<compile_context>
chip_gen: v6e
topology: v6e:2x2x1
jax: 0.10.0
libtpu: 0.0.40
codegen_flags: <defaults>
</compile_context>

<pallas_src>
import math
from functools import partial

import jax
import jax.numpy as jnp
from jax.experimental import pallas as pl
from jax.experimental.pallas import tpu as pltpu


# ----------------------------- in-kernel helpers -----------------------------

def _zero_halo(p_ref, H, W):
    """Zero only the 1-px halo of a padded scratch (bb, H+2, W+2, C).

    The interior (rows [1,H], cols [1,W]) is fully overwritten by the subsequent store
    every grid step, so zero-filling it would be pure wasted vst work."""
    bb = p_ref.shape[0]
    Wp = p_ref.shape[2]
    C = p_ref.shape[3]
    zrow = jnp.zeros((bb, 1, Wp, C), p_ref.dtype)
    p_ref[:, 0:1, :, :] = zrow                        # top halo row
    p_ref[:, H + 1:H + 2, :, :] = zrow                # bottom halo row
    zcol = jnp.zeros((bb, H, 1, C), p_ref.dtype)
    p_ref[:, 1:1 + H, 0:1, :] = zcol                  # left halo column
    p_ref[:, 1:1 + H, W + 1:W + 2, :] = zcol          # right halo column


def _conv3x3_relu(xp_ref, w_ref, b_ref, H, W):
    """3x3 same-conv + bias + ReLU over a batch block.

    Structure (per perf review): one cheap kw lane-concat (3*Cin lanes) and THREE
    accumulating K=3*Cin MXU matmuls; kh shifts are free slices along the untiled H axis,
    so the large 9*Cin lane-concatenate (which crossed 128-lane vregs) is gone.

    xp_ref: (bb, H+2, W+2, Cin) bf16 scratch; interior at rows [1,H], cols [1,W];
            halo (row 0 / H+1, col 0 / W+1) zeroed.
    w_ref : (3, 3*Cin, Cout) bf16 taps, layout [kh][(kw, cin)][cout].
    b_ref : (1, Cout) f32.
    returns (bb, H, W, Cout) f32 post-ReLU activation (as a value).
    """
    bb = xp_ref.shape[0]
    Cin = xp_ref.shape[-1]
    Cout = w_ref.shape[-1]
    # kw-shifted column windows (sublane shifts on 1x data), lane-concatenated once.
    slabs = [xp_ref[:, :, kw:kw + W, :] for kw in range(3)]
    slab_cat = jnp.concatenate(slabs, axis=-1)                  # (bb, H+2, W, 3*Cin) bf16
    acc = None
    for kh in range(3):                                          # static unroll
        lhs = slab_cat[:, kh:kh + H, :, :].reshape(bb * H * W, 3 * Cin)
        part = jnp.dot(lhs, w_ref[kh], preferred_element_type=jnp.float32)
        acc = part if acc is None else acc + part
    acc = jnp.maximum(acc + b_ref[...], 0.0)                     # f32 bias + ReLU epilogue
    return acc.reshape(bb, H, W, Cout)


def _maxpool2(t_ref):
    """2x2 / stride-2 max pool from an f32 VMEM scratch: (bb, H, W, C) -> (bb, H/2, W/2, C)."""
    bb, H, W, C = t_ref.shape
    Ho, Wo = H // 2, W // 2
    even = t_ref[:, :, pl.ds(0, Wo, 2), :]          # proven strided-sublane load pattern
    odd = t_ref[:, :, pl.ds(1, Wo, 2), :]
    m = jnp.maximum(even, odd)                      # (bb, H, Wo, C): pooled along W
    m = m.reshape(bb * Ho, 2, Wo, C)                # split untiled H into adjacent pairs
    return jnp.max(m, axis=1).reshape(bb, Ho, Wo, C)


# ----------------------------- fused kernel -----------------------------

def _fused_convnet_kernel(
        x_ref,
        w1a_ref, b1a_ref, w1b_ref, b1b_ref,
        w2a_ref, b2a_ref, w2b_ref, b2b_ref,
        wfc1_ref, bfc1_ref, wfc2_ref, bfc2_ref,
        o_ref,
        p0, p1, t1, p2, p3, t2):
    bb, H1, W1, _ = x_ref.shape
    H2, W2 = H1 // 2, W1 // 2

    # conv block 1: Conv3x3(4->32)+ReLU, Conv3x3(32->32)+ReLU, MaxPool2
    _zero_halo(p0, H1, W1)
    p0[:, 1:1 + H1, 1:1 + W1, :] = x_ref[...]                                # input is bf16 already
    _zero_halo(p1, H1, W1)
    p1[:, 1:1 + H1, 1:1 + W1, :] = _conv3x3_relu(p0, w1a_ref, b1a_ref, H1, W1).astype(jnp.bfloat16)
    t1[...] = _conv3x3_relu(p1, w1b_ref, b1b_ref, H1, W1)                    # f32 pre-pool
    pooled1 = _maxpool2(t1)                                                  # (bb, H2, W2, 32) f32

    # conv block 2: Conv3x3(32->64)+ReLU, Conv3x3(64->64)+ReLU, MaxPool2
    _zero_halo(p2, H2, W2)
    p2[:, 1:1 + H2, 1:1 + W2, :] = pooled1.astype(jnp.bfloat16)              # cast 4x-smaller pooled data
    _zero_halo(p3, H2, W2)
    p3[:, 1:1 + H2, 1:1 + W2, :] = _conv3x3_relu(p2, w2a_ref, b2a_ref, H2, W2).astype(jnp.bfloat16)
    t2[...] = _conv3x3_relu(p3, w2b_ref, b2b_ref, H2, W2)                    # f32 pre-pool
    pooled2 = _maxpool2(t2)                                                  # (bb, H1//4, W1//4, 64) f32

    # head: AvgPool2d(3) (stride-3 floor => only the top-left 3x3 window) -> Flatten
    #       -> Linear(64,128) -> ReLU -> Linear(128,4)
    s = pooled2[:, 0] + pooled2[:, 1] + pooled2[:, 2]                        # (bb, W1//4, 64)
    s = s[:, 0] + s[:, 1] + s[:, 2]                                          # (bb, 64)
    avg = s * (1.0 / 9.0)
    h = jnp.dot(avg.astype(jnp.bfloat16), wfc1_ref[...],
                preferred_element_type=jnp.float32) + bfc1_ref[...]
    h = jnp.maximum(h, 0.0)
    o_ref[...] = jnp.dot(h.astype(jnp.bfloat16), wfc2_ref[...],
                         preferred_element_type=jnp.float32) + bfc2_ref[...]


# ----------------------------- wrapper -----------------------------

def _pick_batch_block(batch):
    """Images per grid step.  Default caps at 16 (comfortably inside every generation's
    VMEM, including v7x's 64 MiB, after 128-lane padding of the narrow channel dims);
    pass batch_block=32 to convnet_forward to sweep.  Always yields >=2 grid steps for
    batch>=2 so v7x's second TensorCore gets work on the 'parallel' axis."""
    if batch >= 32:
        return 16
    if batch >= 2:
        return min(16, (batch + 1) // 2)
    return 1


@partial(jax.jit, static_argnames=("batch_block",))
def convnet_forward(x_nchw, kparams, batch_block=None):
    """ConvNet forward. x_nchw: (B, 4, H, W) f32 (PyTorch layout); kparams from prepare_kernel_params()."""
    B, Cin, H, W = x_nchw.shape
    if H % 4 or W % 4 or not (3 <= H // 4 <= 5) or not (3 <= W // 4 <= 5):
        # AvgPool2d(3) -> Flatten -> Linear(64, ...) pins the post-conv map to 3..5 px/side.
        raise ValueError(f"unsupported spatial size {(H, W)}; the head requires e.g. 16x16 inputs")

    # NCHW -> NHWC (channels on lanes); the one-and-only bf16 cast of the input fuses into
    # this XLA transpose and halves the per-step input DMA bytes.
    x = jnp.transpose(x_nchw, (0, 2, 3, 1)).astype(jnp.bfloat16)
    bb = batch_block if batch_block is not None else _pick_batch_block(B)
    nb = (B + bb - 1) // bb
    if nb * bb != B:                                              # pad batch to whole blocks
        x = jnp.pad(x, ((0, nb * bb - B), (0, 0), (0, 0), (0, 0)))

    H2, W2 = H // 2, W // 2
    weights = [kparams[k] for k in ("w1a", "b1a", "w1b", "b1b", "w2a", "b2a",
                                    "w2b", "b2b", "wfc1", "bfc1", "wfc2", "bfc2")]

    out = pl.pallas_call(
        _fused_convnet_kernel,
        out_shape=jax.ShapeDtypeStruct((nb, bb, 4), jnp.float32),
        grid=(nb,),
        in_specs=[pl.BlockSpec((bb, H, W, Cin), lambda i: (i, 0, 0, 0))]
                 + [pl.BlockSpec(w.shape, (lambda i, n=w.ndim: (0,) * n)) for w in weights],
        out_specs=pl.BlockSpec((None, bb, 4), lambda i: (i, 0, 0)),
        scratch_shapes=[
            pltpu.VMEM((bb, H + 2, W + 2, Cin), jnp.bfloat16),    # p0: padded input
            pltpu.VMEM((bb, H + 2, W + 2, 32), jnp.bfloat16),     # p1: padded act (conv1a)
            pltpu.VMEM((bb, H, W, 32), jnp.float32),              # t1: pre-pool act (conv1b)
            pltpu.VMEM((bb, H2 + 2, W2 + 2, 32), jnp.bfloat16),   # p2: padded pooled1
            pltpu.VMEM((bb, H2 + 2, W2 + 2, 64), jnp.bfloat16),   # p3: padded act (conv2a)
            pltpu.VMEM((bb, H2, W2, 64), jnp.float32),            # t2: pre-pool act (conv2b)
        ],
        compiler_params=pltpu.CompilerParams(
            dimension_semantics=("parallel",),
            vmem_limit_bytes=48 * 1024 * 1024),                   # above v5e's 16 MiB scoped default
    )(x, *weights)
    return out.reshape(nb * bb, 4)[:B]


# ----------------------------- params -----------------------------

def init_params(key):
    """Deterministic init mimicking PyTorch's default uniform(-1/sqrt(fan_in), +), PyTorch layouts."""
    def conv_p(k, cout, cin):
        k1, k2 = jax.random.split(k)
        bound = 1.0 / math.sqrt(cin * 9)
        return (jax.random.uniform(k1, (cout, cin, 3, 3), jnp.float32, -bound, bound),
                jax.random.uniform(k2, (cout,), jnp.float32, -bound, bound))

    def fc_p(k, cout, cin):
        k1, k2 = jax.random.split(k)
        bound = 1.0 / math.sqrt(cin)
        return (jax.random.uniform(k1, (cout, cin), jnp.float32, -bound, bound),
                jax.random.uniform(k2, (cout,), jnp.float32, -bound, bound))

    ks = jax.random.split(key, 6)
    p = {}
    p["w1a"], p["b1a"] = conv_p(ks[0], 32, 4)
    p["w1b"], p["b1b"] = conv_p(ks[1], 32, 32)
    p["w2a"], p["b2a"] = conv_p(ks[2], 64, 32)
    p["w2b"], p["b2b"] = conv_p(ks[3], 64, 64)
    p["wfc1"], p["bfc1"] = fc_p(ks[4], 128, 64)
    p["wfc2"], p["bfc2"] = fc_p(ks[5], 4, 128)
    return p


def prepare_kernel_params(params):
    """One-time re-layout (hoisted out of the forward path): conv OIHW -> (3, 3*Cin, Cout)
    bf16 taps with layout [kh][(kw, cin)][cout] (matches the in-kernel kw lane-concat and
    the static kh index of the 3 accumulating matmuls); FC (out,in) -> (in,out) bf16;
    biases -> (1, C) f32."""
    def conv_taps(w):
        cout, cin = w.shape[0], w.shape[1]
        return jnp.transpose(w, (2, 3, 1, 0)).reshape(3, 3 * cin, cout).astype(jnp.bfloat16)

    def fc_w(w):
        return jnp.transpose(w).astype(jnp.bfloat16)

    def bias(b):
        return b.reshape(1, -1).astype(jnp.float32)

    return {
        "w1a": conv_taps(params["w1a"]), "b1a": bias(params["b1a"]),
        "w1b": conv_taps(params["w1b"]), "b1b": bias(params["b1b"]),
        "w2a": conv_taps(params["w2a"]), "b2a": bias(params["b2a"]),
        "w2b": conv_taps(params["w2b"]), "b2b": bias(params["b2b"]),
        "wfc1": fc_w(params["wfc1"]), "bfc1": bias(params["bfc1"]),
        "wfc2": fc_w(params["wfc2"]), "bfc2": bias(params["bfc2"]),
    }


# ----------------------------- pure-JAX reference -----------------------------

def reference_forward(x_nchw, p, matmul_dtype=jnp.float32):
    """Pure-JAX reference matching the PyTorch forward (NCHW).  With
    matmul_dtype=bfloat16 it mimics the kernel's bf16-input / f32-accumulate matmuls
    so the Pallas implementation can be checked at a tight tolerance."""
    md = matmul_dtype

    def conv(x, w, b):
        y = jax.lax.conv_general_dilated(
            x.astype(md), w.astype(md), window_strides=(1, 1), padding=((1, 1), (1, 1)),
            dimension_numbers=("NCHW", "OIHW", "NCHW"),
            preferred_element_type=jnp.float32)
        return jax.nn.relu(y + b[None, :, None, None])

    def pool(x):
        B, C, H, W = x.shape
        return x.reshape(B, C, H // 2, 2, W // 2, 2).max(axis=(3, 5))

    h = conv(x_nchw, p["w1a"], p["b1a"])
    h = conv(h, p["w1b"], p["b1b"])
    h = pool(h)
    h = conv(h, p["w2a"], p["b2a"])
    h = conv(h, p["w2b"], p["b2b"])
    h = pool(h)
    avg = jnp.mean(h[:, :, :3, :3], axis=(2, 3))                # AvgPool2d(3) -> (B, 64)
    z = jax.nn.relu(jnp.dot(avg.astype(md), p["wfc1"].T.astype(md),
                            preferred_element_type=jnp.float32) + p["bfc1"])
    return jnp.dot(z.astype(md), p["wfc2"].T.astype(md),
                   preferred_element_type=jnp.float32) + p["bfc2"]


# ----------------------------- main -----------------------------

if __name__ == "__main__":
    key = jax.random.PRNGKey(0)
    kx, kparam = jax.random.split(key)
    # PyTorch NCHW input: 16x16 spatial so the head sees 4x4 -> AvgPool2d(3) -> 1x1.
    x = jax.random.normal(kx, (2, 4, 16, 16), jnp.float32)
    params = init_params(kparam)
    kparams = prepare_kernel_params(params)          # one-time layout / bf16 prep (not per-forward)

    out = jax.block_until_ready(convnet_forward(x, kparams))
    assert out.shape == (2, 4)

    ref16 = reference_forward(x, params, matmul_dtype=jnp.bfloat16)  # numerics-matched reference
    ref32 = reference_forward(x, params)                             # semantic (f32) reference

    err16 = float(jnp.max(jnp.abs(out - ref16)))
    err32 = float(jnp.max(jnp.abs(out - ref32)))
    if not jnp.allclose(out, ref16, atol=2e-3, rtol=2e-3):
        raise AssertionError(f"kernel vs bf16-matched reference mismatch, max|diff|={err16}")
    if not jnp.allclose(out, ref32, atol=5e-2, rtol=5e-2):
        raise AssertionError(f"kernel vs f32 reference mismatch, max|diff|={err32}")

    print("KERNEL_OK")
</pallas_src>

<mosaic_0001>
module attributes {stable_mosaic.version = 11 : i64} {
  func.func @_fused_convnet_kernel(%arg0: i32, %arg1: memref<1x16x16x4xbf16, #tpu.memory_space<vmem>>, %arg2: memref<3x12x32xbf16, #tpu.memory_space<vmem>>, %arg3: memref<1x32xf32, #tpu.memory_space<vmem>>, %arg4: memref<3x96x32xbf16, #tpu.memory_space<vmem>>, %arg5: memref<1x32xf32, #tpu.memory_space<vmem>>, %arg6: memref<3x96x64xbf16, #tpu.memory_space<vmem>>, %arg7: memref<1x64xf32, #tpu.memory_space<vmem>>, %arg8: memref<3x192x64xbf16, #tpu.memory_space<vmem>>, %arg9: memref<1x64xf32, #tpu.memory_space<vmem>>, %arg10: memref<64x128xbf16, #tpu.memory_space<vmem>>, %arg11: memref<1x128xf32, #tpu.memory_space<vmem>>, %arg12: memref<128x4xbf16, #tpu.memory_space<vmem>>, %arg13: memref<1x4xf32, #tpu.memory_space<vmem>>, %arg14: memref<1x1x4xf32, #tpu.memory_space<vmem>>, %arg15: memref<1x18x18x4xbf16, #tpu.memory_space<vmem>>, %arg16: memref<1x18x18x32xbf16, #tpu.memory_space<vmem>>, %arg17: memref<1x16x16x32xf32, #tpu.memory_space<vmem>>, %arg18: memref<1x10x10x32xbf16, #tpu.memory_space<vmem>>, %arg19: memref<1x10x10x64xbf16, #tpu.memory_space<vmem>>, %arg20: memref<1x8x8x64xf32, #tpu.memory_space<vmem>>) attributes {dimension_semantics = [#tpu.dimension_semantics<parallel>], iteration_bounds = array<i64: 2>, scalar_prefetch = 0 : i64, scratch_operands = 6 : i64, tpu.core_type = #tpu.core_type<tc>, window_params = [{transform_indices = @transform_0, window_bounds = array<i64: 1, 16, 16, 4>}, {pipeline_mode = #tpu.pipeline_mode<synchronous>, transform_indices = @transform_1, window_bounds = array<i64: 3, 12, 32>}, {pipeline_mode = #tpu.pipeline_mode<synchronous>, transform_indices = @transform_2, window_bounds = array<i64: 1, 32>}, {pipeline_mode = #tpu.pipeline_mode<synchronous>, transform_indices = @transform_3, window_bounds = array<i64: 3, 96, 32>}, {pipeline_mode = #tpu.pipeline_mode<synchronous>, transform_indices = @transform_4, window_bounds = array<i64: 1, 32>}, {pipeline_mode = #tpu.pipeline_mode<synchronous>, transform_indices = @transform_5, window_bounds = array<i64: 3, 96, 64>}, {pipeline_mode = #tpu.pipeline_mode<synchronous>, transform_indices = @transform_6, window_bounds = array<i64: 1, 64>}, {pipeline_mode = #tpu.pipeline_mode<synchronous>, transform_indices = @transform_7, window_bounds = array<i64: 3, 192, 64>}, {pipeline_mode = #tpu.pipeline_mode<synchronous>, transform_indices = @transform_8, window_bounds = array<i64: 1, 64>}, {pipeline_mode = #tpu.pipeline_mode<synchronous>, transform_indices = @transform_9, window_bounds = array<i64: 64, 128>}, {pipeline_mode = #tpu.pipeline_mode<synchronous>, transform_indices = @transform_10, window_bounds = array<i64: 1, 128>}, {pipeline_mode = #tpu.pipeline_mode<synchronous>, transform_indices = @transform_11, window_bounds = array<i64: 128, 4>}, {pipeline_mode = #tpu.pipeline_mode<synchronous>, transform_indices = @transform_12, window_bounds = array<i64: 1, 4>}, {transform_indices = @transform_13, window_bounds = array<i64: 1, 1, 4>}]} {
    %cst = arith.constant 0.000000e+00 : bf16
    %0 = vector.broadcast %cst : bf16 to vector<1x1x18x4xbf16>
    %c0 = arith.constant 0 : index
    %c0_0 = arith.constant 0 : index
    %c0_1 = arith.constant 0 : index
    %c0_2 = arith.constant 0 : index
    %1 = vector.load %arg15[%c0, %c0_0, %c0_1, %c0_2] : memref<1x18x18x4xbf16, #tpu.memory_space<vmem>>, vector<1x1x18x4xbf16>
    tpu.vector_store %arg15[%c0, %c0_0, %c0_1, %c0_2], %0 {strides = array<i32>} : memref<1x18x18x4xbf16, #tpu.memory_space<vmem>>, vector<1x1x18x4xbf16>,
    %c0_3 = arith.constant 0 : index
    %c17 = arith.constant 17 : index
    %c0_4 = arith.constant 0 : index
    %c0_5 = arith.constant 0 : index
    %2 = vector.load %arg15[%c0_3, %c17, %c0_4, %c0_5] : memref<1x18x18x4xbf16, #tpu.memory_space<vmem>>, vector<1x1x18x4xbf16>
    tpu.vector_store %arg15[%c0_3, %c17, %c0_4, %c0_5], %0 {strides = array<i32>} : memref<1x18x18x4xbf16, #tpu.memory_space<vmem>>, vector<1x1x18x4xbf16>,
    %cst_6 = arith.constant 0.000000e+00 : bf16
    %3 = vector.broadcast %cst_6 : bf16 to vector<1x16x1x4xbf16>
    %c0_7 = arith.constant 0 : index
    %c1 = arith.constant 1 : index
    %c0_8 = arith.constant 0 : index
    %c0_9 = arith.constant 0 : index
    %4 = vector.load %arg15[%c0_7, %c1, %c0_8, %c0_9] : memref<1x18x18x4xbf16, #tpu.memory_space<vmem>>, vector<1x16x1x4xbf16>
    tpu.vector_store %arg15[%c0_7, %c1, %c0_8, %c0_9], %3 {strides = array<i32>} : memref<1x18x18x4xbf16, #tpu.memory_space<vmem>>, vector<1x16x1x4xbf16>,
    %c0_10 = arith.constant 0 : index
    %c1_11 = arith.constant 1 : index
    %c17_12 = arith.constant 17 : index
    %c0_13 = arith.constant 0 : index
    %5 = vector.load %arg15[%c0_10, %c1_11, %c17_12, %c0_13] : memref<1x18x18x4xbf16, #tpu.memory_space<vmem>>, vector<1x16x1x4xbf16>
    tpu.vector_store %arg15[%c0_10, %c1_11, %c17_12, %c0_13], %3 {strides = array<i32>} : memref<1x18x18x4xbf16, #tpu.memory_space<vmem>>, vector<1x16x1x4xbf16>,
    %c0_14 = arith.constant 0 : index
    %c0_15 = arith.constant 0 : index
    %c0_16 = arith.constant 0 : index
    %c0_17 = arith.constant 0 : index
    %6 = vector.load %arg1[%c0_14, %c0_15, %c0_16, %c0_17] : memref<1x16x16x4xbf16, #tpu.memory_space<vmem>>, vector<1x16x16x4xbf16>
    %c0_18 = arith.constant 0 : index
    %c1_19 = arith.constant 1 : index
    %c1_20 = arith.constant 1 : index
    %c0_21 = arith.constant 0 : index
    %7 = vector.load %arg15[%c0_18, %c1_19, %c1_20, %c0_21] : memref<1x18x18x4xbf16, #tpu.memory_space<vmem>>, vector<1x16x16x4xbf16>
    tpu.vector_store %arg15[%c0_18, %c1_19, %c1_20, %c0_21], %6 {strides = array<i32>} : memref<1x18x18x4xbf16, #tpu.memory_space<vmem>>, vector<1x16x16x4xbf16>,
    %cst_22 = arith.constant 0.000000e+00 : bf16
    %8 = vector.broadcast %cst_22 : bf16 to vector<1x1x18x32xbf16>
    %c0_23 = arith.constant 0 : index
    %c0_24 = arith.constant 0 : index
    %c0_25 = arith.constant 0 : index
    %c0_26 = arith.constant 0 : index
    %9 = vector.load %arg16[%c0_23, %c0_24, %c0_25, %c0_26] : memref<1x18x18x32xbf16, #tpu.memory_space<vmem>>, vector<1x1x18x32xbf16>
    tpu.vector_store %arg16[%c0_23, %c0_24, %c0_25, %c0_26], %8 {strides = array<i32>} : memref<1x18x18x32xbf16, #tpu.memory_space<vmem>>, vector<1x1x18x32xbf16>,
    %c0_27 = arith.constant 0 : index
    %c17_28 = arith.constant 17 : index
    %c0_29 = arith.constant 0 : index
    %c0_30 = arith.constant 0 : index
    %10 = vector.load %arg16[%c0_27, %c17_28, %c0_29, %c0_30] : memref<1x18x18x32xbf16, #tpu.memory_space<vmem>>, vector<1x1x18x32xbf16>
    tpu.vector_store %arg16[%c0_27, %c17_28, %c0_29, %c0_30], %8 {strides = array<i32>} : memref<1x18x18x32xbf16, #tpu.memory_space<vmem>>, vector<1x1x18x32xbf16>,
    %cst_31 = arith.constant 0.000000e+00 : bf16
    %11 = vector.broadcast %cst_31 : bf16 to vector<1x16x1x32xbf16>
    %c0_32 = arith.constant 0 : index
    %c1_33 = arith.constant 1 : index
    %c0_34 = arith.constant 0 : index
    %c0_35 = arith.constant 0 : index
    %12 = vector.load %arg16[%c0_32, %c1_33, %c0_34, %c0_35] : memref<1x18x18x32xbf16, #tpu.memory_space<vmem>>, vector<1x16x1x32xbf16>
    tpu.vector_store %arg16[%c0_32, %c1_33, %c0_34, %c0_35], %11 {strides = array<i32>} : memref<1x18x18x32xbf16, #tpu.memory_space<vmem>>, vector<1x16x1x32xbf16>,
    %c0_36 = arith.constant 0 : index
    %c1_37 = arith.constant 1 : index
    %c17_38 = arith.constant 17 : index
    %c0_39 = arith.constant 0 : index
    %13 = vector.load %arg16[%c0_36, %c1_37, %c17_38, %c0_39] : memref<1x18x18x32xbf16, #tpu.memory_space<vmem>>, vector<1x16x1x32xbf16>
    tpu.vector_store %arg16[%c0_36, %c1_37, %c17_38, %c0_39], %11 {strides = array<i32>} : memref<1x18x18x32xbf16, #tpu.memory_space<vmem>>, vector<1x16x1x32xbf16>,
    %c0_40 = arith.constant 0 : index
    %c0_41 = arith.constant 0 : index
    %c0_42 = arith.constant 0 : index
    %c0_43 = arith.constant 0 : index
    %14 = vector.load %arg15[%c0_40, %c0_41, %c0_42, %c0_43] : memref<1x18x18x4xbf16, #tpu.memory_space<vmem>>, vector<1x18x16x4xbf16>
    %c0_44 = arith.constant 0 : index
    %c0_45 = arith.constant 0 : index
    %c1_46 = arith.constant 1 : index
    %c0_47 = arith.constant 0 : index
    %15 = vector.load %arg15[%c0_44, %c0_45, %c1_46, %c0_47] : memref<1x18x18x4xbf16, #tpu.memory_space<vmem>>, vector<1x18x16x4xbf16>
    %c0_48 = arith.constant 0 : index
    %c0_49 = arith.constant 0 : index
    %c2 = arith.constant 2 : index
    %c0_50 = arith.constant 0 : index
    %16 = vector.load %arg15[%c0_48, %c0_49, %c2, %c0_50] : memref<1x18x18x4xbf16, #tpu.memory_space<vmem>>, vector<1x18x16x4xbf16>
    %17 = tpu.concatenate %14, %15, %16 in 3 : vector<1x18x16x4xbf16>, vector<1x18x16x4xbf16>, vector<1x18x16x4xbf16> -> vector<1x18x16x12xbf16>
    %18 = vector.extract_strided_slice %17 {offsets = [0, 0, 0, 0], sizes = [1, 16, 16, 12], strides = [1, 1, 1, 1]} : vector<1x18x16x12xbf16> to vector<1x16x16x12xbf16>
    %19 = vector.shape_cast %18 : vector<1x16x16x12xbf16> to vector<256x12xbf16>
    %c0_51 = arith.constant 0 : index
    %c0_52 = arith.constant 0 : index
    %c0_53 = arith.constant 0 : index
    %20 = vector.load %arg2[%c0_51, %c0_52, %c0_53] : memref<3x12x32xbf16, #tpu.memory_space<vmem>>, vector<1x12x32xbf16>
    %21 = vector.shape_cast %20 : vector<1x12x32xbf16> to vector<12x32xbf16>
    %cst_54 = arith.constant dense<0.000000e+00> : vector<256x32xf32>
    %22 = tpu.matmul %19, %21, %cst_54 {dimension_numbers = #tpu.dot_dimension_numbers<[1], [0], [0], [1], [0, 0, 1, 1], [], []>} : vector<256x12xbf16>, vector<12x32xbf16>, vector<256x32xf32> -> vector<256x32xf32>
    %23 = vector.extract_strided_slice %17 {offsets = [0, 1, 0, 0], sizes = [1, 16, 16, 12], strides = [1, 1, 1, 1]} : vector<1x18x16x12xbf16> to vector<1x16x16x12xbf16>
    %24 = vector.shape_cast %23 : vector<1x16x16x12xbf16> to vector<256x12xbf16>
    %c1_55 = arith.constant 1 : index
    %c0_56 = arith.constant 0 : index
    %c0_57 = arith.constant 0 : index
    %25 = vector.load %arg2[%c1_55, %c0_56, %c0_57] : memref<3x12x32xbf16, #tpu.memory_space<vmem>>, vector<1x12x32xbf16>
    %26 = vector.shape_cast %25 : vector<1x12x32xbf16> to vector<12x32xbf16>
    %cst_58 = arith.constant dense<0.000000e+00> : vector<256x32xf32>
    %27 = tpu.matmul %24, %26, %cst_58 {dimension_numbers = #tpu.dot_dimension_numbers<[1], [0], [0], [1], [0, 0, 1, 1], [], []>} : vector<256x12xbf16>, vector<12x32xbf16>, vector<256x32xf32> -> vector<256x32xf32>
    %28 = arith.addf %22, %27 : vector<256x32xf32>
    %29 = vector.extract_strided_slice %17 {offsets = [0, 2, 0, 0], sizes = [1, 16, 16, 12], strides = [1, 1, 1, 1]} : vector<1x18x16x12xbf16> to vector<1x16x16x12xbf16>
    %30 = vector.shape_cast %29 : vector<1x16x16x12xbf16> to vector<256x12xbf16>
    %c2_59 = arith.constant 2 : index
    %c0_60 = arith.constant 0 : index
    %c0_61 = arith.constant 0 : index
    %31 = vector.load %arg2[%c2_59, %c0_60, %c0_61] : memref<3x12x32xbf16, #tpu.memory_space<vmem>>, vector<1x12x32xbf16>
    %32 = vector.shape_cast %31 : vector<1x12x32xbf16> to vector<12x32xbf16>
    %cst_62 = arith.constant dense<0.000000e+00> : vector<256x32xf32>
    %33 = tpu.matmul %30, %32, %cst_62 {dimension_numbers = #tpu.dot_dimension_numbers<[1], [0], [0], [1], [0, 0, 1, 1], [], []>} : vector<256x12xbf16>, vector<12x32xbf16>, vector<256x32xf32> -> vector<256x32xf32>
    %34 = arith.addf %28, %33 : vector<256x32xf32>
    %c0_63 = arith.constant 0 : index
    %c0_64 = arith.constant 0 : index
    %35 = vector.load %arg3[%c0_63, %c0_64] : memref<1x32xf32, #tpu.memory_space<vmem>>, vector<1x32xf32>
    %36 = vector.broadcast %35 : vector<1x32xf32> to vector<256x32xf32>
    %37 = arith.addf %34, %36 : vector<256x32xf32>
    %cst_65 = arith.constant 0.000000e+00 : f32
    %38 = vector.broadcast %cst_65 : f32 to vector<256x32xf32>
    %39 = arith.maximumf %37, %38 : vector<256x32xf32>
    %40 = vector.shape_cast %39 : vector<256x32xf32> to vector<1x16x16x32xf32>
    %41 = arith.truncf %40 : vector<1x16x16x32xf32> to vector<1x16x16x32xbf16>
    %c0_66 = arith.constant 0 : index
    %c1_67 = arith.constant 1 : index
    %c1_68 = arith.constant 1 : index
    %c0_69 = arith.constant 0 : index
    %42 = vector.load %arg16[%c0_66, %c1_67, %c1_68, %c0_69] : memref<1x18x18x32xbf16, #tpu.memory_space<vmem>>, vector<1x16x16x32xbf16>
    tpu.vector_store %arg16[%c0_66, %c1_67, %c1_68, %c0_69], %41 {strides = array<i32>} : memref<1x18x18x32xbf16, #tpu.memory_space<vmem>>, vector<1x16x16x32xbf16>,
    %c0_70 = arith.constant 0 : index
    %c0_71 = arith.constant 0 : index
    %c0_72 = arith.constant 0 : index
    %c0_73 = arith.constant 0 : index
    %43 = vector.load %arg16[%c0_70, %c0_71, %c0_72, %c0_73] : memref<1x18x18x32xbf16, #tpu.memory_space<vmem>>, vector<1x18x16x32xbf16>
    %c0_74 = arith.constant 0 : index
    %c0_75 = arith.constant 0 : index
    %c1_76 = arith.constant 1 : index
    %c0_77 = arith.constant 0 : index
    %44 = vector.load %arg16[%c0_74, %c0_75, %c1_76, %c0_77] : memref<1x18x18x32xbf16, #tpu.memory_space<vmem>>, vector<1x18x16x32xbf16>
    %c0_78 = arith.constant 0 : index
    %c0_79 = arith.constant 0 : index
    %c2_80 = arith.constant 2 : index
    %c0_81 = arith.constant 0 : index
    %45 = vector.load %arg16[%c0_78, %c0_79, %c2_80, %c0_81] : memref<1x18x18x32xbf16, #tpu.memory_space<vmem>>, vector<1x18x16x32xbf16>
    %46 = tpu.concatenate %43, %44, %45 in 3 : vector<1x18x16x32xbf16>, vector<1x18x16x32xbf16>, vector<1x18x16x32xbf16> -> vector<1x18x16x96xbf16>
    %47 = vector.extract_strided_slice %46 {offsets = [0, 0, 0, 0], sizes = [1, 16, 16, 96], strides = [1, 1, 1, 1]} : vector<1x18x16x96xbf16> to vector<1x16x16x96xbf16>
    %48 = vector.shape_cast %47 : vector<1x16x16x96xbf16> to vector<256x96xbf16>
    %c0_82 = arith.constant 0 : index
    %c0_83 = arith.constant 0 : index
    %c0_84 = arith.constant 0 : index
    %49 = vector.load %arg4[%c0_82, %c0_83, %c0_84] : memref<3x96x32xbf16, #tpu.memory_space<vmem>>, vector<1x96x32xbf16>
    %50 = vector.shape_cast %49 : vector<1x96x32xbf16> to vector<96x32xbf16>
    %cst_85 = arith.constant dense<0.000000e+00> : vector<256x32xf32>
    %51 = tpu.matmul %48, %50, %cst_85 {dimension_numbers = #tpu.dot_dimension_numbers<[1], [0], [0], [1], [0, 0, 1, 1], [], []>} : vector<256x96xbf16>, vector<96x32xbf16>, vector<256x32xf32> -> vector<256x32xf32>
    %52 = vector.extract_strided_slice %46 {offsets = [0, 1, 0, 0], sizes = [1, 16, 16, 96], strides = [1, 1, 1, 1]} : vector<1x18x16x96xbf16> to vector<1x16x16x96xbf16>
    %53 = vector.shape_cast %52 : vector<1x16x16x96xbf16> to vector<256x96xbf16>
    %c1_86 = arith.constant 1 : index
    %c0_87 = arith.constant 0 : index
    %c0_88 = arith.constant 0 : index
    %54 = vector.load %arg4[%c1_86, %c0_87, %c0_88] : memref<3x96x32xbf16, #tpu.memory_space<vmem>>, vector<1x96x32xbf16>
    %55 = vector.shape_cast %54 : vector<1x96x32xbf16> to vector<96x32xbf16>
    %cst_89 = arith.constant dense<0.000000e+00> : vector<256x32xf32>
    %56 = tpu.matmul %53, %55, %cst_89 {dimension_numbers = #tpu.dot_dimension_numbers<[1], [0], [0], [1], [0, 0, 1, 1], [], []>} : vector<256x96xbf16>, vector<96x32xbf16>, vector<256x32xf32> -> vector<256x32xf32>
    %57 = arith.addf %51, %56 : vector<256x32xf32>
    %58 = vector.extract_strided_slice %46 {offsets = [0, 2, 0, 0], sizes = [1, 16, 16, 96], strides = [1, 1, 1, 1]} : vector<1x18x16x96xbf16> to vector<1x16x16x96xbf16>
    %59 = vector.shape_cast %58 : vector<1x16x16x96xbf16> to vector<256x96xbf16>
    %c2_90 = arith.constant 2 : index
    %c0_91 = arith.constant 0 : index
    %c0_92 = arith.constant 0 : index
    %60 = vector.load %arg4[%c2_90, %c0_91, %c0_92] : memref<3x96x32xbf16, #tpu.memory_space<vmem>>, vector<1x96x32xbf16>
    %61 = vector.shape_cast %60 : vector<1x96x32xbf16> to vector<96x32xbf16>
    %cst_93 = arith.constant dense<0.000000e+00> : vector<256x32xf32>
    %62 = tpu.matmul %59, %61, %cst_93 {dimension_numbers = #tpu.dot_dimension_numbers<[1], [0], [0], [1], [0, 0, 1, 1], [], []>} : vector<256x96xbf16>, vector<96x32xbf16>, vector<256x32xf32> -> vector<256x32xf32>
    %63 = arith.addf %57, %62 : vector<256x32xf32>
    %c0_94 = arith.constant 0 : index
    %c0_95 = arith.constant 0 : index
    %64 = vector.load %arg5[%c0_94, %c0_95] : memref<1x32xf32, #tpu.memory_space<vmem>>, vector<1x32xf32>
    %65 = vector.broadcast %64 : vector<1x32xf32> to vector<256x32xf32>
    %66 = arith.addf %63, %65 : vector<256x32xf32>
    %cst_96 = arith.constant 0.000000e+00 : f32
    %67 = vector.broadcast %cst_96 : f32 to vector<256x32xf32>
    %68 = arith.maximumf %66, %67 : vector<256x32xf32>
    %69 = vector.shape_cast %68 : vector<256x32xf32> to vector<1x16x16x32xf32>
    %c0_97 = arith.constant 0 : index
    %c0_98 = arith.constant 0 : index
    %c0_99 = arith.constant 0 : index
    %c0_100 = arith.constant 0 : index
    %70 = vector.load %arg17[%c0_97, %c0_98, %c0_99, %c0_100] : memref<1x16x16x32xf32, #tpu.memory_space<vmem>>, vector<1x16x16x32xf32>
    tpu.vector_store %arg17[%c0_97, %c0_98, %c0_99, %c0_100], %69 {strides = array<i32>} : memref<1x16x16x32xf32, #tpu.memory_space<vmem>>, vector<1x16x16x32xf32>,
    %c0_101 = arith.constant 0 : index
    %c0_102 = arith.constant 0 : index
    %c0_103 = arith.constant 0 : index
    %c0_104 = arith.constant 0 : index
    %71 = tpu.strided_load %arg17[%c0_101, %c0_102, %c0_103, %c0_104] {strides = array<i32: 1, 1, 2, 1>} : memref<1x16x16x32xf32, #tpu.memory_space<vmem>>, vector<1x16x8x32xf32>
    %c0_105 = arith.constant 0 : index
    %c0_106 = arith.constant 0 : index
    %c1_107 = arith.constant 1 : index
    %c0_108 = arith.constant 0 : index
    %72 = tpu.strided_load %arg17[%c0_105, %c0_106, %c1_107, %c0_108] {strides = array<i32: 1, 1, 2, 1>} : memref<1x16x16x32xf32, #tpu.memory_space<vmem>>, vector<1x16x8x32xf32>
    %73 = arith.maximumf %71, %72 : vector<1x16x8x32xf32>
    %74 = vector.shape_cast %73 : vector<1x16x8x32xf32> to vector<8x2x8x32xf32>
    %cst_109 = arith.constant dense<0xFF800000> : vector<8x8x32xf32>
    %75 = vector.multi_reduction <maximumf>, %74, %cst_109 [1] : vector<8x2x8x32xf32> to vector<8x8x32xf32>
    %76 = vector.shape_cast %75 : vector<8x8x32xf32> to vector<1x8x8x32xf32>
    %cst_110 = arith.constant 0.000000e+00 : bf16
    %77 = vector.broadcast %cst_110 : bf16 to vector<1x1x10x32xbf16>
    %c0_111 = arith.constant 0 : index
    %c0_112 = arith.constant 0 : index
    %c0_113 = arith.constant 0 : index
    %c0_114 = arith.constant 0 : index
    %78 = vector.load %arg18[%c0_111, %c0_112, %c0_113, %c0_114] : memref<1x10x10x32xbf16, #tpu.memory_space<vmem>>, vector<1x1x10x32xbf16>
    tpu.vector_store %arg18[%c0_111, %c0_112, %c0_113, %c0_114], %77 {strides = array<i32>} : memref<1x10x10x32xbf16, #tpu.memory_space<vmem>>, vector<1x1x10x32xbf16>,
    %c0_115 = arith.constant 0 : index
    %c9 = arith.constant 9 : index
    %c0_116 = arith.constant 0 : index
    %c0_117 = arith.constant 0 : index
    %79 = vector.load %arg18[%c0_115, %c9, %c0_116, %c0_117] : memref<1x10x10x32xbf16, #tpu.memory_space<vmem>>, vector<1x1x10x32xbf16>
    tpu.vector_store %arg18[%c0_115, %c9, %c0_116, %c0_117], %77 {strides = array<i32>} : memref<1x10x10x32xbf16, #tpu.memory_space<vmem>>, vector<1x1x10x32xbf16>,
    %cst_118 = arith.constant 0.000000e+00 : bf16
    %80 = vector.broadcast %cst_118 : bf16 to vector<1x8x1x32xbf16>
    %c0_119 = arith.constant 0 : index
    %c1_120 = arith.constant 1 : index
    %c0_121 = arith.constant 0 : index
    %c0_122 = arith.constant 0 : index
    %81 = vector.load %arg18[%c0_119, %c1_120, %c0_121, %c0_122] : memref<1x10x10x32xbf16, #tpu.memory_space<vmem>>, vector<1x8x1x32xbf16>
    tpu.vector_store %arg18[%c0_119, %c1_120, %c0_121, %c0_122], %80 {strides = array<i32>} : memref<1x10x10x32xbf16, #tpu.memory_space<vmem>>, vector<1x8x1x32xbf16>,
    %c0_123 = arith.constant 0 : index
    %c1_124 = arith.constant 1 : index
    %c9_125 = arith.constant 9 : index
    %c0_126 = arith.constant 0 : index
    %82 = vector.load %arg18[%c0_123, %c1_124, %c9_125, %c0_126] : memref<1x10x10x32xbf16, #tpu.memory_space<vmem>>, vector<1x8x1x32xbf16>
    tpu.vector_store %arg18[%c0_123, %c1_124, %c9_125, %c0_126], %80 {strides = array<i32>} : memref<1x10x10x32xbf16, #tpu.memory_space<vmem>>, vector<1x8x1x32xbf16>,
    %83 = arith.truncf %76 : vector<1x8x8x32xf32> to vector<1x8x8x32xbf16>
    %c0_127 = arith.constant 0 : index
    %c1_128 = arith.constant 1 : index
    %c1_129 = arith.constant 1 : index
    %c0_130 = arith.constant 0 : index
    %84 = vector.load %arg18[%c0_127, %c1_128, %c1_129, %c0_130] : memref<1x10x10x32xbf16, #tpu.memory_space<vmem>>, vector<1x8x8x32xbf16>
    tpu.vector_store %arg18[%c0_127, %c1_128, %c1_129, %c0_130], %83 {strides = array<i32>} : memref<1x10x10x32xbf16, #tpu.memory_space<vmem>>, vector<1x8x8x32xbf16>,
    %cst_131 = arith.constant 0.000000e+00 : bf16
    %85 = vector.broadcast %cst_131 : bf16 to vector<1x1x10x64xbf16>
    %c0_132 = arith.constant 0 : index
    %c0_133 = arith.constant 0 : index
    %c0_134 = arith.constant 0 : index
    %c0_135 = arith.constant 0 : index
    %86 = vector.load %arg19[%c0_132, %c0_133, %c0_134, %c0_135] : memref<1x10x10x64xbf16, #tpu.memory_space<vmem>>, vector<1x1x10x64xbf16>
    tpu.vector_store %arg19[%c0_132, %c0_133, %c0_134, %c0_135], %85 {strides = array<i32>} : memref<1x10x10x64xbf16, #tpu.memory_space<vmem>>, vector<1x1x10x64xbf16>,
    %c0_136 = arith.constant 0 : index
    %c9_137 = arith.constant 9 : index
    %c0_138 = arith.constant 0 : index
    %c0_139 = arith.constant 0 : index
    %87 = vector.load %arg19[%c0_136, %c9_137, %c0_138, %c0_139] : memref<1x10x10x64xbf16, #tpu.memory_space<vmem>>, vector<1x1x10x64xbf16>
    tpu.vector_store %arg19[%c0_136, %c9_137, %c0_138, %c0_139], %85 {strides = array<i32>} : memref<1x10x10x64xbf16, #tpu.memory_space<vmem>>, vector<1x1x10x64xbf16>,
    %cst_140 = arith.constant 0.000000e+00 : bf16
    %88 = vector.broadcast %cst_140 : bf16 to vector<1x8x1x64xbf16>
    %c0_141 = arith.constant 0 : index
    %c1_142 = arith.constant 1 : index
    %c0_143 = arith.constant 0 : index
    %c0_144 = arith.constant 0 : index
    %89 = vector.load %arg19[%c0_141, %c1_142, %c0_143, %c0_144] : memref<1x10x10x64xbf16, #tpu.memory_space<vmem>>, vector<1x8x1x64xbf16>
    tpu.vector_store %arg19[%c0_141, %c1_142, %c0_143, %c0_144], %88 {strides = array<i32>} : memref<1x10x10x64xbf16, #tpu.memory_space<vmem>>, vector<1x8x1x64xbf16>,
    %c0_145 = arith.constant 0 : index
    %c1_146 = arith.constant 1 : index
    %c9_147 = arith.constant 9 : index
    %c0_148 = arith.constant 0 : index
    %90 = vector.load %arg19[%c0_145, %c1_146, %c9_147, %c0_148] : memref<1x10x10x64xbf16, #tpu.memory_space<vmem>>, vector<1x8x1x64xbf16>
    tpu.vector_store %arg19[%c0_145, %c1_146, %c9_147, %c0_148], %88 {strides = array<i32>} : memref<1x10x10x64xbf16, #tpu.memory_space<vmem>>, vector<1x8x1x64xbf16>,
    %c0_149 = arith.constant 0 : index
    %c0_150 = arith.constant 0 : index
    %c0_151 = arith.constant 0 : index
    %c0_152 = arith.constant 0 : index
    %91 = vector.load %arg18[%c0_149, %c0_150, %c0_151, %c0_152] : memref<1x10x10x32xbf16, #tpu.memory_space<vmem>>, vector<1x10x8x32xbf16>
    %c0_153 = arith.constant 0 : index
    %c0_154 = arith.constant 0 : index
    %c1_155 = arith.constant 1 : index
    %c0_156 = arith.constant 0 : index
    %92 = vector.load %arg18[%c0_153, %c0_154, %c1_155, %c0_156] : memref<1x10x10x32xbf16, #tpu.memory_space<vmem>>, vector<1x10x8x32xbf16>
    %c0_157 = arith.constant 0 : index
    %c0_158 = arith.constant 0 : index
    %c2_159 = arith.constant 2 : index
    %c0_160 = arith.constant 0 : index
    %93 = vector.load %arg18[%c0_157, %c0_158, %c2_159, %c0_160] : memref<1x10x10x32xbf16, #tpu.memory_space<vmem>>, vector<1x10x8x32xbf16>
    %94 = tpu.concatenate %91, %92, %93 in 3 : vector<1x10x8x32xbf16>, vector<1x10x8x32xbf16>, vector<1x10x8x32xbf16> -> vector<1x10x8x96xbf16>
    %95 = vector.extract_strided_slice %94 {offsets = [0, 0, 0, 0], sizes = [1, 8, 8, 96], strides = [1, 1, 1, 1]} : vector<1x10x8x96xbf16> to vector<1x8x8x96xbf16>
    %96 = vector.shape_cast %95 : vector<1x8x8x96xbf16> to vector<64x96xbf16>
    %c0_161 = arith.constant 0 : index
    %c0_162 = arith.constant 0 : index
    %c0_163 = arith.constant 0 : index
    %97 = vector.load %arg6[%c0_161, %c0_162, %c0_163] : memref<3x96x64xbf16, #tpu.memory_space<vmem>>, vector<1x96x64xbf16>
    %98 = vector.shape_cast %97 : vector<1x96x64xbf16> to vector<96x64xbf16>
    %cst_164 = arith.constant dense<0.000000e+00> : vector<64x64xf32>
    %99 = tpu.matmul %96, %98, %cst_164 {dimension_numbers = #tpu.dot_dimension_numbers<[1], [0], [0], [1], [0, 0, 1, 1], [], []>} : vector<64x96xbf16>, vector<96x64xbf16>, vector<64x64xf32> -> vector<64x64xf32>
    %100 = vector.extract_strided_slice %94 {offsets = [0, 1, 0, 0], sizes = [1, 8, 8, 96], strides = [1, 1, 1, 1]} : vector<1x10x8x96xbf16> to vector<1x8x8x96xbf16>
    %101 = vector.shape_cast %100 : vector<1x8x8x96xbf16> to vector<64x96xbf16>
    %c1_165 = arith.constant 1 : index
    %c0_166 = arith.constant 0 : index
    %c0_167 = arith.constant 0 : index
    %102 = vector.load %arg6[%c1_165, %c0_166, %c0_167] : memref<3x96x64xbf16, #tpu.memory_space<vmem>>, vector<1x96x64xbf16>
    %103 = vector.shape_cast %102 : vector<1x96x64xbf16> to vector<96x64xbf16>
    %cst_168 = arith.constant dense<0.000000e+00> : vector<64x64xf32>
    %104 = tpu.matmul %101, %103, %cst_168 {dimension_numbers = #tpu.dot_dimension_numbers<[1], [0], [0], [1], [0, 0, 1, 1], [], []>} : vector<64x96xbf16>, vector<96x64xbf16>, vector<64x64xf32> -> vector<64x64xf32>
    %105 = arith.addf %99, %104 : vector<64x64xf32>
    %106 = vector.extract_strided_slice %94 {offsets = [0, 2, 0, 0], sizes = [1, 8, 8, 96], strides = [1, 1, 1, 1]} : vector<1x10x8x96xbf16> to vector<1x8x8x96xbf16>
    %107 = vector.shape_cast %106 : vector<1x8x8x96xbf16> to vector<64x96xbf16>
    %c2_169 = arith.constant 2 : index
    %c0_170 = arith.constant 0 : index
    %c0_171 = arith.constant 0 : index
    %108 = vector.load %arg6[%c2_169, %c0_170, %c0_171] : memref<3x96x64xbf16, #tpu.memory_space<vmem>>, vector<1x96x64xbf16>
    %109 = vector.shape_cast %108 : vector<1x96x64xbf16> to vector<96x64xbf16>
    %cst_172 = arith.constant dense<0.000000e+00> : vector<64x64xf32>
    %110 = tpu.matmul %107, %109, %cst_172 {dimension_numbers = #tpu.dot_dimension_numbers<[1], [0], [0], [1], [0, 0, 1, 1], [], []>} : vector<64x96xbf16>, vector<96x64xbf16>, vector<64x64xf32> -> vector<64x64xf32>
    %111 = arith.addf %105, %110 : vector<64x64xf32>
    %c0_173 = arith.constant 0 : index
    %c0_174 = arith.constant 0 : index
    %112 = vector.load %arg7[%c0_173, %c0_174] : memref<1x64xf32, #tpu.memory_space<vmem>>, vector<1x64xf32>
    %113 = vector.broadcast %112 : vector<1x64xf32> to vector<64x64xf32>
    %114 = arith.addf %111, %113 : vector<64x64xf32>
    %cst_175 = arith.constant 0.000000e+00 : f32
    %115 = vector.broadcast %cst_175 : f32 to vector<64x64xf32>
    %116 = arith.maximumf %114, %115 : vector<64x64xf32>
    %117 = vector.shape_cast %116 : vector<64x64xf32> to vector<1x8x8x64xf32>
    %118 = arith.truncf %117 : vector<1x8x8x64xf32> to vector<1x8x8x64xbf16>
    %c0_176 = arith.constant 0 : index
    %c1_177 = arith.constant 1 : index
    %c1_178 = arith.constant 1 : index
    %c0_179 = arith.constant 0 : index
    %119 = vector.load %arg19[%c0_176, %c1_177, %c1_178, %c0_179] : memref<1x10x10x64xbf16, #tpu.memory_space<vmem>>, vector<1x8x8x64xbf16>
    tpu.vector_store %arg19[%c0_176, %c1_177, %c1_178, %c0_179], %118 {strides = array<i32>} : memref<1x10x10x64xbf16, #tpu.memory_space<vmem>>, vector<1x8x8x64xbf16>,
    %c0_180 = arith.constant 0 : index
    %c0_181 = arith.constant 0 : index
    %c0_182 = arith.constant 0 : index
    %c0_183 = arith.constant 0 : index
    %120 = vector.load %arg19[%c0_180, %c0_181, %c0_182, %c0_183] : memref<1x10x10x64xbf16, #tpu.memory_space<vmem>>, vector<1x10x8x64xbf16>
    %c0_184 = arith.constant 0 : index
    %c0_185 = arith.constant 0 : index
    %c1_186 = arith.constant 1 : index
    %c0_187 = arith.constant 0 : index
    %121 = vector.load %arg19[%c0_184, %c0_185, %c1_186, %c0_187] : memref<1x10x10x64xbf16, #tpu.memory_space<vmem>>, vector<1x10x8x64xbf16>
    %c0_188 = arith.constant 0 : index
    %c0_189 = arith.constant 0 : index
    %c2_190 = arith.constant 2 : index
    %c0_191 = arith.constant 0 : index
    %122 = vector.load %arg19[%c0_188, %c0_189, %c2_190, %c0_191] : memref<1x10x10x64xbf16, #tpu.memory_space<vmem>>, vector<1x10x8x64xbf16>
    %123 = tpu.concatenate %120, %121, %122 in 3 : vector<1x10x8x64xbf16>, vector<1x10x8x64xbf16>, vector<1x10x8x64xbf16> -> vector<1x10x8x192xbf16>
    %124 = vector.extract_strided_slice %123 {offsets = [0, 0, 0, 0], sizes = [1, 8, 8, 192], strides = [1, 1, 1, 1]} : vector<1x10x8x192xbf16> to vector<1x8x8x192xbf16>
    %125 = vector.shape_cast %124 : vector<1x8x8x192xbf16> to vector<64x192xbf16>
    %c0_192 = arith.constant 0 : index
    %c0_193 = arith.constant 0 : index
    %c0_194 = arith.constant 0 : index
    %126 = vector.load %arg8[%c0_192, %c0_193, %c0_194] : memref<3x192x64xbf16, #tpu.memory_space<vmem>>, vector<1x192x64xbf16>
    %127 = vector.shape_cast %126 : vector<1x192x64xbf16> to vector<192x64xbf16>
    %cst_195 = arith.constant dense<0.000000e+00> : vector<64x64xf32>
    %128 = tpu.matmul %125, %127, %cst_195 {dimension_numbers = #tpu.dot_dimension_numbers<[1], [0], [0], [1], [0, 0, 1, 1], [], []>} : vector<64x192xbf16>, vector<192x64xbf16>, vector<64x64xf32> -> vector<64x64xf32>
    %129 = vector.extract_strided_slice %123 {offsets = [0, 1, 0, 0], sizes = [1, 8, 8, 192], strides = [1, 1, 1, 1]} : vector<1x10x8x192xbf16> to vector<1x8x8x192xbf16>
    %130 = vector.shape_cast %129 : vector<1x8x8x192xbf16> to vector<64x192xbf16>
    %c1_196 = arith.constant 1 : index
    %c0_197 = arith.constant 0 : index
    %c0_198 = arith.constant 0 : index
    %131 = vector.load %arg8[%c1_196, %c0_197, %c0_198] : memref<3x192x64xbf16, #tpu.memory_space<vmem>>, vector<1x192x64xbf16>
    %132 = vector.shape_cast %131 : vector<1x192x64xbf16> to vector<192x64xbf16>
    %cst_199 = arith.constant dense<0.000000e+00> : vector<64x64xf32>
    %133 = tpu.matmul %130, %132, %cst_199 {dimension_numbers = #tpu.dot_dimension_numbers<[1], [0], [0], [1], [0, 0, 1, 1], [], []>} : vector<64x192xbf16>, vector<192x64xbf16>, vector<64x64xf32> -> vector<64x64xf32>
    %134 = arith.addf %128, %133 : vector<64x64xf32>
    %135 = vector.extract_strided_slice %123 {offsets = [0, 2, 0, 0], sizes = [1, 8, 8, 192], strides = [1, 1, 1, 1]} : vector<1x10x8x192xbf16> to vector<1x8x8x192xbf16>
    %136 = vector.shape_cast %135 : vector<1x8x8x192xbf16> to vector<64x192xbf16>
    %c2_200 = arith.constant 2 : index
    %c0_201 = arith.constant 0 : index
    %c0_202 = arith.constant 0 : index
    %137 = vector.load %arg8[%c2_200, %c0_201, %c0_202] : memref<3x192x64xbf16, #tpu.memory_space<vmem>>, vector<1x192x64xbf16>
    %138 = vector.shape_cast %137 : vector<1x192x64xbf16> to vector<192x64xbf16>
    %cst_203 = arith.constant dense<0.000000e+00> : vector<64x64xf32>
    %139 = tpu.matmul %136, %138, %cst_203 {dimension_numbers = #tpu.dot_dimension_numbers<[1], [0], [0], [1], [0, 0, 1, 1], [], []>} : vector<64x192xbf16>, vector<192x64xbf16>, vector<64x64xf32> -> vector<64x64xf32>
    %140 = arith.addf %134, %139 : vector<64x64xf32>
    %c0_204 = arith.constant 0 : index
    %c0_205 = arith.constant 0 : index
    %141 = vector.load %arg9[%c0_204, %c0_205] : memref<1x64xf32, #tpu.memory_space<vmem>>, vector<1x64xf32>
    %142 = vector.broadcast %141 : vector<1x64xf32> to vector<64x64xf32>
    %143 = arith.addf %140, %142 : vector<64x64xf32>
    %cst_206 = arith.constant 0.000000e+00 : f32
    %144 = vector.broadcast %cst_206 : f32 to vector<64x64xf32>
    %145 = arith.maximumf %143, %144 : vector<64x64xf32>
    %146 = vector.shape_cast %145 : vector<64x64xf32> to vector<1x8x8x64xf32>
    %c0_207 = arith.constant 0 : index
    %c0_208 = arith.constant 0 : index
    %c0_209 = arith.constant 0 : index
    %c0_210 = arith.constant 0 : index
    %147 = vector.load %arg20[%c0_207, %c0_208, %c0_209, %c0_210] : memref<1x8x8x64xf32, #tpu.memory_space<vmem>>, vector<1x8x8x64xf32>
    tpu.vector_store %arg20[%c0_207, %c0_208, %c0_209, %c0_210], %146 {strides = array<i32>} : memref<1x8x8x64xf32, #tpu.memory_space<vmem>>, vector<1x8x8x64xf32>,
    %c0_211 = arith.constant 0 : index
    %c0_212 = arith.constant 0 : index
    %c0_213 = arith.constant 0 : index
    %c0_214 = arith.constant 0 : index
    %148 = tpu.strided_load %arg20[%c0_211, %c0_212, %c0_213, %c0_214] {strides = array<i32: 1, 1, 2, 1>} : memref<1x8x8x64xf32, #tpu.memory_space<vmem>>, vector<1x8x4x64xf32>
    %c0_215 = arith.constant 0 : index
    %c0_216 = arith.constant 0 : index
    %c1_217 = arith.constant 1 : index
    %c0_218 = arith.constant 0 : index
    %149 = tpu.strided_load %arg20[%c0_215, %c0_216, %c1_217, %c0_218] {strides = array<i32: 1, 1, 2, 1>} : memref<1x8x8x64xf32, #tpu.memory_space<vmem>>, vector<1x8x4x64xf32>
    %150 = arith.maximumf %148, %149 : vector<1x8x4x64xf32>
    %151 = vector.shape_cast %150 : vector<1x8x4x64xf32> to vector<4x2x4x64xf32>
    %cst_219 = arith.constant dense<0xFF800000> : vector<4x4x64xf32>
    %152 = vector.multi_reduction <maximumf>, %151, %cst_219 [1] : vector<4x2x4x64xf32> to vector<4x4x64xf32>
    %153 = vector.shape_cast %152 : vector<4x4x64xf32> to vector<1x4x4x64xf32>
    %154 = vector.extract_strided_slice %153 {offsets = [0, 0, 0, 0], sizes = [1, 1, 4, 64], strides = [1, 1, 1, 1]} : vector<1x4x4x64xf32> to vector<1x1x4x64xf32>
    %155 = vector.shape_cast %154 : vector<1x1x4x64xf32> to vector<1x4x64xf32>
    %156 = vector.extract_strided_slice %153 {offsets = [0, 1, 0, 0], sizes = [1, 1, 4, 64], strides = [1, 1, 1, 1]} : vector<1x4x4x64xf32> to vector<1x1x4x64xf32>
    %157 = vector.shape_cast %156 : vector<1x1x4x64xf32> to vector<1x4x64xf32>
    %158 = arith.addf %155, %157 : vector<1x4x64xf32>
    %159 = vector.extract_strided_slice %153 {offsets = [0, 2, 0, 0], sizes = [1, 1, 4, 64], strides = [1, 1, 1, 1]} : vector<1x4x4x64xf32> to vector<1x1x4x64xf32>
    %160 = vector.shape_cast %159 : vector<1x1x4x64xf32> to vector<1x4x64xf32>
    %161 = arith.addf %158, %160 : vector<1x4x64xf32>
    %162 = vector.extract_strided_slice %161 {offsets = [0, 0, 0], sizes = [1, 1, 64], strides = [1, 1, 1]} : vector<1x4x64xf32> to vector<1x1x64xf32>
    %163 = vector.shape_cast %162 : vector<1x1x64xf32> to vector<1x64xf32>
    %164 = vector.extract_strided_slice %161 {offsets = [0, 1, 0], sizes = [1, 1, 64], strides = [1, 1, 1]} : vector<1x4x64xf32> to vector<1x1x64xf32>
    %165 = vector.shape_cast %164 : vector<1x1x64xf32> to vector<1x64xf32>
    %166 = arith.addf %163, %165 : vector<1x64xf32>
    %167 = vector.extract_strided_slice %161 {offsets = [0, 2, 0], sizes = [1, 1, 64], strides = [1, 1, 1]} : vector<1x4x64xf32> to vector<1x1x64xf32>
    %168 = vector.shape_cast %167 : vector<1x1x64xf32> to vector<1x64xf32>
    %169 = arith.addf %166, %168 : vector<1x64xf32>
    %cst_220 = arith.constant 0.111111112 : f32
    %170 = vector.broadcast %cst_220 : f32 to vector<1x64xf32>
    %171 = arith.mulf %169, %170 : vector<1x64xf32>
    %172 = arith.truncf %171 : vector<1x64xf32> to vector<1x64xbf16>
    %c0_221 = arith.constant 0 : index
    %c0_222 = arith.constant 0 : index
    %173 = vector.load %arg10[%c0_221, %c0_222] : memref<64x128xbf16, #tpu.memory_space<vmem>>, vector<64x128xbf16>
    %cst_223 = arith.constant dense<0.000000e+00> : vector<1x128xf32>
    %174 = tpu.matmul %172, %173, %cst_223 {dimension_numbers = #tpu.dot_dimension_numbers<[1], [0], [0], [1], [0, 0, 1, 1], [], []>} : vector<1x64xbf16>, vector<64x128xbf16>, vector<1x128xf32> -> vector<1x128xf32>
    %c0_224 = arith.constant 0 : index
    %c0_225 = arith.constant 0 : index
    %175 = vector.load %arg11[%c0_224, %c0_225] : memref<1x128xf32, #tpu.memory_space<vmem>>, vector<1x128xf32>
    %176 = arith.addf %174, %175 : vector<1x128xf32>
    %cst_226 = arith.constant 0.000000e+00 : f32
    %177 = vector.broadcast %cst_226 : f32 to vector<1x128xf32>
    %178 = arith.maximumf %176, %177 : vector<1x128xf32>
    %179 = arith.truncf %178 : vector<1x128xf32> to vector<1x128xbf16>
    %c0_227 = arith.constant 0 : index
    %c0_228 = arith.constant 0 : index
    %180 = vector.load %arg12[%c0_227, %c0_228] : memref<128x4xbf16, #tpu.memory_space<vmem>>, vector<128x4xbf16>
    %cst_229 = arith.constant dense<0.000000e+00> : vector<1x4xf32>
    %181 = tpu.matmul %179, %180, %cst_229 {dimension_numbers = #tpu.dot_dimension_numbers<[1], [0], [0], [1], [0, 0, 1, 1], [], []>} : vector<1x128xbf16>, vector<128x4xbf16>, vector<1x4xf32> -> vector<1x4xf32>
    %c0_230 = arith.constant 0 : index
    %c0_231 = arith.constant 0 : index
    %182 = vector.load %arg13[%c0_230, %c0_231] : memref<1x4xf32, #tpu.memory_space<vmem>>, vector<1x4xf32>
    %183 = arith.addf %181, %182 : vector<1x4xf32>
    %c0_232 = arith.constant 0 : index
    %c0_233 = arith.constant 0 : index
    %c0_234 = arith.constant 0 : index
    %184 = vector.load %arg14[%c0_232, %c0_233, %c0_234] : memref<1x1x4xf32, #tpu.memory_space<vmem>>, vector<1x1x4xf32>
    %185 = vector.shape_cast %184 : vector<1x1x4xf32> to vector<1x4xf32>
    %186 = vector.shape_cast %183 : vector<1x4xf32> to vector<1x1x4xf32>
    tpu.vector_store %arg14[%c0_232, %c0_233, %c0_234], %186 {strides = array<i32>} : memref<1x1x4xf32, #tpu.memory_space<vmem>>, vector<1x1x4xf32>,
    return
  }
  func.func @transform_0(%arg0: i32) -> (i32, i32, i32, i32) {
    %c0_i32 = arith.constant 0 : i32
    %c0_i32_0 = arith.constant 0 : i32
    %c0_i32_1 = arith.constant 0 : i32
    %c0_i32_2 = arith.constant 0 : i32
    return %arg0, %c0_i32, %c0_i32_0, %c0_i32_1 : i32, i32, i32, i32
  }
  func.func @transform_1(%arg0: i32) -> (i32, i32, i32) {
    %c0_i32 = arith.constant 0 : i32
    %c0_i32_0 = arith.constant 0 : i32
    %c0_i32_1 = arith.constant 0 : i32
    %c0_i32_2 = arith.constant 0 : i32
    return %c0_i32, %c0_i32_0, %c0_i32_1 : i32, i32, i32
  }
  func.func @transform_2(%arg0: i32) -> (i32, i32) {
    %c0_i32 = arith.constant 0 : i32
    %c0_i32_0 = arith.constant 0 : i32
    %c0_i32_1 = arith.constant 0 : i32
    return %c0_i32, %c0_i32_0 : i32, i32
  }
  func.func @transform_3(%arg0: i32) -> (i32, i32, i32) {
    %c0_i32 = arith.constant 0 : i32
    %c0_i32_0 = arith.constant 0 : i32
    %c0_i32_1 = arith.constant 0 : i32
    %c0_i32_2 = arith.constant 0 : i32
    return %c0_i32, %c0_i32_0, %c0_i32_1 : i32, i32, i32
  }
  func.func @transform_4(%arg0: i32) -> (i32, i32) {
    %c0_i32 = arith.constant 0 : i32
    %c0_i32_0 = arith.constant 0 : i32
    %c0_i32_1 = arith.constant 0 : i32
    return %c0_i32, %c0_i32_0 : i32, i32
  }
  func.func @transform_5(%arg0: i32) -> (i32, i32, i32) {
    %c0_i32 = arith.constant 0 : i32
    %c0_i32_0 = arith.constant 0 : i32
    %c0_i32_1 = arith.constant 0 : i32
    %c0_i32_2 = arith.constant 0 : i32
    return %c0_i32, %c0_i32_0, %c0_i32_1 : i32, i32, i32
  }
  func.func @transform_6(%arg0: i32) -> (i32, i32) {
    %c0_i32 = arith.constant 0 : i32
    %c0_i32_0 = arith.constant 0 : i32
    %c0_i32_1 = arith.constant 0 : i32
    return %c0_i32, %c0_i32_0 : i32, i32
  }
  func.func @transform_7(%arg0: i32) -> (i32, i32, i32) {
    %c0_i32 = arith.constant 0 : i32
    %c0_i32_0 = arith.constant 0 : i32
    %c0_i32_1 = arith.constant 0 : i32
    %c0_i32_2 = arith.constant 0 : i32
    return %c0_i32, %c0_i32_0, %c0_i32_1 : i32, i32, i32
  }
  func.func @transform_8(%arg0: i32) -> (i32, i32) {
    %c0_i32 = arith.constant 0 : i32
    %c0_i32_0 = arith.constant 0 : i32
    %c0_i32_1 = arith.constant 0 : i32
    return %c0_i32, %c0_i32_0 : i32, i32
  }
  func.func @transform_9(%arg0: i32) -> (i32, i32) {
    %c0_i32 = arith.constant 0 : i32
    %c0_i32_0 = arith.constant 0 : i32
    %c0_i32_1 = arith.constant 0 : i32
    return %c0_i32, %c0_i32_0 : i32, i32
  }
  func.func @transform_10(%arg0: i32) -> (i32, i32) {
    %c0_i32 = arith.constant 0 : i32
    %c0_i32_0 = arith.constant 0 : i32
    %c0_i32_1 = arith.constant 0 : i32
    return %c0_i32, %c0_i32_0 : i32, i32
  }
  func.func @transform_11(%arg0: i32) -> (i32, i32) {
    %c0_i32 = arith.constant 0 : i32
    %c0_i32_0 = arith.constant 0 : i32
    %c0_i32_1 = arith.constant 0 : i32
    return %c0_i32, %c0_i32_0 : i32, i32
  }
  func.func @transform_12(%arg0: i32) -> (i32, i32) {
    %c0_i32 = arith.constant 0 : i32
    %c0_i32_0 = arith.constant 0 : i32
    %c0_i32_1 = arith.constant 0 : i32
    return %c0_i32, %c0_i32_0 : i32, i32
  }
  func.func @transform_13(%arg0: i32) -> (i32, i32, i32) {
    %c0_i32 = arith.constant 0 : i32
    %c0_i32_0 = arith.constant 0 : i32
    %c0_i32_1 = arith.constant 0 : i32
    return %arg0, %c0_i32, %c0_i32_0 : i32, i32, i32
  }
}

</mosaic_0001>

<llo_original>
// kernel: convnet_forward.1
$region0: #{convnet_forward.1}
  #allocation0 [shape = 'u32[]', space=smem, size = 0x4, offset = 0x4, fixed_abs, tag = 'smem constant byte address 0x4 - core index']
  #allocation1 [shape = 'u32[144,128]{1,0:T(1,128)}', space=vmem, size = 0x12000, scoped, tag = 'internal scratch']
  #allocation2 [shape = 'bf16[1,18,18,4]{3,2,1,0:T(8,128)(2,1)}', space=vmem, size = 0x1b000, scoped, tag = 'scratch operand']
  #allocation3 [shape = 'bf16[1,18,18,32]{3,2,1,0:T(8,128)(2,1)}', space=vmem, size = 0x1b000, scoped, tag = 'scratch operand']
  #allocation4 [shape = 'f32[1,16,16,32]{3,2,1,0:T(8,128)}', space=vmem, size = 0x20000, scoped, tag = 'scratch operand']
  #allocation5 [shape = 'bf16[1,10,10,32]{3,2,1,0:T(8,128)(2,1)}', space=vmem, size = 0xa000, scoped, tag = 'scratch operand']
  #allocation6 [shape = 'bf16[1,10,10,64]{3,2,1,0:T(8,128)(2,1)}', space=vmem, size = 0xa000, scoped, tag = 'scratch operand']
  #allocation7 [shape = 'f32[1,8,8,64]{3,2,1,0:T(8,128)}', space=vmem, size = 0x8000, scoped, tag = 'scratch operand']
  %s0 = inlined_call_operand.vmem [shape: bf16[2,16,16,4], index: 0, kind: input, shape index: {}]
  %s1 = inlined_call_operand.vmem [shape: bf16[3,12,32], index: 1, kind: input, shape index: {}]
  %s2 = inlined_call_operand.vmem [shape: f32[1,32], index: 2, kind: input, shape index: {}]
  %s3 = inlined_call_operand.vmem [shape: bf16[3,96,32], index: 3, kind: input, shape index: {}]
  %s4 = inlined_call_operand.vmem [shape: f32[1,32], index: 4, kind: input, shape index: {}]
  %s5 = inlined_call_operand.vmem [shape: bf16[3,96,64], index: 5, kind: input, shape index: {}]
  %s6 = inlined_call_operand.vmem [shape: f32[1,64], index: 6, kind: input, shape index: {}]
  %s7 = inlined_call_operand.vmem [shape: bf16[3,192,64], index: 7, kind: input, shape index: {}]
  %s8 = inlined_call_operand.vmem [shape: f32[1,64], index: 8, kind: input, shape index: {}]
  %s9 = inlined_call_operand.vmem [shape: bf16[64,128], index: 9, kind: input, shape index: {}]
  %s10 = inlined_call_operand.vmem [shape: f32[1,128], index: 10, kind: input, shape index: {}]
  %s11 = inlined_call_operand.vmem [shape: bf16[128,4], index: 11, kind: input, shape index: {}]
  %s12 = inlined_call_operand.vmem [shape: f32[1,4], index: 12, kind: input, shape index: {}]
  %s13 = inlined_call_operand.hbm [shape: f32[2,1,4], index: 13, kind: output, shape index: {}]
  %s14 = sld [smem:[#allocation0]]
  $region85: #{convnet_forward.1} parent=0
    _
  %s16 = ssub.s32 1, %s14
  %s17 = scalar_select 0, %s16, %s14
  $region1: #{convnet_forward.1} parent=0
    #allocation8 [shape = 'u8[1024]{0}', space=vmem, size = 0x400, scoped, tag = 'output window, operand 0']
    #allocation9 [shape = 's32[2]{0}', space=sflag, size = 0x8, scoped, tag = 'scoped memory for convnet_forward.1']
    %18 = vsyncpa [#allocation9], 0
    %s19 = scalar_lea.sflag [#allocation9], 1
    %20 = vsyncpa %s19, 0
    loop: start=0, step=1, limit=4
    $region2: #{convnet_forward.1} parent=1 // loop_pre_header
      _
    $region3: #{convnet_forward.1} parent=1 // loop_header
      %s22 = sphi 0, %s26
      %p23 = scmp.ge.s32.totalorder %s22, 4
      %s32 = sphi 0, %s34
      %s35 = sphi 0, %s32
      %s36 = sphi 0, %s35
      %s52 = sphi 0, %s36
      %s56 = sphi 0, %s56
      %s58 = sphi 0, %s56
      %s59 = sphi 0, %s58
      %s73 = sphi 0, %s59
      %s77 = sphi 0, %s77
      %s79 = sphi 0, %s77
      %s80 = sphi 0, %s79
      %s94 = sphi 0, %s80
      %s98 = sphi 0, %s98
      %s100 = sphi 0, %s98
      %s101 = sphi 0, %s100
      %s115 = sphi 0, %s101
      %s119 = sphi 0, %s119
      %s121 = sphi 0, %s119
      %s122 = sphi 0, %s121
      %s136 = sphi 0, %s122
      %s140 = sphi 0, %s140
      %s142 = sphi 0, %s140
      %s143 = sphi 0, %s142
      %s157 = sphi 0, %s143
      %s161 = sphi 0, %s161
      %s163 = sphi 0, %s161
      %s164 = sphi 0, %s163
      %s178 = sphi 0, %s164
      %s182 = sphi 0, %s182
      %s184 = sphi 0, %s182
      %s185 = sphi 0, %s184
      %s199 = sphi 0, %s185
      %s203 = sphi 0, %s203
      %s205 = sphi 0, %s203
      %s206 = sphi 0, %s205
      %s220 = sphi 0, %s206
      %s224 = sphi 0, %s224
      %s226 = sphi 0, %s224
      %s227 = sphi 0, %s226
      %s241 = sphi 0, %s227
      %s245 = sphi 0, %s245
      %s247 = sphi 0, %s245
      %s248 = sphi 0, %s247
      %s262 = sphi 0, %s248
      %s266 = sphi 0, %s266
      %s268 = sphi 0, %s266
      %s269 = sphi 0, %s268
      %s283 = sphi 0, %s269
      %s287 = sphi 0, %s287
      %s289 = sphi 0, %s287
      %s290 = sphi 0, %s289
      %s304 = sphi 0, %s290
      %s310 = sphi 0, %s312
      %s313 = sphi 0, %s310
      %s314 = sphi 0, %s313
      %s330 = sphi 0, %s314
    $region4: #{convnet_forward.1} parent=1 // loop_header_branch
      %25 = sbr.rel (%p23) target = $region8
    $region5: #{convnet_forward.1} parent=1 // loop_body
      %s27 = ssub.s32 %s22, 1
      %s28 = ssub.s32 %s22, 2
      %s29 = sadd.s32 %s22, 1
      %s30 = ssub.s32 %s22, %s29
      %p31 = scmp.eq.s32.totalorder %s30, 0
      %s33 = sadd.s32 %s32, 1
      %s34 = scalar_select %p31, %s32, %s33
      %p37 = pneg %p31
      %p38 = scmp.eq.s32.totalorder %s22, 1
      %p39 = por %p37, %p38
      %p40 = scmp.ne.s32.totalorder %s32, %s35
      %p41 = scmp.eq.s32.totalorder %s22, 0
      %p42 = por %p40, %p41
      %p43 = scmp.ne.s32.totalorder %s32, %s35
      %p44 = scmp.eq.s32.totalorder %s27, 1
      %p45 = por %p43, %p44
      %p46 = scmp.ne.s32.totalorder %s35, %s36
      %p47 = scmp.eq.s32.totalorder %s27, 0
      %p48 = por %p46, %p47
      %p49 = scmp.ne.s32.totalorder %s35, %s36
      %p50 = scmp.eq.s32.totalorder %s28, 1
      %p51 = por %p49, %p50
      %p53 = scmp.ne.s32.totalorder %s36, %s52
      %p54 = scmp.eq.s32.totalorder %s28, 0
      %p55 = por %p53, %p54
      %s57 = sadd.s32 %s56, 1
      %p60 = scmp.eq.s32.totalorder %s22, 1
      %p61 = scmp.ne.s32.totalorder %s56, %s58
      %p62 = scmp.eq.s32.totalorder %s22, 0
      %p63 = por %p61, %p62
      %p64 = scmp.ne.s32.totalorder %s56, %s58
      %p65 = scmp.eq.s32.totalorder %s27, 1
      %p66 = por %p64, %p65
      %p67 = scmp.ne.s32.totalorder %s58, %s59
      %p68 = scmp.eq.s32.totalorder %s27, 0
      %p69 = por %p67, %p68
      %p70 = scmp.ne.s32.totalorder %s58, %s59
      %p71 = scmp.eq.s32.totalorder %s28, 1
      %p72 = por %p70, %p71
      %p74 = scmp.ne.s32.totalorder %s59, %s73
      %p75 = scmp.eq.s32.totalorder %s28, 0
      %p76 = por %p74, %p75
      %s78 = sadd.s32 %s77, 1
      %p81 = scmp.eq.s32.totalorder %s22, 1
      %p82 = scmp.ne.s32.totalorder %s77, %s79
      %p83 = scmp.eq.s32.totalorder %s22, 0
      %p84 = por %p82, %p83
      %p85 = scmp.ne.s32.totalorder %s77, %s79
      %p86 = scmp.eq.s32.totalorder %s27, 1
      %p87 = por %p85, %p86
      %p88 = scmp.ne.s32.totalorder %s79, %s80
      %p89 = scmp.eq.s32.totalorder %s27, 0
      %p90 = por %p88, %p89
      %p91 = scmp.ne.s32.totalorder %s79, %s80
      %p92 = scmp.eq.s32.totalorder %s28, 1
      %p93 = por %p91, %p92
      %p95 = scmp.ne.s32.totalorder %s80, %s94
      %p96 = scmp.eq.s32.totalorder %s28, 0
      %p97 = por %p95, %p96
      %s99 = sadd.s32 %s98, 1
      %p102 = scmp.eq.s32.totalorder %s22, 1
      %p103 = scmp.ne.s32.totalorder %s98, %s100
      %p104 = scmp.eq.s32.totalorder %s22, 0
      %p105 = por %p103, %p104
      %p106 = scmp.ne.s32.totalorder %s98, %s100
      %p107 = scmp.eq.s32.totalorder %s27, 1
      %p108 = por %p106, %p107
      %p109 = scmp.ne.s32.totalorder %s100, %s101
      %p110 = scmp.eq.s32.totalorder %s27, 0
      %p111 = por %p109, %p110
      %p112 = scmp.ne.s32.totalorder %s100, %s101
      %p113 = scmp.eq.s32.totalorder %s28, 1
      %p114 = por %p112, %p113
      %p116 = scmp.ne.s32.totalorder %s101, %s115
      %p117 = scmp.eq.s32.totalorder %s28, 0
      %p118 = por %p116, %p117
      %s120 = sadd.s32 %s119, 1
      %p123 = scmp.eq.s32.totalorder %s22, 1
      %p124 = scmp.ne.s32.totalorder %s119, %s121
      %p125 = scmp.eq.s32.totalorder %s22, 0
      %p126 = por %p124, %p125
      %p127 = scmp.ne.s32.totalorder %s119, %s121
      %p128 = scmp.eq.s32.totalorder %s27, 1
      %p129 = por %p127, %p128
      %p130 = scmp.ne.s32.totalorder %s121, %s122
      %p131 = scmp.eq.s32.totalorder %s27, 0
      %p132 = por %p130, %p131
      %p133 = scmp.ne.s32.totalorder %s121, %s122
      %p134 = scmp.eq.s32.totalorder %s28, 1
      %p135 = por %p133, %p134
      %p137 = scmp.ne.s32.totalorder %s122, %s136
      %p138 = scmp.eq.s32.totalorder %s28, 0
      %p139 = por %p137, %p138
      %s141 = sadd.s32 %s140, 1
      %p144 = scmp.eq.s32.totalorder %s22, 1
      %p145 = scmp.ne.s32.totalorder %s140, %s142
      %p146 = scmp.eq.s32.totalorder %s22, 0
      %p147 = por %p145, %p146
      %p148 = scmp.ne.s32.totalorder %s140, %s142
      %p149 = scmp.eq.s32.totalorder %s27, 1
      %p150 = por %p148, %p149
      %p151 = scmp.ne.s32.totalorder %s142, %s143
      %p152 = scmp.eq.s32.totalorder %s27, 0
      %p153 = por %p151, %p152
      %p154 = scmp.ne.s32.totalorder %s142, %s143
      %p155 = scmp.eq.s32.totalorder %s28, 1
      %p156 = por %p154, %p155
      %p158 = scmp.ne.s32.totalorder %s143, %s157
      %p159 = scmp.eq.s32.totalorder %s28, 0
      %p160 = por %p158, %p159
      %s162 = sadd.s32 %s161, 1
      %p165 = scmp.eq.s32.totalorder %s22, 1
      %p166 = scmp.ne.s32.totalorder %s161, %s163
      %p167 = scmp.eq.s32.totalorder %s22, 0
      %p168 = por %p166, %p167
      %p169 = scmp.ne.s32.totalorder %s161, %s163
      %p170 = scmp.eq.s32.totalorder %s27, 1
      %p171 = por %p169, %p170
      %p172 = scmp.ne.s32.totalorder %s163, %s164
      %p173 = scmp.eq.s32.totalorder %s27, 0
      %p174 = por %p172, %p173
      %p175 = scmp.ne.s32.totalorder %s163, %s164
      %p176 = scmp.eq.s32.totalorder %s28, 1
      %p177 = por %p175, %p176
      %p179 = scmp.ne.s32.totalorder %s164, %s178
      %p180 = scmp.eq.s32.totalorder %s28, 0
      %p181 = por %p179, %p180
      %s183 = sadd.s32 %s182, 1
      %p186 = scmp.eq.s32.totalorder %s22, 1
      %p187 = scmp.ne.s32.totalorder %s182, %s184
      %p188 = scmp.eq.s32.totalorder %s22, 0
      %p189 = por %p187, %p188
      %p190 = scmp.ne.s32.totalorder %s182, %s184
      %p191 = scmp.eq.s32.totalorder %s27, 1
      %p192 = por %p190, %p191
      %p193 = scmp.ne.s32.totalorder %s184, %s185
      %p194 = scmp.eq.s32.totalorder %s27, 0
      %p195 = por %p193, %p194
      %p196 = scmp.ne.s32.totalorder %s184, %s185
      %p197 = scmp.eq.s32.totalorder %s28, 1
      %p198 = por %p196, %p197
      %p200 = scmp.ne.s32.totalorder %s185, %s199
      %p201 = scmp.eq.s32.totalorder %s28, 0
      %p202 = por %p200, %p201
      %s204 = sadd.s32 %s203, 1
      %p207 = scmp.eq.s32.totalorder %s22, 1
      %p208 = scmp.ne.s32.totalorder %s203, %s205
      %p209 = scmp.eq.s32.totalorder %s22, 0
      %p210 = por %p208, %p209
      %p211 = scmp.ne.s32.totalorder %s203, %s205
      %p212 = scmp.eq.s32.totalorder %s27, 1
      %p213 = por %p211, %p212
      %p214 = scmp.ne.s32.totalorder %s205, %s206
      %p215 = scmp.eq.s32.totalorder %s27, 0
      %p216 = por %p214, %p215
      %p217 = scmp.ne.s32.totalorder %s205, %s206
      %p218 = scmp.eq.s32.totalorder %s28, 1
      %p219 = por %p217, %p218
      %p221 = scmp.ne.s32.totalorder %s206, %s220
      %p222 = scmp.eq.s32.totalorder %s28, 0
      %p223 = por %p221, %p222
      %s225 = sadd.s32 %s224, 1
      %p228 = scmp.eq.s32.totalorder %s22, 1
      %p229 = scmp.ne.s32.totalorder %s224, %s226
      %p230 = scmp.eq.s32.totalorder %s22, 0
      %p231 = por %p229, %p230
      %p232 = scmp.ne.s32.totalorder %s224, %s226
      %p233 = scmp.eq.s32.totalorder %s27, 1
      %p234 = por %p232, %p233
      %p235 = scmp.ne.s32.totalorder %s226, %s227
      %p236 = scmp.eq.s32.totalorder %s27, 0
      %p237 = por %p235, %p236
      %p238 = scmp.ne.s32.totalorder %s226, %s227
      %p239 = scmp.eq.s32.totalorder %s28, 1
      %p240 = por %p238, %p239
      %p242 = scmp.ne.s32.totalorder %s227, %s241
      %p243 = scmp.eq.s32.totalorder %s28, 0
      %p244 = por %p242, %p243
      %s246 = sadd.s32 %s245, 1
      %p249 = scmp.eq.s32.totalorder %s22, 1
      %p250 = scmp.ne.s32.totalorder %s245, %s247
      %p251 = scmp.eq.s32.totalorder %s22, 0
      %p252 = por %p250, %p251
      %p253 = scmp.ne.s32.totalorder %s245, %s247
      %p254 = scmp.eq.s32.totalorder %s27, 1
      %p255 = por %p253, %p254
      %p256 = scmp.ne.s32.totalorder %s247, %s248
      %p257 = scmp.eq.s32.totalorder %s27, 0
      %p258 = por %p256, %p257
      %p259 = scmp.ne.s32.totalorder %s247, %s248
      %p260 = scmp.eq.s32.totalorder %s28, 1
      %p261 = por %p259, %p260
      %p263 = scmp.ne.s32.totalorder %s248, %s262
      %p264 = scmp.eq.s32.totalorder %s28, 0
      %p265 = por %p263, %p264
      %s267 = sadd.s32 %s266, 1
      %p270 = scmp.eq.s32.totalorder %s22, 1
      %p271 = scmp.ne.s32.totalorder %s266, %s268
      %p272 = scmp.eq.s32.totalorder %s22, 0
      %p273 = por %p271, %p272
      %p274 = scmp.ne.s32.totalorder %s266, %s268
      %p275 = scmp.eq.s32.totalorder %s27, 1
      %p276 = por %p274, %p275
      %p277 = scmp.ne.s32.totalorder %s268, %s269
      %p278 = scmp.eq.s32.totalorder %s27, 0
      %p279 = por %p277, %p278
      %p280 = scmp.ne.s32.totalorder %s268, %s269
      %p281 = scmp.eq.s32.totalorder %s28, 1
      %p282 = por %p280, %p281
      %p284 = scmp.ne.s32.totalorder %s269, %s283
      %p285 = scmp.eq.s32.totalorder %s28, 0
      %p286 = por %p284, %p285
      %s288 = sadd.s32 %s287, 1
      %p291 = scmp.eq.s32.totalorder %s22, 1
      %p292 = scmp.ne.s32.totalorder %s287, %s289
      %p293 = scmp.eq.s32.totalorder %s22, 0
      %p294 = por %p292, %p293
      %p295 = scmp.ne.s32.totalorder %s287, %s289
      %p296 = scmp.eq.s32.totalorder %s27, 1
      %p297 = por %p295, %p296
      %p298 = scmp.ne.s32.totalorder %s289, %s290
      %p299 = scmp.eq.s32.totalorder %s27, 0
      %p300 = por %p298, %p299
      %p301 = scmp.ne.s32.totalorder %s289, %s290
      %p302 = scmp.eq.s32.totalorder %s28, 1
      %p303 = por %p301, %p302
      %p305 = scmp.ne.s32.totalorder %s290, %s304
      %p306 = scmp.eq.s32.totalorder %s28, 0
      %p307 = por %p305, %p306
      %s308 = ssub.s32 %s22, %s29
      %p309 = scmp.eq.s32.totalorder %s308, 0
      %s311 = sadd.s32 %s310, 1
      %s312 = scalar_select %p309, %s310, %s311
      %p315 = pneg %p309
      %p316 = scmp.eq.s32.totalorder %s22, 1
      %p317 = por %p315, %p316
      %p318 = scmp.ne.s32.totalorder %s310, %s313
      %p319 = scmp.eq.s32.totalorder %s22, 0
      %p320 = por %p318, %p319
      %p321 = scmp.ne.s32.totalorder %s310, %s313
      %p322 = scmp.eq.s32.totalorder %s27, 1
      %p323 = por %p321, %p322
      %p324 = scmp.ne.s32.totalorder %s313, %s314
      %p325 = scmp.eq.s32.totalorder %s27, 0
      %p326 = por %p324, %p325
      %p327 = scmp.ne.s32.totalorder %s313, %s314
      %p328 = scmp.eq.s32.totalorder %s28, 1
      %p329 = por %p327, %p328
      %p331 = scmp.ne.s32.totalorder %s314, %s330
      %p332 = scmp.eq.s32.totalorder %s28, 0
      %p333 = por %p331, %p332
      %p334 = scmp.le.s32.totalorder 1, %s22
      %p335 = scmp.lt.s32.totalorder %s22, 3
      %p336 = pnand %p334, %p335
      %p337 = pneg %p336
      // Predicated region
      $region9: #{convnet_forward.1} parent=5 // pred_check
        _
      $region10: #{convnet_forward.1} parent=5 // pred_check_branch
        %339 = sbr.rel (%p336) target = $region12
      $region11: #{convnet_forward.1} parent=5 // pred_region
        %s340 = ssub.s32 %s22, 1
        // Predicated region
        $region13: #{convnet_forward.1} parent=11 // pred_check
          %p341 = pneg %p69
        $region14: #{convnet_forward.1} parent=11 // pred_check_branch
          %343 = sbr.rel (%p341) target = $region16
        $region15: #{convnet_forward.1} parent=11 // pred_region
          _
        $region16: #{convnet_forward.1} parent=11 // pred_fallthru
          _
        // Predicated region
        $region17: #{convnet_forward.1} parent=11 // pred_check
          %p344 = pneg %p90
        $region18: #{convnet_forward.1} parent=11 // pred_check_branch
          %346 = sbr.rel (%p344) target = $region20
        $region19: #{convnet_forward.1} parent=11 // pred_region
          _
        $region20: #{convnet_forward.1} parent=11 // pred_fallthru
          _
        // Predicated region
        $region21: #{convnet_forward.1} parent=11 // pred_check
          %p347 = pneg %p111
        $region22: #{convnet_forward.1} parent=11 // pred_check_branch
          %349 = sbr.rel (%p347) target = $region24
        $region23: #{convnet_forward.1} parent=11 // pred_region
          _
        $region24: #{convnet_forward.1} parent=11 // pred_fallthru
          _
        // Predicated region
        $region25: #{convnet_forward.1} parent=11 // pred_check
          %p350 = pneg %p132
        $region26: #{convnet_forward.1} parent=11 // pred_check_branch
          %352 = sbr.rel (%p350) target = $region28
        $region27: #{convnet_forward.1} parent=11 // pred_region
          _
        $region28: #{convnet_forward.1} parent=11 // pred_fallthru
          _
        // Predicated region
        $region29: #{convnet_forward.1} parent=11 // pred_check
          %p353 = pneg %p153
        $region30: #{convnet_forward.1} parent=11 // pred_check_branch
          %355 = sbr.rel (%p353) target = $region32
        $region31: #{convnet_forward.1} parent=11 // pred_region
          _
        $region32: #{convnet_forward.1} parent=11 // pred_fallthru
          _
        // Predicated region
        $region33: #{convnet_forward.1} parent=11 // pred_check
          %p356 = pneg %p174
        $region34: #{convnet_forward.1} parent=11 // pred_check_branch
          %358 = sbr.rel (%p356) target = $region36
        $region35: #{convnet_forward.1} parent=11 // pred_region
          _
        $region36: #{convnet_forward.1} parent=11 // pred_fallthru
          _
        // Predicated region
        $region37: #{convnet_forward.1} parent=11 // pred_check
          %p359 = pneg %p195
        $region38: #{convnet_forward.1} parent=11 // pred_check_branch
          %361 = sbr.rel (%p359) target = $region40
        $region39: #{convnet_forward.1} parent=11 // pred_region
          _
        $region40: #{convnet_forward.1} parent=11 // pred_fallthru
          _
        // Predicated region
        $region41: #{convnet_forward.1} parent=11 // pred_check
          %p362 = pneg %p216
        $region42: #{convnet_forward.1} parent=11 // pred_check_branch
          %364 = sbr.rel (%p362) target = $region44
        $region43: #{convnet_forward.1} parent=11 // pred_region
          _
        $region44: #{convnet_forward.1} parent=11 // pred_fallthru
          _
        // Predicated region
        $region45: #{convnet_forward.1} parent=11 // pred_check
          %p365 = pneg %p237
        $region46: #{convnet_forward.1} parent=11 // pred_check_branch
          %367 = sbr.rel (%p365) target = $region48
        $region47: #{convnet_forward.1} parent=11 // pred_region
          _
        $region48: #{convnet_forward.1} parent=11 // pred_fallthru
          _
        // Predicated region
        $region49: #{convnet_forward.1} parent=11 // pred_check
          %p368 = pneg %p258
        $region50: #{convnet_forward.1} parent=11 // pred_check_branch
          %370 = sbr.rel (%p368) target = $region52
        $region51: #{convnet_forward.1} parent=11 // pred_region
          _
        $region52: #{convnet_forward.1} parent=11 // pred_fallthru
          _
        // Predicated region
        $region53: #{convnet_forward.1} parent=11 // pred_check
          %p371 = pneg %p279
        $region54: #{convnet_forward.1} parent=11 // pred_check_branch
          %373 = sbr.rel (%p371) target = $region56
        $region55: #{convnet_forward.1} parent=11 // pred_region
          _
        $region56: #{convnet_forward.1} parent=11 // pred_fallthru
          _
        // Predicated region
        $region57: #{convnet_forward.1} parent=11 // pred_check
          %p374 = pneg %p300
        $region58: #{convnet_forward.1} parent=11 // pred_check_branch
          %376 = sbr.rel (%p374) target = $region60
        $region59: #{convnet_forward.1} parent=11 // pred_region
          _
        $region60: #{convnet_forward.1} parent=11 // pred_fallthru
          _
      $region12: #{convnet_forward.1} parent=5 // pred_fallthru
        _
      %p377 = scmp.lt.s32.totalorder %s22, 2
      // Predicated region
      $region61: #{convnet_forward.1} parent=5 // pred_check
        %p378 = pneg %p377
      $region62: #{convnet_forward.1} parent=5 // pred_check_branch
        %380 = sbr.rel (%p378) target = $region64
      $region63: #{convnet_forward.1} parent=5 // pred_region
        // Predicated region
        $region65: #{convnet_forward.1} parent=63 // pred_check
          %p381 = pneg %p42
        $region66: #{convnet_forward.1} parent=63 // pred_check_branch
          %383 = sbr.rel (%p381) target = $region68
        $region67: #{convnet_forward.1} parent=63 // pred_region
          %p384 = scmp.lt.s32.totalorder %s22, 1
          %s385 = scalar_select %p384, %s22, 1
          %s386 = smul.addr %s385, 32
          %s387 = smul.addr %s386, 4
          %s388 = scalar_lea.vmem %s0, %s387
        $region68: #{convnet_forward.1} parent=63 // pred_fallthru
          _
      $region64: #{convnet_forward.1} parent=5 // pred_fallthru
        _
      %p389 = scmp.le.s32.totalorder 1, %s22
      %p390 = scmp.lt.s32.totalorder %s22, 3
      %p391 = pnand %p389, %p390
      %p392 = pneg %p391
      // Predicated region
      $region69: #{convnet_forward.1} parent=5 // pred_check
        _
      $region70: #{convnet_forward.1} parent=5 // pred_check_branch
        %394 = sbr.rel (%p391) target = $region72
      $region71: #{convnet_forward.1} parent=5 // pred_region
        %s395 = ssub.s32 %s22, 1
        %p396 = scmp.lt.s32.totalorder %s27, 1
        %s397 = scalar_select %p396, %s27, 1
        %s398 = smul.addr %s397, 32
        %s399 = smul.addr %s398, 4
        %s400 = scalar_lea.vmem %s0, %s399
        %p401 = pneg %p48
        %p402 = pneg %p45
        %p403 = pneg %p69
        %p404 = pneg %p66
        %p405 = pneg %p90
        %p406 = pneg %p87
        %p407 = pneg %p111
        %p408 = pneg %p108
        %p409 = pneg %p132
        %p410 = pneg %p129
        %p411 = pneg %p153
        %p412 = pneg %p150
        %p413 = pneg %p174
        %p414 = pneg %p171
        %p415 = pneg %p195
        %p416 = pneg %p192
        %p417 = pneg %p216
        %p418 = pneg %p213
        %p419 = pneg %p237
        %p420 = pneg %p234
        %p421 = pneg %p258
        %p422 = pneg %p255
        %p423 = pneg %p279
        %p424 = pneg %p276
        %p425 = pneg %p300
        %p426 = pneg %p297
        %p427 = pneg %p326
        %p428 = pneg %p323
        %s429 = sand.u32 %s313, 1
        %s430 = scalar_lea.sflag [#allocation9], %s429
        %s431 = sand.u32 %s313, 1
        %s432 = scalar_lea.vmem [#allocation8], %s431
        %p433 = scmp.lt.s32.totalorder %s27, 1
        %s434 = scalar_select %p433, %s27, 1
        %s435 = smul.addr %s434, 32
        %s436 = smul.addr %s435, 4
        %s437 = scalar_lea.vmem %s0, %s436
        %vm439 = vcmask 27648
        %440 = vst.msk [vmem:[#allocation2] sm:$0xf] %vm439, 0
        %441 = vst.msk [vmem:[#allocation2 + $0x4] sm:$0xf] %vm439, 0
        %vm442 = vcmask 24576
        %443 = vst.msk [vmem:[#allocation2 + $0x8] sm:$0x1] %vm442, 0
        %s444 = scalar_lea.vmem [#allocation2], 204
        %445 = vst.msk [vmem:[%s444] sm:$0xf] %vm439, 0
        %446 = vst.msk [vmem:[%s444 + $0x4] sm:$0xf] %vm439, 0
        %447 = vst.msk [vmem:[%s444 + $0x8] sm:$0x1] %vm442, 0
        %s448 = scalar_lea.vmem [#allocation2], 12
        %vm449 = vcmask 24576
        %vm450 = vsmask.f32 256
        %vm451 = vmand %vm449, %vm450
        %v452 = vld [vmem:[%s448] sm:$0x1]
        %v453 = vsel %vm451, 0, %v452
        %454 = vst [vmem:[%s448] sm:$0x1] %v453
        %v455 = vld [vmem:[%s448 + $0xc] sm:$0x1]
        %v456 = vsel %vm451, 0, %v455
        %457 = vst [vmem:[%s448 + $0xc] sm:$0x1] %v456
        %v458 = vld [vmem:[%s448 + $0x18] sm:$0x1]
        %v459 = vsel %vm451, 0, %v458
        %460 = vst [vmem:[%s448 + $0x18] sm:$0x1] %v459
        %v461 = vld [vmem:[%s448 + $0x24] sm:$0x1]
        %v462 = vsel %vm451, 0, %v461
        %463 = vst [vmem:[%s448 + $0x24] sm:$0x1] %v462
        %v464 = vld [vmem:[%s448 + $0x30] sm:$0x1]
        %v465 = vsel %vm451, 0, %v464
        %466 = vst [vmem:[%s448 + $0x30] sm:$0x1] %v465
        %v467 = vld [vmem:[%s448 + $0x3c] sm:$0x1]
        %v468 = vsel %vm451, 0, %v467
        %469 = vst [vmem:[%s448 + $0x3c] sm:$0x1] %v468
        %v470 = vld [vmem:[%s448 + $0x48] sm:$0x1]
        %v471 = vsel %vm451, 0, %v470
        %472 = vst [vmem:[%s448 + $0x48] sm:$0x1] %v471
        %v473 = vld [vmem:[%s448 + $0x54] sm:$0x1]
        %v474 = vsel %vm451, 0, %v473
        %475 = vst [vmem:[%s448 + $0x54] sm:$0x1] %v474
        %v476 = vld [vmem:[%s448 + $0x60] sm:$0x1]
        %v477 = vsel %vm451, 0, %v476
        %478 = vst [vmem:[%s448 + $0x60] sm:$0x1] %v477
        %v479 = vld [vmem:[%s448 + $0x6c] sm:$0x1]
        %v480 = vsel %vm451, 0, %v479
        %481 = vst [vmem:[%s448 + $0x6c] sm:$0x1] %v480
        %v482 = vld [vmem:[%s448 + $0x78] sm:$0x1]
        %v483 = vsel %vm451, 0, %v482
        %484 = vst [vmem:[%s448 + $0x78] sm:$0x1] %v483
        %v485 = vld [vmem:[%s448 + $0x84] sm:$0x1]
        %v486 = vsel %vm451, 0, %v485
        %487 = vst [vmem:[%s448 + $0x84] sm:$0x1] %v486
        %v488 = vld [vmem:[%s448 + $0x90] sm:$0x1]
        %v489 = vsel %vm451, 0, %v488
        %490 = vst [vmem:[%s448 + $0x90] sm:$0x1] %v489
        %v491 = vld [vmem:[%s448 + $0x9c] sm:$0x1]
        %v492 = vsel %vm451, 0, %v491
        %493 = vst [vmem:[%s448 + $0x9c] sm:$0x1] %v492
        %v494 = vld [vmem:[%s448 + $0xa8] sm:$0x1]
        %v495 = vsel %vm451, 0, %v494
        %496 = vst [vmem:[%s448 + $0xa8] sm:$0x1] %v495
        %v497 = vld [vmem:[%s448 + $0xb4] sm:$0x1]
        %v498 = vsel %vm451, 0, %v497
        %499 = vst [vmem:[%s448 + $0xb4] sm:$0x1] %v498
        %vm500 = vsmask.f32 7938
        %vm501 = vmand %vm449, %vm500
        %v502 = vld [vmem:[%s448 + $0x8] sm:$0x1]
        %v503 = vsel %vm501, 0, %v502
        %504 = vst [vmem:[%s448 + $0x8] sm:$0x1] %v503
        %v505 = vld [vmem:[%s448 + $0x14] sm:$0x1]
        %v506 = vsel %vm501, 0, %v505
        %507 = vst [vmem:[%s448 + $0x14] sm:$0x1] %v506
        %v508 = vld [vmem:[%s448 + $0x20] sm:$0x1]
        %v509 = vsel %vm501, 0, %v508
        %510 = vst [vmem:[%s448 + $0x20] sm:$0x1] %v509
        %v511 = vld [vmem:[%s448 + $0x2c] sm:$0x1]
        %v512 = vsel %vm501, 0, %v511
        %513 = vst [vmem:[%s448 + $0x2c] sm:$0x1] %v512
        %v514 = vld [vmem:[%s448 + $0x38] sm:$0x1]
        %v515 = vsel %vm501, 0, %v514
        %516 = vst [vmem:[%s448 + $0x38] sm:$0x1] %v515
        %v517 = vld [vmem:[%s448 + $0x44] sm:$0x1]
        %v518 = vsel %vm501, 0, %v517
        %519 = vst [vmem:[%s448 + $0x44] sm:$0x1] %v518
        %v520 = vld [vmem:[%s448 + $0x50] sm:$0x1]
        %v521 = vsel %vm501, 0, %v520
        %522 = vst [vmem:[%s448 + $0x50] sm:$0x1] %v521
        %v523 = vld [vmem:[%s448 + $0x5c] sm:$0x1]
        %v524 = vsel %vm501, 0, %v523
        %525 = vst [vmem:[%s448 + $0x5c] sm:$0x1] %v524
        %v526 = vld [vmem:[%s448 + $0x68] sm:$0x1]
        %v527 = vsel %vm501, 0, %v526
        %528 = vst [vmem:[%s448 + $0x68] sm:$0x1] %v527
        %v529 = vld [vmem:[%s448 + $0x74] sm:$0x1]
        %v530 = vsel %vm501, 0, %v529
        %531 = vst [vmem:[%s448 + $0x74] sm:$0x1] %v530
        %v532 = vld [vmem:[%s448 + $0x80] sm:$0x1]
        %v533 = vsel %vm501, 0, %v532
        %534 = vst [vmem:[%s448 + $0x80] sm:$0x1] %v533
        %v535 = vld [vmem:[%s448 + $0x8c] sm:$0x1]
        %v536 = vsel %vm501, 0, %v535
        %537 = vst [vmem:[%s448 + $0x8c] sm:$0x1] %v536
        %v538 = vld [vmem:[%s448 + $0x98] sm:$0x1]
        %v539 = vsel %vm501, 0, %v538
        %540 = vst [vmem:[%s448 + $0x98] sm:$0x1] %v539
        %v541 = vld [vmem:[%s448 + $0xa4] sm:$0x1]
        %v542 = vsel %vm501, 0, %v541
        %543 = vst [vmem:[%s448 + $0xa4] sm:$0x1] %v542
        %v544 = vld [vmem:[%s448 + $0xb0] sm:$0x1]
        %v545 = vsel %vm501, 0, %v544
        %546 = vst [vmem:[%s448 + $0xb0] sm:$0x1] %v545
        %v547 = vld [vmem:[%s448 + $0xbc] sm:$0x1]
        %v548 = vsel %vm501, 0, %v547
        %549 = vst [vmem:[%s448 + $0xbc] sm:$0x1] %v548
        %v550 = vld [vmem:[%s437] sm:$0xf]
        %v551 = vld [vmem:[%s437 + $0x4] sm:$0xf]
        %v552 = vld [vmem:[%s437 + $0x8] sm:$0xf]
        %v553 = vld [vmem:[%s437 + $0xc] sm:$0xf]
        %v554 = vld [vmem:[%s437 + $0x10] sm:$0xf]
        %v555 = vld [vmem:[%s437 + $0x14] sm:$0xf]
        %v556 = vld [vmem:[%s437 + $0x18] sm:$0xf]
        %v557 = vld [vmem:[%s437 + $0x1c] sm:$0xf]
        %v558 = vld [vmem:[%s437 + $0x20] sm:$0xf]
        %v559 = vld [vmem:[%s437 + $0x24] sm:$0xf]
        %v560 = vld [vmem:[%s437 + $0x28] sm:$0xf]
        %v561 = vld [vmem:[%s437 + $0x2c] sm:$0xf]
        %v562 = vld [vmem:[%s437 + $0x30] sm:$0xf]
        %v563 = vld [vmem:[%s437 + $0x34] sm:$0xf]
        %v564 = vld [vmem:[%s437 + $0x38] sm:$0xf]
        %v565 = vld [vmem:[%s437 + $0x3c] sm:$0xf]
        %v566 = vld [vmem:[%s437 + $0x40] sm:$0xf]
        %v567 = vld [vmem:[%s437 + $0x44] sm:$0xf]
        %v568 = vld [vmem:[%s437 + $0x48] sm:$0xf]
        %v569 = vld [vmem:[%s437 + $0x4c] sm:$0xf]
        %v570 = vld [vmem:[%s437 + $0x50] sm:$0xf]
        %v571 = vld [vmem:[%s437 + $0x54] sm:$0xf]
        %v572 = vld [vmem:[%s437 + $0x58] sm:$0xf]
        %v573 = vld [vmem:[%s437 + $0x5c] sm:$0xf]
        %v574 = vld [vmem:[%s437 + $0x60] sm:$0xf]
        %v575 = vld [vmem:[%s437 + $0x64] sm:$0xf]
        %v576 = vld [vmem:[%s437 + $0x68] sm:$0xf]
        %v577 = vld [vmem:[%s437 + $0x6c] sm:$0xf]
        %v578 = vld [vmem:[%s437 + $0x70] sm:$0xf]
        %v579 = vld [vmem:[%s437 + $0x74] sm:$0xf]
        %v580 = vld [vmem:[%s437 + $0x78] sm:$0xf]
        %v581 = vld [vmem:[%s437 + $0x7c] sm:$0xf]
        %vm582 = vsmask.f32 4368
        %vm583 = vmor %vm450, %vm582
        %v585 = vshrl.u32 %v550, 16
        %v587 = vrot.slane %v585, 7
        %v588 = vshll.u32 %v550, 16
        %v590 = vor.u32 %v587, %v588
        %v591 = vrot.slane %v587, 4
        %v593 = vshrl.u32 %v551, 16
        %v595 = vrot.slane %v593, 7
        %v596 = vshll.u32 %v551, 16
        %v598 = vor.u32 %v595, %v596
        %v599 = vsel %vm583, %v591, %v598
        %v600 = vrot.slane %v595, 4
        %v602 = vshrl.u32 %v552, 16
        %v604 = vrot.slane %v602, 7
        %v605 = vshll.u32 %v552, 16
        %v607 = vor.u32 %v604, %v605
        %v608 = vrot.slane %v604, 4
        %v610 = vshrl.u32 %v553, 16
        %v612 = vrot.slane %v610, 7
        %v613 = vshll.u32 %v553, 16
        %v615 = vor.u32 %v612, %v613
        %v616 = vsel %vm583, %v608, %v615
        %v617 = vrot.slane %v612, 4
        %v619 = vshrl.u32 %v554, 16
        %v621 = vrot.slane %v619, 7
        %v622 = vshll.u32 %v554, 16
        %v624 = vor.u32 %v621, %v622
        %v625 = vrot.slane %v621, 4
        %v627 = vshrl.u32 %v555, 16
        %v629 = vrot.slane %v627, 7
        %v630 = vshll.u32 %v555, 16
        %v632 = vor.u32 %v629, %v630
        %v633 = vsel %vm583, %v625, %v632
        %v634 = vrot.slane %v629, 4
        %v636 = vshrl.u32 %v556, 16
        %v638 = vrot.slane %v636, 7
        %v639 = vshll.u32 %v556, 16
        %v641 = vor.u32 %v638, %v639
        %v642 = vrot.slane %v638, 4
        %v644 = vshrl.u32 %v557, 16
        %v646 = vrot.slane %v644, 7
        %v647 = vshll.u32 %v557, 16
        %v649 = vor.u32 %v646, %v647
        %v650 = vsel %vm583, %v642, %v649
        %v651 = vrot.slane %v646, 4
        %v653 = vshrl.u32 %v558, 16
        %v655 = vrot.slane %v653, 7
        %v656 = vshll.u32 %v558, 16
        %v658 = vor.u32 %v655, %v656
        %v659 = vrot.slane %v655, 4
        %v661 = vshrl.u32 %v559, 16
        %v663 = vrot.slane %v661, 7
        %v664 = vshll.u32 %v559, 16
        %v666 = vor.u32 %v663, %v664
        %v667 = vsel %vm583, %v659, %v666
        %v668 = vrot.slane %v663, 4
        %v670 = vshrl.u32 %v560, 16
        %v672 = vrot.slane %v670, 7
        %v673 = vshll.u32 %v560, 16
        %v675 = vor.u32 %v672, %v673
        %v676 = vrot.slane %v672, 4
        %v678 = vshrl.u32 %v561, 16
        %v680 = vrot.slane %v678, 7
        %v681 = vshll.u32 %v561, 16
        %v683 = vor.u32 %v680, %v681
        %v684 = vsel %vm583, %v676, %v683
        %v685 = vrot.slane %v680, 4
        %v687 = vshrl.u32 %v562, 16
        %v689 = vrot.slane %v687, 7
        %v690 = vshll.u32 %v562, 16
        %v692 = vor.u32 %v689, %v690
        %v693 = vrot.slane %v689, 4
        %v695 = vshrl.u32 %v563, 16
        %v697 = vrot.slane %v695, 7
        %v698 = vshll.u32 %v563, 16
        %v700 = vor.u32 %v697, %v698
        %v701 = vsel %vm583, %v693, %v700
        %v702 = vrot.slane %v697, 4
        %v704 = vshrl.u32 %v564, 16
        %v706 = vrot.slane %v704, 7
        %v707 = vshll.u32 %v564, 16
        %v709 = vor.u32 %v706, %v707
        %v710 = vrot.slane %v706, 4
        %v712 = vshrl.u32 %v565, 16
        %v714 = vrot.slane %v712, 7
        %v715 = vshll.u32 %v565, 16
        %v717 = vor.u32 %v714, %v715
        %v718 = vsel %vm583, %v710, %v717
        %v719 = vrot.slane %v714, 4
        %v721 = vshrl.u32 %v566, 16
        %v723 = vrot.slane %v721, 7
        %v724 = vshll.u32 %v566, 16
        %v726 = vor.u32 %v723, %v724
        %v727 = vrot.slane %v723, 4
        %v729 = vshrl.u32 %v567, 16
        %v731 = vrot.slane %v729, 7
        %v732 = vshll.u32 %v567, 16
        %v734 = vor.u32 %v731, %v732
        %v735 = vsel %vm583, %v727, %v734
        %v736 = vrot.slane %v731, 4
        %v738 = vshrl.u32 %v568, 16
        %v740 = vrot.slane %v738, 7
        %v741 = vshll.u32 %v568, 16
        %v743 = vor.u32 %v740, %v741
        %v744 = vrot.slane %v740, 4
        %v746 = vshrl.u32 %v569, 16
        %v748 = vrot.slane %v746, 7
        %v749 = vshll.u32 %v569, 16
        %v751 = vor.u32 %v748, %v749
        %v752 = vsel %vm583, %v744, %v751
        %v753 = vrot.slane %v748, 4
        %v755 = vshrl.u32 %v570, 16
        %v757 = vrot.slane %v755, 7
        %v758 = vshll.u32 %v570, 16
        %v760 = vor.u32 %v757, %v758
        %v761 = vrot.slane %v757, 4
        %v763 = vshrl.u32 %v571, 16
        %v765 = vrot.slane %v763, 7
        %v766 = vshll.u32 %v571, 16
        %v768 = vor.u32 %v765, %v766
        %v769 = vsel %vm583, %v761, %v768
        %v770 = vrot.slane %v765, 4
        %v772 = vshrl.u32 %v572, 16
        %v774 = vrot.slane %v772, 7
        %v775 = vshll.u32 %v572, 16
        %v777 = vor.u32 %v774, %v775
        %v778 = vrot.slane %v774, 4
        %v780 = vshrl.u32 %v573, 16
        %v782 = vrot.slane %v780, 7
        %v783 = vshll.u32 %v573, 16
        %v785 = vor.u32 %v782, %v783
        %v786 = vsel %vm583, %v778, %v785
        %v787 = vrot.slane %v782, 4
        %v789 = vshrl.u32 %v574, 16
        %v791 = vrot.slane %v789, 7
        %v792 = vshll.u32 %v574, 16
        %v794 = vor.u32 %v791, %v792
        %v795 = vrot.slane %v791, 4
        %v797 = vshrl.u32 %v575, 16
        %v799 = vrot.slane %v797, 7
        %v800 = vshll.u32 %v575, 16
        %v802 = vor.u32 %v799, %v800
        %v803 = vsel %vm583, %v795, %v802
        %v804 = vrot.slane %v799, 4
        %v806 = vshrl.u32 %v576, 16
        %v808 = vrot.slane %v806, 7
        %v809 = vshll.u32 %v576, 16
        %v811 = vor.u32 %v808, %v809
        %v812 = vrot.slane %v808, 4
        %v814 = vshrl.u32 %v577, 16
        %v816 = vrot.slane %v814, 7
        %v817 = vshll.u32 %v577, 16
        %v819 = vor.u32 %v816, %v817
        %v820 = vsel %vm583, %v812, %v819
        %v821 = vrot.slane %v816, 4
        %v823 = vshrl.u32 %v578, 16
        %v825 = vrot.slane %v823, 7
        %v826 = vshll.u32 %v578, 16
        %v828 = vor.u32 %v825, %v826
        %v829 = vrot.slane %v825, 4
        %v831 = vshrl.u32 %v579, 16
        %v833 = vrot.slane %v831, 7
        %v834 = vshll.u32 %v579, 16
        %v836 = vor.u32 %v833, %v834
        %v837 = vsel %vm583, %v829, %v836
        %v838 = vrot.slane %v833, 4
        %v840 = vshrl.u32 %v580, 16
        %v842 = vrot.slane %v840, 7
        %v843 = vshll.u32 %v580, 16
        %v845 = vor.u32 %v842, %v843
        %v846 = vrot.slane %v842, 4
        %v848 = vshrl.u32 %v581, 16
        %v850 = vrot.slane %v848, 7
        %v851 = vshll.u32 %v581, 16
        %v853 = vor.u32 %v850, %v851
        %v854 = vsel %vm583, %v846, %v853
        %v855 = vrot.slane %v850, 4
        %vm904 = vcmask 27648
        %vm905 = vmand %vm904, %vm500
        %v906 = vld [vmem:[%s448] sm:$0xf]
        %v907 = vsel %vm905, %v590, %v906
        %908 = vst [vmem:[%s448] sm:$0xf] %v907
        %909 = vst.msk [vmem:[%s448 + $0x4] sm:$0xf] %vm439, %v599
        %v910 = vld [vmem:[%s448 + $0x8] sm:$0x1]
        %v911 = vsel %vm451, %v600, %v910
        %912 = vst [vmem:[%s448 + $0x8] sm:$0x1] %v911
        %v913 = vld [vmem:[%s448 + $0xc] sm:$0xf]
        %v914 = vsel %vm905, %v607, %v913
        %915 = vst [vmem:[%s448 + $0xc] sm:$0xf] %v914
        %916 = vst.msk [vmem:[%s448 + $0x10] sm:$0xf] %vm439, %v616
        %v917 = vld [vmem:[%s448 + $0x14] sm:$0x1]
        %v918 = vsel %vm451, %v617, %v917
        %919 = vst [vmem:[%s448 + $0x14] sm:$0x1] %v918
        %v920 = vld [vmem:[%s448 + $0x18] sm:$0xf]
        %v921 = vsel %vm905, %v624, %v920
        %922 = vst [vmem:[%s448 + $0x18] sm:$0xf] %v921
        %923 = vst.msk [vmem:[%s448 + $0x1c] sm:$0xf] %vm439, %v633
        %v924 = vld [vmem:[%s448 + $0x20] sm:$0x1]
        %v925 = vsel %vm451, %v634, %v924
        %926 = vst [vmem:[%s448 + $0x20] sm:$0x1] %v925
        %v927 = vld [vmem:[%s448 + $0x24] sm:$0xf]
        %v928 = vsel %vm905, %v641, %v927
        %929 = vst [vmem:[%s448 + $0x24] sm:$0xf] %v928
        %930 = vst.msk [vmem:[%s448 + $0x28] sm:$0xf] %vm439, %v650
        %v931 = vld [vmem:[%s448 + $0x2c] sm:$0x1]
        %v932 = vsel %vm451, %v651, %v931
        %933 = vst [vmem:[%s448 + $0x2c] sm:$0x1] %v932
        %v934 = vld [vmem:[%s448 + $0x30] sm:$0xf]
        %v935 = vsel %vm905, %v658, %v934
        %936 = vst [vmem:[%s448 + $0x30] sm:$0xf] %v935
        %937 = vst.msk [vmem:[%s448 + $0x34] sm:$0xf] %vm439, %v667
        %v938 = vld [vmem:[%s448 + $0x38] sm:$0x1]
        %v939 = vsel %vm451, %v668, %v938
        %940 = vst [vmem:[%s448 + $0x38] sm:$0x1] %v939
        %v941 = vld [vmem:[%s448 + $0x3c] sm:$0xf]
        %v942 = vsel %vm905, %v675, %v941
        %943 = vst [vmem:[%s448 + $0x3c] sm:$0xf] %v942
        %944 = vst.msk [vmem:[%s448 + $0x40] sm:$0xf] %vm439, %v684
        %v945 = vld [vmem:[%s448 + $0x44] sm:$0x1]
        %v946 = vsel %vm451, %v685, %v945
        %947 = vst [vmem:[%s448 + $0x44] sm:$0x1] %v946
        %v948 = vld [vmem:[%s448 + $0x48] sm:$0xf]
        %v949 = vsel %vm905, %v692, %v948
        %950 = vst [vmem:[%s448 + $0x48] sm:$0xf] %v949
        %951 = vst.msk [vmem:[%s448 + $0x4c] sm:$0xf] %vm439, %v701
        %v952 = vld [vmem:[%s448 + $0x50] sm:$0x1]
        %v953 = vsel %vm451, %v702, %v952
        %954 = vst [vmem:[%s448 + $0x50] sm:$0x1] %v953
        %v955 = vld [vmem:[%s448 + $0x54] sm:$0xf]
        %v956 = vsel %vm905, %v709, %v955
        %957 = vst [vmem:[%s448 + $0x54] sm:$0xf] %v956
        %958 = vst.msk [vmem:[%s448 + $0x58] sm:$0xf] %vm439, %v718
        %v959 = vld [vmem:[%s448 + $0x5c] sm:$0x1]
        %v960 = vsel %vm451, %v719, %v959
        %961 = vst [vmem:[%s448 + $0x5c] sm:$0x1] %v960
        %v962 = vld [vmem:[%s448 + $0x60] sm:$0xf]
        %v963 = vsel %vm905, %v726, %v962
        %964 = vst [vmem:[%s448 + $0x60] sm:$0xf] %v963
        %965 = vst.msk [vmem:[%s448 + $0x64] sm:$0xf] %vm439, %v735
        %v966 = vld [vmem:[%s448 + $0x68] sm:$0x1]
        %v967 = vsel %vm451, %v736, %v966
        %968 = vst [vmem:[%s448 + $0x68] sm:$0x1] %v967
        %v969 = vld [vmem:[%s448 + $0x6c] sm:$0xf]
        %v970 = vsel %vm905, %v743, %v969
        %971 = vst [vmem:[%s448 + $0x6c] sm:$0xf] %v970
        %972 = vst.msk [vmem:[%s448 + $0x70] sm:$0xf] %vm439, %v752
        %v973 = vld [vmem:[%s448 + $0x74] sm:$0x1]
        %v974 = vsel %vm451, %v753, %v973
        %975 = vst [vmem:[%s448 + $0x74] sm:$0x1] %v974
        %v976 = vld [vmem:[%s448 + $0x78] sm:$0xf]
        %v977 = vsel %vm905, %v760, %v976
        %978 = vst [vmem:[%s448 + $0x78] sm:$0xf] %v977
        %979 = vst.msk [vmem:[%s448 + $0x7c] sm:$0xf] %vm439, %v769
        %v980 = vld [vmem:[%s448 + $0x80] sm:$0x1]
        %v981 = vsel %vm451, %v770, %v980
        %982 = vst [vmem:[%s448 + $0x80] sm:$0x1] %v981
        %v983 = vld [vmem:[%s448 + $0x84] sm:$0xf]
        %v984 = vsel %vm905, %v777, %v983
        %985 = vst [vmem:[%s448 + $0x84] sm:$0xf] %v984
        %986 = vst.msk [vmem:[%s448 + $0x88] sm:$0xf] %vm439, %v786
        %v987 = vld [vmem:[%s448 + $0x8c] sm:$0x1]
        %v988 = vsel %vm451, %v787, %v987
        %989 = vst [vmem:[%s448 + $0x8c] sm:$0x1] %v988
        %v990 = vld [vmem:[%s448 + $0x90] sm:$0xf]
        %v991 = vsel %vm905, %v794, %v990
        %992 = vst [vmem:[%s448 + $0x90] sm:$0xf] %v991
        %993 = vst.msk [vmem:[%s448 + $0x94] sm:$0xf] %vm439, %v803
        %v994 = vld [vmem:[%s448 + $0x98] sm:$0x1]
        %v995 = vsel %vm451, %v804, %v994
        %996 = vst [vmem:[%s448 + $0x98] sm:$0x1] %v995
        %v997 = vld [vmem:[%s448 + $0x9c] sm:$0xf]
        %v998 = vsel %vm905, %v811, %v997
        %999 = vst [vmem:[%s448 + $0x9c] sm:$0xf] %v998
        %1000 = vst.msk [vmem:[%s448 + $0xa0] sm:$0xf] %vm439, %v820
        %v1001 = vld [vmem:[%s448 + $0xa4] sm:$0x1]
        %v1002 = vsel %vm451, %v821, %v1001
        %1003 = vst [vmem:[%s448 + $0xa4] sm:$0x1] %v1002
        %v1004 = vld [vmem:[%s448 + $0xa8] sm:$0xf]
        %v1005 = vsel %vm905, %v828, %v1004
        %1006 = vst [vmem:[%s448 + $0xa8] sm:$0xf] %v1005
        %1007 = vst.msk [vmem:[%s448 + $0xac] sm:$0xf] %vm439, %v837
        %v1008 = vld [vmem:[%s448 + $0xb0] sm:$0x1]
        %v1009 = vsel %vm451, %v838, %v1008
        %1010 = vst [vmem:[%s448 + $0xb0] sm:$0x1] %v1009
        %v1011 = vld [vmem:[%s448 + $0xb4] sm:$0xf]
        %v1012 = vsel %vm905, %v845, %v1011
        %1013 = vst [vmem:[%s448 + $0xb4] sm:$0xf] %v1012
        %1014 = vst.msk [vmem:[%s448 + $0xb8] sm:$0xf] %vm439, %v854
        %v1015 = vld [vmem:[%s448 + $0xbc] sm:$0x1]
        %v1016 = vsel %vm451, %v855, %v1015
        %1017 = vst [vmem:[%s448 + $0xbc] sm:$0x1] %v1016
        %vm1018 = vcmask 257024
        %1019 = vst.msk [vmem:[#allocation3] sm:$0xf] %vm1018, 0
        %1020 = vst.msk [vmem:[#allocation3 + $0x4] sm:$0xf] %vm1018, 0
        %vm1021 = vcmask 253952
        %1022 = vst.msk [vmem:[#allocation3 + $0x8] sm:$0x1] %vm1021, 0
        %s1023 = scalar_lea.vmem [#allocation3], 204
        %1024 = vst.msk [vmem:[%s1023] sm:$0xf] %vm1018, 0
        %1025 = vst.msk [vmem:[%s1023 + $0x4] sm:$0xf] %vm1018, 0
        %1026 = vst.msk [vmem:[%s1023 + $0x8] sm:$0x1] %vm1021, 0
        %s1027 = scalar_lea.vmem [#allocation3], 12
        %vm1028 = vcmask 253952
        %vm1029 = vmand %vm1028, %vm450
        %v1030 = vld [vmem:[%s1027] sm:$0x1]
        %v1031 = vsel %vm1029, 0, %v1030
        %1032 = vst [vmem:[%s1027] sm:$0x1] %v1031
        %v1033 = vld [vmem:[%s1027 + $0xc] sm:$0x1]
        %v1034 = vsel %vm1029, 0, %v1033
        %1035 = vst [vmem:[%s1027 + $0xc] sm:$0x1] %v1034
        %v1036 = vld [vmem:[%s1027 + $0x18] sm:$0x1]
        %v1037 = vsel %vm1029, 0, %v1036
        %1038 = vst [vmem:[%s1027 + $0x18] sm:$0x1] %v1037
        %v1039 = vld [vmem:[%s1027 + $0x24] sm:$0x1]
        %v1040 = vsel %vm1029, 0, %v1039
        %1041 = vst [vmem:[%s1027 + $0x24] sm:$0x1] %v1040
        %v1042 = vld [vmem:[%s1027 + $0x30] sm:$0x1]
        %v1043 = vsel %vm1029, 0, %v1042
        %1044 = vst [vmem:[%s1027 + $0x30] sm:$0x1] %v1043
        %v1045 = vld [vmem:[%s1027 + $0x3c] sm:$0x1]
        %v1046 = vsel %vm1029, 0, %v1045
        %1047 = vst [vmem:[%s1027 + $0x3c] sm:$0x1] %v1046
        %v1048 = vld [vmem:[%s1027 + $0x48] sm:$0x1]
        %v1049 = vsel %vm1029, 0, %v1048
        %1050 = vst [vmem:[%s1027 + $0x48] sm:$0x1] %v1049
        %v1051 = vld [vmem:[%s1027 + $0x54] sm:$0x1]
        %v1052 = vsel %vm1029, 0, %v1051
        %1053 = vst [vmem:[%s1027 + $0x54] sm:$0x1] %v1052
        %v1054 = vld [vmem:[%s1027 + $0x60] sm:$0x1]
        %v1055 = vsel %vm1029, 0, %v1054
        %1056 = vst [vmem:[%s1027 + $0x60] sm:$0x1] %v1055
        %v1057 = vld [vmem:[%s1027 + $0x6c] sm:$0x1]
        %v1058 = vsel %vm1029, 0, %v1057
        %1059 = vst [vmem:[%s1027 + $0x6c] sm:$0x1] %v1058
        %v1060 = vld [vmem:[%s1027 + $0x78] sm:$0x1]
        %v1061 = vsel %vm1029, 0, %v1060
        %1062 = vst [vmem:[%s1027 + $0x78] sm:$0x1] %v1061
        %v1063 = vld [vmem:[%s1027 + $0x84] sm:$0x1]
        %v1064 = vsel %vm1029, 0, %v1063
        %1065 = vst [vmem:[%s1027 + $0x84] sm:$0x1] %v1064
        %v1066 = vld [vmem:[%s1027 + $0x90] sm:$0x1]
        %v1067 = vsel %vm1029, 0, %v1066
        %1068 = vst [vmem:[%s1027 + $0x90] sm:$0x1] %v1067
        %v1069 = vld [vmem:[%s1027 + $0x9c] sm:$0x1]
        %v1070 = vsel %vm1029, 0, %v1069
        %1071 = vst [vmem:[%s1027 + $0x9c] sm:$0x1] %v1070
        %v1072 = vld [vmem:[%s1027 + $0xa8] sm:$0x1]
        %v1073 = vsel %vm1029, 0, %v1072
        %1074 = vst [vmem:[%s1027 + $0xa8] sm:$0x1] %v1073
        %v1075 = vld [vmem:[%s1027 + $0xb4] sm:$0x1]
        %v1076 = vsel %vm1029, 0, %v1075
        %1077 = vst [vmem:[%s1027 + $0xb4] sm:$0x1] %v1076
        %vm1078 = vmand %vm1028, %vm500
        %v1079 = vld [vmem:[%s1027 + $0x8] sm:$0x1]
        %v1080 = vsel %vm1078, 0, %v1079
        %1081 = vst [vmem:[%s1027 + $0x8] sm:$0x1] %v1080
        %v1082 = vld [vmem:[%s1027 + $0x14] sm:$0x1]
        %v1083 = vsel %vm1078, 0, %v1082
        %1084 = vst [vmem:[%s1027 + $0x14] sm:$0x1] %v1083
        %v1085 = vld [vmem:[%s1027 + $0x20] sm:$0x1]
        %v1086 = vsel %vm1078, 0, %v1085
        %1087 = vst [vmem:[%s1027 + $0x20] sm:$0x1] %v1086
        %v1088 = vld [vmem:[%s1027 + $0x2c] sm:$0x1]
        %v1089 = vsel %vm1078, 0, %v1088
        %1090 = vst [vmem:[%s1027 + $0x2c] sm:$0x1] %v1089
        %v1091 = vld [vmem:[%s1027 + $0x38] sm:$0x1]
        %v1092 = vsel %vm1078, 0, %v1091
        %1093 = vst [vmem:[%s1027 + $0x38] sm:$0x1] %v1092
        %v1094 = vld [vmem:[%s1027 + $0x44] sm:$0x1]
        %v1095 = vsel %vm1078, 0, %v1094
        %1096 = vst [vmem:[%s1027 + $0x44] sm:$0x1] %v1095
        %v1097 = vld [vmem:[%s1027 + $0x50] sm:$0x1]
        %v1098 = vsel %vm1078, 0, %v1097
        %1099 = vst [vmem:[%s1027 + $0x50] sm:$0x1] %v1098
        %v1100 = vld [vmem:[%s1027 + $0x5c] sm:$0x1]
        %v1101 = vsel %vm1078, 0, %v1100
        %1102 = vst [vmem:[%s1027 + $0x5c] sm:$0x1] %v1101
        %v1103 = vld [vmem:[%s1027 + $0x68] sm:$0x1]
        %v1104 = vsel %vm1078, 0, %v1103
        %1105 = vst [vmem:[%s1027 + $0x68] sm:$0x1] %v1104
        %v1106 = vld [vmem:[%s1027 + $0x74] sm:$0x1]
        %v1107 = vsel %vm1078, 0, %v1106
        %1108 = vst [vmem:[%s1027 + $0x74] sm:$0x1] %v1107
        %v1109 = vld [vmem:[%s1027 + $0x80] sm:$0x1]
        %v1110 = vsel %vm1078, 0, %v1109
        %1111 = vst [vmem:[%s1027 + $0x80] sm:$0x1] %v1110
        %v1112 = vld [vmem:[%s1027 + $0x8c] sm:$0x1]
        %v1113 = vsel %vm1078, 0, %v1112
        %1114 = vst [vmem:[%s1027 + $0x8c] sm:$0x1] %v1113
        %v1115 = vld [vmem:[%s1027 + $0x98] sm:$0x1]
        %v1116 = vsel %vm1078, 0, %v1115
        %1117 = vst [vmem:[%s1027 + $0x98] sm:$0x1] %v1116
        %v1118 = vld [vmem:[%s1027 + $0xa4] sm:$0x1]
        %v1119 = vsel %vm1078, 0, %v1118
        %1120 = vst [vmem:[%s1027 + $0xa4] sm:$0x1] %v1119
        %v1121 = vld [vmem:[%s1027 + $0xb0] sm:$0x1]
        %v1122 = vsel %vm1078, 0, %v1121
        %1123 = vst [vmem:[%s1027 + $0xb0] sm:$0x1] %v1122
        %v1124 = vld [vmem:[%s1027 + $0xbc] sm:$0x1]
        %v1125 = vsel %vm1078, 0, %v1124
        %1126 = vst [vmem:[%s1027 + $0xbc] sm:$0x1] %v1125
        %v1127 = vld [vmem:[#allocation2] sm:$0xf]
        %v1128 = vld [vmem:[#allocation2 + $0x4] sm:$0xf]
        %v1129 = vld [vmem:[#allocation2 + $0xc] sm:$0xf]
        %v1130 = vld [vmem:[#allocation2 + $0x10] sm:$0xf]
        %v1131 = vld [vmem:[#allocation2 + $0x18] sm:$0xf]
        %v1132 = vld [vmem:[#allocation2 + $0x1c] sm:$0xf]
        %v1133 = vld [vmem:[#allocation2 + $0x24] sm:$0xf]
        %v1134 = vld [vmem:[#allocation2 + $0x28] sm:$0xf]
        %v1135 = vld [vmem:[#allocation2 + $0x30] sm:$0xf]
        %v1136 = vld [vmem:[#allocation2 + $0x34] sm:$0xf]
        %v1137 = vld [vmem:[#allocation2 + $0x3c] sm:$0xf]
        %v1138 = vld [vmem:[#allocation2 + $0x40] sm:$0xf]
        %v1139 = vld [vmem:[#allocation2 + $0x48] sm:$0xf]
        %v1140 = vld [vmem:[#allocation2 + $0x4c] sm:$0xf]
        %v1141 = vld [vmem:[#allocation2 + $0x54] sm:$0xf]
        %v1142 = vld [vmem:[#allocation2 + $0x58] sm:$0xf]
        %v1143 = vld [vmem:[#allocation2 + $0x60] sm:$0xf]
        %v1144 = vld [vmem:[#allocation2 + $0x64] sm:$0xf]
        %v1145 = vld [vmem:[#allocation2 + $0x6c] sm:$0xf]
        %v1146 = vld [vmem:[#allocation2 + $0x70] sm:$0xf]
        %v1147 = vld [vmem:[#allocation2 + $0x78] sm:$0xf]
        %v1148 = vld [vmem:[#allocation2 + $0x7c] sm:$0xf]
        %v1149 = vld [vmem:[#allocation2 + $0x84] sm:$0xf]
        %v1150 = vld [vmem:[#allocation2 + $0x88] sm:$0xf]
        %v1151 = vld [vmem:[#allocation2 + $0x90] sm:$0xf]
        %v1152 = vld [vmem:[#allocation2 + $0x94] sm:$0xf]
        %v1153 = vld [vmem:[#allocation2 + $0x9c] sm:$0xf]
        %v1154 = vld [vmem:[#allocation2 + $0xa0] sm:$0xf]
        %v1155 = vld [vmem:[#allocation2 + $0xa8] sm:$0xf]
        %v1156 = vld [vmem:[#allocation2 + $0xac] sm:$0xf]
        %v1157 = vld [vmem:[#allocation2 + $0xb4] sm:$0xf]
        %v1158 = vld [vmem:[#allocation2 + $0xb8] sm:$0xf]
        %v1159 = vld [vmem:[#allocation2 + $0xc0] sm:$0xf]
        %v1160 = vld [vmem:[#allocation2 + $0xc4] sm:$0xf]
        %v1161 = vld [vmem:[#allocation2 + $0xcc] sm:$0xf]
        %v1162 = vld [vmem:[#allocation2 + $0xd0] sm:$0xf]
        %v1163 = vld [vmem:[#allocation2 + $0x8] sm:$0x1]
        %v1164 = vld [vmem:[#allocation2 + $0x14] sm:$0x1]
        %v1165 = vld [vmem:[#allocation2 + $0x20] sm:$0x1]
        %v1166 = vld [vmem:[#allocation2 + $0x2c] sm:$0x1]
        %v1167 = vld [vmem:[#allocation2 + $0x38] sm:$0x1]
        %v1168 = vld [vmem:[#allocation2 + $0x44] sm:$0x1]
        %v1169 = vld [vmem:[#allocation2 + $0x50] sm:$0x1]
        %v1170 = vld [vmem:[#allocation2 + $0x5c] sm:$0x1]
        %v1171 = vld [vmem:[#allocation2 + $0x68] sm:$0x1]
        %v1172 = vld [vmem:[#allocation2 + $0x74] sm:$0x1]
        %v1173 = vld [vmem:[#allocation2 + $0x80] sm:$0x1]
        %v1174 = vld [vmem:[#allocation2 + $0x8c] sm:$0x1]
        %v1175 = vld [vmem:[#allocation2 + $0x98] sm:$0x1]
        %v1176 = vld [vmem:[#allocation2 + $0xa4] sm:$0x1]
        %v1177 = vld [vmem:[#allocation2 + $0xb0] sm:$0x1]
        %v1178 = vld [vmem:[#allocation2 + $0xbc] sm:$0x1]
        %v1179 = vld [vmem:[#allocation2 + $0xc8] sm:$0x1]
        %v1180 = vld [vmem:[#allocation2 + $0xd4] sm:$0x1]
        %v1181 = vld [vmem:[#allocation2] sm:$0xe]
        %v1182 = vld [vmem:[#allocation2 + $0xc] sm:$0xe]
        %v1183 = vld [vmem:[#allocation2 + $0x18] sm:$0xe]
        %v1184 = vld [vmem:[#allocation2 + $0x24] sm:$0xe]
        %v1185 = vld [vmem:[#allocation2 + $0x30] sm:$0xe]
        %v1186 = vld [vmem:[#allocation2 + $0x3c] sm:$0xe]
        %v1187 = vld [vmem:[#allocation2 + $0x48] sm:$0xe]
        %v1188 = vld [vmem:[#allocation2 + $0x54] sm:$0xe]
        %v1189 = vld [vmem:[#allocation2 + $0x60] sm:$0xe]
        %v1190 = vld [vmem:[#allocation2 + $0x6c] sm:$0xe]
        %v1191 = vld [vmem:[#allocation2 + $0x78] sm:$0xe]
        %v1192 = vld [vmem:[#allocation2 + $0x84] sm:$0xe]
        %v1193 = vld [vmem:[#allocation2 + $0x90] sm:$0xe]
        %v1194 = vld [vmem:[#allocation2 + $0x9c] sm:$0xe]
        %v1195 = vld [vmem:[#allocation2 + $0xa8] sm:$0xe]
        %v1196 = vld [vmem:[#allocation2 + $0xb4] sm:$0xe]
        %v1197 = vld [vmem:[#allocation2 + $0xc0] sm:$0xe]
        %v1198 = vld [vmem:[#allocation2 + $0xcc] sm:$0xe]
        %v1235 = vunpack.c.l.b16 %v1127
        %v1236 = vunpack.c.l.b16 %v1128
        %v1237 = vunpack.c.l.b16 %v1129
        %v1238 = vunpack.c.l.b16 %v1130
        %v1239 = vunpack.c.l.b16 %v1131
        %v1240 = vunpack.c.l.b16 %v1132
        %v1241 = vunpack.c.l.b16 %v1133
        %v1242 = vunpack.c.l.b16 %v1134
        %v1243 = vunpack.c.l.b16 %v1135
        %v1244 = vunpack.c.l.b16 %v1136
        %v1245 = vunpack.c.l.b16 %v1137
        %v1246 = vunpack.c.l.b16 %v1138
        %v1247 = vunpack.c.l.b16 %v1139
        %v1248 = vunpack.c.l.b16 %v1140
        %v1249 = vunpack.c.l.b16 %v1141
        %v1250 = vunpack.c.l.b16 %v1142
        %v1251 = vunpack.c.l.b16 %v1143
        %v1252 = vunpack.c.l.b16 %v1144
        %v1253 = vunpack.c.l.b16 %v1145
        %v1254 = vunpack.c.l.b16 %v1146
        %v1255 = vunpack.c.l.b16 %v1147
        %v1256 = vunpack.c.l.b16 %v1148
        %v1257 = vunpack.c.l.b16 %v1149
        %v1258 = vunpack.c.l.b16 %v1150
        %v1259 = vunpack.c.l.b16 %v1151
        %v1260 = vunpack.c.l.b16 %v1152
        %v1261 = vunpack.c.l.b16 %v1153
        %v1262 = vunpack.c.l.b16 %v1154
        %v1263 = vunpack.c.l.b16 %v1155
        %v1264 = vunpack.c.l.b16 %v1156
        %v1265 = vunpack.c.l.b16 %v1157
        %v1266 = vunpack.c.l.b16 %v1158
        %v1267 = vunpack.c.l.b16 %v1159
        %v1268 = vunpack.c.l.b16 %v1160
        %v1269 = vunpack.c.l.b16 %v1161
        %v1270 = vunpack.c.l.b16 %v1162
        %v1271 = vpack.c.b16 %v1236, %v1235
        %v1272 = vpack.c.b16 %v1238, %v1237
        %v1273 = vpack.c.b16 %v1240, %v1239
        %v1274 = vpack.c.b16 %v1242, %v1241
        %v1275 = vpack.c.b16 %v1244, %v1243
        %v1276 = vpack.c.b16 %v1246, %v1245
        %v1277 = vpack.c.b16 %v1248, %v1247
        %v1278 = vpack.c.b16 %v1250, %v1249
        %v1279 = vpack.c.b16 %v1252, %v1251
        %v1280 = vpack.c.b16 %v1254, %v1253
        %v1281 = vpack.c.b16 %v1256, %v1255
        %v1282 = vpack.c.b16 %v1258, %v1257
        %v1283 = vpack.c.b16 %v1260, %v1259
        %v1284 = vpack.c.b16 %v1262, %v1261
        %v1285 = vpack.c.b16 %v1264, %v1263
        %v1286 = vpack.c.b16 %v1266, %v1265
        %v1287 = vpack.c.b16 %v1268, %v1267
        %v1288 = vpack.c.b16 %v1270, %v1269
        %v1307 = vunpack.c.l.b16 %v1163
        %v1308 = vunpack.c.l.b16 %v1164
        %v1309 = vunpack.c.l.b16 %v1165
        %v1310 = vunpack.c.l.b16 %v1166
        %v1311 = vunpack.c.l.b16 %v1167
        %v1312 = vunpack.c.l.b16 %v1168
        %v1313 = vunpack.c.l.b16 %v1169
        %v1314 = vunpack.c.l.b16 %v1170
        %v1315 = vunpack.c.l.b16 %v1171
        %v1316 = vunpack.c.l.b16 %v1172
        %v1317 = vunpack.c.l.b16 %v1173
        %v1318 = vunpack.c.l.b16 %v1174
        %v1319 = vunpack.c.l.b16 %v1175
        %v1320 = vunpack.c.l.b16 %v1176
        %v1321 = vunpack.c.l.b16 %v1177
        %v1322 = vunpack.c.l.b16 %v1178
        %v1323 = vunpack.c.l.b16 %v1179
        %v1324 = vunpack.c.l.b16 %v1180
        %v1325 = vpack.c.b16 %v1307, %v1307
        %v1326 = vpack.c.b16 %v1308, %v1308
        %v1327 = vpack.c.b16 %v1309, %v1309
        %v1328 = vpack.c.b16 %v1310, %v1310
        %v1329 = vpack.c.b16 %v1311, %v1311
        %v1330 = vpack.c.b16 %v1312, %v1312
        %v1331 = vpack.c.b16 %v1313, %v1313
        %v1332 = vpack.c.b16 %v1314, %v1314
        %v1333 = vpack.c.b16 %v1315, %v1315
        %v1334 = vpack.c.b16 %v1316, %v1316
        %v1335 = vpack.c.b16 %v1317, %v1317
        %v1336 = vpack.c.b16 %v1318, %v1318
        %v1337 = vpack.c.b16 %v1319, %v1319
        %v1338 = vpack.c.b16 %v1320, %v1320
        %v1339 = vpack.c.b16 %v1321, %v1321
        %v1340 = vpack.c.b16 %v1322, %v1322
        %v1341 = vpack.c.b16 %v1323, %v1323
        %v1342 = vpack.c.b16 %v1324, %v1324
        %vm1343 = vsmask.f32 7424
        %v1345 = vshrl.u32 %v1271, 16
        %v1347 = vshll.u32 %v1271, 16
        %v1349 = vrot.slane %v1347, 1
        %v1350 = vor.u32 %v1345, %v1349
        %v1352 = vshll.u32 %v1325, 16
        %v1354 = vrot.slane %v1352, 1
        %v1355 = vsel %vm1343, %v1350, %v1354
        %v1357 = vshrl.u32 %v1272, 16
        %v1359 = vshll.u32 %v1272, 16
        %v1361 = vrot.slane %v1359, 1
        %v1362 = vor.u32 %v1357, %v1361
        %v1364 = vshll.u32 %v1326, 16
        %v1366 = vrot.slane %v1364, 1
        %v1367 = vsel %vm1343, %v1362, %v1366
        %v1369 = vshrl.u32 %v1273, 16
        %v1371 = vshll.u32 %v1273, 16
        %v1373 = vrot.slane %v1371, 1
        %v1374 = vor.u32 %v1369, %v1373
        %v1376 = vshll.u32 %v1327, 16
        %v1378 = vrot.slane %v1376, 1
        %v1379 = vsel %vm1343, %v1374, %v1378
        %v1381 = vshrl.u32 %v1274, 16
        %v1383 = vshll.u32 %v1274, 16
        %v1385 = vrot.slane %v1383, 1
        %v1386 = vor.u32 %v1381, %v1385
        %v1388 = vshll.u32 %v1328, 16
        %v1390 = vrot.slane %v1388, 1
        %v1391 = vsel %vm1343, %v1386, %v1390
        %v1393 = vshrl.u32 %v1275, 16
        %v1395 = vshll.u32 %v1275, 16
        %v1397 = vrot.slane %v1395, 1
        %v1398 = vor.u32 %v1393, %v1397
        %v1400 = vshll.u32 %v1329, 16
        %v1402 = vrot.slane %v1400, 1
        %v1403 = vsel %vm1343, %v1398, %v1402
        %v1405 = vshrl.u32 %v1276, 16
        %v1407 = vshll.u32 %v1276, 16
        %v1409 = vrot.slane %v1407, 1
        %v1410 = vor.u32 %v1405, %v1409
        %v1412 = vshll.u32 %v1330, 16
        %v1414 = vrot.slane %v1412, 1
        %v1415 = vsel %vm1343, %v1410, %v1414
        %v1417 = vshrl.u32 %v1277, 16
        %v1419 = vshll.u32 %v1277, 16
        %v1421 = vrot.slane %v1419, 1
        %v1422 = vor.u32 %v1417, %v1421
        %v1424 = vshll.u32 %v1331, 16
        %v1426 = vrot.slane %v1424, 1
        %v1427 = vsel %vm1343, %v1422, %v1426
        %v1429 = vshrl.u32 %v1278, 16
        %v1431 = vshll.u32 %v1278, 16
        %v1433 = vrot.slane %v1431, 1
        %v1434 = vor.u32 %v1429, %v1433
        %v1436 = vshll.u32 %v1332, 16
        %v1438 = vrot.slane %v1436, 1
        %v1439 = vsel %vm1343, %v1434, %v1438
        %v1441 = vshrl.u32 %v1279, 16
        %v1443 = vshll.u32 %v1279, 16
        %v1445 = vrot.slane %v1443, 1
        %v1446 = vor.u32 %v1441, %v1445
        %v1448 = vshll.u32 %v1333, 16
        %v1450 = vrot.slane %v1448, 1
        %v1451 = vsel %vm1343, %v1446, %v1450
        %v1453 = vshrl.u32 %v1280, 16
        %v1455 = vshll.u32 %v1280, 16
        %v1457 = vrot.slane %v1455, 1
        %v1458 = vor.u32 %v1453, %v1457
        %v1460 = vshll.u32 %v1334, 16
        %v1462 = vrot.slane %v1460, 1
        %v1463 = vsel %vm1343, %v1458, %v1462
        %v1465 = vshrl.u32 %v1281, 16
        %v1467 = vshll.u32 %v1281, 16
        %v1469 = vrot.slane %v1467, 1
        %v1470 = vor.u32 %v1465, %v1469
        %v1472 = vshll.u32 %v1335, 16
        %v1474 = vrot.slane %v1472, 1
        %v1475 = vsel %vm1343, %v1470, %v1474
        %v1477 = vshrl.u32 %v1282, 16
        %v1479 = vshll.u32 %v1282, 16
        %v1481 = vrot.slane %v1479, 1
        %v1482 = vor.u32 %v1477, %v1481
        %v1484 = vshll.u32 %v1336, 16
        %v1486 = vrot.slane %v1484, 1
        %v1487 = vsel %vm1343, %v1482, %v1486
        %v1489 = vshrl.u32 %v1283, 16
        %v1491 = vshll.u32 %v1283, 16
        %v1493 = vrot.slane %v1491, 1
        %v1494 = vor.u32 %v1489, %v1493
        %v1496 = vshll.u32 %v1337, 16
        %v1498 = vrot.slane %v1496, 1
        %v1499 = vsel %vm1343, %v1494, %v1498
        %v1501 = vshrl.u32 %v1284, 16
        %v1503 = vshll.u32 %v1284, 16
        %v1505 = vrot.slane %v1503, 1
        %v1506 = vor.u32 %v1501, %v1505
        %v1508 = vshll.u32 %v1338, 16
        %v1510 = vrot.slane %v1508, 1
        %v1511 = vsel %vm1343, %v1506, %v1510
        %v1513 = vshrl.u32 %v1285, 16
        %v1515 = vshll.u32 %v1285, 16
        %v1517 = vrot.slane %v1515, 1
        %v1518 = vor.u32 %v1513, %v1517
        %v1520 = vshll.u32 %v1339, 16
        %v1522 = vrot.slane %v1520, 1
        %v1523 = vsel %vm1343, %v1518, %v1522
        %v1525 = vshrl.u32 %v1286, 16
        %v1527 = vshll.u32 %v1286, 16
        %v1529 = vrot.slane %v1527, 1
        %v1530 = vor.u32 %v1525, %v1529
        %v1532 = vshll.u32 %v1340, 16
        %v1534 = vrot.slane %v1532, 1
        %v1535 = vsel %vm1343, %v1530, %v1534
        %v1537 = vshrl.u32 %v1287, 16
        %v1539 = vshll.u32 %v1287, 16
        %v1541 = vrot.slane %v1539, 1
        %v1542 = vor.u32 %v1537, %v1541
        %v1544 = vshll.u32 %v1341, 16
        %v1546 = vrot.slane %v1544, 1
        %v1547 = vsel %vm1343, %v1542, %v1546
        %v1549 = vshrl.u32 %v1288, 16
        %v1551 = vshll.u32 %v1288, 16
        %v1553 = vrot.slane %v1551, 1
        %v1554 = vor.u32 %v1549, %v1553
        %v1556 = vshll.u32 %v1342, 16
        %v1558 = vrot.slane %v1556, 1
        %v1559 = vsel %vm1343, %v1554, %v1558
        %1560 = vrot.lane.b32.xlu0 %v1355, 4
        %v1561 = vpop.permute.xlu0 %1560
        %1562 = vrot.lane.b32.xlu0 %v1367, 4
        %v1563 = vpop.permute.xlu0 %1562
        %1564 = vrot.lane.b32.xlu0 %v1379, 4
        %v1565 = vpop.permute.xlu0 %1564
        %1566 = vrot.lane.b32.xlu0 %v1391, 4
        %v1567 = vpop.permute.xlu0 %1566
        %1568 = vrot.lane.b32.xlu0 %v1403, 4
        %v1569 = vpop.permute.xlu0 %1568
        %1570 = vrot.lane.b32.xlu0 %v1415, 4
        %v1571 = vpop.permute.xlu0 %1570
        %1572 = vrot.lane.b32.xlu0 %v1427, 4
        %v1573 = vpop.permute.xlu0 %1572
        %1574 = vrot.lane.b32.xlu0 %v1439, 4
        %v1575 = vpop.permute.xlu0 %1574
        %1576 = vrot.lane.b32.xlu0 %v1451, 4
        %v1577 = vpop.permute.xlu0 %1576
        %1578 = vrot.lane.b32.xlu0 %v1463, 4
        %v1579 = vpop.permute.xlu0 %1578
        %1580 = vrot.lane.b32.xlu0 %v1475, 4
        %v1581 = vpop.permute.xlu0 %1580
        %1582 = vrot.lane.b32.xlu0 %v1487, 4
        %v1583 = vpop.permute.xlu0 %1582
        %1584 = vrot.lane.b32.xlu0 %v1499, 4
        %v1585 = vpop.permute.xlu0 %1584
        %1586 = vrot.lane.b32.xlu0 %v1511, 4
        %v1587 = vpop.permute.xlu0 %1586
        %1588 = vrot.lane.b32.xlu0 %v1523, 4
        %v1589 = vpop.permute.xlu0 %1588
        %1590 = vrot.lane.b32.xlu0 %v1535, 4
        %v1591 = vpop.permute.xlu0 %1590
        %1592 = vrot.lane.b32.xlu0 %v1547, 4
        %v1593 = vpop.permute.xlu0 %1592
        %1594 = vrot.lane.b32.xlu0 %v1559, 4
        %v1595 = vpop.permute.xlu0 %1594
        %v1614 = vunpack.c.l.b16 %v1181
        %v1615 = vunpack.c.l.b16 %v1182
        %v1616 = vunpack.c.l.b16 %v1183
        %v1617 = vunpack.c.l.b16 %v1184
        %v1618 = vunpack.c.l.b16 %v1185
        %v1619 = vunpack.c.l.b16 %v1186
        %v1620 = vunpack.c.l.b16 %v1187
        %v1621 = vunpack.c.l.b16 %v1188
        %v1622 = vunpack.c.l.b16 %v1189
        %v1623 = vunpack.c.l.b16 %v1190
        %v1624 = vunpack.c.l.b16 %v1191
        %v1625 = vunpack.c.l.b16 %v1192
        %v1626 = vunpack.c.l.b16 %v1193
        %v1627 = vunpack.c.l.b16 %v1194
        %v1628 = vunpack.c.l.b16 %v1195
        %v1629 = vunpack.c.l.b16 %v1196
        %v1630 = vunpack.c.l.b16 %v1197
        %v1631 = vunpack.c.l.b16 %v1198
        %v1632 = vpack.c.b16 %v1236, %v1614
        %v1633 = vpack.c.b16 %v1238, %v1615
        %v1634 = vpack.c.b16 %v1240, %v1616
        %v1635 = vpack.c.b16 %v1242, %v1617
        %v1636 = vpack.c.b16 %v1244, %v1618
        %v1637 = vpack.c.b16 %v1246, %v1619
        %v1638 = vpack.c.b16 %v1248, %v1620
        %v1639 = vpack.c.b16 %v1250, %v1621
        %v1640 = vpack.c.b16 %v1252, %v1622
        %v1641 = vpack.c.b16 %v1254, %v1623
        %v1642 = vpack.c.b16 %v1256, %v1624
        %v1643 = vpack.c.b16 %v1258, %v1625
        %v1644 = vpack.c.b16 %v1260, %v1626
        %v1645 = vpack.c.b16 %v1262, %v1627
        %v1646 = vpack.c.b16 %v1264, %v1628
        %v1647 = vpack.c.b16 %v1266, %v1629
        %v1648 = vpack.c.b16 %v1268, %v1630
        %v1649 = vpack.c.b16 %v1270, %v1631
        %vm1650 = vcmask 1046528
        %v1651 = vrot.slane %v1632, 1
        %v1652 = vrot.slane %v1325, 1
        %v1653 = vsel %vm1650, %v1651, %v1652
        %v1654 = vrot.slane %v1633, 1
        %v1655 = vrot.slane %v1326, 1
        %v1656 = vsel %vm1650, %v1654, %v1655
        %v1657 = vrot.slane %v1634, 1
        %v1658 = vrot.slane %v1327, 1
        %v1659 = vsel %vm1650, %v1657, %v1658
        %v1660 = vrot.slane %v1635, 1
        %v1661 = vrot.slane %v1328, 1
        %v1662 = vsel %vm1650, %v1660, %v1661
        %v1663 = vrot.slane %v1636, 1
        %v1664 = vrot.slane %v1329, 1
        %v1665 = vsel %vm1650, %v1663, %v1664
        %v1666 = vrot.slane %v1637, 1
        %v1667 = vrot.slane %v1330, 1
        %v1668 = vsel %vm1650, %v1666, %v1667
        %v1669 = vrot.slane %v1638, 1
        %v1670 = vrot.slane %v1331, 1
        %v1671 = vsel %vm1650, %v1669, %v1670
        %v1672 = vrot.slane %v1639, 1
        %v1673 = vrot.slane %v1332, 1
        %v1674 = vsel %vm1650, %v1672, %v1673
        %v1675 = vrot.slane %v1640, 1
        %v1676 = vrot.slane %v1333, 1
        %v1677 = vsel %vm1650, %v1675, %v1676
        %v1678 = vrot.slane %v1641, 1
        %v1679 = vrot.slane %v1334, 1
        %v1680 = vsel %vm1650, %v1678, %v1679
        %v1681 = vrot.slane %v1642, 1
        %v1682 = vrot.slane %v1335, 1
        %v1683 = vsel %vm1650, %v1681, %v1682
        %v1684 = vrot.slane %v1643, 1
        %v1685 = vrot.slane %v1336, 1
        %v1686 = vsel %vm1650, %v1684, %v1685
        %v1687 = vrot.slane %v1644, 1
        %v1688 = vrot.slane %v1337, 1
        %v1689 = vsel %vm1650, %v1687, %v1688
        %v1690 = vrot.slane %v1645, 1
        %v1691 = vrot.slane %v1338, 1
        %v1692 = vsel %vm1650, %v1690, %v1691
        %v1693 = vrot.slane %v1646, 1
        %v1694 = vrot.slane %v1339, 1
        %v1695 = vsel %vm1650, %v1693, %v1694
        %v1696 = vrot.slane %v1647, 1
        %v1697 = vrot.slane %v1340, 1
        %v1698 = vsel %vm1650, %v1696, %v1697
        %v1699 = vrot.slane %v1648, 1
        %v1700 = vrot.slane %v1341, 1
        %v1701 = vsel %vm1650, %v1699, %v1700
        %v1702 = vrot.slane %v1649, 1
        %v1703 = vrot.slane %v1342, 1
        %v1704 = vsel %vm1650, %v1702, %v1703
        %1705 = vrot.lane.b32.xlu0 %v1653, 8
        %v1706 = vpop.permute.xlu0 %1705
        %1707 = vrot.lane.b32.xlu0 %v1656, 8
        %v1708 = vpop.permute.xlu0 %1707
        %1709 = vrot.lane.b32.xlu0 %v1659, 8
        %v1710 = vpop.permute.xlu0 %1709
        %1711 = vrot.lane.b32.xlu0 %v1662, 8
        %v1712 = vpop.permute.xlu0 %1711
        %1713 = vrot.lane.b32.xlu0 %v1665, 8
        %v1714 = vpop.permute.xlu0 %1713
        %1715 = vrot.lane.b32.xlu0 %v1668, 8
        %v1716 = vpop.permute.xlu0 %1715
        %1717 = vrot.lane.b32.xlu0 %v1671, 8
        %v1718 = vpop.permute.xlu0 %1717
        %1719 = vrot.lane.b32.xlu0 %v1674, 8
        %v1720 = vpop.permute.xlu0 %1719
        %1721 = vrot.lane.b32.xlu0 %v1677, 8
        %v1722 = vpop.permute.xlu0 %1721
        %1723 = vrot.lane.b32.xlu0 %v1680, 8
        %v1724 = vpop.permute.xlu0 %1723
        %1725 = vrot.lane.b32.xlu0 %v1683, 8
        %v1726 = vpop.permute.xlu0 %1725
        %1727 = vrot.lane.b32.xlu0 %v1686, 8
        %v1728 = vpop.permute.xlu0 %1727
        %1729 = vrot.lane.b32.xlu0 %v1689, 8
        %v1730 = vpop.permute.xlu0 %1729
        %1731 = vrot.lane.b32.xlu0 %v1692, 8
        %v1732 = vpop.permute.xlu0 %1731
        %1733 = vrot.lane.b32.xlu0 %v1695, 8
        %v1734 = vpop.permute.xlu0 %1733
        %1735 = vrot.lane.b32.xlu0 %v1698, 8
        %v1736 = vpop.permute.xlu0 %1735
        %1737 = vrot.lane.b32.xlu0 %v1701, 8
        %v1738 = vpop.permute.xlu0 %1737
        %1739 = vrot.lane.b32.xlu0 %v1704, 8
        %v1740 = vpop.permute.xlu0 %1739
        %vm1741 = vcmask 31744
        %v1743 = vsel %vm1741, %v1271, %v1561
        %v1745 = vsel %vm1741, %v1272, %v1563
        %v1747 = vsel %vm1741, %v1273, %v1565
        %v1749 = vsel %vm1741, %v1274, %v1567
        %v1751 = vsel %vm1741, %v1275, %v1569
        %v1753 = vsel %vm1741, %v1276, %v1571
        %v1755 = vsel %vm1741, %v1277, %v1573
        %v1757 = vsel %vm1741, %v1278, %v1575
        %v1759 = vsel %vm1741, %v1279, %v1577
        %v1761 = vsel %vm1741, %v1280, %v1579
        %v1763 = vsel %vm1741, %v1281, %v1581
        %v1765 = vsel %vm1741, %v1282, %v1583
        %v1767 = vsel %vm1741, %v1283, %v1585
        %v1769 = vsel %vm1741, %v1284, %v1587
        %v1771 = vsel %vm1741, %v1285, %v1589
        %v1773 = vsel %vm1741, %v1286, %v1591
        %v1775 = vsel %vm1741, %v1287, %v1593
        %v1777 = vsel %vm1741, %v1288, %v1595
        %vm1778 = vcmask 64512
        %v1780 = vsel %vm1778, %v1743, %v1706
        %v1782 = vsel %vm1778, %v1745, %v1708
        %v1784 = vsel %vm1778, %v1747, %v1710
        %v1786 = vsel %vm1778, %v1749, %v1712
        %v1788 = vsel %vm1778, %v1751, %v1714
        %v1790 = vsel %vm1778, %v1753, %v1716
        %v1792 = vsel %vm1778, %v1755, %v1718
        %v1794 = vsel %vm1778, %v1757, %v1720
        %v1796 = vsel %vm1778, %v1759, %v1722
        %v1798 = vsel %vm1778, %v1761, %v1724
        %v1800 = vsel %vm1778, %v1763, %v1726
        %v1802 = vsel %vm1778, %v1765, %v1728
        %v1804 = vsel %vm1778, %v1767, %v1730
        %v1806 = vsel %vm1778, %v1769, %v1732
        %v1808 = vsel %vm1778, %v1771, %v1734
        %v1810 = vsel %vm1778, %v1773, %v1736
        %v1812 = vsel %vm1778, %v1775, %v1738
        %v1814 = vsel %vm1778, %v1777, %v1740
        %v1815 = vld [vmem:[%s1] sm:$0xf]
        %v1816 = vld [vmem:[%s1 + $0x4] sm:$0x3]
        %s1817 = scalar_lea.vmem %s1, 8
        %v1818 = vld [vmem:[%s1817] sm:$0xf]
        %v1819 = vld [vmem:[%s1817 + $0x4] sm:$0x3]
        %v1822 = vunpack.c.l.b16 %v1818
        %v1823 = vunpack.c.l.b16 %v1819
        %v1824 = vpack.c.b16 %v1823, %v1822
        %vm1825 = vcmask 97280
        %v1826 = vsel %vm1825, %v1782, 0
        %v1828 = vsel %vm1825, %v1784, 0
        %v1830 = vsel %vm1825, %v1786, 0
        %v1832 = vsel %vm1825, %v1788, 0
        %v1834 = vsel %vm1825, %v1790, 0
        %v1836 = vsel %vm1825, %v1792, 0
        %v1838 = vsel %vm1825, %v1794, 0
        %v1840 = vsel %vm1825, %v1796, 0
        %v1842 = vsel %vm1825, %v1798, 0
        %v1844 = vsel %vm1825, %v1800, 0
        %v1846 = vsel %vm1825, %v1802, 0
        %v1848 = vsel %vm1825, %v1804, 0
        %v1850 = vsel %vm1825, %v1806, 0
        %v1852 = vsel %vm1825, %v1808, 0
        %v1854 = vsel %vm1825, %v1810, 0
        %v1856 = vsel %vm1825, %v1812, 0
        %vm1858 = vcmask 1045504
        %v1860 = vsel %vm1858, %v1824, 0
        %1862 = vmatprep.subr.bf16.mxu0 0
        %1863 = vmatpush1.bf16.msra.mxu0 0
        %1864 = vmatprep.subr.bf16.mxu0 0
        %1865 = vmatpush1.bf16.msra.mxu0 0
        %1866 = vmatprep.subr.bf16.mxu0 0
        %1867 = vmatpush1.bf16.msra.mxu0 0
        %1868 = vmatprep.subr.bf16.mxu0 0
        %1869 = vmatpush1.bf16.msra.mxu0 0
        %1870 = vmatprep.subr.bf16.mxu0 0
        %1871 = vmatpush1.bf16.msra.mxu0 0
        %1872 = vmatprep.subr.bf16.mxu0 0
        %1873 = vmatpush1.bf16.msra.mxu0 0
        %1874 = vmatprep.subr.bf16.mxu0 0
        %1875 = vmatpush1.bf16.msra.mxu0 0
        %1876 = vmatprep.subr.bf16.mxu0 0
        %1877 = vmatpush1.bf16.msra.mxu0 %v1860
        %1878 = vmatprep.subr.bf16.mxu0 0
        %1879 = vmatpush2.bf16.msra.mxu0 0
        %1880 = vmatprep.subr.bf16.mxu0 0
        %1881 = vmatpush2.bf16.msra.mxu0 0
        %1882 = vmatprep.subr.bf16.mxu0 0
        %1883 = vmatpush2.bf16.msra.mxu0 0
        %1884 = vmatprep.subr.bf16.mxu0 0
        %1885 = vmatpush2.bf16.msra.mxu0 0
        %1886 = vmatprep.subr.bf16.mxu0 0
        %1887 = vmatpush2.bf16.msra.mxu0 0
        %1888 = vmatprep.subr.bf16.mxu0 0
        %1889 = vmatpush2.bf16.msra.mxu0 0
        %1890 = vmatprep.subr.bf16.mxu0 0
        %1891 = vmatpush2.bf16.msra.mxu0 0
        %1892 = vmatprep.subr.bf16.mxu0 0
        %1893 = vmatpush2.bf16.msra.mxu0 0
        %1894 = vmatprep.mubr.bf16.mxu0 0
        %1895 = vmatmul.mubr.bf16.gmra.mxu0 %v1826
        %v1896 = vpop.f32.mrf.mxu0
        %v1897 = vadd.f32 0.0, %v1896
        %v1898 = vpop.f32.mrf.mxu0
        %v1899 = vpop.f32.mrf.mxu0
        %v1900 = vadd.f32 0.0, %v1899
        %v1901 = vpop.f32.mrf.mxu0
        %1902 = vmatprep.mubr.bf16.mxu0 0
        %1903 = vmatmul.mubr.bf16.gmra.mxu0 %v1828
        %v1904 = vpop.f32.mrf.mxu0
        %v1905 = vadd.f32 0.0, %v1904
        %v1906 = vpop.f32.mrf.mxu0
        %v1907 = vpop.f32.mrf.mxu0
        %v1908 = vadd.f32 0.0, %v1907
        %v1909 = vpop.f32.mrf.mxu0
        %1910 = vmatprep.mubr.bf16.mxu0 0
        %1911 = vmatmul.mubr.bf16.gmra.mxu0 %v1830
        %v1912 = vpop.f32.mrf.mxu0
        %v1913 = vadd.f32 0.0, %v1912
        %v1914 = vpop.f32.mrf.mxu0
        %v1915 = vpop.f32.mrf.mxu0
        %v1916 = vadd.f32 0.0, %v1915
        %v1917 = vpop.f32.mrf.mxu0
        %1918 = vmatprep.mubr.bf16.mxu0 0
        %1919 = vmatmul.mubr.bf16.gmra.mxu0 %v1832
        %v1920 = vpop.f32.mrf.mxu0
        %v1921 = vadd.f32 0.0, %v1920
        %v1922 = vpop.f32.mrf.mxu0
        %v1923 = vpop.f32.mrf.mxu0
        %v1924 = vadd.f32 0.0, %v1923
        %v1925 = vpop.f32.mrf.mxu0
        %1926 = vmatprep.mubr.bf16.mxu0 0
        %1927 = vmatmul.mubr.bf16.gmra.mxu0 %v1834
        %v1928 = vpop.f32.mrf.mxu0
        %v1929 = vadd.f32 0.0, %v1928
        %v1930 = vpop.f32.mrf.mxu0
        %v1931 = vpop.f32.mrf.mxu0
        %v1932 = vadd.f32 0.0, %v1931
        %v1933 = vpop.f32.mrf.mxu0
        %1934 = vmatprep.mubr.bf16.mxu0 0
        %1935 = vmatmul.mubr.bf16.gmra.mxu0 %v1836
        %v1936 = vpop.f32.mrf.mxu0
        %v1937 = vadd.f32 0.0, %v1936
        %v1938 = vpop.f32.mrf.mxu0
        %v1939 = vpop.f32.mrf.mxu0
        %v1940 = vadd.f32 0.0, %v1939
        %v1941 = vpop.f32.mrf.mxu0
        %1942 = vmatprep.mubr.bf16.mxu0 0
        %1943 = vmatmul.mubr.bf16.gmra.mxu0 %v1838
        %v1944 = vpop.f32.mrf.mxu0
        %v1945 = vadd.f32 0.0, %v1944
        %v1946 = vpop.f32.mrf.mxu0
        %v1947 = vpop.f32.mrf.mxu0
        %v1948 = vadd.f32 0.0, %v1947
        %v1949 = vpop.f32.mrf.mxu0
        %1950 = vmatprep.mubr.bf16.mxu0 0
        %1951 = vmatmul.mubr.bf16.gmra.mxu0 %v1840
        %v1952 = vpop.f32.mrf.mxu0
        %v1953 = vadd.f32 0.0, %v1952
        %v1954 = vpop.f32.mrf.mxu0
        %v1955 = vpop.f32.mrf.mxu0
        %v1956 = vadd.f32 0.0, %v1955
        %v1957 = vpop.f32.mrf.mxu0
        %1958 = vmatprep.mubr.bf16.mxu0 0
        %1959 = vmatmul.mubr.bf16.gmra.mxu0 %v1842
        %v1960 = vpop.f32.mrf.mxu0
        %v1961 = vadd.f32 0.0, %v1960
        %v1962 = vpop.f32.mrf.mxu0
        %v1963 = vpop.f32.mrf.mxu0
        %v1964 = vadd.f32 0.0, %v1963
        %v1965 = vpop.f32.mrf.mxu0
        %1966 = vmatprep.mubr.bf16.mxu0 0
        %1967 = vmatmul.mubr.bf16.gmra.mxu0 %v1844
        %v1968 = vpop.f32.mrf.mxu0
        %v1969 = vadd.f32 0.0, %v1968
        %v1970 = vpop.f32.mrf.mxu0
        %v1971 = vpop.f32.mrf.mxu0
        %v1972 = vadd.f32 0.0, %v1971
        %v1973 = vpop.f32.mrf.mxu0
        %1974 = vmatprep.mubr.bf16.mxu0 0
        %1975 = vmatmul.mubr.bf16.gmra.mxu0 %v1846
        %v1976 = vpop.f32.mrf.mxu0
        %v1977 = vadd.f32 0.0, %v1976
        %v1978 = vpop.f32.mrf.mxu0
        %v1979 = vpop.f32.mrf.mxu0
        %v1980 = vadd.f32 0.0, %v1979
        %v1981 = vpop.f32.mrf.mxu0
        %1982 = vmatprep.mubr.bf16.mxu0 0
        %1983 = vmatmul.mubr.bf16.gmra.mxu0 %v1848
        %v1984 = vpop.f32.mrf.mxu0
        %v1985 = vadd.f32 0.0, %v1984
        %v1986 = vpop.f32.mrf.mxu0
        %v1987 = vpop.f32.mrf.mxu0
        %v1988 = vadd.f32 0.0, %v1987
        %v1989 = vpop.f32.mrf.mxu0
        %1990 = vmatprep.mubr.bf16.mxu0 0
        %1991 = vmatmul.mubr.bf16.gmra.mxu0 %v1850
        %v1992 = vpop.f32.mrf.mxu0
        %v1993 = vadd.f32 0.0, %v1992
        %v1994 = vpop.f32.mrf.mxu0
        %v1995 = vpop.f32.mrf.mxu0
        %v1996 = vadd.f32 0.0, %v1995
        %v1997 = vpop.f32.mrf.mxu0
        %1998 = vmatprep.mubr.bf16.mxu0 0
        %1999 = vmatmul.mubr.bf16.gmra.mxu0 %v1852
        %v2000 = vpop.f32.mrf.mxu0
        %v2001 = vadd.f32 0.0, %v2000
        %v2002 = vpop.f32.mrf.mxu0
        %v2003 = vpop.f32.mrf.mxu0
        %v2004 = vadd.f32 0.0, %v2003
        %v2005 = vpop.f32.mrf.mxu0
        %2006 = vmatprep.mubr.bf16.mxu0 0
        %2007 = vmatmul.mubr.bf16.gmra.mxu0 %v1854
        %v2008 = vpop.f32.mrf.mxu0
        %v2009 = vadd.f32 0.0, %v2008
        %v2010 = vpop.f32.mrf.mxu0
        %v2011 = vpop.f32.mrf.mxu0
        %v2012 = vadd.f32 0.0, %v2011
        %v2013 = vpop.f32.mrf.mxu0
        %2014 = vmatprep.mubr.bf16.mxu0 0
        %2015 = vmatmul.mubr.bf16.gmra.mxu0 %v1856
        %v2016 = vpop.f32.mrf.mxu0
        %v2017 = vadd.f32 0.0, %v2016
        %v2018 = vpop.f32.mrf.mxu0
        %v2019 = vpop.f32.mrf.mxu0
        %v2020 = vadd.f32 0.0, %v2019
        %v2021 = vpop.f32.mrf.mxu0
        %2022 = vdwg.mxu0
        %v2025 = vunpack.c.l.b16 %v1815
        %v2026 = vunpack.c.l.b16 %v1816
        %v2027 = vpack.c.b16 %v2026, %v2025
        %v2028 = vsel %vm1825, %v1780, 0
        %v2031 = vsel %vm1858, %v2027, 0
        %2033 = vmatprep.subr.bf16.mxu0 0
        %2034 = vmatpush1.bf16.msra.mxu0 0
        %2035 = vmatprep.subr.bf16.mxu0 0
        %2036 = vmatpush1.bf16.msra.mxu0 0
        %2037 = vmatprep.subr.bf16.mxu0 0
        %2038 = vmatpush1.bf16.msra.mxu0 0
        %2039 = vmatprep.subr.bf16.mxu0 0
        %2040 = vmatpush1.bf16.msra.mxu0 0
        %2041 = vmatprep.subr.bf16.mxu0 0
        %2042 = vmatpush1.bf16.msra.mxu0 0
        %2043 = vmatprep.subr.bf16.mxu0 0
        %2044 = vmatpush1.bf16.msra.mxu0 0
        %2045 = vmatprep.subr.bf16.mxu0 0
        %2046 = vmatpush1.bf16.msra.mxu0 0
        %2047 = vmatprep.subr.bf16.mxu0 0
        %2048 = vmatpush1.bf16.msra.mxu0 %v2031
        %2049 = vmatprep.subr.bf16.mxu0 0
        %2050 = vmatpush2.bf16.msra.mxu0 0
        %2051 = vmatprep.subr.bf16.mxu0 0
        %2052 = vmatpush2.bf16.msra.mxu0 0
        %2053 = vmatprep.subr.bf16.mxu0 0
        %2054 = vmatpush2.bf16.msra.mxu0 0
        %2055 = vmatprep.subr.bf16.mxu0 0
        %2056 = vmatpush2.bf16.msra.mxu0 0
        %2057 = vmatprep.subr.bf16.mxu0 0
        %2058 = vmatpush2.bf16.msra.mxu0 0
        %2059 = vmatprep.subr.bf16.mxu0 0
        %2060 = vmatpush2.bf16.msra.mxu0 0
        %2061 = vmatprep.subr.bf16.mxu0 0
        %2062 = vmatpush2.bf16.msra.mxu0 0
        %2063 = vmatprep.subr.bf16.mxu0 0
        %2064 = vmatpush2.bf16.msra.mxu0 0
        %2065 = vmatprep.mubr.bf16.mxu0 0
        %2066 = vmatmul.mubr.bf16.gmra.mxu0 %v2028
        %v2067 = vpop.f32.mrf.mxu0
        %v2068 = vadd.f32 %v1897, %v2067
        %v2069 = vpop.f32.mrf.mxu0
        %v2070 = vpop.f32.mrf.mxu0
        %v2071 = vadd.f32 %v1900, %v2070
        %v2072 = vpop.f32.mrf.mxu0
        %2073 = vmatprep.mubr.bf16.mxu0 0
        %2074 = vmatmul.mubr.bf16.gmra.mxu0 %v1826
        %v2075 = vpop.f32.mrf.mxu0
        %v2076 = vadd.f32 %v1905, %v2075
        %v2077 = vpop.f32.mrf.mxu0
        %v2078 = vpop.f32.mrf.mxu0
        %v2079 = vadd.f32 %v1908, %v2078
        %v2080 = vpop.f32.mrf.mxu0
        %2081 = vmatprep.mubr.bf16.mxu0 0
        %2082 = vmatmul.mubr.bf16.gmra.mxu0 %v1828
        %v2083 = vpop.f32.mrf.mxu0
        %v2084 = vadd.f32 %v1913, %v2083
        %v2085 = vpop.f32.mrf.mxu0
        %v2086 = vpop.f32.mrf.mxu0
        %v2087 = vadd.f32 %v1916, %v2086
        %v2088 = vpop.f32.mrf.mxu0
        %2089 = vmatprep.mubr.bf16.mxu0 0
        %2090 = vmatmul.mubr.bf16.gmra.mxu0 %v1830
        %v2091 = vpop.f32.mrf.mxu0
        %v2092 = vadd.f32 %v1921, %v2091
        %v2093 = vpop.f32.mrf.mxu0
        %v2094 = vpop.f32.mrf.mxu0
        %v2095 = vadd.f32 %v1924, %v2094
        %v2096 = vpop.f32.mrf.mxu0
        %2097 = vmatprep.mubr.bf16.mxu0 0
        %2098 = vmatmul.mubr.bf16.gmra.mxu0 %v1832
        %v2099 = vpop.f32.mrf.mxu0
        %v2100 = vadd.f32 %v1929, %v2099
        %v2101 = vpop.f32.mrf.mxu0
        %v2102 = vpop.f32.mrf.mxu0
        %v2103 = vadd.f32 %v1932, %v2102
        %v2104 = vpop.f32.mrf.mxu0
        %2105 = vmatprep.mubr.bf16.mxu0 0
        %2106 = vmatmul.mubr.bf16.gmra.mxu0 %v1834
        %v2107 = vpop.f32.mrf.mxu0
        %v2108 = vadd.f32 %v1937, %v2107
        %v2109 = vpop.f32.mrf.mxu0
        %v2110 = vpop.f32.mrf.mxu0
        %v2111 = vadd.f32 %v1940, %v2110
        %v2112 = vpop.f32.mrf.mxu0
        %2113 = vmatprep.mubr.bf16.mxu0 0
        %2114 = vmatmul.mubr.bf16.gmra.mxu0 %v1836
        %v2115 = vpop.f32.mrf.mxu0
        %v2116 = vadd.f32 %v1945, %v2115
        %v2117 = vpop.f32.mrf.mxu0
        %v2118 = vpop.f32.mrf.mxu0
        %v2119 = vadd.f32 %v1948, %v2118
        %v2120 = vpop.f32.mrf.mxu0
        %2121 = vmatprep.mubr.bf16.mxu0 0
        %2122 = vmatmul.mubr.bf16.gmra.mxu0 %v1838
        %v2123 = vpop.f32.mrf.mxu0
        %v2124 = vadd.f32 %v1953, %v2123
        %v2125 = vpop.f32.mrf.mxu0
        %v2126 = vpop.f32.mrf.mxu0
        %v2127 = vadd.f32 %v1956, %v2126
        %v2128 = vpop.f32.mrf.mxu0
        %2129 = vmatprep.mubr.bf16.mxu0 0
        %2130 = vmatmul.mubr.bf16.gmra.mxu0 %v1840
        %v2131 = vpop.f32.mrf.mxu0
        %v2132 = vadd.f32 %v1961, %v2131
        %v2133 = vpop.f32.mrf.mxu0
        %v2134 = vpop.f32.mrf.mxu0
        %v2135 = vadd.f32 %v1964, %v2134
        %v2136 = vpop.f32.mrf.mxu0
        %2137 = vmatprep.mubr.bf16.mxu0 0
        %2138 = vmatmul.mubr.bf16.gmra.mxu0 %v1842
        %v2139 = vpop.f32.mrf.mxu0
        %v2140 = vadd.f32 %v1969, %v2139
        %v2141 = vpop.f32.mrf.mxu0
        %v2142 = vpop.f32.mrf.mxu0
        %v2143 = vadd.f32 %v1972, %v2142
        %v2144 = vpop.f32.mrf.mxu0
        %2145 = vmatprep.mubr.bf16.mxu0 0
        %2146 = vmatmul.mubr.bf16.gmra.mxu0 %v1844
        %v2147 = vpop.f32.mrf.mxu0
        %v2148 = vadd.f32 %v1977, %v2147
        %v2149 = vpop.f32.mrf.mxu0
        %v2150 = vpop.f32.mrf.mxu0
        %v2151 = vadd.f32 %v1980, %v2150
        %v2152 = vpop.f32.mrf.mxu0
        %2153 = vmatprep.mubr.bf16.mxu0 0
        %2154 = vmatmul.mubr.bf16.gmra.mxu0 %v1846
        %v2155 = vpop.f32.mrf.mxu0
        %v2156 = vadd.f32 %v1985, %v2155
        %v2157 = vpop.f32.mrf.mxu0
        %v2158 = vpop.f32.mrf.mxu0
        %v2159 = vadd.f32 %v1988, %v2158
        %v2160 = vpop.f32.mrf.mxu0
        %2161 = vmatprep.mubr.bf16.mxu0 0
        %2162 = vmatmul.mubr.bf16.gmra.mxu0 %v1848
        %v2163 = vpop.f32.mrf.mxu0
        %v2164 = vadd.f32 %v1993, %v2163
        %v2165 = vpop.f32.mrf.mxu0
        %v2166 = vpop.f32.mrf.mxu0
        %v2167 = vadd.f32 %v1996, %v2166
        %v2168 = vpop.f32.mrf.mxu0
        %2169 = vmatprep.mubr.bf16.mxu0 0
        %2170 = vmatmul.mubr.bf16.gmra.mxu0 %v1850
        %v2171 = vpop.f32.mrf.mxu0
        %v2172 = vadd.f32 %v2001, %v2171
        %v2173 = vpop.f32.mrf.mxu0
        %v2174 = vpop.f32.mrf.mxu0
        %v2175 = vadd.f32 %v2004, %v2174
        %v2176 = vpop.f32.mrf.mxu0
        %2177 = vmatprep.mubr.bf16.mxu0 0
        %2178 = vmatmul.mubr.bf16.gmra.mxu0 %v1852
        %v2179 = vpop.f32.mrf.mxu0
        %v2180 = vadd.f32 %v2009, %v2179
        %v2181 = vpop.f32.mrf.mxu0
        %v2182 = vpop.f32.mrf.mxu0
        %v2183 = vadd.f32 %v2012, %v2182
        %v2184 = vpop.f32.mrf.mxu0
        %2185 = vmatprep.mubr.bf16.mxu0 0
        %2186 = vmatmul.mubr.bf16.gmra.mxu0 %v1854
        %v2187 = vpop.f32.mrf.mxu0
        %v2188 = vadd.f32 %v2017, %v2187
        %v2189 = vpop.f32.mrf.mxu0
        %v2190 = vpop.f32.mrf.mxu0
        %v2191 = vadd.f32 %v2020, %v2190
        %v2192 = vpop.f32.mrf.mxu0
        %2193 = vdwg.mxu0
        %s2194 = scalar_lea.vmem %s1, 16
        %v2195 = vld [vmem:[%s2194] sm:$0xf]
        %v2196 = vld [vmem:[%s2194 + $0x4] sm:$0x3]
        %v2199 = vunpack.c.l.b16 %v2195
        %v2200 = vunpack.c.l.b16 %v2196
        %v2201 = vpack.c.b16 %v2200, %v2199
        %v2202 = vsel %vm1825, %v1814, 0
        %v2205 = vsel %vm1858, %v2201, 0
        %2207 = vmatprep.subr.bf16.mxu0 0
        %2208 = vmatpush1.bf16.msra.mxu0 0
        %2209 = vmatprep.subr.bf16.mxu0 0
        %2210 = vmatpush1.bf16.msra.mxu0 0
        %2211 = vmatprep.subr.bf16.mxu0 0
        %2212 = vmatpush1.bf16.msra.mxu0 0
        %2213 = vmatprep.subr.bf16.mxu0 0
        %2214 = vmatpush1.bf16.msra.mxu0 0
        %2215 = vmatprep.subr.bf16.mxu0 0
        %2216 = vmatpush1.bf16.msra.mxu0 0
        %2217 = vmatprep.subr.bf16.mxu0 0
        %2218 = vmatpush1.bf16.msra.mxu0 0
        %2219 = vmatprep.subr.bf16.mxu0 0
        %2220 = vmatpush1.bf16.msra.mxu0 0
        %2221 = vmatprep.subr.bf16.mxu0 0
        %2222 = vmatpush1.bf16.msra.mxu0 %v2205
        %2223 = vmatprep.subr.bf16.mxu0 0
        %2224 = vmatpush2.bf16.msra.mxu0 0
        %2225 = vmatprep.subr.bf16.mxu0 0
        %2226 = vmatpush2.bf16.msra.mxu0 0
        %2227 = vmatprep.subr.bf16.mxu0 0
        %2228 = vmatpush2.bf16.msra.mxu0 0
        %2229 = vmatprep.subr.bf16.mxu0 0
        %2230 = vmatpush2.bf16.msra.mxu0 0
        %2231 = vmatprep.subr.bf16.mxu0 0
        %2232 = vmatpush2.bf16.msra.mxu0 0
        %2233 = vmatprep.subr.bf16.mxu0 0
        %2234 = vmatpush2.bf16.msra.mxu0 0
        %2235 = vmatprep.subr.bf16.mxu0 0
        %2236 = vmatpush2.bf16.msra.mxu0 0
        %2237 = vmatprep.subr.bf16.mxu0 0
        %2238 = vmatpush2.bf16.msra.mxu0 0
        %2239 = vmatprep.mubr.bf16.mxu0 0
        %2240 = vmatmul.mubr.bf16.gmra.mxu0 %v1828
        %v2241 = vpop.f32.mrf.mxu0
        %v2242 = vadd.f32 0.0, %v2241
        %v2243 = vpop.f32.mrf.mxu0
        %v2244 = vpop.f32.mrf.mxu0
        %v2245 = vadd.f32 0.0, %v2244
        %v2246 = vpop.f32.mrf.mxu0
        %2247 = vmatprep.mubr.bf16.mxu0 0
        %2248 = vmatmul.mubr.bf16.gmra.mxu0 %v1830
        %v2249 = vpop.f32.mrf.mxu0
        %v2250 = vadd.f32 0.0, %v2249
        %v2251 = vpop.f32.mrf.mxu0
        %v2252 = vpop.f32.mrf.mxu0
        %v2253 = vadd.f32 0.0, %v2252
        %v2254 = vpop.f32.mrf.mxu0
        %2255 = vmatprep.mubr.bf16.mxu0 0
        %2256 = vmatmul.mubr.bf16.gmra.mxu0 %v1832
        %v2257 = vpop.f32.mrf.mxu0
        %v2258 = vadd.f32 0.0, %v2257
        %v2259 = vpop.f32.mrf.mxu0
        %v2260 = vpop.f32.mrf.mxu0
        %v2261 = vadd.f32 0.0, %v2260
        %v2262 = vpop.f32.mrf.mxu0
        %2263 = vmatprep.mubr.bf16.mxu0 0
        %2264 = vmatmul.mubr.bf16.gmra.mxu0 %v1834
        %v2265 = vpop.f32.mrf.mxu0
        %v2266 = vadd.f32 0.0, %v2265
        %v2267 = vpop.f32.mrf.mxu0
        %v2268 = vpop.f32.mrf.mxu0
        %v2269 = vadd.f32 0.0, %v2268
        %v2270 = vpop.f32.mrf.mxu0
        %2271 = vmatprep.mubr.bf16.mxu0 0
        %2272 = vmatmul.mubr.bf16.gmra.mxu0 %v1836
        %v2273 = vpop.f32.mrf.mxu0
        %v2274 = vadd.f32 0.0, %v2273
        %v2275 = vpop.f32.mrf.mxu0
        %v2276 = vpop.f32.mrf.mxu0
        %v2277 = vadd.f32 0.0, %v2276
        %v2278 = vpop.f32.mrf.mxu0
        %2279 = vmatprep.mubr.bf16.mxu0 0
        %2280 = vmatmul.mubr.bf16.gmra.mxu0 %v1838
        %v2281 = vpop.f32.mrf.mxu0
        %v2282 = vadd.f32 0.0, %v2281
        %v2283 = vpop.f32.mrf.mxu0
        %v2284 = vpop.f32.mrf.mxu0
        %v2285 = vadd.f32 0.0, %v2284
        %v2286 = vpop.f32.mrf.mxu0
        %2287 = vmatprep.mubr.bf16.mxu0 0
        %2288 = vmatmul.mubr.bf16.gmra.mxu0 %v1840
        %v2289 = vpop.f32.mrf.mxu0
        %v2290 = vadd.f32 0.0, %v2289
        %v2291 = vpop.f32.mrf.mxu0
        %v2292 = vpop.f32.mrf.mxu0
        %v2293 = vadd.f32 0.0, %v2292
        %v2294 = vpop.f32.mrf.mxu0
        %2295 = vmatprep.mubr.bf16.mxu0 0
        %2296 = vmatmul.mubr.bf16.gmra.mxu0 %v1842
        %v2297 = vpop.f32.mrf.mxu0
        %v2298 = vadd.f32 0.0, %v2297
        %v2299 = vpop.f32.mrf.mxu0
        %v2300 = vpop.f32.mrf.mxu0
        %v2301 = vadd.f32 0.0, %v2300
        %v2302 = vpop.f32.mrf.mxu0
        %2303 = vmatprep.mubr.bf16.mxu0 0
        %2304 = vmatmul.mubr.bf16.gmra.mxu0 %v1844
        %v2305 = vpop.f32.mrf.mxu0
        %v2306 = vadd.f32 0.0, %v2305
        %v2307 = vpop.f32.mrf.mxu0
        %v2308 = vpop.f32.mrf.mxu0
        %v2309 = vadd.f32 0.0, %v2308
        %v2310 = vpop.f32.mrf.mxu0
        %2311 = vmatprep.mubr.bf16.mxu0 0
        %2312 = vmatmul.mubr.bf16.gmra.mxu0 %v1846
        %v2313 = vpop.f32.mrf.mxu0
        %v2314 = vadd.f32 0.0, %v2313
        %v2315 = vpop.f32.mrf.mxu0
        %v2316 = vpop.f32.mrf.mxu0
        %v2317 = vadd.f32 0.0, %v2316
        %v2318 = vpop.f32.mrf.mxu0
        %2319 = vmatprep.mubr.bf16.mxu0 0
        %2320 = vmatmul.mubr.bf16.gmra.mxu0 %v1848
        %v2321 = vpop.f32.mrf.mxu0
        %v2322 = vadd.f32 0.0, %v2321
        %v2323 = vpop.f32.mrf.mxu0
        %v2324 = vpop.f32.mrf.mxu0
        %v2325 = vadd.f32 0.0, %v2324
        %v2326 = vpop.f32.mrf.mxu0
        %2327 = vmatprep.mubr.bf16.mxu0 0
        %2328 = vmatmul.mubr.bf16.gmra.mxu0 %v1850
        %v2329 = vpop.f32.mrf.mxu0
        %v2330 = vadd.f32 0.0, %v2329
        %v2331 = vpop.f32.mrf.mxu0
        %v2332 = vpop.f32.mrf.mxu0
        %v2333 = vadd.f32 0.0, %v2332
        %v2334 = vpop.f32.mrf.mxu0
        %2335 = vmatprep.mubr.bf16.mxu0 0
        %2336 = vmatmul.mubr.bf16.gmra.mxu0 %v1852
        %v2337 = vpop.f32.mrf.mxu0
        %v2338 = vadd.f32 0.0, %v2337
        %v2339 = vpop.f32.mrf.mxu0
        %v2340 = vpop.f32.mrf.mxu0
        %v2341 = vadd.f32 0.0, %v2340
        %v2342 = vpop.f32.mrf.mxu0
        %2343 = vmatprep.mubr.bf16.mxu0 0
        %2344 = vmatmul.mubr.bf16.gmra.mxu0 %v1854
        %v2345 = vpop.f32.mrf.mxu0
        %v2346 = vadd.f32 0.0, %v2345
        %v2347 = vpop.f32.mrf.mxu0
        %v2348 = vpop.f32.mrf.mxu0
        %v2349 = vadd.f32 0.0, %v2348
        %v2350 = vpop.f32.mrf.mxu0
        %2351 = vmatprep.mubr.bf16.mxu0 0
        %2352 = vmatmul.mubr.bf16.gmra.mxu0 %v1856
        %v2353 = vpop.f32.mrf.mxu0
        %v2354 = vadd.f32 0.0, %v2353
        %v2355 = vpop.f32.mrf.mxu0
        %v2356 = vpop.f32.mrf.mxu0
        %v2357 = vadd.f32 0.0, %v2356
        %v2358 = vpop.f32.mrf.mxu0
        %2359 = vmatprep.mubr.bf16.mxu0 0
        %2360 = vmatmul.mubr.bf16.gmra.mxu0 %v2202
        %v2361 = vpop.f32.mrf.mxu0
        %v2362 = vadd.f32 0.0, %v2361
        %v2363 = vpop.f32.mrf.mxu0
        %v2364 = vpop.f32.mrf.mxu0
        %v2365 = vadd.f32 0.0, %v2364
        %v2366 = vpop.f32.mrf.mxu0
        %2367 = vdwg.mxu0
        %v2368 = vadd.f32 %v2068, %v2242
        %v2369 = vadd.f32 %v2071, %v2245
        %v2370 = vadd.f32 %v2076, %v2250
        %v2371 = vadd.f32 %v2079, %v2253
        %v2372 = vadd.f32 %v2084, %v2258
        %v2373 = vadd.f32 %v2087, %v2261
        %v2374 = vadd.f32 %v2092, %v2266
        %v2375 = vadd.f32 %v2095, %v2269
        %v2376 = vadd.f32 %v2100, %v2274
        %v2377 = vadd.f32 %v2103, %v2277
        %v2378 = vadd.f32 %v2108, %v2282
        %v2379 = vadd.f32 %v2111, %v2285
        %v2380 = vadd.f32 %v2116, %v2290
        %v2381 = vadd.f32 %v2119, %v2293
        %v2382 = vadd.f32 %v2124, %v2298
        %v2383 = vadd.f32 %v2127, %v2301
        %v2384 = vadd.f32 %v2132, %v2306
        %v2385 = vadd.f32 %v2135, %v2309
        %v2386 = vadd.f32 %v2140, %v2314
        %v2387 = vadd.f32 %v2143, %v2317
        %v2388 = vadd.f32 %v2148, %v2322
        %v2389 = vadd.f32 %v2151, %v2325
        %v2390 = vadd.f32 %v2156, %v2330
        %v2391 = vadd.f32 %v2159, %v2333
        %v2392 = vadd.f32 %v2164, %v2338
        %v2393 = vadd.f32 %v2167, %v2341
        %v2394 = vadd.f32 %v2172, %v2346
        %v2395 = vadd.f32 %v2175, %v2349
        %v2396 = vadd.f32 %v2180, %v2354
        %v2397 = vadd.f32 %v2183, %v2357
        %v2398 = vadd.f32 %v2188, %v2362
        %v2399 = vadd.f32 %v2191, %v2365
        %v2400 = vld [vmem:[%s2] sm:$0x1]
        %v2402 = vlaneseq
        %v2403 = vshrl.u32 %v2402, 7
        %v2404 = vsub.s32 0, %v2403
        %v2405 = vrot.slane %v2400, %v2404
        %v2407 = vadd.f32 %v2368, %v2405
        %v2408 = vadd.f32 %v2369, %v2405
        %v2409 = vadd.f32 %v2370, %v2405
        %v2410 = vadd.f32 %v2371, %v2405
        %v2411 = vadd.f32 %v2372, %v2405
        %v2412 = vadd.f32 %v2373, %v2405
        %v2413 = vadd.f32 %v2374, %v2405
        %v2414 = vadd.f32 %v2375, %v2405
        %v2415 = vadd.f32 %v2376, %v2405
        %v2416 = vadd.f32 %v2377, %v2405
        %v2417 = vadd.f32 %v2378, %v2405
        %v2418 = vadd.f32 %v2379, %v2405
        %v2419 = vadd.f32 %v2380, %v2405
        %v2420 = vadd.f32 %v2381, %v2405
        %v2421 = vadd.f32 %v2382, %v2405
        %v2422 = vadd.f32 %v2383, %v2405
        %v2423 = vadd.f32 %v2384, %v2405
        %v2424 = vadd.f32 %v2385, %v2405
        %v2425 = vadd.f32 %v2386, %v2405
        %v2426 = vadd.f32 %v2387, %v2405
        %v2427 = vadd.f32 %v2388, %v2405
        %v2428 = vadd.f32 %v2389, %v2405
        %v2429 = vadd.f32 %v2390, %v2405
        %v2430 = vadd.f32 %v2391, %v2405
        %v2431 = vadd.f32 %v2392, %v2405
        %v2432 = vadd.f32 %v2393, %v2405
        %v2433 = vadd.f32 %v2394, %v2405
        %v2434 = vadd.f32 %v2395, %v2405
        %v2435 = vadd.f32 %v2396, %v2405
        %v2436 = vadd.f32 %v2397, %v2405
        %v2437 = vadd.f32 %v2398, %v2405
        %v2438 = vadd.f32 %v2399, %v2405
        %v2439 = vmax.f32 %v2407, 0.0
        %v2440 = vmax.f32 %v2408, 0.0
        %v2441 = vmax.f32 %v2409, 0.0
        %v2442 = vmax.f32 %v2410, 0.0
        %v2443 = vmax.f32 %v2411, 0.0
        %v2444 = vmax.f32 %v2412, 0.0
        %v2445 = vmax.f32 %v2413, 0.0
        %v2446 = vmax.f32 %v2414, 0.0
        %v2447 = vmax.f32 %v2415, 0.0
        %v2448 = vmax.f32 %v2416, 0.0
        %v2449 = vmax.f32 %v2417, 0.0
        %v2450 = vmax.f32 %v2418, 0.0
        %v2451 = vmax.f32 %v2419, 0.0
        %v2452 = vmax.f32 %v2420, 0.0
        %v2453 = vmax.f32 %v2421, 0.0
        %v2454 = vmax.f32 %v2422, 0.0
        %v2455 = vmax.f32 %v2423, 0.0
        %v2456 = vmax.f32 %v2424, 0.0
        %v2457 = vmax.f32 %v2425, 0.0
        %v2458 = vmax.f32 %v2426, 0.0
        %v2459 = vmax.f32 %v2427, 0.0
        %v2460 = vmax.f32 %v2428, 0.0
        %v2461 = vmax.f32 %v2429, 0.0
        %v2462 = vmax.f32 %v2430, 0.0
        %v2463 = vmax.f32 %v2431, 0.0
        %v2464 = vmax.f32 %v2432, 0.0
        %v2465 = vmax.f32 %v2433, 0.0
        %v2466 = vmax.f32 %v2434, 0.0
        %v2467 = vmax.f32 %v2435, 0.0
        %v2468 = vmax.f32 %v2436, 0.0
        %v2469 = vmax.f32 %v2437, 0.0
        %v2470 = vmax.f32 %v2438, 0.0
        %v2471 = vpack.c.bf16 %v2440, %v2439
        %v2472 = vpack.c.bf16 %v2442, %v2441
        %v2473 = vpack.c.bf16 %v2444, %v2443
        %v2474 = vpack.c.bf16 %v2446, %v2445
        %v2475 = vpack.c.bf16 %v2448, %v2447
        %v2476 = vpack.c.bf16 %v2450, %v2449
        %v2477 = vpack.c.bf16 %v2452, %v2451
        %v2478 = vpack.c.bf16 %v2454, %v2453
        %v2479 = vpack.c.bf16 %v2456, %v2455
        %v2480 = vpack.c.bf16 %v2458, %v2457
        %v2481 = vpack.c.bf16 %v2460, %v2459
        %v2482 = vpack.c.bf16 %v2462, %v2461
        %v2483 = vpack.c.bf16 %v2464, %v2463
        %v2484 = vpack.c.bf16 %v2466, %v2465
        %v2485 = vpack.c.bf16 %v2468, %v2467
        %v2486 = vpack.c.bf16 %v2470, %v2469
        %v2503 = vunpack.c.l.b16 %v2471
        %v2504 = vunpack.c.h.b16 %v2471
        %v2505 = vunpack.c.l.b16 %v2472
        %v2506 = vunpack.c.h.b16 %v2472
        %v2507 = vunpack.c.l.b16 %v2473
        %v2508 = vunpack.c.h.b16 %v2473
        %v2509 = vunpack.c.l.b16 %v2474
        %v2510 = vunpack.c.h.b16 %v2474
        %v2511 = vunpack.c.l.b16 %v2475
        %v2512 = vunpack.c.h.b16 %v2475
        %v2513 = vunpack.c.l.b16 %v2476
        %v2514 = vunpack.c.h.b16 %v2476
        %v2515 = vunpack.c.l.b16 %v2477
        %v2516 = vunpack.c.h.b16 %v2477
        %v2517 = vunpack.c.l.b16 %v2478
        %v2518 = vunpack.c.h.b16 %v2478
        %v2519 = vunpack.c.l.b16 %v2479
        %v2520 = vunpack.c.h.b16 %v2479
        %v2521 = vunpack.c.l.b16 %v2480
        %v2522 = vunpack.c.h.b16 %v2480
        %v2523 = vunpack.c.l.b16 %v2481
        %v2524 = vunpack.c.h.b16 %v2481
        %v2525 = vunpack.c.l.b16 %v2482
        %v2526 = vunpack.c.h.b16 %v2482
        %v2527 = vunpack.c.l.b16 %v2483
        %v2528 = vunpack.c.h.b16 %v2483
        %v2529 = vunpack.c.l.b16 %v2484
        %v2530 = vunpack.c.h.b16 %v2484
        %v2531 = vunpack.c.l.b16 %v2485
        %v2532 = vunpack.c.h.b16 %v2485
        %v2533 = vunpack.c.l.b16 %v2486
        %v2534 = vunpack.c.h.b16 %v2486
        %v2535 = vpack.c.b16 %v2503, %v2503
        %v2536 = vpack.c.b16 %v2504, %v2504
        %v2537 = vpack.c.b16 %v2505, %v2505
        %v2538 = vpack.c.b16 %v2506, %v2506
        %v2539 = vpack.c.b16 %v2507, %v2507
        %v2540 = vpack.c.b16 %v2508, %v2508
        %v2541 = vpack.c.b16 %v2509, %v2509
        %v2542 = vpack.c.b16 %v2510, %v2510
        %v2543 = vpack.c.b16 %v2511, %v2511
        %v2544 = vpack.c.b16 %v2512, %v2512
        %v2545 = vpack.c.b16 %v2513, %v2513
        %v2546 = vpack.c.b16 %v2514, %v2514
        %v2547 = vpack.c.b16 %v2515, %v2515
        %v2548 = vpack.c.b16 %v2516, %v2516
        %v2549 = vpack.c.b16 %v2517, %v2517
        %v2550 = vpack.c.b16 %v2518, %v2518
        %v2551 = vpack.c.b16 %v2519, %v2519
        %v2552 = vpack.c.b16 %v2520, %v2520
        %v2553 = vpack.c.b16 %v2521, %v2521
        %v2554 = vpack.c.b16 %v2522, %v2522
        %v2555 = vpack.c.b16 %v2523, %v2523
        %v2556 = vpack.c.b16 %v2524, %v2524
        %v2557 = vpack.c.b16 %v2525, %v2525
        %v2558 = vpack.c.b16 %v2526, %v2526
        %v2559 = vpack.c.b16 %v2527, %v2527
        %v2560 = vpack.c.b16 %v2528, %v2528
        %v2561 = vpack.c.b16 %v2529, %v2529
        %v2562 = vpack.c.b16 %v2530, %v2530
        %v2563 = vpack.c.b16 %v2531, %v2531
        %v2564 = vpack.c.b16 %v2532, %v2532
        %v2565 = vpack.c.b16 %v2533, %v2533
        %v2566 = vpack.c.b16 %v2534, %v2534
        %v2568 = vshrl.u32 %v2535, 16
        %v2570 = vrot.slane %v2568, 7
        %v2571 = vshll.u32 %v2535, 16
        %v2573 = vor.u32 %v2570, %v2571
        %v2574 = vrot.slane %v2570, 4
        %v2576 = vshrl.u32 %v2536, 16
        %v2578 = vrot.slane %v2576, 7
        %v2579 = vshll.u32 %v2536, 16
        %v2581 = vor.u32 %v2578, %v2579
        %v2582 = vsel %vm583, %v2574, %v2581
        %v2583 = vrot.slane %v2578, 4
        %v2585 = vshrl.u32 %v2537, 16
        %v2587 = vrot.slane %v2585, 7
        %v2588 = vshll.u32 %v2537, 16
        %v2590 = vor.u32 %v2587, %v2588
        %v2591 = vrot.slane %v2587, 4
        %v2593 = vshrl.u32 %v2538, 16
        %v2595 = vrot.slane %v2593, 7
        %v2596 = vshll.u32 %v2538, 16
        %v2598 = vor.u32 %v2595, %v2596
        %v2599 = vsel %vm583, %v2591, %v2598
        %v2600 = vrot.slane %v2595, 4
        %v2602 = vshrl.u32 %v2539, 16
        %v2604 = vrot.slane %v2602, 7
        %v2605 = vshll.u32 %v2539, 16
        %v2607 = vor.u32 %v2604, %v2605
        %v2608 = vrot.slane %v2604, 4
        %v2610 = vshrl.u32 %v2540, 16
        %v2612 = vrot.slane %v2610, 7
        %v2613 = vshll.u32 %v2540, 16
        %v2615 = vor.u32 %v2612, %v2613
        %v2616 = vsel %vm583, %v2608, %v2615
        %v2617 = vrot.slane %v2612, 4
        %v2619 = vshrl.u32 %v2541, 16
        %v2621 = vrot.slane %v2619, 7
        %v2622 = vshll.u32 %v2541, 16
        %v2624 = vor.u32 %v2621, %v2622
        %v2625 = vrot.slane %v2621, 4
        %v2627 = vshrl.u32 %v2542, 16
        %v2629 = vrot.slane %v2627, 7
        %v2630 = vshll.u32 %v2542, 16
        %v2632 = vor.u32 %v2629, %v2630
        %v2633 = vsel %vm583, %v2625, %v2632
        %v2634 = vrot.slane %v2629, 4
        %v2636 = vshrl.u32 %v2543, 16
        %v2638 = vrot.slane %v2636, 7
        %v2639 = vshll.u32 %v2543, 16
        %v2641 = vor.u32 %v2638, %v2639
        %v2642 = vrot.slane %v2638, 4
        %v2644 = vshrl.u32 %v2544, 16
        %v2646 = vrot.slane %v2644, 7
        %v2647 = vshll.u32 %v2544, 16
        %v2649 = vor.u32 %v2646, %v2647
        %v2650 = vsel %vm583, %v2642, %v2649
        %v2651 = vrot.slane %v2646, 4
        %v2653 = vshrl.u32 %v2545, 16
        %v2655 = vrot.slane %v2653, 7
        %v2656 = vshll.u32 %v2545, 16
        %v2658 = vor.u32 %v2655, %v2656
        %v2659 = vrot.slane %v2655, 4
        %v2661 = vshrl.u32 %v2546, 16
        %v2663 = vrot.slane %v2661, 7
        %v2664 = vshll.u32 %v2546, 16
        %v2666 = vor.u32 %v2663, %v2664
        %v2667 = vsel %vm583, %v2659, %v2666
        %v2668 = vrot.slane %v2663, 4
        %v2670 = vshrl.u32 %v2547, 16
        %v2672 = vrot.slane %v2670, 7
        %v2673 = vshll.u32 %v2547, 16
        %v2675 = vor.u32 %v2672, %v2673
        %v2676 = vrot.slane %v2672, 4
        %v2678 = vshrl.u32 %v2548, 16
        %v2680 = vrot.slane %v2678, 7
        %v2681 = vshll.u32 %v2548, 16
        %v2683 = vor.u32 %v2680, %v2681
        %v2684 = vsel %vm583, %v2676, %v2683
        %v2685 = vrot.slane %v2680, 4
        %v2687 = vshrl.u32 %v2549, 16
        %v2689 = vrot.slane %v2687, 7
        %v2690 = vshll.u32 %v2549, 16
        %v2692 = vor.u32 %v2689, %v2690
        %v2693 = vrot.slane %v2689, 4
        %v2695 = vshrl.u32 %v2550, 16
        %v2697 = vrot.slane %v2695, 7
        %v2698 = vshll.u32 %v2550, 16
        %v2700 = vor.u32 %v2697, %v2698
        %v2701 = vsel %vm583, %v2693, %v2700
        %v2702 = vrot.slane %v2697, 4
        %v2704 = vshrl.u32 %v2551, 16
        %v2706 = vrot.slane %v2704, 7
        %v2707 = vshll.u32 %v2551, 16
        %v2709 = vor.u32 %v2706, %v2707
        %v2710 = vrot.slane %v2706, 4
        %v2712 = vshrl.u32 %v2552, 16
        %v2714 = vrot.slane %v2712, 7
        %v2715 = vshll.u32 %v2552, 16
        %v2717 = vor.u32 %v2714, %v2715
        %v2718 = vsel %vm583, %v2710, %v2717
        %v2719 = vrot.slane %v2714, 4
        %v2721 = vshrl.u32 %v2553, 16
        %v2723 = vrot.slane %v2721, 7
        %v2724 = vshll.u32 %v2553, 16
        %v2726 = vor.u32 %v2723, %v2724
        %v2727 = vrot.slane %v2723, 4
        %v2729 = vshrl.u32 %v2554, 16
        %v2731 = vrot.slane %v2729, 7
        %v2732 = vshll.u32 %v2554, 16
        %v2734 = vor.u32 %v2731, %v2732
        %v2735 = vsel %vm583, %v2727, %v2734
        %v2736 = vrot.slane %v2731, 4
        %v2738 = vshrl.u32 %v2555, 16
        %v2740 = vrot.slane %v2738, 7
        %v2741 = vshll.u32 %v2555, 16
        %v2743 = vor.u32 %v2740, %v2741
        %v2744 = vrot.slane %v2740, 4
        %v2746 = vshrl.u32 %v2556, 16
        %v2748 = vrot.slane %v2746, 7
        %v2749 = vshll.u32 %v2556, 16
        %v2751 = vor.u32 %v2748, %v2749
        %v2752 = vsel %vm583, %v2744, %v2751
        %v2753 = vrot.slane %v2748, 4
        %v2755 = vshrl.u32 %v2557, 16
        %v2757 = vrot.slane %v2755, 7
        %v2758 = vshll.u32 %v2557, 16
        %v2760 = vor.u32 %v2757, %v2758
        %v2761 = vrot.slane %v2757, 4
        %v2763 = vshrl.u32 %v2558, 16
        %v2765 = vrot.slane %v2763, 7
        %v2766 = vshll.u32 %v2558, 16
        %v2768 = vor.u32 %v2765, %v2766
        %v2769 = vsel %vm583, %v2761, %v2768
        %v2770 = vrot.slane %v2765, 4
        %v2772 = vshrl.u32 %v2559, 16
        %v2774 = vrot.slane %v2772, 7
        %v2775 = vshll.u32 %v2559, 16
        %v2777 = vor.u32 %v2774, %v2775
        %v2778 = vrot.slane %v2774, 4
        %v2780 = vshrl.u32 %v2560, 16
        %v2782 = vrot.slane %v2780, 7
        %v2783 = vshll.u32 %v2560, 16
        %v2785 = vor.u32 %v2782, %v2783
        %v2786 = vsel %vm583, %v2778, %v2785
        %v2787 = vrot.slane %v2782, 4
        %v2789 = vshrl.u32 %v2561, 16
        %v2791 = vrot.slane %v2789, 7
        %v2792 = vshll.u32 %v2561, 16
        %v2794 = vor.u32 %v2791, %v2792
        %v2795 = vrot.slane %v2791, 4
        %v2797 = vshrl.u32 %v2562, 16
        %v2799 = vrot.slane %v2797, 7
        %v2800 = vshll.u32 %v2562, 16
        %v2802 = vor.u32 %v2799, %v2800
        %v2803 = vsel %vm583, %v2795, %v2802
        %v2804 = vrot.slane %v2799, 4
        %v2806 = vshrl.u32 %v2563, 16
        %v2808 = vrot.slane %v2806, 7
        %v2809 = vshll.u32 %v2563, 16
        %v2811 = vor.u32 %v2808, %v2809
        %v2812 = vrot.slane %v2808, 4
        %v2814 = vshrl.u32 %v2564, 16
        %v2816 = vrot.slane %v2814, 7
        %v2817 = vshll.u32 %v2564, 16
        %v2819 = vor.u32 %v2816, %v2817
        %v2820 = vsel %vm583, %v2812, %v2819
        %v2821 = vrot.slane %v2816, 4
        %v2823 = vshrl.u32 %v2565, 16
        %v2825 = vrot.slane %v2823, 7
        %v2826 = vshll.u32 %v2565, 16
        %v2828 = vor.u32 %v2825, %v2826
        %v2829 = vrot.slane %v2825, 4
        %v2831 = vshrl.u32 %v2566, 16
        %v2833 = vrot.slane %v2831, 7
        %v2834 = vshll.u32 %v2566, 16
        %v2836 = vor.u32 %v2833, %v2834
        %v2837 = vsel %vm583, %v2829, %v2836
        %v2838 = vrot.slane %v2833, 4
        %vm2887 = vcmask 257024
        %vm2888 = vmand %vm2887, %vm500
        %v2889 = vld [vmem:[%s1027] sm:$0xf]
        %v2890 = vsel %vm2888, %v2573, %v2889
        %2891 = vst [vmem:[%s1027] sm:$0xf] %v2890
        %2892 = vst.msk [vmem:[%s1027 + $0x4] sm:$0xf] %vm1018, %v2582
        %v2893 = vld [vmem:[%s1027 + $0x8] sm:$0x1]
        %v2894 = vsel %vm1029, %v2583, %v2893
        %2895 = vst [vmem:[%s1027 + $0x8] sm:$0x1] %v2894
        %v2896 = vld [vmem:[%s1027 + $0xc] sm:$0xf]
        %v2897 = vsel %vm2888, %v2590, %v2896
        %2898 = vst [vmem:[%s1027 + $0xc] sm:$0xf] %v2897
        %2899 = vst.msk [vmem:[%s1027 + $0x10] sm:$0xf] %vm1018, %v2599
        %v2900 = vld [vmem:[%s1027 + $0x14] sm:$0x1]
        %v2901 = vsel %vm1029, %v2600, %v2900
        %2902 = vst [vmem:[%s1027 + $0x14] sm:$0x1] %v2901
        %v2903 = vld [vmem:[%s1027 + $0x18] sm:$0xf]
        %v2904 = vsel %vm2888, %v2607, %v2903
        %2905 = vst [vmem:[%s1027 + $0x18] sm:$0xf] %v2904
        %2906 = vst.msk [vmem:[%s1027 + $0x1c] sm:$0xf] %vm1018, %v2616
        %v2907 = vld [vmem:[%s1027 + $0x20] sm:$0x1]
        %v2908 = vsel %vm1029, %v2617, %v2907
        %2909 = vst [vmem:[%s1027 + $0x20] sm:$0x1] %v2908
        %v2910 = vld [vmem:[%s1027 + $0x24] sm:$0xf]
        %v2911 = vsel %vm2888, %v2624, %v2910
        %2912 = vst [vmem:[%s1027 + $0x24] sm:$0xf] %v2911
        %2913 = vst.msk [vmem:[%s1027 + $0x28] sm:$0xf] %vm1018, %v2633
        %v2914 = vld [vmem:[%s1027 + $0x2c] sm:$0x1]
        %v2915 = vsel %vm1029, %v2634, %v2914
        %2916 = vst [vmem:[%s1027 + $0x2c] sm:$0x1] %v2915
        %v2917 = vld [vmem:[%s1027 + $0x30] sm:$0xf]
        %v2918 = vsel %vm2888, %v2641, %v2917
        %2919 = vst [vmem:[%s1027 + $0x30] sm:$0xf] %v2918
        %2920 = vst.msk [vmem:[%s1027 + $0x34] sm:$0xf] %vm1018, %v2650
        %v2921 = vld [vmem:[%s1027 + $0x38] sm:$0x1]
        %v2922 = vsel %vm1029, %v2651, %v2921
        %2923 = vst [vmem:[%s1027 + $0x38] sm:$0x1] %v2922
        %v2924 = vld [vmem:[%s1027 + $0x3c] sm:$0xf]
        %v2925 = vsel %vm2888, %v2658, %v2924
        %2926 = vst [vmem:[%s1027 + $0x3c] sm:$0xf] %v2925
        %2927 = vst.msk [vmem:[%s1027 + $0x40] sm:$0xf] %vm1018, %v2667
        %v2928 = vld [vmem:[%s1027 + $0x44] sm:$0x1]
        %v2929 = vsel %vm1029, %v2668, %v2928
        %2930 = vst [vmem:[%s1027 + $0x44] sm:$0x1] %v2929
        %v2931 = vld [vmem:[%s1027 + $0x48] sm:$0xf]
        %v2932 = vsel %vm2888, %v2675, %v2931
        %2933 = vst [vmem:[%s1027 + $0x48] sm:$0xf] %v2932
        %2934 = vst.msk [vmem:[%s1027 + $0x4c] sm:$0xf] %vm1018, %v2684
        %v2935 = vld [vmem:[%s1027 + $0x50] sm:$0x1]
        %v2936 = vsel %vm1029, %v2685, %v2935
        %2937 = vst [vmem:[%s1027 + $0x50] sm:$0x1] %v2936
        %v2938 = vld [vmem:[%s1027 + $0x54] sm:$0xf]
        %v2939 = vsel %vm2888, %v2692, %v2938
        %2940 = vst [vmem:[%s1027 + $0x54] sm:$0xf] %v2939
        %2941 = vst.msk [vmem:[%s1027 + $0x58] sm:$0xf] %vm1018, %v2701
        %v2942 = vld [vmem:[%s1027 + $0x5c] sm:$0x1]
        %v2943 = vsel %vm1029, %v2702, %v2942
        %2944 = vst [vmem:[%s1027 + $0x5c] sm:$0x1] %v2943
        %v2945 = vld [vmem:[%s1027 + $0x60] sm:$0xf]
        %v2946 = vsel %vm2888, %v2709, %v2945
        %2947 = vst [vmem:[%s1027 + $0x60] sm:$0xf] %v2946
        %2948 = vst.msk [vmem:[%s1027 + $0x64] sm:$0xf] %vm1018, %v2718
        %v2949 = vld [vmem:[%s1027 + $0x68] sm:$0x1]
        %v2950 = vsel %vm1029, %v2719, %v2949
        %2951 = vst [vmem:[%s1027 + $0x68] sm:$0x1] %v2950
        %v2952 = vld [vmem:[%s1027 + $0x6c] sm:$0xf]
        %v2953 = vsel %vm2888, %v2726, %v2952
        %2954 = vst [vmem:[%s1027 + $0x6c] sm:$0xf] %v2953
        %2955 = vst.msk [vmem:[%s1027 + $0x70] sm:$0xf] %vm1018, %v2735
        %v2956 = vld [vmem:[%s1027 + $0x74] sm:$0x1]
        %v2957 = vsel %vm1029, %v2736, %v2956
        %2958 = vst [vmem:[%s1027 + $0x74] sm:$0x1] %v2957
        %v2959 = vld [vmem:[%s1027 + $0x78] sm:$0xf]
        %v2960 = vsel %vm2888, %v2743, %v2959
        %2961 = vst [vmem:[%s1027 + $0x78] sm:$0xf] %v2960
        %2962 = vst.msk [vmem:[%s1027 + $0x7c] sm:$0xf] %vm1018, %v2752
        %v2963 = vld [vmem:[%s1027 + $0x80] sm:$0x1]
        %v2964 = vsel %vm1029, %v2753, %v2963
        %2965 = vst [vmem:[%s1027 + $0x80] sm:$0x1] %v2964
        %v2966 = vld [vmem:[%s1027 + $0x84] sm:$0xf]
        %v2967 = vsel %vm2888, %v2760, %v2966
        %2968 = vst [vmem:[%s1027 + $0x84] sm:$0xf] %v2967
        %2969 = vst.msk [vmem:[%s1027 + $0x88] sm:$0xf] %vm1018, %v2769
        %v2970 = vld [vmem:[%s1027 + $0x8c] sm:$0x1]
        %v2971 = vsel %vm1029, %v2770, %v2970
        %2972 = vst [vmem:[%s1027 + $0x8c] sm:$0x1] %v2971
        %v2973 = vld [vmem:[%s1027 + $0x90] sm:$0xf]
        %v2974 = vsel %vm2888, %v2777, %v2973
        %2975 = vst [vmem:[%s1027 + $0x90] sm:$0xf] %v2974
        %2976 = vst.msk [vmem:[%s1027 + $0x94] sm:$0xf] %vm1018, %v2786
        %v2977 = vld [vmem:[%s1027 + $0x98] sm:$0x1]
        %v2978 = vsel %vm1029, %v2787, %v2977
        %2979 = vst [vmem:[%s1027 + $0x98] sm:$0x1] %v2978
        %v2980 = vld [vmem:[%s1027 + $0x9c] sm:$0xf]
        %v2981 = vsel %vm2888, %v2794, %v2980
        %2982 = vst [vmem:[%s1027 + $0x9c] sm:$0xf] %v2981
        %2983 = vst.msk [vmem:[%s1027 + $0xa0] sm:$0xf] %vm1018, %v2803
        %v2984 = vld [vmem:[%s1027 + $0xa4] sm:$0x1]
        %v2985 = vsel %vm1029, %v2804, %v2984
        %2986 = vst [vmem:[%s1027 + $0xa4] sm:$0x1] %v2985
        %v2987 = vld [vmem:[%s1027 + $0xa8] sm:$0xf]
        %v2988 = vsel %vm2888, %v2811, %v2987
        %2989 = vst [vmem:[%s1027 + $0xa8] sm:$0xf] %v2988
        %2990 = vst.msk [vmem:[%s1027 + $0xac] sm:$0xf] %vm1018, %v2820
        %v2991 = vld [vmem:[%s1027 + $0xb0] sm:$0x1]
        %v2992 = vsel %vm1029, %v2821, %v2991
        %2993 = vst [vmem:[%s1027 + $0xb0] sm:$0x1] %v2992
        %v2994 = vld [vmem:[%s1027 + $0xb4] sm:$0xf]
        %v2995 = vsel %vm2888, %v2828, %v2994
        %2996 = vst [vmem:[%s1027 + $0xb4] sm:$0xf] %v2995
        %2997 = vst.msk [vmem:[%s1027 + $0xb8] sm:$0xf] %vm1018, %v2837
        %v2998 = vld [vmem:[%s1027 + $0xbc] sm:$0x1]
        %v2999 = vsel %vm1029, %v2838, %v2998
        %3000 = vst [vmem:[%s1027 + $0xbc] sm:$0x1] %v2999
        %v3001 = vld [vmem:[#allocation3] sm:$0xf]
        %v3002 = vld [vmem:[#allocation3 + $0x4] sm:$0xf]
        %v3003 = vld [vmem:[#allocation3 + $0xc] sm:$0xf]
        %v3004 = vld [vmem:[#allocation3 + $0x10] sm:$0xf]
        %v3005 = vld [vmem:[#allocation3 + $0x18] sm:$0xf]
        %v3006 = vld [vmem:[#allocation3 + $0x1c] sm:$0xf]
        %v3007 = vld [vmem:[#allocation3 + $0x24] sm:$0xf]
        %v3008 = vld [vmem:[#allocation3 + $0x28] sm:$0xf]
        %v3009 = vld [vmem:[#allocation3 + $0x30] sm:$0xf]
        %v3010 = vld [vmem:[#allocation3 + $0x34] sm:$0xf]
        %v3011 = vld [vmem:[#allocation3 + $0x3c] sm:$0xf]
        %v3012 = vld [vmem:[#allocation3 + $0x40] sm:$0xf]
        %v3013 = vld [vmem:[#allocation3 + $0x48] sm:$0xf]
        %v3014 = vld [vmem:[#allocation3 + $0x4c] sm:$0xf]
        %v3015 = vld [vmem:[#allocation3 + $0x54] sm:$0xf]
        %v3016 = vld [vmem:[#allocation3 + $0x58] sm:$0xf]
        %v3017 = vld [vmem:[#allocation3 + $0x60] sm:$0xf]
        %v3018 = vld [vmem:[#allocation3 + $0x64] sm:$0xf]
        %v3019 = vld [vmem:[#allocation3 + $0x6c] sm:$0xf]
        %v3020 = vld [vmem:[#allocation3 + $0x70] sm:$0xf]
        %v3021 = vld [vmem:[#allocation3 + $0x78] sm:$0xf]
        %v3022 = vld [vmem:[#allocation3 + $0x7c] sm:$0xf]
        %v3023 = vld [vmem:[#allocation3 + $0x84] sm:$0xf]
        %v3024 = vld [vmem:[#allocation3 + $0x88] sm:$0xf]
        %v3025 = vld [vmem:[#allocation3 + $0x90] sm:$0xf]
        %v3026 = vld [vmem:[#allocation3 + $0x94] sm:$0xf]
        %v3027 = vld [vmem:[#allocation3 + $0x9c] sm:$0xf]
        %v3028 = vld [vmem:[#allocation3 + $0xa0] sm:$0xf]
        %v3029 = vld [vmem:[#allocation3 + $0xa8] sm:$0xf]
        %v3030 = vld [vmem:[#allocation3 + $0xac] sm:$0xf]
        %v3031 = vld [vmem:[#allocation3 + $0xb4] sm:$0xf]
        %v3032 = vld [vmem:[#allocation3 + $0xb8] sm:$0xf]
        %v3033 = vld [vmem:[#allocation3 + $0xc0] sm:$0xf]
        %v3034 = vld [vmem:[#allocation3 + $0xc4] sm:$0xf]
        %v3035 = vld [vmem:[#allocation3 + $0xcc] sm:$0xf]
        %v3036 = vld [vmem:[#allocation3 + $0xd0] sm:$0xf]
        %v3037 = vld [vmem:[#allocation3 + $0x8] sm:$0x1]
        %v3038 = vld [vmem:[#allocation3 + $0x14] sm:$0x1]
        %v3039 = vld [vmem:[#allocation3 + $0x20] sm:$0x1]
        %v3040 = vld [vmem:[#allocation3 + $0x2c] sm:$0x1]
        %v3041 = vld [vmem:[#allocation3 + $0x38] sm:$0x1]
        %v3042 = vld [vmem:[#allocation3 + $0x44] sm:$0x1]
        %v3043 = vld [vmem:[#allocation3 + $0x50] sm:$0x1]
        %v3044 = vld [vmem:[#allocation3 + $0x5c] sm:$0x1]
        %v3045 = vld [vmem:[#allocation3 + $0x68] sm:$0x1]
        %v3046 = vld [vmem:[#allocation3 + $0x74] sm:$0x1]
        %v3047 = vld [vmem:[#allocation3 + $0x80] sm:$0x1]
        %v3048 = vld [vmem:[#allocation3 + $0x8c] sm:$0x1]
        %v3049 = vld [vmem:[#allocation3 + $0x98] sm:$0x1]
        %v3050 = vld [vmem:[#allocation3 + $0xa4] sm:$0x1]
        %v3051 = vld [vmem:[#allocation3 + $0xb0] sm:$0x1]
        %v3052 = vld [vmem:[#allocation3 + $0xbc] sm:$0x1]
        %v3053 = vld [vmem:[#allocation3 + $0xc8] sm:$0x1]
        %v3054 = vld [vmem:[#allocation3 + $0xd4] sm:$0x1]
        %v3055 = vld [vmem:[#allocation3] sm:$0xe]
        %v3056 = vld [vmem:[#allocation3 + $0xc] sm:$0xe]
        %v3057 = vld [vmem:[#allocation3 + $0x18] sm:$0xe]
        %v3058 = vld [vmem:[#allocation3 + $0x24] sm:$0xe]
        %v3059 = vld [vmem:[#allocation3 + $0x30] sm:$0xe]
        %v3060 = vld [vmem:[#allocation3 + $0x3c] sm:$0xe]
        %v3061 = vld [vmem:[#allocation3 + $0x48] sm:$0xe]
        %v3062 = vld [vmem:[#allocation3 + $0x54] sm:$0xe]
        %v3063 = vld [vmem:[#allocation3 + $0x60] sm:$0xe]
        %v3064 = vld [vmem:[#allocation3 + $0x6c] sm:$0xe]
        %v3065 = vld [vmem:[#allocation3 + $0x78] sm:$0xe]
        %v3066 = vld [vmem:[#allocation3 + $0x84] sm:$0xe]
        %v3067 = vld [vmem:[#allocation3 + $0x90] sm:$0xe]
        %v3068 = vld [vmem:[#allocation3 + $0x9c] sm:$0xe]
        %v3069 = vld [vmem:[#allocation3 + $0xa8] sm:$0xe]
        %v3070 = vld [vmem:[#allocation3 + $0xb4] sm:$0xe]
        %v3071 = vld [vmem:[#allocation3 + $0xc0] sm:$0xe]
        %v3072 = vld [vmem:[#allocation3 + $0xcc] sm:$0xe]
        %v3109 = vunpack.c.l.b16 %v3001
        %v3110 = vunpack.c.l.b16 %v3002
        %v3111 = vunpack.c.l.b16 %v3003
        %v3112 = vunpack.c.l.b16 %v3004
        %v3113 = vunpack.c.l.b16 %v3005
        %v3114 = vunpack.c.l.b16 %v3006
        %v3115 = vunpack.c.l.b16 %v3007
        %v3116 = vunpack.c.l.b16 %v3008
        %v3117 = vunpack.c.l.b16 %v3009
        %v3118 = vunpack.c.l.b16 %v3010
        %v3119 = vunpack.c.l.b16 %v3011
        %v3120 = vunpack.c.l.b16 %v3012
        %v3121 = vunpack.c.l.b16 %v3013
        %v3122 = vunpack.c.l.b16 %v3014
        %v3123 = vunpack.c.l.b16 %v3015
        %v3124 = vunpack.c.l.b16 %v3016
        %v3125 = vunpack.c.l.b16 %v3017
        %v3126 = vunpack.c.l.b16 %v3018
        %v3127 = vunpack.c.l.b16 %v3019
        %v3128 = vunpack.c.l.b16 %v3020
        %v3129 = vunpack.c.l.b16 %v3021
        %v3130 = vunpack.c.l.b16 %v3022
        %v3131 = vunpack.c.l.b16 %v3023
        %v3132 = vunpack.c.l.b16 %v3024
        %v3133 = vunpack.c.l.b16 %v3025
        %v3134 = vunpack.c.l.b16 %v3026
        %v3135 = vunpack.c.l.b16 %v3027
        %v3136 = vunpack.c.l.b16 %v3028
        %v3137 = vunpack.c.l.b16 %v3029
        %v3138 = vunpack.c.l.b16 %v3030
        %v3139 = vunpack.c.l.b16 %v3031
        %v3140 = vunpack.c.l.b16 %v3032
        %v3141 = vunpack.c.l.b16 %v3033
        %v3142 = vunpack.c.l.b16 %v3034
        %v3143 = vunpack.c.l.b16 %v3035
        %v3144 = vunpack.c.l.b16 %v3036
        %v3145 = vpack.c.b16 %v3110, %v3109
        %v3146 = vpack.c.b16 %v3112, %v3111
        %v3147 = vpack.c.b16 %v3114, %v3113
        %v3148 = vpack.c.b16 %v3116, %v3115
        %v3149 = vpack.c.b16 %v3118, %v3117
        %v3150 = vpack.c.b16 %v3120, %v3119
        %v3151 = vpack.c.b16 %v3122, %v3121
        %v3152 = vpack.c.b16 %v3124, %v3123
        %v3153 = vpack.c.b16 %v3126, %v3125
        %v3154 = vpack.c.b16 %v3128, %v3127
        %v3155 = vpack.c.b16 %v3130, %v3129
        %v3156 = vpack.c.b16 %v3132, %v3131
        %v3157 = vpack.c.b16 %v3134, %v3133
        %v3158 = vpack.c.b16 %v3136, %v3135
        %v3159 = vpack.c.b16 %v3138, %v3137
        %v3160 = vpack.c.b16 %v3140, %v3139
        %v3161 = vpack.c.b16 %v3142, %v3141
        %v3162 = vpack.c.b16 %v3144, %v3143
        %v3181 = vunpack.c.l.b16 %v3037
        %v3182 = vunpack.c.l.b16 %v3038
        %v3183 = vunpack.c.l.b16 %v3039
        %v3184 = vunpack.c.l.b16 %v3040
        %v3185 = vunpack.c.l.b16 %v3041
        %v3186 = vunpack.c.l.b16 %v3042
        %v3187 = vunpack.c.l.b16 %v3043
        %v3188 = vunpack.c.l.b16 %v3044
        %v3189 = vunpack.c.l.b16 %v3045
        %v3190 = vunpack.c.l.b16 %v3046
        %v3191 = vunpack.c.l.b16 %v3047
        %v3192 = vunpack.c.l.b16 %v3048
        %v3193 = vunpack.c.l.b16 %v3049
        %v3194 = vunpack.c.l.b16 %v3050
        %v3195 = vunpack.c.l.b16 %v3051
        %v3196 = vunpack.c.l.b16 %v3052
        %v3197 = vunpack.c.l.b16 %v3053
        %v3198 = vunpack.c.l.b16 %v3054
        %v3199 = vpack.c.b16 %v3181, %v3181
        %v3200 = vpack.c.b16 %v3182, %v3182
        %v3201 = vpack.c.b16 %v3183, %v3183
        %v3202 = vpack.c.b16 %v3184, %v3184
        %v3203 = vpack.c.b16 %v3185, %v3185
        %v3204 = vpack.c.b16 %v3186, %v3186
        %v3205 = vpack.c.b16 %v3187, %v3187
        %v3206 = vpack.c.b16 %v3188, %v3188
        %v3207 = vpack.c.b16 %v3189, %v3189
        %v3208 = vpack.c.b16 %v3190, %v3190
        %v3209 = vpack.c.b16 %v3191, %v3191
        %v3210 = vpack.c.b16 %v3192, %v3192
        %v3211 = vpack.c.b16 %v3193, %v3193
        %v3212 = vpack.c.b16 %v3194, %v3194
        %v3213 = vpack.c.b16 %v3195, %v3195
        %v3214 = vpack.c.b16 %v3196, %v3196
        %v3215 = vpack.c.b16 %v3197, %v3197
        %v3216 = vpack.c.b16 %v3198, %v3198
        %v3218 = vshrl.u32 %v3145, 16
        %v3220 = vshll.u32 %v3145, 16
        %v3222 = vrot.slane %v3220, 1
        %v3223 = vor.u32 %v3218, %v3222
        %v3225 = vshll.u32 %v3199, 16
        %v3227 = vrot.slane %v3225, 1
        %v3228 = vsel %vm1343, %v3223, %v3227
        %v3230 = vshrl.u32 %v3146, 16
        %v3232 = vshll.u32 %v3146, 16
        %v3234 = vrot.slane %v3232, 1
        %v3235 = vor.u32 %v3230, %v3234
        %v3237 = vshll.u32 %v3200, 16
        %v3239 = vrot.slane %v3237, 1
        %v3240 = vsel %vm1343, %v3235, %v3239
        %v3242 = vshrl.u32 %v3147, 16
        %v3244 = vshll.u32 %v3147, 16
        %v3246 = vrot.slane %v3244, 1
        %v3247 = vor.u32 %v3242, %v3246
        %v3249 = vshll.u32 %v3201, 16
        %v3251 = vrot.slane %v3249, 1
        %v3252 = vsel %vm1343, %v3247, %v3251
        %v3254 = vshrl.u32 %v3148, 16
        %v3256 = vshll.u32 %v3148, 16
        %v3258 = vrot.slane %v3256, 1
        %v3259 = vor.u32 %v3254, %v3258
        %v3261 = vshll.u32 %v3202, 16
        %v3263 = vrot.slane %v3261, 1
        %v3264 = vsel %vm1343, %v3259, %v3263
        %v3266 = vshrl.u32 %v3149, 16
        %v3268 = vshll.u32 %v3149, 16
        %v3270 = vrot.slane %v3268, 1
        %v3271 = vor.u32 %v3266, %v3270
        %v3273 = vshll.u32 %v3203, 16
        %v3275 = vrot.slane %v3273, 1
        %v3276 = vsel %vm1343, %v3271, %v3275
        %v3278 = vshrl.u32 %v3150, 16
        %v3280 = vshll.u32 %v3150, 16
        %v3282 = vrot.slane %v3280, 1
        %v3283 = vor.u32 %v3278, %v3282
        %v3285 = vshll.u32 %v3204, 16
        %v3287 = vrot.slane %v3285, 1
        %v3288 = vsel %vm1343, %v3283, %v3287
        %v3290 = vshrl.u32 %v3151, 16
        %v3292 = vshll.u32 %v3151, 16
        %v3294 = vrot.slane %v3292, 1
        %v3295 = vor.u32 %v3290, %v3294
        %v3297 = vshll.u32 %v3205, 16
        %v3299 = vrot.slane %v3297, 1
        %v3300 = vsel %vm1343, %v3295, %v3299
        %v3302 = vshrl.u32 %v3152, 16
        %v3304 = vshll.u32 %v3152, 16
        %v3306 = vrot.slane %v3304, 1
        %v3307 = vor.u32 %v3302, %v3306
        %v3309 = vshll.u32 %v3206, 16
        %v3311 = vrot.slane %v3309, 1
        %v3312 = vsel %vm1343, %v3307, %v3311
        %v3314 = vshrl.u32 %v3153, 16
        %v3316 = vshll.u32 %v3153, 16
        %v3318 = vrot.slane %v3316, 1
        %v3319 = vor.u32 %v3314, %v3318
        %v3321 = vshll.u32 %v3207, 16
        %v3323 = vrot.slane %v3321, 1
        %v3324 = vsel %vm1343, %v3319, %v3323
        %v3326 = vshrl.u32 %v3154, 16
        %v3328 = vshll.u32 %v3154, 16
        %v3330 = vrot.slane %v3328, 1
        %v3331 = vor.u32 %v3326, %v3330
        %v3333 = vshll.u32 %v3208, 16
        %v3335 = vrot.slane %v3333, 1
        %v3336 = vsel %vm1343, %v3331, %v3335
        %v3338 = vshrl.u32 %v3155, 16
        %v3340 = vshll.u32 %v3155, 16
        %v3342 = vrot.slane %v3340, 1
        %v3343 = vor.u32 %v3338, %v3342
        %v3345 = vshll.u32 %v3209, 16
        %v3347 = vrot.slane %v3345, 1
        %v3348 = vsel %vm1343, %v3343, %v3347
        %v3350 = vshrl.u32 %v3156, 16
        %v3352 = vshll.u32 %v3156, 16
        %v3354 = vrot.slane %v3352, 1
        %v3355 = vor.u32 %v3350, %v3354
        %v3357 = vshll.u32 %v3210, 16
        %v3359 = vrot.slane %v3357, 1
        %v3360 = vsel %vm1343, %v3355, %v3359
        %v3362 = vshrl.u32 %v3157, 16
        %v3364 = vshll.u32 %v3157, 16
        %v3366 = vrot.slane %v3364, 1
        %v3367 = vor.u32 %v3362, %v3366
        %v3369 = vshll.u32 %v3211, 16
        %v3371 = vrot.slane %v3369, 1
        %v3372 = vsel %vm1343, %v3367, %v3371
        %v3374 = vshrl.u32 %v3158, 16
        %v3376 = vshll.u32 %v3158, 16
        %v3378 = vrot.slane %v3376, 1
        %v3379 = vor.u32 %v3374, %v3378
        %v3381 = vshll.u32 %v3212, 16
        %v3383 = vrot.slane %v3381, 1
        %v3384 = vsel %vm1343, %v3379, %v3383
        %v3386 = vshrl.u32 %v3159, 16
        %v3388 = vshll.u32 %v3159, 16
        %v3390 = vrot.slane %v3388, 1
        %v3391 = vor.u32 %v3386, %v3390
        %v3393 = vshll.u32 %v3213, 16
        %v3395 = vrot.slane %v3393, 1
        %v3396 = vsel %vm1343, %v3391, %v3395
        %v3398 = vshrl.u32 %v3160, 16
        %v3400 = vshll.u32 %v3160, 16
        %v3402 = vrot.slane %v3400, 1
        %v3403 = vor.u32 %v3398, %v3402
        %v3405 = vshll.u32 %v3214, 16
        %v3407 = vrot.slane %v3405, 1
        %v3408 = vsel %vm1343, %v3403, %v3407
        %v3410 = vshrl.u32 %v3161, 16
        %v3412 = vshll.u32 %v3161, 16
        %v3414 = vrot.slane %v3412, 1
        %v3415 = vor.u32 %v3410, %v3414
        %v3417 = vshll.u32 %v3215, 16
        %v3419 = vrot.slane %v3417, 1
        %v3420 = vsel %vm1343, %v3415, %v3419
        %v3422 = vshrl.u32 %v3162, 16
        %v3424 = vshll.u32 %v3162, 16
        %v3426 = vrot.slane %v3424, 1
        %v3427 = vor.u32 %v3422, %v3426
        %v3429 = vshll.u32 %v3216, 16
        %v3431 = vrot.slane %v3429, 1
        %v3432 = vsel %vm1343, %v3427, %v3431
        %3433 = vrot.lane.b32.xlu0 %v3228, 32
        %v3434 = vpop.permute.xlu0 %3433
        %3435 = vrot.lane.b32.xlu0 %v3240, 32
        %v3436 = vpop.permute.xlu0 %3435
        %3437 = vrot.lane.b32.xlu0 %v3252, 32
        %v3438 = vpop.permute.xlu0 %3437
        %3439 = vrot.lane.b32.xlu0 %v3264, 32
        %v3440 = vpop.permute.xlu0 %3439
        %3441 = vrot.lane.b32.xlu0 %v3276, 32
        %v3442 = vpop.permute.xlu0 %3441
        %3443 = vrot.lane.b32.xlu0 %v3288, 32
        %v3444 = vpop.permute.xlu0 %3443
        %3445 = vrot.lane.b32.xlu0 %v3300, 32
        %v3446 = vpop.permute.xlu0 %3445
        %3447 = vrot.lane.b32.xlu0 %v3312, 32
        %v3448 = vpop.permute.xlu0 %3447
        %3449 = vrot.lane.b32.xlu0 %v3324, 32
        %v3450 = vpop.permute.xlu0 %3449
        %3451 = vrot.lane.b32.xlu0 %v3336, 32
        %v3452 = vpop.permute.xlu0 %3451
        %3453 = vrot.lane.b32.xlu0 %v3348, 32
        %v3454 = vpop.permute.xlu0 %3453
        %3455 = vrot.lane.b32.xlu0 %v3360, 32
        %v3456 = vpop.permute.xlu0 %3455
        %3457 = vrot.lane.b32.xlu0 %v3372, 32
        %v3458 = vpop.permute.xlu0 %3457
        %3459 = vrot.lane.b32.xlu0 %v3384, 32
        %v3460 = vpop.permute.xlu0 %3459
        %3461 = vrot.lane.b32.xlu0 %v3396, 32
        %v3462 = vpop.permute.xlu0 %3461
        %3463 = vrot.lane.b32.xlu0 %v3408, 32
        %v3464 = vpop.permute.xlu0 %3463
        %3465 = vrot.lane.b32.xlu0 %v3420, 32
        %v3466 = vpop.permute.xlu0 %3465
        %3467 = vrot.lane.b32.xlu0 %v3432, 32
        %v3468 = vpop.permute.xlu0 %3467
        %v3487 = vunpack.c.l.b16 %v3055
        %v3488 = vunpack.c.l.b16 %v3056
        %v3489 = vunpack.c.l.b16 %v3057
        %v3490 = vunpack.c.l.b16 %v3058
        %v3491 = vunpack.c.l.b16 %v3059
        %v3492 = vunpack.c.l.b16 %v3060
        %v3493 = vunpack.c.l.b16 %v3061
        %v3494 = vunpack.c.l.b16 %v3062
        %v3495 = vunpack.c.l.b16 %v3063
        %v3496 = vunpack.c.l.b16 %v3064
        %v3497 = vunpack.c.l.b16 %v3065
        %v3498 = vunpack.c.l.b16 %v3066
        %v3499 = vunpack.c.l.b16 %v3067
        %v3500 = vunpack.c.l.b16 %v3068
        %v3501 = vunpack.c.l.b16 %v3069
        %v3502 = vunpack.c.l.b16 %v3070
        %v3503 = vunpack.c.l.b16 %v3071
        %v3504 = vunpack.c.l.b16 %v3072
        %v3505 = vpack.c.b16 %v3110, %v3487
        %v3506 = vpack.c.b16 %v3112, %v3488
        %v3507 = vpack.c.b16 %v3114, %v3489
        %v3508 = vpack.c.b16 %v3116, %v3490
        %v3509 = vpack.c.b16 %v3118, %v3491
        %v3510 = vpack.c.b16 %v3120, %v3492
        %v3511 = vpack.c.b16 %v3122, %v3493
        %v3512 = vpack.c.b16 %v3124, %v3494
        %v3513 = vpack.c.b16 %v3126, %v3495
        %v3514 = vpack.c.b16 %v3128, %v3496
        %v3515 = vpack.c.b16 %v3130, %v3497
        %v3516 = vpack.c.b16 %v3132, %v3498
        %v3517 = vpack.c.b16 %v3134, %v3499
        %v3518 = vpack.c.b16 %v3136, %v3500
        %v3519 = vpack.c.b16 %v3138, %v3501
        %v3520 = vpack.c.b16 %v3140, %v3502
        %v3521 = vpack.c.b16 %v3142, %v3503
        %v3522 = vpack.c.b16 %v3144, %v3504
        %v3523 = vrot.slane %v3505, 1
        %v3524 = vrot.slane %v3199, 1
        %v3525 = vsel %vm1650, %v3523, %v3524
        %v3526 = vrot.slane %v3506, 1
        %v3527 = vrot.slane %v3200, 1
        %v3528 = vsel %vm1650, %v3526, %v3527
        %v3529 = vrot.slane %v3507, 1
        %v3530 = vrot.slane %v3201, 1
        %v3531 = vsel %vm1650, %v3529, %v3530
        %v3532 = vrot.slane %v3508, 1
        %v3533 = vrot.slane %v3202, 1
        %v3534 = vsel %vm1650, %v3532, %v3533
        %v3535 = vrot.slane %v3509, 1
        %v3536 = vrot.slane %v3203, 1
        %v3537 = vsel %vm1650, %v3535, %v3536
        %v3538 = vrot.slane %v3510, 1
        %v3539 = vrot.slane %v3204, 1
        %v3540 = vsel %vm1650, %v3538, %v3539
        %v3541 = vrot.slane %v3511, 1
        %v3542 = vrot.slane %v3205, 1
        %v3543 = vsel %vm1650, %v3541, %v3542
        %v3544 = vrot.slane %v3512, 1
        %v3545 = vrot.slane %v3206, 1
        %v3546 = vsel %vm1650, %v3544, %v3545
        %v3547 = vrot.slane %v3513, 1
        %v3548 = vrot.slane %v3207, 1
        %v3549 = vsel %vm1650, %v3547, %v3548
        %v3550 = vrot.slane %v3514, 1
        %v3551 = vrot.slane %v3208, 1
        %v3552 = vsel %vm1650, %v3550, %v3551
        %v3553 = vrot.slane %v3515, 1
        %v3554 = vrot.slane %v3209, 1
        %v3555 = vsel %vm1650, %v3553, %v3554
        %v3556 = vrot.slane %v3516, 1
        %v3557 = vrot.slane %v3210, 1
        %v3558 = vsel %vm1650, %v3556, %v3557
        %v3559 = vrot.slane %v3517, 1
        %v3560 = vrot.slane %v3211, 1
        %v3561 = vsel %vm1650, %v3559, %v3560
        %v3562 = vrot.slane %v3518, 1
        %v3563 = vrot.slane %v3212, 1
        %v3564 = vsel %vm1650, %v3562, %v3563
        %v3565 = vrot.slane %v3519, 1
        %v3566 = vrot.slane %v3213, 1
        %v3567 = vsel %vm1650, %v3565, %v3566
        %v3568 = vrot.slane %v3520, 1
        %v3569 = vrot.slane %v3214, 1
        %v3570 = vsel %vm1650, %v3568, %v3569
        %v3571 = vrot.slane %v3521, 1
        %v3572 = vrot.slane %v3215, 1
        %v3573 = vsel %vm1650, %v3571, %v3572
        %v3574 = vrot.slane %v3522, 1
        %v3575 = vrot.slane %v3216, 1
        %v3576 = vsel %vm1650, %v3574, %v3575
        %3577 = vrot.lane.b32.xlu0 %v3525, 64
        %v3578 = vpop.permute.xlu0 %3577
        %3579 = vrot.lane.b32.xlu0 %v3528, 64
        %v3580 = vpop.permute.xlu0 %3579
        %3581 = vrot.lane.b32.xlu0 %v3531, 64
        %v3582 = vpop.permute.xlu0 %3581
        %3583 = vrot.lane.b32.xlu0 %v3534, 64
        %v3584 = vpop.permute.xlu0 %3583
        %3585 = vrot.lane.b32.xlu0 %v3537, 64
        %v3586 = vpop.permute.xlu0 %3585
        %3587 = vrot.lane.b32.xlu0 %v3540, 64
        %v3588 = vpop.permute.xlu0 %3587
        %3589 = vrot.lane.b32.xlu0 %v3543, 64
        %v3590 = vpop.permute.xlu0 %3589
        %3591 = vrot.lane.b32.xlu0 %v3546, 64
        %v3592 = vpop.permute.xlu0 %3591
        %3593 = vrot.lane.b32.xlu0 %v3549, 64
        %v3594 = vpop.permute.xlu0 %3593
        %3595 = vrot.lane.b32.xlu0 %v3552, 64
        %v3596 = vpop.permute.xlu0 %3595
        %3597 = vrot.lane.b32.xlu0 %v3555, 64
        %v3598 = vpop.permute.xlu0 %3597
        %3599 = vrot.lane.b32.xlu0 %v3558, 64
        %v3600 = vpop.permute.xlu0 %3599
        %3601 = vrot.lane.b32.xlu0 %v3561, 64
        %v3602 = vpop.permute.xlu0 %3601
        %3603 = vrot.lane.b32.xlu0 %v3564, 64
        %v3604 = vpop.permute.xlu0 %3603
        %3605 = vrot.lane.b32.xlu0 %v3567, 64
        %v3606 = vpop.permute.xlu0 %3605
        %3607 = vrot.lane.b32.xlu0 %v3570, 64
        %v3608 = vpop.permute.xlu0 %3607
        %3609 = vrot.lane.b32.xlu0 %v3573, 64
        %v3610 = vpop.permute.xlu0 %3609
        %3611 = vrot.lane.b32.xlu0 %v3576, 64
        %v3612 = vpop.permute.xlu0 %3611
        %vm3613 = vcmask 261120
        %v3615 = vsel %vm3613, %v3145, %v3434
        %v3617 = vsel %vm3613, %v3146, %v3436
        %v3619 = vsel %vm3613, %v3147, %v3438
        %v3621 = vsel %vm3613, %v3148, %v3440
        %v3623 = vsel %vm3613, %v3149, %v3442
        %v3625 = vsel %vm3613, %v3150, %v3444
        %v3627 = vsel %vm3613, %v3151, %v3446
        %v3629 = vsel %vm3613, %v3152, %v3448
        %v3631 = vsel %vm3613, %v3153, %v3450
        %v3633 = vsel %vm3613, %v3154, %v3452
        %v3635 = vsel %vm3613, %v3155, %v3454
        %v3637 = vsel %vm3613, %v3156, %v3456
        %v3639 = vsel %vm3613, %v3157, %v3458
        %v3641 = vsel %vm3613, %v3158, %v3460
        %v3643 = vsel %vm3613, %v3159, %v3462
        %v3645 = vsel %vm3613, %v3160, %v3464
        %v3647 = vsel %vm3613, %v3161, %v3466
        %v3649 = vsel %vm3613, %v3162, %v3468
        %vm3650 = vcmask 523264
        %v3652 = vsel %vm3650, %v3615, %v3578
        %v3654 = vsel %vm3650, %v3617, %v3580
        %v3656 = vsel %vm3650, %v3619, %v3582
        %v3658 = vsel %vm3650, %v3621, %v3584
        %v3660 = vsel %vm3650, %v3623, %v3586
        %v3662 = vsel %vm3650, %v3625, %v3588
        %v3664 = vsel %vm3650, %v3627, %v3590
        %v3666 = vsel %vm3650, %v3629, %v3592
        %v3668 = vsel %vm3650, %v3631, %v3594
        %v3670 = vsel %vm3650, %v3633, %v3596
        %v3672 = vsel %vm3650, %v3635, %v3598
        %v3674 = vsel %vm3650, %v3637, %v3600
        %v3676 = vsel %vm3650, %v3639, %v3602
        %v3678 = vsel %vm3650, %v3641, %v3604
        %v3680 = vsel %vm3650, %v3643, %v3606
        %v3682 = vsel %vm3650, %v3645, %v3608
        %v3684 = vsel %vm3650, %v3647, %v3610
        %v3686 = vsel %vm3650, %v3649, %v3612
        %v3687 = vld [vmem:[%s3] sm:$0xf]
        %v3688 = vld [vmem:[%s3 + $0x4] sm:$0xf]
        %v3689 = vld [vmem:[%s3 + $0x8] sm:$0xf]
        %v3690 = vld [vmem:[%s3 + $0xc] sm:$0xf]
        %v3691 = vld [vmem:[%s3 + $0x10] sm:$0xf]
        %v3692 = vld [vmem:[%s3 + $0x14] sm:$0xf]
        %v3693 = vld [vmem:[%s3 + $0x18] sm:$0xf]
        %v3694 = vld [vmem:[%s3 + $0x1c] sm:$0xf]
        %v3695 = vld [vmem:[%s3 + $0x20] sm:$0xf]
        %v3696 = vld [vmem:[%s3 + $0x24] sm:$0xf]
        %v3697 = vld [vmem:[%s3 + $0x28] sm:$0xf]
        %v3698 = vld [vmem:[%s3 + $0x2c] sm:$0xf]
        %s3699 = scalar_lea.vmem %s3, 48
        %v3700 = vld [vmem:[%s3699] sm:$0xf]
        %v3701 = vld [vmem:[%s3699 + $0x4] sm:$0xf]
        %v3702 = vld [vmem:[%s3699 + $0x8] sm:$0xf]
        %v3703 = vld [vmem:[%s3699 + $0xc] sm:$0xf]
        %v3704 = vld [vmem:[%s3699 + $0x10] sm:$0xf]
        %v3705 = vld [vmem:[%s3699 + $0x14] sm:$0xf]
        %v3706 = vld [vmem:[%s3699 + $0x18] sm:$0xf]
        %v3707 = vld [vmem:[%s3699 + $0x1c] sm:$0xf]
        %v3708 = vld [vmem:[%s3699 + $0x20] sm:$0xf]
        %v3709 = vld [vmem:[%s3699 + $0x24] sm:$0xf]
        %v3710 = vld [vmem:[%s3699 + $0x28] sm:$0xf]
        %v3711 = vld [vmem:[%s3699 + $0x2c] sm:$0xf]
        %v3724 = vunpack.c.l.b16 %v3700
        %v3725 = vunpack.c.l.b16 %v3701
        %v3726 = vunpack.c.l.b16 %v3702
        %v3727 = vunpack.c.l.b16 %v3703
        %v3728 = vunpack.c.l.b16 %v3704
        %v3729 = vunpack.c.l.b16 %v3705
        %v3730 = vunpack.c.l.b16 %v3706
        %v3731 = vunpack.c.l.b16 %v3707
        %v3732 = vunpack.c.l.b16 %v3708
        %v3733 = vunpack.c.l.b16 %v3709
        %v3734 = vunpack.c.l.b16 %v3710
        %v3735 = vunpack.c.l.b16 %v3711
        %v3736 = vpack.c.b16 %v3725, %v3724
        %v3737 = vpack.c.b16 %v3727, %v3726
        %v3738 = vpack.c.b16 %v3729, %v3728
        %v3739 = vpack.c.b16 %v3731, %v3730
        %v3740 = vpack.c.b16 %v3733, %v3732
        %v3741 = vpack.c.b16 %v3735, %v3734
        %vm3748 = vcmask 785408
        %v3749 = vsel %vm3748, %v3654, 0
        %v3751 = vsel %vm3748, %v3656, 0
        %v3753 = vsel %vm3748, %v3658, 0
        %v3755 = vsel %vm3748, %v3660, 0
        %v3757 = vsel %vm3748, %v3662, 0
        %v3759 = vsel %vm3748, %v3664, 0
        %v3761 = vsel %vm3748, %v3666, 0
        %v3763 = vsel %vm3748, %v3668, 0
        %v3765 = vsel %vm3748, %v3670, 0
        %v3767 = vsel %vm3748, %v3672, 0
        %v3769 = vsel %vm3748, %v3674, 0
        %v3771 = vsel %vm3748, %v3676, 0
        %v3773 = vsel %vm3748, %v3678, 0
        %v3775 = vsel %vm3748, %v3680, 0
        %v3777 = vsel %vm3748, %v3682, 0
        %v3779 = vsel %vm3748, %v3684, 0
        %3781 = vmatprep.subr.bf16.mxu0 0
        %3782 = vmatpush1.bf16.msra.mxu0 0
        %3783 = vmatprep.subr.bf16.mxu0 0
        %3784 = vmatpush1.bf16.msra.mxu0 0
        %3785 = vmatprep.subr.bf16.mxu0 0
        %3786 = vmatpush1.bf16.msra.mxu0 %v3741
        %3787 = vmatprep.subr.bf16.mxu0 0
        %3788 = vmatpush1.bf16.msra.mxu0 %v3740
        %3789 = vmatprep.subr.bf16.mxu0 0
        %3790 = vmatpush1.bf16.msra.mxu0 %v3739
        %3791 = vmatprep.subr.bf16.mxu0 0
        %3792 = vmatpush1.bf16.msra.mxu0 %v3738
        %3793 = vmatprep.subr.bf16.mxu0 0
        %3794 = vmatpush1.bf16.msra.mxu0 %v3737
        %3795 = vmatprep.subr.bf16.mxu0 0
        %3796 = vmatpush1.bf16.msra.mxu0 %v3736
        %3797 = vmatprep.subr.bf16.mxu0 0
        %3798 = vmatpush2.bf16.msra.mxu0 0
        %3799 = vmatprep.subr.bf16.mxu0 0
        %3800 = vmatpush2.bf16.msra.mxu0 0
        %3801 = vmatprep.subr.bf16.mxu0 0
        %3802 = vmatpush2.bf16.msra.mxu0 0
        %3803 = vmatprep.subr.bf16.mxu0 0
        %3804 = vmatpush2.bf16.msra.mxu0 0
        %3805 = vmatprep.subr.bf16.mxu0 0
        %3806 = vmatpush2.bf16.msra.mxu0 0
        %3807 = vmatprep.subr.bf16.mxu0 0
        %3808 = vmatpush2.bf16.msra.mxu0 0
        %3809 = vmatprep.subr.bf16.mxu0 0
        %3810 = vmatpush2.bf16.msra.mxu0 0
        %3811 = vmatprep.subr.bf16.mxu0 0
        %3812 = vmatpush2.bf16.msra.mxu0 0
        %3813 = vmatprep.mubr.bf16.mxu0 0
        %3814 = vmatmul.mubr.bf16.gmra.mxu0 %v3749
        %v3815 = vpop.f32.mrf.mxu0
        %v3816 = vadd.f32 0.0, %v3815
        %v3817 = vpop.f32.mrf.mxu0
        %v3818 = vpop.f32.mrf.mxu0
        %v3819 = vadd.f32 0.0, %v3818
        %v3820 = vpop.f32.mrf.mxu0
        %3821 = vmatprep.mubr.bf16.mxu0 0
        %3822 = vmatmul.mubr.bf16.gmra.mxu0 %v3751
        %v3823 = vpop.f32.mrf.mxu0
        %v3824 = vadd.f32 0.0, %v3823
        %v3825 = vpop.f32.mrf.mxu0
        %v3826 = vpop.f32.mrf.mxu0
        %v3827 = vadd.f32 0.0, %v3826
        %v3828 = vpop.f32.mrf.mxu0
        %3829 = vmatprep.mubr.bf16.mxu0 0
        %3830 = vmatmul.mubr.bf16.gmra.mxu0 %v3753
        %v3831 = vpop.f32.mrf.mxu0
        %v3832 = vadd.f32 0.0, %v3831
        %v3833 = vpop.f32.mrf.mxu0
        %v3834 = vpop.f32.mrf.mxu0
        %v3835 = vadd.f32 0.0, %v3834
        %v3836 = vpop.f32.mrf.mxu0
        %3837 = vmatprep.mubr.bf16.mxu0 0
        %3838 = vmatmul.mubr.bf16.gmra.mxu0 %v3755
        %v3839 = vpop.f32.mrf.mxu0
        %v3840 = vadd.f32 0.0, %v3839
        %v3841 = vpop.f32.mrf.mxu0
        %v3842 = vpop.f32.mrf.mxu0
        %v3843 = vadd.f32 0.0, %v3842
        %v3844 = vpop.f32.mrf.mxu0
        %3845 = vmatprep.mubr.bf16.mxu0 0
        %3846 = vmatmul.mubr.bf16.gmra.mxu0 %v3757
        %v3847 = vpop.f32.mrf.mxu0
        %v3848 = vadd.f32 0.0, %v3847
        %v3849 = vpop.f32.mrf.mxu0
        %v3850 = vpop.f32.mrf.mxu0
        %v3851 = vadd.f32 0.0, %v3850
        %v3852 = vpop.f32.mrf.mxu0
        %3853 = vmatprep.mubr.bf16.mxu0 0
        %3854 = vmatmul.mubr.bf16.gmra.mxu0 %v3759
        %v3855 = vpop.f32.mrf.mxu0
        %v3856 = vadd.f32 0.0, %v3855
        %v3857 = vpop.f32.mrf.mxu0
        %v3858 = vpop.f32.mrf.mxu0
        %v3859 = vadd.f32 0.0, %v3858
        %v3860 = vpop.f32.mrf.mxu0
        %3861 = vmatprep.mubr.bf16.mxu0 0
        %3862 = vmatmul.mubr.bf16.gmra.mxu0 %v3761
        %v3863 = vpop.f32.mrf.mxu0
        %v3864 = vadd.f32 0.0, %v3863
        %v3865 = vpop.f32.mrf.mxu0
        %v3866 = vpop.f32.mrf.mxu0
        %v3867 = vadd.f32 0.0, %v3866
        %v3868 = vpop.f32.mrf.mxu0
        %3869 = vmatprep.mubr.bf16.mxu0 0
        %3870 = vmatmul.mubr.bf16.gmra.mxu0 %v3763
        %v3871 = vpop.f32.mrf.mxu0
        %v3872 = vadd.f32 0.0, %v3871
        %v3873 = vpop.f32.mrf.mxu0
        %v3874 = vpop.f32.mrf.mxu0
        %v3875 = vadd.f32 0.0, %v3874
        %v3876 = vpop.f32.mrf.mxu0
        %3877 = vmatprep.mubr.bf16.mxu0 0
        %3878 = vmatmul.mubr.bf16.gmra.mxu0 %v3765
        %v3879 = vpop.f32.mrf.mxu0
        %v3880 = vadd.f32 0.0, %v3879
        %v3881 = vpop.f32.mrf.mxu0
        %v3882 = vpop.f32.mrf.mxu0
        %v3883 = vadd.f32 0.0, %v3882
        %v3884 = vpop.f32.mrf.mxu0
        %3885 = vmatprep.mubr.bf16.mxu0 0
        %3886 = vmatmul.mubr.bf16.gmra.mxu0 %v3767
        %v3887 = vpop.f32.mrf.mxu0
        %v3888 = vadd.f32 0.0, %v3887
        %v3889 = vpop.f32.mrf.mxu0
        %v3890 = vpop.f32.mrf.mxu0
        %v3891 = vadd.f32 0.0, %v3890
        %v3892 = vpop.f32.mrf.mxu0
        %3893 = vmatprep.mubr.bf16.mxu0 0
        %3894 = vmatmul.mubr.bf16.gmra.mxu0 %v3769
        %v3895 = vpop.f32.mrf.mxu0
        %v3896 = vadd.f32 0.0, %v3895
        %v3897 = vpop.f32.mrf.mxu0
        %v3898 = vpop.f32.mrf.mxu0
        %v3899 = vadd.f32 0.0, %v3898
        %v3900 = vpop.f32.mrf.mxu0
        %3901 = vmatprep.mubr.bf16.mxu0 0
        %3902 = vmatmul.mubr.bf16.gmra.mxu0 %v3771
        %v3903 = vpop.f32.mrf.mxu0
        %v3904 = vadd.f32 0.0, %v3903
        %v3905 = vpop.f32.mrf.mxu0
        %v3906 = vpop.f32.mrf.mxu0
        %v3907 = vadd.f32 0.0, %v3906
        %v3908 = vpop.f32.mrf.mxu0
        %3909 = vmatprep.mubr.bf16.mxu0 0
        %3910 = vmatmul.mubr.bf16.gmra.mxu0 %v3773
        %v3911 = vpop.f32.mrf.mxu0
        %v3912 = vadd.f32 0.0, %v3911
        %v3913 = vpop.f32.mrf.mxu0
        %v3914 = vpop.f32.mrf.mxu0
        %v3915 = vadd.f32 0.0, %v3914
        %v3916 = vpop.f32.mrf.mxu0
        %3917 = vmatprep.mubr.bf16.mxu0 0
        %3918 = vmatmul.mubr.bf16.gmra.mxu0 %v3775
        %v3919 = vpop.f32.mrf.mxu0
        %v3920 = vadd.f32 0.0, %v3919
        %v3921 = vpop.f32.mrf.mxu0
        %v3922 = vpop.f32.mrf.mxu0
        %v3923 = vadd.f32 0.0, %v3922
        %v3924 = vpop.f32.mrf.mxu0
        %3925 = vmatprep.mubr.bf16.mxu0 0
        %3926 = vmatmul.mubr.bf16.gmra.mxu0 %v3777
        %v3927 = vpop.f32.mrf.mxu0
        %v3928 = vadd.f32 0.0, %v3927
        %v3929 = vpop.f32.mrf.mxu0
        %v3930 = vpop.f32.mrf.mxu0
        %v3931 = vadd.f32 0.0, %v3930
        %v3932 = vpop.f32.mrf.mxu0
        %3933 = vmatprep.mubr.bf16.mxu0 0
        %3934 = vmatmul.mubr.bf16.gmra.mxu0 %v3779
        %v3935 = vpop.f32.mrf.mxu0
        %v3936 = vadd.f32 0.0, %v3935
        %v3937 = vpop.f32.mrf.mxu0
        %v3938 = vpop.f32.mrf.mxu0
        %v3939 = vadd.f32 0.0, %v3938
        %v3940 = vpop.f32.mrf.mxu0
        %3941 = vdwg.mxu0
        %v3954 = vunpack.c.l.b16 %v3687
        %v3955 = vunpack.c.l.b16 %v3688
        %v3956 = vunpack.c.l.b16 %v3689
        %v3957 = vunpack.c.l.b16 %v3690
        %v3958 = vunpack.c.l.b16 %v3691
        %v3959 = vunpack.c.l.b16 %v3692
        %v3960 = vunpack.c.l.b16 %v3693
        %v3961 = vunpack.c.l.b16 %v3694
        %v3962 = vunpack.c.l.b16 %v3695
        %v3963 = vunpack.c.l.b16 %v3696
        %v3964 = vunpack.c.l.b16 %v3697
        %v3965 = vunpack.c.l.b16 %v3698
        %v3966 = vpack.c.b16 %v3955, %v3954
        %v3967 = vpack.c.b16 %v3957, %v3956
        %v3968 = vpack.c.b16 %v3959, %v3958
        %v3969 = vpack.c.b16 %v3961, %v3960
        %v3970 = vpack.c.b16 %v3963, %v3962
        %v3971 = vpack.c.b16 %v3965, %v3964
        %v3978 = vsel %vm3748, %v3652, 0
        %3980 = vmatprep.subr.bf16.mxu0 0
        %3981 = vmatpush1.bf16.msra.mxu0 0
        %3982 = vmatprep.subr.bf16.mxu0 0
        %3983 = vmatpush1.bf16.msra.mxu0 0
        %3984 = vmatprep.subr.bf16.mxu0 0
        %3985 = vmatpush1.bf16.msra.mxu0 %v3971
        %3986 = vmatprep.subr.bf16.mxu0 0
        %3987 = vmatpush1.bf16.msra.mxu0 %v3970
        %3988 = vmatprep.subr.bf16.mxu0 0
        %3989 = vmatpush1.bf16.msra.mxu0 %v3969
        %3990 = vmatprep.subr.bf16.mxu0 0
        %3991 = vmatpush1.bf16.msra.mxu0 %v3968
        %3992 = vmatprep.subr.bf16.mxu0 0
        %3993 = vmatpush1.bf16.msra.mxu0 %v3967
        %3994 = vmatprep.subr.bf16.mxu0 0
        %3995 = vmatpush1.bf16.msra.mxu0 %v3966
        %3996 = vmatprep.subr.bf16.mxu0 0
        %3997 = vmatpush2.bf16.msra.mxu0 0
        %3998 = vmatprep.subr.bf16.mxu0 0
        %3999 = vmatpush2.bf16.msra.mxu0 0
        %4000 = vmatprep.subr.bf16.mxu0 0
        %4001 = vmatpush2.bf16.msra.mxu0 0
        %4002 = vmatprep.subr.bf16.mxu0 0
        %4003 = vmatpush2.bf16.msra.mxu0 0
        %4004 = vmatprep.subr.bf16.mxu0 0
        %4005 = vmatpush2.bf16.msra.mxu0 0
        %4006 = vmatprep.subr.bf16.mxu0 0
        %4007 = vmatpush2.bf16.msra.mxu0 0
        %4008 = vmatprep.subr.bf16.mxu0 0
        %4009 = vmatpush2.bf16.msra.mxu0 0
        %4010 = vmatprep.subr.bf16.mxu0 0
        %4011 = vmatpush2.bf16.msra.mxu0 0
        %4012 = vmatprep.mubr.bf16.mxu0 0
        %4013 = vmatmul.mubr.bf16.gmra.mxu0 %v3978
        %v4014 = vpop.f32.mrf.mxu0
        %v4015 = vadd.f32 %v3816, %v4014
        %v4016 = vpop.f32.mrf.mxu0
        %v4017 = vpop.f32.mrf.mxu0
        %v4018 = vadd.f32 %v3819, %v4017
        %v4019 = vpop.f32.mrf.mxu0
        %4020 = vmatprep.mubr.bf16.mxu0 0
        %4021 = vmatmul.mubr.bf16.gmra.mxu0 %v3749
        %v4022 = vpop.f32.mrf.mxu0
        %v4023 = vadd.f32 %v3824, %v4022
        %v4024 = vpop.f32.mrf.mxu0
        %v4025 = vpop.f32.mrf.mxu0
        %v4026 = vadd.f32 %v3827, %v4025
        %v4027 = vpop.f32.mrf.mxu0
        %4028 = vmatprep.mubr.bf16.mxu0 0
        %4029 = vmatmul.mubr.bf16.gmra.mxu0 %v3751
        %v4030 = vpop.f32.mrf.mxu0
        %v4031 = vadd.f32 %v3832, %v4030
        %v4032 = vpop.f32.mrf.mxu0
        %v4033 = vpop.f32.mrf.mxu0
        %v4034 = vadd.f32 %v3835, %v4033
        %v4035 = vpop.f32.mrf.mxu0
        %4036 = vmatprep.mubr.bf16.mxu0 0
        %4037 = vmatmul.mubr.bf16.gmra.mxu0 %v3753
        %v4038 = vpop.f32.mrf.mxu0
        %v4039 = vadd.f32 %v3840, %v4038
        %v4040 = vpop.f32.mrf.mxu0
        %v4041 = vpop.f32.mrf.mxu0
        %v4042 = vadd.f32 %v3843, %v4041
        %v4043 = vpop.f32.mrf.mxu0
        %4044 = vmatprep.mubr.bf16.mxu0 0
        %4045 = vmatmul.mubr.bf16.gmra.mxu0 %v3755
        %v4046 = vpop.f32.mrf.mxu0
        %v4047 = vadd.f32 %v3848, %v4046
        %v4048 = vpop.f32.mrf.mxu0
        %v4049 = vpop.f32.mrf.mxu0
        %v4050 = vadd.f32 %v3851, %v4049
        %v4051 = vpop.f32.mrf.mxu0
        %4052 = vmatprep.mubr.bf16.mxu0 0
        %4053 = vmatmul.mubr.bf16.gmra.mxu0 %v3757
        %v4054 = vpop.f32.mrf.mxu0
        %v4055 = vadd.f32 %v3856, %v4054
        %v4056 = vpop.f32.mrf.mxu0
        %v4057 = vpop.f32.mrf.mxu0
        %v4058 = vadd.f32 %v3859, %v4057
        %v4059 = vpop.f32.mrf.mxu0
        %4060 = vmatprep.mubr.bf16.mxu0 0
        %4061 = vmatmul.mubr.bf16.gmra.mxu0 %v3759
        %v4062 = vpop.f32.mrf.mxu0
        %v4063 = vadd.f32 %v3864, %v4062
        %v4064 = vpop.f32.mrf.mxu0
        %v4065 = vpop.f32.mrf.mxu0
        %v4066 = vadd.f32 %v3867, %v4065
        %v4067 = vpop.f32.mrf.mxu0
        %4068 = vmatprep.mubr.bf16.mxu0 0
        %4069 = vmatmul.mubr.bf16.gmra.mxu0 %v3761
        %v4070 = vpop.f32.mrf.mxu0
        %v4071 = vadd.f32 %v3872, %v4070
        %v4072 = vpop.f32.mrf.mxu0
        %v4073 = vpop.f32.mrf.mxu0
        %v4074 = vadd.f32 %v3875, %v4073
        %v4075 = vpop.f32.mrf.mxu0
        %4076 = vmatprep.mubr.bf16.mxu0 0
        %4077 = vmatmul.mubr.bf16.gmra.mxu0 %v3763
        %v4078 = vpop.f32.mrf.mxu0
        %v4079 = vadd.f32 %v3880, %v4078
        %v4080 = vpop.f32.mrf.mxu0
        %v4081 = vpop.f32.mrf.mxu0
        %v4082 = vadd.f32 %v3883, %v4081
        %v4083 = vpop.f32.mrf.mxu0
        %4084 = vmatprep.mubr.bf16.mxu0 0
        %4085 = vmatmul.mubr.bf16.gmra.mxu0 %v3765
        %v4086 = vpop.f32.mrf.mxu0
        %v4087 = vadd.f32 %v3888, %v4086
        %v4088 = vpop.f32.mrf.mxu0
        %v4089 = vpop.f32.mrf.mxu0
        %v4090 = vadd.f32 %v3891, %v4089
        %v4091 = vpop.f32.mrf.mxu0
        %4092 = vmatprep.mubr.bf16.mxu0 0
        %4093 = vmatmul.mubr.bf16.gmra.mxu0 %v3767
        %v4094 = vpop.f32.mrf.mxu0
        %v4095 = vadd.f32 %v3896, %v4094
        %v4096 = vpop.f32.mrf.mxu0
        %v4097 = vpop.f32.mrf.mxu0
        %v4098 = vadd.f32 %v3899, %v4097
        %v4099 = vpop.f32.mrf.mxu0
        %4100 = vmatprep.mubr.bf16.mxu0 0
        %4101 = vmatmul.mubr.bf16.gmra.mxu0 %v3769
        %v4102 = vpop.f32.mrf.mxu0
        %v4103 = vadd.f32 %v3904, %v4102
        %v4104 = vpop.f32.mrf.mxu0
        %v4105 = vpop.f32.mrf.mxu0
        %v4106 = vadd.f32 %v3907, %v4105
        %v4107 = vpop.f32.mrf.mxu0
        %4108 = vmatprep.mubr.bf16.mxu0 0
        %4109 = vmatmul.mubr.bf16.gmra.mxu0 %v3771
        %v4110 = vpop.f32.mrf.mxu0
        %v4111 = vadd.f32 %v3912, %v4110
        %v4112 = vpop.f32.mrf.mxu0
        %v4113 = vpop.f32.mrf.mxu0
        %v4114 = vadd.f32 %v3915, %v4113
        %v4115 = vpop.f32.mrf.mxu0
        %4116 = vmatprep.mubr.bf16.mxu0 0
        %4117 = vmatmul.mubr.bf16.gmra.mxu0 %v3773
        %v4118 = vpop.f32.mrf.mxu0
        %v4119 = vadd.f32 %v3920, %v4118
        %v4120 = vpop.f32.mrf.mxu0
        %v4121 = vpop.f32.mrf.mxu0
        %v4122 = vadd.f32 %v3923, %v4121
        %v4123 = vpop.f32.mrf.mxu0
        %4124 = vmatprep.mubr.bf16.mxu0 0
        %4125 = vmatmul.mubr.bf16.gmra.mxu0 %v3775
        %v4126 = vpop.f32.mrf.mxu0
        %v4127 = vadd.f32 %v3928, %v4126
        %v4128 = vpop.f32.mrf.mxu0
        %v4129 = vpop.f32.mrf.mxu0
        %v4130 = vadd.f32 %v3931, %v4129
        %v4131 = vpop.f32.mrf.mxu0
        %4132 = vmatprep.mubr.bf16.mxu0 0
        %4133 = vmatmul.mubr.bf16.gmra.mxu0 %v3777
        %v4134 = vpop.f32.mrf.mxu0
        %v4135 = vadd.f32 %v3936, %v4134
        %v4136 = vpop.f32.mrf.mxu0
        %v4137 = vpop.f32.mrf.mxu0
        %v4138 = vadd.f32 %v3939, %v4137
        %v4139 = vpop.f32.mrf.mxu0
        %4140 = vdwg.mxu0
        %s4141 = scalar_lea.vmem %s3, 96
        %v4142 = vld [vmem:[%s4141] sm:$0xf]
        %v4143 = vld [vmem:[%s4141 + $0x4] sm:$0xf]
        %v4144 = vld [vmem:[%s4141 + $0x8] sm:$0xf]
        %v4145 = vld [vmem:[%s4141 + $0xc] sm:$0xf]
        %v4146 = vld [vmem:[%s4141 + $0x10] sm:$0xf]
        %v4147 = vld [vmem:[%s4141 + $0x14] sm:$0xf]
        %v4148 = vld [vmem:[%s4141 + $0x18] sm:$0xf]
        %v4149 = vld [vmem:[%s4141 + $0x1c] sm:$0xf]
        %v4150 = vld [vmem:[%s4141 + $0x20] sm:$0xf]
        %v4151 = vld [vmem:[%s4141 + $0x24] sm:$0xf]
        %v4152 = vld [vmem:[%s4141 + $0x28] sm:$0xf]
        %v4153 = vld [vmem:[%s4141 + $0x2c] sm:$0xf]
        %v4166 = vunpack.c.l.b16 %v4142
        %v4167 = vunpack.c.l.b16 %v4143
        %v4168 = vunpack.c.l.b16 %v4144
        %v4169 = vunpack.c.l.b16 %v4145
        %v4170 = vunpack.c.l.b16 %v4146
        %v4171 = vunpack.c.l.b16 %v4147
        %v4172 = vunpack.c.l.b16 %v4148
        %v4173 = vunpack.c.l.b16 %v4149
        %v4174 = vunpack.c.l.b16 %v4150
        %v4175 = vunpack.c.l.b16 %v4151
        %v4176 = vunpack.c.l.b16 %v4152
        %v4177 = vunpack.c.l.b16 %v4153
        %v4178 = vpack.c.b16 %v4167, %v4166
        %v4179 = vpack.c.b16 %v4169, %v4168
        %v4180 = vpack.c.b16 %v4171, %v4170
        %v4181 = vpack.c.b16 %v4173, %v4172
        %v4182 = vpack.c.b16 %v4175, %v4174
        %v4183 = vpack.c.b16 %v4177, %v4176
        %v4190 = vsel %vm3748, %v3686, 0
        %4192 = vmatprep.subr.bf16.mxu0 0
        %4193 = vmatpush1.bf16.msra.mxu0 0
        %4194 = vmatprep.subr.bf16.mxu0 0
        %4195 = vmatpush1.bf16.msra.mxu0 0
        %4196 = vmatprep.subr.bf16.mxu0 0
        %4197 = vmatpush1.bf16.msra.mxu0 %v4183
        %4198 = vmatprep.subr.bf16.mxu0 0
        %4199 = vmatpush1.bf16.msra.mxu0 %v4182
        %4200 = vmatprep.subr.bf16.mxu0 0
        %4201 = vmatpush1.bf16.msra.mxu0 %v4181
        %4202 = vmatprep.subr.bf16.mxu0 0
        %4203 = vmatpush1.bf16.msra.mxu0 %v4180
        %4204 = vmatprep.subr.bf16.mxu0 0
        %4205 = vmatpush1.bf16.msra.mxu0 %v4179
        %4206 = vmatprep.subr.bf16.mxu0 0
        %4207 = vmatpush1.bf16.msra.mxu0 %v4178
        %4208 = vmatprep.subr.bf16.mxu0 0
        %4209 = vmatpush2.bf16.msra.mxu0 0
        %4210 = vmatprep.subr.bf16.mxu0 0
        %4211 = vmatpush2.bf16.msra.mxu0 0
        %4212 = vmatprep.subr.bf16.mxu0 0
        %4213 = vmatpush2.bf16.msra.mxu0 0
        %4214 = vmatprep.subr.bf16.mxu0 0
        %4215 = vmatpush2.bf16.msra.mxu0 0
        %4216 = vmatprep.subr.bf16.mxu0 0
        %4217 = vmatpush2.bf16.msra.mxu0 0
        %4218 = vmatprep.subr.bf16.mxu0 0
        %4219 = vmatpush2.bf16.msra.mxu0 0
        %4220 = vmatprep.subr.bf16.mxu0 0
        %4221 = vmatpush2.bf16.msra.mxu0 0
        %4222 = vmatprep.subr.bf16.mxu0 0
        %4223 = vmatpush2.bf16.msra.mxu0 0
        %4224 = vmatprep.mubr.bf16.mxu0 0
        %4225 = vmatmul.mubr.bf16.gmra.mxu0 %v3751
        %v4226 = vpop.f32.mrf.mxu0
        %v4227 = vadd.f32 0.0, %v4226
        %v4228 = vpop.f32.mrf.mxu0
        %v4229 = vpop.f32.mrf.mxu0
        %v4230 = vadd.f32 0.0, %v4229
        %v4231 = vpop.f32.mrf.mxu0
        %4232 = vmatprep.mubr.bf16.mxu0 0
        %4233 = vmatmul.mubr.bf16.gmra.mxu0 %v3753
        %v4234 = vpop.f32.mrf.mxu0
        %v4235 = vadd.f32 0.0, %v4234
        %v4236 = vpop.f32.mrf.mxu0
        %v4237 = vpop.f32.mrf.mxu0
        %v4238 = vadd.f32 0.0, %v4237
        %v4239 = vpop.f32.mrf.mxu0
        %4240 = vmatprep.mubr.bf16.mxu0 0
        %4241 = vmatmul.mubr.bf16.gmra.mxu0 %v3755
        %v4242 = vpop.f32.mrf.mxu0
        %v4243 = vadd.f32 0.0, %v4242
        %v4244 = vpop.f32.mrf.mxu0
        %v4245 = vpop.f32.mrf.mxu0
        %v4246 = vadd.f32 0.0, %v4245
        %v4247 = vpop.f32.mrf.mxu0
        %4248 = vmatprep.mubr.bf16.mxu0 0
        %4249 = vmatmul.mubr.bf16.gmra.mxu0 %v3757
        %v4250 = vpop.f32.mrf.mxu0
        %v4251 = vadd.f32 0.0, %v4250
        %v4252 = vpop.f32.mrf.mxu0
        %v4253 = vpop.f32.mrf.mxu0
        %v4254 = vadd.f32 0.0, %v4253
        %v4255 = vpop.f32.mrf.mxu0
        %4256 = vmatprep.mubr.bf16.mxu0 0
        %4257 = vmatmul.mubr.bf16.gmra.mxu0 %v3759
        %v4258 = vpop.f32.mrf.mxu0
        %v4259 = vadd.f32 0.0, %v4258
        %v4260 = vpop.f32.mrf.mxu0
        %v4261 = vpop.f32.mrf.mxu0
        %v4262 = vadd.f32 0.0, %v4261
        %v4263 = vpop.f32.mrf.mxu0
        %4264 = vmatprep.mubr.bf16.mxu0 0
        %4265 = vmatmul.mubr.bf16.gmra.mxu0 %v3761
        %v4266 = vpop.f32.mrf.mxu0
        %v4267 = vadd.f32 0.0, %v4266
        %v4268 = vpop.f32.mrf.mxu0
        %v4269 = vpop.f32.mrf.mxu0
        %v4270 = vadd.f32 0.0, %v4269
        %v4271 = vpop.f32.mrf.mxu0
        %4272 = vmatprep.mubr.bf16.mxu0 0
        %4273 = vmatmul.mubr.bf16.gmra.mxu0 %v3763
        %v4274 = vpop.f32.mrf.mxu0
        %v4275 = vadd.f32 0.0, %v4274
        %v4276 = vpop.f32.mrf.mxu0
        %v4277 = vpop.f32.mrf.mxu0
        %v4278 = vadd.f32 0.0, %v4277
        %v4279 = vpop.f32.mrf.mxu0
        %4280 = vmatprep.mubr.bf16.mxu0 0
        %4281 = vmatmul.mubr.bf16.gmra.mxu0 %v3765
        %v4282 = vpop.f32.mrf.mxu0
        %v4283 = vadd.f32 0.0, %v4282
        %v4284 = vpop.f32.mrf.mxu0
        %v4285 = vpop.f32.mrf.mxu0
        %v4286 = vadd.f32 0.0, %v4285
        %v4287 = vpop.f32.mrf.mxu0
        %4288 = vmatprep.mubr.bf16.mxu0 0
        %4289 = vmatmul.mubr.bf16.gmra.mxu0 %v3767
        %v4290 = vpop.f32.mrf.mxu0
        %v4291 = vadd.f32 0.0, %v4290
        %v4292 = vpop.f32.mrf.mxu0
        %v4293 = vpop.f32.mrf.mxu0
        %v4294 = vadd.f32 0.0, %v4293
        %v4295 = vpop.f32.mrf.mxu0
        %4296 = vmatprep.mubr.bf16.mxu0 0
        %4297 = vmatmul.mubr.bf16.gmra.mxu0 %v3769
        %v4298 = vpop.f32.mrf.mxu0
        %v4299 = vadd.f32 0.0, %v4298
        %v4300 = vpop.f32.mrf.mxu0
        %v4301 = vpop.f32.mrf.mxu0
        %v4302 = vadd.f32 0.0, %v4301
        %v4303 = vpop.f32.mrf.mxu0
        %4304 = vmatprep.mubr.bf16.mxu0 0
        %4305 = vmatmul.mubr.bf16.gmra.mxu0 %v3771
        %v4306 = vpop.f32.mrf.mxu0
        %v4307 = vadd.f32 0.0, %v4306
        %v4308 = vpop.f32.mrf.mxu0
        %v4309 = vpop.f32.mrf.mxu0
        %v4310 = vadd.f32 0.0, %v4309
        %v4311 = vpop.f32.mrf.mxu0
        %4312 = vmatprep.mubr.bf16.mxu0 0
        %4313 = vmatmul.mubr.bf16.gmra.mxu0 %v3773
        %v4314 = vpop.f32.mrf.mxu0
        %v4315 = vadd.f32 0.0, %v4314
        %v4316 = vpop.f32.mrf.mxu0
        %v4317 = vpop.f32.mrf.mxu0
        %v4318 = vadd.f32 0.0, %v4317
        %v4319 = vpop.f32.mrf.mxu0
        %4320 = vmatprep.mubr.bf16.mxu0 0
        %4321 = vmatmul.mubr.bf16.gmra.mxu0 %v3775
        %v4322 = vpop.f32.mrf.mxu0
        %v4323 = vadd.f32 0.0, %v4322
        %v4324 = vpop.f32.mrf.mxu0
        %v4325 = vpop.f32.mrf.mxu0
        %v4326 = vadd.f32 0.0, %v4325
        %v4327 = vpop.f32.mrf.mxu0
        %4328 = vmatprep.mubr.bf16.mxu0 0
        %4329 = vmatmul.mubr.bf16.gmra.mxu0 %v3777
        %v4330 = vpop.f32.mrf.mxu0
        %v4331 = vadd.f32 0.0, %v4330
        %v4332 = vpop.f32.mrf.mxu0
        %v4333 = vpop.f32.mrf.mxu0
        %v4334 = vadd.f32 0.0, %v4333
        %v4335 = vpop.f32.mrf.mxu0
        %4336 = vmatprep.mubr.bf16.mxu0 0
        %4337 = vmatmul.mubr.bf16.gmra.mxu0 %v3779
        %v4338 = vpop.f32.mrf.mxu0
        %v4339 = vadd.f32 0.0, %v4338
        %v4340 = vpop.f32.mrf.mxu0
        %v4341 = vpop.f32.mrf.mxu0
        %v4342 = vadd.f32 0.0, %v4341
        %v4343 = vpop.f32.mrf.mxu0
        %4344 = vmatprep.mubr.bf16.mxu0 0
        %4345 = vmatmul.mubr.bf16.gmra.mxu0 %v4190
        %v4346 = vpop.f32.mrf.mxu0
        %v4347 = vadd.f32 0.0, %v4346
        %v4348 = vpop.f32.mrf.mxu0
        %v4349 = vpop.f32.mrf.mxu0
        %v4350 = vadd.f32 0.0, %v4349
        %v4351 = vpop.f32.mrf.mxu0
        %4352 = vdwg.mxu0
        %v4353 = vadd.f32 %v4015, %v4227
        %v4354 = vadd.f32 %v4018, %v4230
        %v4355 = vadd.f32 %v4023, %v4235
        %v4356 = vadd.f32 %v4026, %v4238
        %v4357 = vadd.f32 %v4031, %v4243
        %v4358 = vadd.f32 %v4034, %v4246
        %v4359 = vadd.f32 %v4039, %v4251
        %v4360 = vadd.f32 %v4042, %v4254
        %v4361 = vadd.f32 %v4047, %v4259
        %v4362 = vadd.f32 %v4050, %v4262
        %v4363 = vadd.f32 %v4055, %v4267
        %v4364 = vadd.f32 %v4058, %v4270
        %v4365 = vadd.f32 %v4063, %v4275
        %v4366 = vadd.f32 %v4066, %v4278
        %v4367 = vadd.f32 %v4071, %v4283
        %v4368 = vadd.f32 %v4074, %v4286
        %v4369 = vadd.f32 %v4079, %v4291
        %v4370 = vadd.f32 %v4082, %v4294
        %v4371 = vadd.f32 %v4087, %v4299
        %v4372 = vadd.f32 %v4090, %v4302
        %v4373 = vadd.f32 %v4095, %v4307
        %v4374 = vadd.f32 %v4098, %v4310
        %v4375 = vadd.f32 %v4103, %v4315
        %v4376 = vadd.f32 %v4106, %v4318
        %v4377 = vadd.f32 %v4111, %v4323
        %v4378 = vadd.f32 %v4114, %v4326
        %v4379 = vadd.f32 %v4119, %v4331
        %v4380 = vadd.f32 %v4122, %v4334
        %v4381 = vadd.f32 %v4127, %v4339
        %v4382 = vadd.f32 %v4130, %v4342
        %v4383 = vadd.f32 %v4135, %v4347
        %v4384 = vadd.f32 %v4138, %v4350
        %v4385 = vld [vmem:[%s4] sm:$0x1]
        %v4387 = vlaneseq
        %v4388 = vshrl.u32 %v4387, 7
        %v4389 = vsub.s32 0, %v4388
        %v4390 = vrot.slane %v4385, %v4389
        %v4392 = vadd.f32 %v4353, %v4390
        %v4393 = vadd.f32 %v4354, %v4390
        %v4394 = vadd.f32 %v4355, %v4390
        %v4395 = vadd.f32 %v4356, %v4390
        %v4396 = vadd.f32 %v4357, %v4390
        %v4397 = vadd.f32 %v4358, %v4390
        %v4398 = vadd.f32 %v4359, %v4390
        %v4399 = vadd.f32 %v4360, %v4390
        %v4400 = vadd.f32 %v4361, %v4390
        %v4401 = vadd.f32 %v4362, %v4390
        %v4402 = vadd.f32 %v4363, %v4390
        %v4403 = vadd.f32 %v4364, %v4390
        %v4404 = vadd.f32 %v4365, %v4390
        %v4405 = vadd.f32 %v4366, %v4390
        %v4406 = vadd.f32 %v4367, %v4390
        %v4407 = vadd.f32 %v4368, %v4390
        %v4408 = vadd.f32 %v4369, %v4390
        %v4409 = vadd.f32 %v4370, %v4390
        %v4410 = vadd.f32 %v4371, %v4390
        %v4411 = vadd.f32 %v4372, %v4390
        %v4412 = vadd.f32 %v4373, %v4390
        %v4413 = vadd.f32 %v4374, %v4390
        %v4414 = vadd.f32 %v4375, %v4390
        %v4415 = vadd.f32 %v4376, %v4390
        %v4416 = vadd.f32 %v4377, %v4390
        %v4417 = vadd.f32 %v4378, %v4390
        %v4418 = vadd.f32 %v4379, %v4390
        %v4419 = vadd.f32 %v4380, %v4390
        %v4420 = vadd.f32 %v4381, %v4390
        %v4421 = vadd.f32 %v4382, %v4390
        %v4422 = vadd.f32 %v4383, %v4390
        %v4423 = vadd.f32 %v4384, %v4390
        %v4424 = vmax.f32 %v4392, 0.0
        %v4425 = vmax.f32 %v4393, 0.0
        %v4426 = vmax.f32 %v4394, 0.0
        %v4427 = vmax.f32 %v4395, 0.0
        %v4428 = vmax.f32 %v4396, 0.0
        %v4429 = vmax.f32 %v4397, 0.0
        %v4430 = vmax.f32 %v4398, 0.0
        %v4431 = vmax.f32 %v4399, 0.0
        %v4432 = vmax.f32 %v4400, 0.0
        %v4433 = vmax.f32 %v4401, 0.0
        %v4434 = vmax.f32 %v4402, 0.0
        %v4435 = vmax.f32 %v4403, 0.0
        %v4436 = vmax.f32 %v4404, 0.0
        %v4437 = vmax.f32 %v4405, 0.0
        %v4438 = vmax.f32 %v4406, 0.0
        %v4439 = vmax.f32 %v4407, 0.0
        %v4440 = vmax.f32 %v4408, 0.0
        %v4441 = vmax.f32 %v4409, 0.0
        %v4442 = vmax.f32 %v4410, 0.0
        %v4443 = vmax.f32 %v4411, 0.0
        %v4444 = vmax.f32 %v4412, 0.0
        %v4445 = vmax.f32 %v4413, 0.0
        %v4446 = vmax.f32 %v4414, 0.0
        %v4447 = vmax.f32 %v4415, 0.0
        %v4448 = vmax.f32 %v4416, 0.0
        %v4449 = vmax.f32 %v4417, 0.0
        %v4450 = vmax.f32 %v4418, 0.0
        %v4451 = vmax.f32 %v4419, 0.0
        %v4452 = vmax.f32 %v4420, 0.0
        %v4453 = vmax.f32 %v4421, 0.0
        %v4454 = vmax.f32 %v4422, 0.0
        %v4455 = vmax.f32 %v4423, 0.0
        %4456 = vst.msk [vmem:[#allocation4] sm:$0xff] %vm3613, %v4424
        %4457 = vst.msk [vmem:[#allocation4 + $0x8] sm:$0xff] %vm3613, %v4425
        %4458 = vst.msk [vmem:[#allocation4 + $0x10] sm:$0xff] %vm3613, %v4426
        %4459 = vst.msk [vmem:[#allocation4 + $0x18] sm:$0xff] %vm3613, %v4427
        %4460 = vst.msk [vmem:[#allocation4 + $0x20] sm:$0xff] %vm3613, %v4428
        %4461 = vst.msk [vmem:[#allocation4 + $0x28] sm:$0xff] %vm3613, %v4429
        %4462 = vst.msk [vmem:[#allocation4 + $0x30] sm:$0xff] %vm3613, %v4430
        %4463 = vst.msk [vmem:[#allocation4 + $0x38] sm:$0xff] %vm3613, %v4431
        %4464 = vst.msk [vmem:[#allocation4 + $0x40] sm:$0xff] %vm3613, %v4432
        %4465 = vst.msk [vmem:[#allocation4 + $0x48] sm:$0xff] %vm3613, %v4433
        %4466 = vst.msk [vmem:[#allocation4 + $0x50] sm:$0xff] %vm3613, %v4434
        %4467 = vst.msk [vmem:[#allocation4 + $0x58] sm:$0xff] %vm3613, %v4435
        %4468 = vst.msk [vmem:[#allocation4 + $0x60] sm:$0xff] %vm3613, %v4436
        %4469 = vst.msk [vmem:[#allocation4 + $0x68] sm:$0xff] %vm3613, %v4437
        %4470 = vst.msk [vmem:[#allocation4 + $0x70] sm:$0xff] %vm3613, %v4438
        %4471 = vst.msk [vmem:[#allocation4 + $0x78] sm:$0xff] %vm3613, %v4439
        %4472 = vst.msk [vmem:[#allocation4 + $0x80] sm:$0xff] %vm3613, %v4440
        %4473 = vst.msk [vmem:[#allocation4 + $0x88] sm:$0xff] %vm3613, %v4441
        %4474 = vst.msk [vmem:[#allocation4 + $0x90] sm:$0xff] %vm3613, %v4442
        %4475 = vst.msk [vmem:[#allocation4 + $0x98] sm:$0xff] %vm3613, %v4443
        %4476 = vst.msk [vmem:[#allocation4 + $0xa0] sm:$0xff] %vm3613, %v4444
        %4477 = vst.msk [vmem:[#allocation4 + $0xa8] sm:$0xff] %vm3613, %v4445
        %4478 = vst.msk [vmem:[#allocation4 + $0xb0] sm:$0xff] %vm3613, %v4446
        %4479 = vst.msk [vmem:[#allocation4 + $0xb8] sm:$0xff] %vm3613, %v4447
        %4480 = vst.msk [vmem:[#allocation4 + $0xc0] sm:$0xff] %vm3613, %v4448
        %4481 = vst.msk [vmem:[#allocation4 + $0xc8] sm:$0xff] %vm3613, %v4449
        %4482 = vst.msk [vmem:[#allocation4 + $0xd0] sm:$0xff] %vm3613, %v4450
        %4483 = vst.msk [vmem:[#allocation4 + $0xd8] sm:$0xff] %vm3613, %v4451
        %4484 = vst.msk [vmem:[#allocation4 + $0xe0] sm:$0xff] %vm3613, %v4452
        %4485 = vst.msk [vmem:[#allocation4 + $0xe8] sm:$0xff] %vm3613, %v4453
        %4486 = vst.msk [vmem:[#allocation4 + $0xf0] sm:$0xff] %vm3613, %v4454
        %4487 = vst.msk [vmem:[#allocation4 + $0xf8] sm:$0xff] %vm3613, %v4455
        %v4488 = vld [vmem:[#allocation4] ss:$2 sm:$0xff]
        %s4489 = scalar_lea.vmem [#allocation4], 16
        %v4490 = vld [vmem:[%s4489] ss:$2 sm:$0xff]
        %s4491 = scalar_lea.vmem [#allocation4], 32
        %v4492 = vld [vmem:[%s4491] ss:$2 sm:$0xff]
        %s4493 = scalar_lea.vmem [#allocation4], 48
        %v4494 = vld [vmem:[%s4493] ss:$2 sm:$0xff]
        %s4495 = scalar_lea.vmem [#allocation4], 64
        %v4496 = vld [vmem:[%s4495] ss:$2 sm:$0xff]
        %s4497 = scalar_lea.vmem [#allocation4], 80
        %v4498 = vld [vmem:[%s4497] ss:$2 sm:$0xff]
        %s4499 = scalar_lea.vmem [#allocation4], 96
        %v4500 = vld [vmem:[%s4499] ss:$2 sm:$0xff]
        %s4501 = scalar_lea.vmem [#allocation4], 112
        %v4502 = vld [vmem:[%s4501] ss:$2 sm:$0xff]
        %s4503 = scalar_lea.vmem [#allocation4], 128
        %v4504 = vld [vmem:[%s4503] ss:$2 sm:$0xff]
        %s4505 = scalar_lea.vmem [#allocation4], 144
        %v4506 = vld [vmem:[%s4505] ss:$2 sm:$0xff]
        %s4507 = scalar_lea.vmem [#allocation4], 160
        %v4508 = vld [vmem:[%s4507] ss:$2 sm:$0xff]
        %s4509 = scalar_lea.vmem [#allocation4], 176
        %v4510 = vld [vmem:[%s4509] ss:$2 sm:$0xff]
        %s4511 = scalar_lea.vmem [#allocation4], 192
        %v4512 = vld [vmem:[%s4511] ss:$2 sm:$0xff]
        %s4513 = scalar_lea.vmem [#allocation4], 208
        %v4514 = vld [vmem:[%s4513] ss:$2 sm:$0xff]
        %s4515 = scalar_lea.vmem [#allocation4], 224
        %v4516 = vld [vmem:[%s4515] ss:$2 sm:$0xff]
        %s4517 = scalar_lea.vmem [#allocation4], 240
        %v4518 = vld [vmem:[%s4517] ss:$2 sm:$0xff]
        %s4519 = scalar_lea.vmem [#allocation4], 1
        %v4520 = vld [vmem:[%s4519] ss:$2 sm:$0xff]
        %s4521 = scalar_lea.vmem [#allocation4], 17
        %v4522 = vld [vmem:[%s4521] ss:$2 sm:$0xff]
        %s4523 = scalar_lea.vmem [#allocation4], 33
        %v4524 = vld [vmem:[%s4523] ss:$2 sm:$0xff]
        %s4525 = scalar_lea.vmem [#allocation4], 49
        %v4526 = vld [vmem:[%s4525] ss:$2 sm:$0xff]
        %s4527 = scalar_lea.vmem [#allocation4], 65
        %v4528 = vld [vmem:[%s4527] ss:$2 sm:$0xff]
        %s4529 = scalar_lea.vmem [#allocation4], 81
        %v4530 = vld [vmem:[%s4529] ss:$2 sm:$0xff]
        %s4531 = scalar_lea.vmem [#allocation4], 97
        %v4532 = vld [vmem:[%s4531] ss:$2 sm:$0xff]
        %s4533 = scalar_lea.vmem [#allocation4], 113
        %v4534 = vld [vmem:[%s4533] ss:$2 sm:$0xff]
        %s4535 = scalar_lea.vmem [#allocation4], 129
        %v4536 = vld [vmem:[%s4535] ss:$2 sm:$0xff]
        %s4537 = scalar_lea.vmem [#allocation4], 145
        %v4538 = vld [vmem:[%s4537] ss:$2 sm:$0xff]
        %s4539 = scalar_lea.vmem [#allocation4], 161
        %v4540 = vld [vmem:[%s4539] ss:$2 sm:$0xff]
        %s4541 = scalar_lea.vmem [#allocation4], 177
        %v4542 = vld [vmem:[%s4541] ss:$2 sm:$0xff]
        %s4543 = scalar_lea.vmem [#allocation4], 193
        %v4544 = vld [vmem:[%s4543] ss:$2 sm:$0xff]
        %s4545 = scalar_lea.vmem [#allocation4], 209
        %v4546 = vld [vmem:[%s4545] ss:$2 sm:$0xff]
        %s4547 = scalar_lea.vmem [#allocation4], 225
        %v4548 = vld [vmem:[%s4547] ss:$2 sm:$0xff]
        %s4549 = scalar_lea.vmem [#allocation4], 241
        %v4550 = vld [vmem:[%s4549] ss:$2 sm:$0xff]
        %v4551 = vmax.f32 %v4488, %v4520
        %v4552 = vmax.f32 %v4490, %v4522
        %v4553 = vmax.f32 %v4492, %v4524
        %v4554 = vmax.f32 %v4494, %v4526
        %v4555 = vmax.f32 %v4496, %v4528
        %v4556 = vmax.f32 %v4498, %v4530
        %v4557 = vmax.f32 %v4500, %v4532
        %v4558 = vmax.f32 %v4502, %v4534
        %v4559 = vmax.f32 %v4504, %v4536
        %v4560 = vmax.f32 %v4506, %v4538
        %v4561 = vmax.f32 %v4508, %v4540
        %v4562 = vmax.f32 %v4510, %v4542
        %v4563 = vmax.f32 %v4512, %v4544
        %v4564 = vmax.f32 %v4514, %v4546
        %v4565 = vmax.f32 %v4516, %v4548
        %v4566 = vmax.f32 %v4518, %v4550
        %v4567 = vsel %vm3613, %v4551, -inf
        %v4568 = vsel %vm3613, %v4552, -inf
        %v4569 = vmax.f32 %v4567, %v4568
        %v4570 = vsel %vm3613, %v4553, -inf
        %v4571 = vsel %vm3613, %v4554, -inf
        %v4572 = vmax.f32 %v4570, %v4571
        %v4573 = vsel %vm3613, %v4555, -inf
        %v4574 = vsel %vm3613, %v4556, -inf
        %v4575 = vmax.f32 %v4573, %v4574
        %v4576 = vsel %vm3613, %v4557, -inf
        %v4577 = vsel %vm3613, %v4558, -inf
        %v4578 = vmax.f32 %v4576, %v4577
        %v4579 = vsel %vm3613, %v4559, -inf
        %v4580 = vsel %vm3613, %v4560, -inf
        %v4581 = vmax.f32 %v4579, %v4580
        %v4582 = vsel %vm3613, %v4561, -inf
        %v4583 = vsel %vm3613, %v4562, -inf
        %v4584 = vmax.f32 %v4582, %v4583
        %v4585 = vsel %vm3613, %v4563, -inf
        %v4586 = vsel %vm3613, %v4564, -inf
        %v4587 = vmax.f32 %v4585, %v4586
        %v4588 = vsel %vm3613, %v4565, -inf
        %v4589 = vsel %vm3613, %v4566, -inf
        %v4590 = vmax.f32 %v4588, %v4589
        %4591 = vst.msk [vmem:[#allocation5] sm:$0xf] %vm1018, 0
        %4592 = vst.msk [vmem:[#allocation5 + $0x4] sm:$0x1] %vm1021, 0
        %s4593 = scalar_lea.vmem [#allocation5], 72
        %4594 = vst.msk [vmem:[%s4593] sm:$0xf] %vm1018, 0
        %4595 = vst.msk [vmem:[%s4593 + $0x4] sm:$0x1] %vm1021, 0
        %s4596 = scalar_lea.vmem [#allocation5], 8
        %v4597 = vld [vmem:[%s4596] sm:$0x1]
        %v4598 = vsel %vm1029, 0, %v4597
        %4599 = vst [vmem:[%s4596] sm:$0x1] %v4598
        %v4600 = vld [vmem:[%s4596 + $0x8] sm:$0x1]
        %v4601 = vsel %vm1029, 0, %v4600
        %4602 = vst [vmem:[%s4596 + $0x8] sm:$0x1] %v4601
        %v4603 = vld [vmem:[%s4596 + $0x10] sm:$0x1]
        %v4604 = vsel %vm1029, 0, %v4603
        %4605 = vst [vmem:[%s4596 + $0x10] sm:$0x1] %v4604
        %v4606 = vld [vmem:[%s4596 + $0x18] sm:$0x1]
        %v4607 = vsel %vm1029, 0, %v4606
        %4608 = vst [vmem:[%s4596 + $0x18] sm:$0x1] %v4607
        %v4609 = vld [vmem:[%s4596 + $0x20] sm:$0x1]
        %v4610 = vsel %vm1029, 0, %v4609
        %4611 = vst [vmem:[%s4596 + $0x20] sm:$0x1] %v4610
        %v4612 = vld [vmem:[%s4596 + $0x28] sm:$0x1]
        %v4613 = vsel %vm1029, 0, %v4612
        %4614 = vst [vmem:[%s4596 + $0x28] sm:$0x1] %v4613
        %v4615 = vld [vmem:[%s4596 + $0x30] sm:$0x1]
        %v4616 = vsel %vm1029, 0, %v4615
        %4617 = vst [vmem:[%s4596 + $0x30] sm:$0x1] %v4616
        %v4618 = vld [vmem:[%s4596 + $0x38] sm:$0x1]
        %v4619 = vsel %vm1029, 0, %v4618
        %4620 = vst [vmem:[%s4596 + $0x38] sm:$0x1] %v4619
        %v4621 = vld [vmem:[%s4596 + $0x4] sm:$0x1]
        %v4622 = vsel %vm1078, 0, %v4621
        %4623 = vst [vmem:[%s4596 + $0x4] sm:$0x1] %v4622
        %v4624 = vld [vmem:[%s4596 + $0xc] sm:$0x1]
        %v4625 = vsel %vm1078, 0, %v4624
        %4626 = vst [vmem:[%s4596 + $0xc] sm:$0x1] %v4625
        %v4627 = vld [vmem:[%s4596 + $0x14] sm:$0x1]
        %v4628 = vsel %vm1078, 0, %v4627
        %4629 = vst [vmem:[%s4596 + $0x14] sm:$0x1] %v4628
        %v4630 = vld [vmem:[%s4596 + $0x1c] sm:$0x1]
        %v4631 = vsel %vm1078, 0, %v4630
        %4632 = vst [vmem:[%s4596 + $0x1c] sm:$0x1] %v4631
        %v4633 = vld [vmem:[%s4596 + $0x24] sm:$0x1]
        %v4634 = vsel %vm1078, 0, %v4633
        %4635 = vst [vmem:[%s4596 + $0x24] sm:$0x1] %v4634
        %v4636 = vld [vmem:[%s4596 + $0x2c] sm:$0x1]
        %v4637 = vsel %vm1078, 0, %v4636
        %4638 = vst [vmem:[%s4596 + $0x2c] sm:$0x1] %v4637
        %v4639 = vld [vmem:[%s4596 + $0x34] sm:$0x1]
        %v4640 = vsel %vm1078, 0, %v4639
        %4641 = vst [vmem:[%s4596 + $0x34] sm:$0x1] %v4640
        %v4642 = vld [vmem:[%s4596 + $0x3c] sm:$0x1]
        %v4643 = vsel %vm1078, 0, %v4642
        %4644 = vst [vmem:[%s4596 + $0x3c] sm:$0x1] %v4643
        %v4645 = vpack.c.bf16 %v4569, %v4569
        %v4646 = vpack.c.bf16 %v4572, %v4572
        %v4647 = vpack.c.bf16 %v4575, %v4575
        %v4648 = vpack.c.bf16 %v4578, %v4578
        %v4649 = vpack.c.bf16 %v4581, %v4581
        %v4650 = vpack.c.bf16 %v4584, %v4584
        %v4651 = vpack.c.bf16 %v4587, %v4587
        %v4652 = vpack.c.bf16 %v4590, %v4590
        %v4661 = vunpack.c.l.b16 %v4645
        %v4662 = vunpack.c.l.b16 %v4646
        %v4663 = vunpack.c.l.b16 %v4647
        %v4664 = vunpack.c.l.b16 %v4648
        %v4665 = vunpack.c.l.b16 %v4649
        %v4666 = vunpack.c.l.b16 %v4650
        %v4667 = vunpack.c.l.b16 %v4651
        %v4668 = vunpack.c.l.b16 %v4652
        %v4669 = vpack.c.b16 %v4661, %v4661
        %v4670 = vpack.c.b16 %v4662, %v4662
        %v4671 = vpack.c.b16 %v4663, %v4663
        %v4672 = vpack.c.b16 %v4664, %v4664
        %v4673 = vpack.c.b16 %v4665, %v4665
        %v4674 = vpack.c.b16 %v4666, %v4666
        %v4675 = vpack.c.b16 %v4667, %v4667
        %v4676 = vpack.c.b16 %v4668, %v4668
        %v4678 = vshrl.u32 %v4669, 16
        %v4680 = vrot.slane %v4678, 7
        %v4681 = vshll.u32 %v4669, 16
        %v4683 = vor.u32 %v4680, %v4681
        %v4684 = vrot.slane %v4680, 4
        %v4686 = vshrl.u32 %v4670, 16
        %v4688 = vrot.slane %v4686, 7
        %v4689 = vshll.u32 %v4670, 16
        %v4691 = vor.u32 %v4688, %v4689
        %v4692 = vrot.slane %v4688, 4
        %v4694 = vshrl.u32 %v4671, 16
        %v4696 = vrot.slane %v4694, 7
        %v4697 = vshll.u32 %v4671, 16
        %v4699 = vor.u32 %v4696, %v4697
        %v4700 = vrot.slane %v4696, 4
        %v4702 = vshrl.u32 %v4672, 16
        %v4704 = vrot.slane %v4702, 7
        %v4705 = vshll.u32 %v4672, 16
        %v4707 = vor.u32 %v4704, %v4705
        %v4708 = vrot.slane %v4704, 4
        %v4710 = vshrl.u32 %v4673, 16
        %v4712 = vrot.slane %v4710, 7
        %v4713 = vshll.u32 %v4673, 16
        %v4715 = vor.u32 %v4712, %v4713
        %v4716 = vrot.slane %v4712, 4
        %v4718 = vshrl.u32 %v4674, 16
        %v4720 = vrot.slane %v4718, 7
        %v4721 = vshll.u32 %v4674, 16
        %v4723 = vor.u32 %v4720, %v4721
        %v4724 = vrot.slane %v4720, 4
        %v4726 = vshrl.u32 %v4675, 16
        %v4728 = vrot.slane %v4726, 7
        %v4729 = vshll.u32 %v4675, 16
        %v4731 = vor.u32 %v4728, %v4729
        %v4732 = vrot.slane %v4728, 4
        %v4734 = vshrl.u32 %v4676, 16
        %v4736 = vrot.slane %v4734, 7
        %v4737 = vshll.u32 %v4676, 16
        %v4739 = vor.u32 %v4736, %v4737
        %v4740 = vrot.slane %v4736, 4
        %v4757 = vld [vmem:[%s4596] sm:$0xf]
        %v4758 = vsel %vm2888, %v4683, %v4757
        %4759 = vst [vmem:[%s4596] sm:$0xf] %v4758
        %v4760 = vld [vmem:[%s4596 + $0x4] sm:$0x1]
        %v4761 = vsel %vm1029, %v4684, %v4760
        %4762 = vst [vmem:[%s4596 + $0x4] sm:$0x1] %v4761
        %v4763 = vld [vmem:[%s4596 + $0x8] sm:$0xf]
        %v4764 = vsel %vm2888, %v4691, %v4763
        %4765 = vst [vmem:[%s4596 + $0x8] sm:$0xf] %v4764
        %v4766 = vld [vmem:[%s4596 + $0xc] sm:$0x1]
        %v4767 = vsel %vm1029, %v4692, %v4766
        %4768 = vst [vmem:[%s4596 + $0xc] sm:$0x1] %v4767
        %v4769 = vld [vmem:[%s4596 + $0x10] sm:$0xf]
        %v4770 = vsel %vm2888, %v4699, %v4769
        %4771 = vst [vmem:[%s4596 + $0x10] sm:$0xf] %v4770
        %v4772 = vld [vmem:[%s4596 + $0x14] sm:$0x1]
        %v4773 = vsel %vm1029, %v4700, %v4772
        %4774 = vst [vmem:[%s4596 + $0x14] sm:$0x1] %v4773
        %v4775 = vld [vmem:[%s4596 + $0x18] sm:$0xf]
        %v4776 = vsel %vm2888, %v4707, %v4775
        %4777 = vst [vmem:[%s4596 + $0x18] sm:$0xf] %v4776
        %v4778 = vld [vmem:[%s4596 + $0x1c] sm:$0x1]
        %v4779 = vsel %vm1029, %v4708, %v4778
        %4780 = vst [vmem:[%s4596 + $0x1c] sm:$0x1] %v4779
        %v4781 = vld [vmem:[%s4596 + $0x20] sm:$0xf]
        %v4782 = vsel %vm2888, %v4715, %v4781
        %4783 = vst [vmem:[%s4596 + $0x20] sm:$0xf] %v4782
        %v4784 = vld [vmem:[%s4596 + $0x24] sm:$0x1]
        %v4785 = vsel %vm1029, %v4716, %v4784
        %4786 = vst [vmem:[%s4596 + $0x24] sm:$0x1] %v4785
        %v4787 = vld [vmem:[%s4596 + $0x28] sm:$0xf]
        %v4788 = vsel %vm2888, %v4723, %v4787
        %4789 = vst [vmem:[%s4596 + $0x28] sm:$0xf] %v4788
        %v4790 = vld [vmem:[%s4596 + $0x2c] sm:$0x1]
        %v4791 = vsel %vm1029, %v4724, %v4790
        %4792 = vst [vmem:[%s4596 + $0x2c] sm:$0x1] %v4791
        %v4793 = vld [vmem:[%s4596 + $0x30] sm:$0xf]
        %v4794 = vsel %vm2888, %v4731, %v4793
        %4795 = vst [vmem:[%s4596 + $0x30] sm:$0xf] %v4794
        %v4796 = vld [vmem:[%s4596 + $0x34] sm:$0x1]
        %v4797 = vsel %vm1029, %v4732, %v4796
        %4798 = vst [vmem:[%s4596 + $0x34] sm:$0x1] %v4797
        %v4799 = vld [vmem:[%s4596 + $0x38] sm:$0xf]
        %v4800 = vsel %vm2888, %v4739, %v4799
        %4801 = vst [vmem:[%s4596 + $0x38] sm:$0xf] %v4800
        %v4802 = vld [vmem:[%s4596 + $0x3c] sm:$0x1]
        %v4803 = vsel %vm1029, %v4740, %v4802
        %4804 = vst [vmem:[%s4596 + $0x3c] sm:$0x1] %v4803
        %vm4805 = vcmask 519168
        %4806 = vst.msk [vmem:[#allocation6] sm:$0xf] %vm4805, 0
        %vm4807 = vcmask 516096
        %4808 = vst.msk [vmem:[#allocation6 + $0x4] sm:$0x1] %vm4807, 0
        %s4809 = scalar_lea.vmem [#allocation6], 72
        %4810 = vst.msk [vmem:[%s4809] sm:$0xf] %vm4805, 0
        %4811 = vst.msk [vmem:[%s4809 + $0x4] sm:$0x1] %vm4807, 0
        %s4812 = scalar_lea.vmem [#allocation6], 8
        %vm4813 = vcmask 516096
        %vm4814 = vmand %vm4813, %vm450
        %v4815 = vld [vmem:[%s4812] sm:$0x1]
        %v4816 = vsel %vm4814, 0, %v4815
        %4817 = vst [vmem:[%s4812] sm:$0x1] %v4816
        %v4818 = vld [vmem:[%s4812 + $0x8] sm:$0x1]
        %v4819 = vsel %vm4814, 0, %v4818
        %4820 = vst [vmem:[%s4812 + $0x8] sm:$0x1] %v4819
        %v4821 = vld [vmem:[%s4812 + $0x10] sm:$0x1]
        %v4822 = vsel %vm4814, 0, %v4821
        %4823 = vst [vmem:[%s4812 + $0x10] sm:$0x1] %v4822
        %v4824 = vld [vmem:[%s4812 + $0x18] sm:$0x1]
        %v4825 = vsel %vm4814, 0, %v4824
        %4826 = vst [vmem:[%s4812 + $0x18] sm:$0x1] %v4825
        %v4827 = vld [vmem:[%s4812 + $0x20] sm:$0x1]
        %v4828 = vsel %vm4814, 0, %v4827
        %4829 = vst [vmem:[%s4812 + $0x20] sm:$0x1] %v4828
        %v4830 = vld [vmem:[%s4812 + $0x28] sm:$0x1]
        %v4831 = vsel %vm4814, 0, %v4830
        %4832 = vst [vmem:[%s4812 + $0x28] sm:$0x1] %v4831
        %v4833 = vld [vmem:[%s4812 + $0x30] sm:$0x1]
        %v4834 = vsel %vm4814, 0, %v4833
        %4835 = vst [vmem:[%s4812 + $0x30] sm:$0x1] %v4834
        %v4836 = vld [vmem:[%s4812 + $0x38] sm:$0x1]
        %v4837 = vsel %vm4814, 0, %v4836
        %4838 = vst [vmem:[%s4812 + $0x38] sm:$0x1] %v4837
        %vm4839 = vmand %vm4813, %vm500
        %v4840 = vld [vmem:[%s4812 + $0x4] sm:$0x1]
        %v4841 = vsel %vm4839, 0, %v4840
        %4842 = vst [vmem:[%s4812 + $0x4] sm:$0x1] %v4841
        %v4843 = vld [vmem:[%s4812 + $0xc] sm:$0x1]
        %v4844 = vsel %vm4839, 0, %v4843
        %4845 = vst [vmem:[%s4812 + $0xc] sm:$0x1] %v4844
        %v4846 = vld [vmem:[%s4812 + $0x14] sm:$0x1]
        %v4847 = vsel %vm4839, 0, %v4846
        %4848 = vst [vmem:[%s4812 + $0x14] sm:$0x1] %v4847
        %v4849 = vld [vmem:[%s4812 + $0x1c] sm:$0x1]
        %v4850 = vsel %vm4839, 0, %v4849
        %4851 = vst [vmem:[%s4812 + $0x1c] sm:$0x1] %v4850
        %v4852 = vld [vmem:[%s4812 + $0x24] sm:$0x1]
        %v4853 = vsel %vm4839, 0, %v4852
        %4854 = vst [vmem:[%s4812 + $0x24] sm:$0x1] %v4853
        %v4855 = vld [vmem:[%s4812 + $0x2c] sm:$0x1]
        %v4856 = vsel %vm4839, 0, %v4855
        %4857 = vst [vmem:[%s4812 + $0x2c] sm:$0x1] %v4856
        %v4858 = vld [vmem:[%s4812 + $0x34] sm:$0x1]
        %v4859 = vsel %vm4839, 0, %v4858
        %4860 = vst [vmem:[%s4812 + $0x34] sm:$0x1] %v4859
        %v4861 = vld [vmem:[%s4812 + $0x3c] sm:$0x1]
        %v4862 = vsel %vm4839, 0, %v4861
        %4863 = vst [vmem:[%s4812 + $0x3c] sm:$0x1] %v4862
        %v4864 = vld [vmem:[#allocation5] sm:$0xf]
        %v4865 = vld [vmem:[#allocation5 + $0x8] sm:$0xf]
        %v4866 = vld [vmem:[#allocation5 + $0x10] sm:$0xf]
        %v4867 = vld [vmem:[#allocation5 + $0x18] sm:$0xf]
        %v4868 = vld [vmem:[#allocation5 + $0x20] sm:$0xf]
        %v4869 = vld [vmem:[#allocation5 + $0x28] sm:$0xf]
        %v4870 = vld [vmem:[#allocation5 + $0x30] sm:$0xf]
        %v4871 = vld [vmem:[#allocation5 + $0x38] sm:$0xf]
        %v4872 = vld [vmem:[#allocation5 + $0x40] sm:$0xf]
        %v4873 = vld [vmem:[#allocation5 + $0x48] sm:$0xf]
        %v4874 = vld [vmem:[#allocation5 + $0x4] sm:$0x1]
        %v4875 = vld [vmem:[#allocation5 + $0xc] sm:$0x1]
        %v4876 = vld [vmem:[#allocation5 + $0x14] sm:$0x1]
        %v4877 = vld [vmem:[#allocation5 + $0x1c] sm:$0x1]
        %v4878 = vld [vmem:[#allocation5 + $0x24] sm:$0x1]
        %v4879 = vld [vmem:[#allocation5 + $0x2c] sm:$0x1]
        %v4880 = vld [vmem:[#allocation5 + $0x34] sm:$0x1]
        %v4881 = vld [vmem:[#allocation5 + $0x3c] sm:$0x1]
        %v4882 = vld [vmem:[#allocation5 + $0x44] sm:$0x1]
        %v4883 = vld [vmem:[#allocation5 + $0x4c] sm:$0x1]
        %v4884 = vld [vmem:[#allocation5] sm:$0xe]
        %v4885 = vld [vmem:[#allocation5 + $0x8] sm:$0xe]
        %v4886 = vld [vmem:[#allocation5 + $0x10] sm:$0xe]
        %v4887 = vld [vmem:[#allocation5 + $0x18] sm:$0xe]
        %v4888 = vld [vmem:[#allocation5 + $0x20] sm:$0xe]
        %v4889 = vld [vmem:[#allocation5 + $0x28] sm:$0xe]
        %v4890 = vld [vmem:[#allocation5 + $0x30] sm:$0xe]
        %v4891 = vld [vmem:[#allocation5 + $0x38] sm:$0xe]
        %v4892 = vld [vmem:[#allocation5 + $0x40] sm:$0xe]
        %v4893 = vld [vmem:[#allocation5 + $0x48] sm:$0xe]
        %v4914 = vunpack.c.l.b16 %v4864
        %v4915 = vunpack.c.l.b16 %v4874
        %v4916 = vunpack.c.l.b16 %v4865
        %v4917 = vunpack.c.l.b16 %v4875
        %v4918 = vunpack.c.l.b16 %v4866
        %v4919 = vunpack.c.l.b16 %v4876
        %v4920 = vunpack.c.l.b16 %v4867
        %v4921 = vunpack.c.l.b16 %v4877
        %v4922 = vunpack.c.l.b16 %v4868
        %v4923 = vunpack.c.l.b16 %v4878
        %v4924 = vunpack.c.l.b16 %v4869
        %v4925 = vunpack.c.l.b16 %v4879
        %v4926 = vunpack.c.l.b16 %v4870
        %v4927 = vunpack.c.l.b16 %v4880
        %v4928 = vunpack.c.l.b16 %v4871
        %v4929 = vunpack.c.l.b16 %v4881
        %v4930 = vunpack.c.l.b16 %v4872
        %v4931 = vunpack.c.l.b16 %v4882
        %v4932 = vunpack.c.l.b16 %v4873
        %v4933 = vunpack.c.l.b16 %v4883
        %v4934 = vpack.c.b16 %v4915, %v4914
        %v4935 = vpack.c.b16 %v4917, %v4916
        %v4936 = vpack.c.b16 %v4919, %v4918
        %v4937 = vpack.c.b16 %v4921, %v4920
        %v4938 = vpack.c.b16 %v4923, %v4922
        %v4939 = vpack.c.b16 %v4925, %v4924
        %v4940 = vpack.c.b16 %v4927, %v4926
        %v4941 = vpack.c.b16 %v4929, %v4928
        %v4942 = vpack.c.b16 %v4931, %v4930
        %v4943 = vpack.c.b16 %v4933, %v4932
        %v4945 = vshrl.u32 %v4934, 16
        %v4947 = vshll.u32 %v4934, 16
        %v4949 = vrot.slane %v4947, 1
        %v4950 = vor.u32 %v4945, %v4949
        %v4952 = vshrl.u32 %v4935, 16
        %v4954 = vshll.u32 %v4935, 16
        %v4956 = vrot.slane %v4954, 1
        %v4957 = vor.u32 %v4952, %v4956
        %v4959 = vshrl.u32 %v4936, 16
        %v4961 = vshll.u32 %v4936, 16
        %v4963 = vrot.slane %v4961, 1
        %v4964 = vor.u32 %v4959, %v4963
        %v4966 = vshrl.u32 %v4937, 16
        %v4968 = vshll.u32 %v4937, 16
        %v4970 = vrot.slane %v4968, 1
        %v4971 = vor.u32 %v4966, %v4970
        %v4973 = vshrl.u32 %v4938, 16
        %v4975 = vshll.u32 %v4938, 16
        %v4977 = vrot.slane %v4975, 1
        %v4978 = vor.u32 %v4973, %v4977
        %v4980 = vshrl.u32 %v4939, 16
        %v4982 = vshll.u32 %v4939, 16
        %v4984 = vrot.slane %v4982, 1
        %v4985 = vor.u32 %v4980, %v4984
        %v4987 = vshrl.u32 %v4940, 16
        %v4989 = vshll.u32 %v4940, 16
        %v4991 = vrot.slane %v4989, 1
        %v4992 = vor.u32 %v4987, %v4991
        %v4994 = vshrl.u32 %v4941, 16
        %v4996 = vshll.u32 %v4941, 16
        %v4998 = vrot.slane %v4996, 1
        %v4999 = vor.u32 %v4994, %v4998
        %v5001 = vshrl.u32 %v4942, 16
        %v5003 = vshll.u32 %v4942, 16
        %v5005 = vrot.slane %v5003, 1
        %v5006 = vor.u32 %v5001, %v5005
        %v5008 = vshrl.u32 %v4943, 16
        %v5010 = vshll.u32 %v4943, 16
        %v5012 = vrot.slane %v5010, 1
        %v5013 = vor.u32 %v5008, %v5012
        %5014 = vrot.lane.b32.xlu0 %v4950, 32
        %v5015 = vpop.permute.xlu0 %5014
        %5016 = vrot.lane.b32.xlu0 %v4957, 32
        %v5017 = vpop.permute.xlu0 %5016
        %5018 = vrot.lane.b32.xlu0 %v4964, 32
        %v5019 = vpop.permute.xlu0 %5018
        %5020 = vrot.lane.b32.xlu0 %v4971, 32
        %v5021 = vpop.permute.xlu0 %5020
        %5022 = vrot.lane.b32.xlu0 %v4978, 32
        %v5023 = vpop.permute.xlu0 %5022
        %5024 = vrot.lane.b32.xlu0 %v4985, 32
        %v5025 = vpop.permute.xlu0 %5024
        %5026 = vrot.lane.b32.xlu0 %v4992, 32
        %v5027 = vpop.permute.xlu0 %5026
        %5028 = vrot.lane.b32.xlu0 %v4999, 32
        %v5029 = vpop.permute.xlu0 %5028
        %5030 = vrot.lane.b32.xlu0 %v5006, 32
        %v5031 = vpop.permute.xlu0 %5030
        %5032 = vrot.lane.b32.xlu0 %v5013, 32
        %v5033 = vpop.permute.xlu0 %5032
        %v5044 = vunpack.c.l.b16 %v4884
        %v5045 = vunpack.c.l.b16 %v4885
        %v5046 = vunpack.c.l.b16 %v4886
        %v5047 = vunpack.c.l.b16 %v4887
        %v5048 = vunpack.c.l.b16 %v4888
        %v5049 = vunpack.c.l.b16 %v4889
        %v5050 = vunpack.c.l.b16 %v4890
        %v5051 = vunpack.c.l.b16 %v4891
        %v5052 = vunpack.c.l.b16 %v4892
        %v5053 = vunpack.c.l.b16 %v4893
        %v5054 = vpack.c.b16 %v4915, %v5044
        %v5055 = vpack.c.b16 %v4917, %v5045
        %v5056 = vpack.c.b16 %v4919, %v5046
        %v5057 = vpack.c.b16 %v4921, %v5047
        %v5058 = vpack.c.b16 %v4923, %v5048
        %v5059 = vpack.c.b16 %v4925, %v5049
        %v5060 = vpack.c.b16 %v4927, %v5050
        %v5061 = vpack.c.b16 %v4929, %v5051
        %v5062 = vpack.c.b16 %v4931, %v5052
        %v5063 = vpack.c.b16 %v4933, %v5053
        %v5064 = vrot.slane %v5054, 1
        %v5065 = vrot.slane %v5055, 1
        %v5066 = vrot.slane %v5056, 1
        %v5067 = vrot.slane %v5057, 1
        %v5068 = vrot.slane %v5058, 1
        %v5069 = vrot.slane %v5059, 1
        %v5070 = vrot.slane %v5060, 1
        %v5071 = vrot.slane %v5061, 1
        %v5072 = vrot.slane %v5062, 1
        %v5073 = vrot.slane %v5063, 1
        %5074 = vrot.lane.b32.xlu0 %v5064, 64
        %v5075 = vpop.permute.xlu0 %5074
        %5076 = vrot.lane.b32.xlu0 %v5065, 64
        %v5077 = vpop.permute.xlu0 %5076
        %5078 = vrot.lane.b32.xlu0 %v5066, 64
        %v5079 = vpop.permute.xlu0 %5078
        %5080 = vrot.lane.b32.xlu0 %v5067, 64
        %v5081 = vpop.permute.xlu0 %5080
        %5082 = vrot.lane.b32.xlu0 %v5068, 64
        %v5083 = vpop.permute.xlu0 %5082
        %5084 = vrot.lane.b32.xlu0 %v5069, 64
        %v5085 = vpop.permute.xlu0 %5084
        %5086 = vrot.lane.b32.xlu0 %v5070, 64
        %v5087 = vpop.permute.xlu0 %5086
        %5088 = vrot.lane.b32.xlu0 %v5071, 64
        %v5089 = vpop.permute.xlu0 %5088
        %5090 = vrot.lane.b32.xlu0 %v5072, 64
        %v5091 = vpop.permute.xlu0 %5090
        %5092 = vrot.lane.b32.xlu0 %v5073, 64
        %v5093 = vpop.permute.xlu0 %5092
        %v5096 = vsel %vm3613, %v4864, %v5015
        %v5099 = vsel %vm3613, %v4865, %v5017
        %v5102 = vsel %vm3613, %v4866, %v5019
        %v5105 = vsel %vm3613, %v4867, %v5021
        %v5108 = vsel %vm3613, %v4868, %v5023
        %v5111 = vsel %vm3613, %v4869, %v5025
        %v5114 = vsel %vm3613, %v4870, %v5027
        %v5117 = vsel %vm3613, %v4871, %v5029
        %v5120 = vsel %vm3613, %v4872, %v5031
        %v5123 = vsel %vm3613, %v4873, %v5033
        %v5125 = vsel %vm3650, %v5096, %v5075
        %v5127 = vsel %vm3650, %v5099, %v5077
        %v5129 = vsel %vm3650, %v5102, %v5079
        %v5131 = vsel %vm3650, %v5105, %v5081
        %v5133 = vsel %vm3650, %v5108, %v5083
        %v5135 = vsel %vm3650, %v5111, %v5085
        %v5137 = vsel %vm3650, %v5114, %v5087
        %v5139 = vsel %vm3650, %v5117, %v5089
        %v5141 = vsel %vm3650, %v5120, %v5091
        %v5143 = vsel %vm3650, %v5123, %v5093
        %v5144 = vld [vmem:[%s5] sm:$0xf]
        %v5145 = vld [vmem:[%s5 + $0x4] sm:$0xf]
        %v5146 = vld [vmem:[%s5 + $0x8] sm:$0xf]
        %v5147 = vld [vmem:[%s5 + $0xc] sm:$0xf]
        %v5148 = vld [vmem:[%s5 + $0x10] sm:$0xf]
        %v5149 = vld [vmem:[%s5 + $0x14] sm:$0xf]
        %v5150 = vld [vmem:[%s5 + $0x18] sm:$0xf]
        %v5151 = vld [vmem:[%s5 + $0x1c] sm:$0xf]
        %v5152 = vld [vmem:[%s5 + $0x20] sm:$0xf]
        %v5153 = vld [vmem:[%s5 + $0x24] sm:$0xf]
        %v5154 = vld [vmem:[%s5 + $0x28] sm:$0xf]
        %v5155 = vld [vmem:[%s5 + $0x2c] sm:$0xf]
        %s5156 = scalar_lea.vmem %s5, 48
        %v5157 = vld [vmem:[%s5156] sm:$0xf]
        %v5158 = vld [vmem:[%s5156 + $0x4] sm:$0xf]
        %v5159 = vld [vmem:[%s5156 + $0x8] sm:$0xf]
        %v5160 = vld [vmem:[%s5156 + $0xc] sm:$0xf]
        %v5161 = vld [vmem:[%s5156 + $0x10] sm:$0xf]
        %v5162 = vld [vmem:[%s5156 + $0x14] sm:$0xf]
        %v5163 = vld [vmem:[%s5156 + $0x18] sm:$0xf]
        %v5164 = vld [vmem:[%s5156 + $0x1c] sm:$0xf]
        %v5165 = vld [vmem:[%s5156 + $0x20] sm:$0xf]
        %v5166 = vld [vmem:[%s5156 + $0x24] sm:$0xf]
        %v5167 = vld [vmem:[%s5156 + $0x28] sm:$0xf]
        %v5168 = vld [vmem:[%s5156 + $0x2c] sm:$0xf]
        %v5177 = vunpack.c.l.b16 %v5127
        %v5178 = vunpack.c.l.b16 %v5129
        %v5179 = vunpack.c.l.b16 %v5131
        %v5180 = vunpack.c.l.b16 %v5133
        %v5181 = vunpack.c.l.b16 %v5135
        %v5182 = vunpack.c.l.b16 %v5137
        %v5183 = vunpack.c.l.b16 %v5139
        %v5184 = vunpack.c.l.b16 %v5141
        %v5185 = vpack.c.b16 %v5178, %v5177
        %v5186 = vpack.c.b16 %v5180, %v5179
        %v5187 = vpack.c.b16 %v5182, %v5181
        %v5188 = vpack.c.b16 %v5184, %v5183
        %v5201 = vunpack.c.l.b16 %v5157
        %v5202 = vunpack.c.l.b16 %v5158
        %v5203 = vunpack.c.l.b16 %v5159
        %v5204 = vunpack.c.l.b16 %v5160
        %v5205 = vunpack.c.l.b16 %v5161
        %v5206 = vunpack.c.l.b16 %v5162
        %v5207 = vunpack.c.l.b16 %v5163
        %v5208 = vunpack.c.l.b16 %v5164
        %v5209 = vunpack.c.l.b16 %v5165
        %v5210 = vunpack.c.l.b16 %v5166
        %v5211 = vunpack.c.l.b16 %v5167
        %v5212 = vunpack.c.l.b16 %v5168
        %v5213 = vpack.c.b16 %v5202, %v5201
        %v5214 = vpack.c.b16 %v5204, %v5203
        %v5215 = vpack.c.b16 %v5206, %v5205
        %v5216 = vpack.c.b16 %v5208, %v5207
        %v5217 = vpack.c.b16 %v5210, %v5209
        %v5218 = vpack.c.b16 %v5212, %v5211
        %v5226 = vsel %vm3748, %v5185, 0
        %v5229 = vsel %vm3748, %v5186, 0
        %v5232 = vsel %vm3748, %v5187, 0
        %v5235 = vsel %vm3748, %v5188, 0
        %5237 = vmatprep.subr.bf16.mxu0 0
        %5238 = vmatpush1.bf16.msra.mxu0 0
        %5239 = vmatprep.subr.bf16.mxu0 0
        %5240 = vmatpush1.bf16.msra.mxu0 0
        %5241 = vmatprep.subr.bf16.mxu0 0
        %5242 = vmatpush1.bf16.msra.mxu0 %v5218
        %5243 = vmatprep.subr.bf16.mxu0 0
        %5244 = vmatpush1.bf16.msra.mxu0 %v5217
        %5245 = vmatprep.subr.bf16.mxu0 0
        %5246 = vmatpush1.bf16.msra.mxu0 %v5216
        %5247 = vmatprep.subr.bf16.mxu0 0
        %5248 = vmatpush1.bf16.msra.mxu0 %v5215
        %5249 = vmatprep.subr.bf16.mxu0 0
        %5250 = vmatpush1.bf16.msra.mxu0 %v5214
        %5251 = vmatprep.subr.bf16.mxu0 0
        %5252 = vmatpush1.bf16.msra.mxu0 %v5213
        %5253 = vmatprep.subr.bf16.mxu0 0
        %5254 = vmatpush2.bf16.msra.mxu0 0
        %5255 = vmatprep.subr.bf16.mxu0 0
        %5256 = vmatpush2.bf16.msra.mxu0 0
        %5257 = vmatprep.subr.bf16.mxu0 0
        %5258 = vmatpush2.bf16.msra.mxu0 0
        %5259 = vmatprep.subr.bf16.mxu0 0
        %5260 = vmatpush2.bf16.msra.mxu0 0
        %5261 = vmatprep.subr.bf16.mxu0 0
        %5262 = vmatpush2.bf16.msra.mxu0 0
        %5263 = vmatprep.subr.bf16.mxu0 0
        %5264 = vmatpush2.bf16.msra.mxu0 0
        %5265 = vmatprep.subr.bf16.mxu0 0
        %5266 = vmatpush2.bf16.msra.mxu0 0
        %5267 = vmatprep.subr.bf16.mxu0 0
        %5268 = vmatpush2.bf16.msra.mxu0 0
        %5269 = vmatprep.mubr.bf16.mxu0 0
        %5270 = vmatmul.mubr.bf16.gmra.mxu0 %v5226
        %v5271 = vpop.f32.mrf.mxu0
        %v5272 = vadd.f32 0.0, %v5271
        %v5273 = vpop.f32.mrf.mxu0
        %v5274 = vpop.f32.mrf.mxu0
        %v5275 = vadd.f32 0.0, %v5274
        %v5276 = vpop.f32.mrf.mxu0
        %5277 = vmatprep.mubr.bf16.mxu0 0
        %5278 = vmatmul.mubr.bf16.gmra.mxu0 %v5229
        %v5279 = vpop.f32.mrf.mxu0
        %v5280 = vadd.f32 0.0, %v5279
        %v5281 = vpop.f32.mrf.mxu0
        %v5282 = vpop.f32.mrf.mxu0
        %v5283 = vadd.f32 0.0, %v5282
        %v5284 = vpop.f32.mrf.mxu0
        %5285 = vmatprep.mubr.bf16.mxu0 0
        %5286 = vmatmul.mubr.bf16.gmra.mxu0 %v5232
        %v5287 = vpop.f32.mrf.mxu0
        %v5288 = vadd.f32 0.0, %v5287
        %v5289 = vpop.f32.mrf.mxu0
        %v5290 = vpop.f32.mrf.mxu0
        %v5291 = vadd.f32 0.0, %v5290
        %v5292 = vpop.f32.mrf.mxu0
        %5293 = vmatprep.mubr.bf16.mxu0 0
        %5294 = vmatmul.mubr.bf16.gmra.mxu0 %v5235
        %v5295 = vpop.f32.mrf.mxu0
        %v5296 = vadd.f32 0.0, %v5295
        %v5297 = vpop.f32.mrf.mxu0
        %v5298 = vpop.f32.mrf.mxu0
        %v5299 = vadd.f32 0.0, %v5298
        %v5300 = vpop.f32.mrf.mxu0
        %5301 = vdwg.mxu0
        %v5303 = vunpack.c.l.b16 %v5125
        %v5304 = vpack.c.b16 %v5177, %v5303
        %v5305 = vpack.c.b16 %v5179, %v5178
        %v5306 = vpack.c.b16 %v5181, %v5180
        %v5307 = vpack.c.b16 %v5183, %v5182
        %v5320 = vunpack.c.l.b16 %v5144
        %v5321 = vunpack.c.l.b16 %v5145
        %v5322 = vunpack.c.l.b16 %v5146
        %v5323 = vunpack.c.l.b16 %v5147
        %v5324 = vunpack.c.l.b16 %v5148
        %v5325 = vunpack.c.l.b16 %v5149
        %v5326 = vunpack.c.l.b16 %v5150
        %v5327 = vunpack.c.l.b16 %v5151
        %v5328 = vunpack.c.l.b16 %v5152
        %v5329 = vunpack.c.l.b16 %v5153
        %v5330 = vunpack.c.l.b16 %v5154
        %v5331 = vunpack.c.l.b16 %v5155
        %v5332 = vpack.c.b16 %v5321, %v5320
        %v5333 = vpack.c.b16 %v5323, %v5322
        %v5334 = vpack.c.b16 %v5325, %v5324
        %v5335 = vpack.c.b16 %v5327, %v5326
        %v5336 = vpack.c.b16 %v5329, %v5328
        %v5337 = vpack.c.b16 %v5331, %v5330
        %v5345 = vsel %vm3748, %v5304, 0
        %v5348 = vsel %vm3748, %v5305, 0
        %v5351 = vsel %vm3748, %v5306, 0
        %v5354 = vsel %vm3748, %v5307, 0
        %5356 = vmatprep.subr.bf16.mxu0 0
        %5357 = vmatpush1.bf16.msra.mxu0 0
        %5358 = vmatprep.subr.bf16.mxu0 0
        %5359 = vmatpush1.bf16.msra.mxu0 0
        %5360 = vmatprep.subr.bf16.mxu0 0
        %5361 = vmatpush1.bf16.msra.mxu0 %v5337
        %5362 = vmatprep.subr.bf16.mxu0 0
        %5363 = vmatpush1.bf16.msra.mxu0 %v5336
        %5364 = vmatprep.subr.bf16.mxu0 0
        %5365 = vmatpush1.bf16.msra.mxu0 %v5335
        %5366 = vmatprep.subr.bf16.mxu0 0
        %5367 = vmatpush1.bf16.msra.mxu0 %v5334
        %5368 = vmatprep.subr.bf16.mxu0 0
        %5369 = vmatpush1.bf16.msra.mxu0 %v5333
        %5370 = vmatprep.subr.bf16.mxu0 0
        %5371 = vmatpush1.bf16.msra.mxu0 %v5332
        %5372 = vmatprep.subr.bf16.mxu0 0
        %5373 = vmatpush2.bf16.msra.mxu0 0
        %5374 = vmatprep.subr.bf16.mxu0 0
        %5375 = vmatpush2.bf16.msra.mxu0 0
        %5376 = vmatprep.subr.bf16.mxu0 0
        %5377 = vmatpush2.bf16.msra.mxu0 0
        %5378 = vmatprep.subr.bf16.mxu0 0
        %5379 = vmatpush2.bf16.msra.mxu0 0
        %5380 = vmatprep.subr.bf16.mxu0 0
        %5381 = vmatpush2.bf16.msra.mxu0 0
        %5382 = vmatprep.subr.bf16.mxu0 0
        %5383 = vmatpush2.bf16.msra.mxu0 0
        %5384 = vmatprep.subr.bf16.mxu0 0
        %5385 = vmatpush2.bf16.msra.mxu0 0
        %5386 = vmatprep.subr.bf16.mxu0 0
        %5387 = vmatpush2.bf16.msra.mxu0 0
        %5388 = vmatprep.mubr.bf16.mxu0 0
        %5389 = vmatmul.mubr.bf16.gmra.mxu0 %v5345
        %v5390 = vpop.f32.mrf.mxu0
        %v5391 = vadd.f32 %v5272, %v5390
        %v5392 = vpop.f32.mrf.mxu0
        %v5393 = vpop.f32.mrf.mxu0
        %v5394 = vadd.f32 %v5275, %v5393
        %v5395 = vpop.f32.mrf.mxu0
        %5396 = vmatprep.mubr.bf16.mxu0 0
        %5397 = vmatmul.mubr.bf16.gmra.mxu0 %v5348
        %v5398 = vpop.f32.mrf.mxu0
        %v5399 = vadd.f32 %v5280, %v5398
        %v5400 = vpop.f32.mrf.mxu0
        %v5401 = vpop.f32.mrf.mxu0
        %v5402 = vadd.f32 %v5283, %v5401
        %v5403 = vpop.f32.mrf.mxu0
        %5404 = vmatprep.mubr.bf16.mxu0 0
        %5405 = vmatmul.mubr.bf16.gmra.mxu0 %v5351
        %v5406 = vpop.f32.mrf.mxu0
        %v5407 = vadd.f32 %v5288, %v5406
        %v5408 = vpop.f32.mrf.mxu0
        %v5409 = vpop.f32.mrf.mxu0
        %v5410 = vadd.f32 %v5291, %v5409
        %v5411 = vpop.f32.mrf.mxu0
        %5412 = vmatprep.mubr.bf16.mxu0 0
        %5413 = vmatmul.mubr.bf16.gmra.mxu0 %v5354
        %v5414 = vpop.f32.mrf.mxu0
        %v5415 = vadd.f32 %v5296, %v5414
        %v5416 = vpop.f32.mrf.mxu0
        %v5417 = vpop.f32.mrf.mxu0
        %v5418 = vadd.f32 %v5299, %v5417
        %v5419 = vpop.f32.mrf.mxu0
        %5420 = vdwg.mxu0
        %s5421 = scalar_lea.vmem %s5, 96
        %v5422 = vld [vmem:[%s5421] sm:$0xf]
        %v5423 = vld [vmem:[%s5421 + $0x4] sm:$0xf]
        %v5424 = vld [vmem:[%s5421 + $0x8] sm:$0xf]
        %v5425 = vld [vmem:[%s5421 + $0xc] sm:$0xf]
        %v5426 = vld [vmem:[%s5421 + $0x10] sm:$0xf]
        %v5427 = vld [vmem:[%s5421 + $0x14] sm:$0xf]
        %v5428 = vld [vmem:[%s5421 + $0x18] sm:$0xf]
        %v5429 = vld [vmem:[%s5421 + $0x1c] sm:$0xf]
        %v5430 = vld [vmem:[%s5421 + $0x20] sm:$0xf]
        %v5431 = vld [vmem:[%s5421 + $0x24] sm:$0xf]
        %v5432 = vld [vmem:[%s5421 + $0x28] sm:$0xf]
        %v5433 = vld [vmem:[%s5421 + $0x2c] sm:$0xf]
        %v5435 = vunpack.c.l.b16 %v5143
        %v5436 = vpack.c.b16 %v5435, %v5184
        %v5449 = vunpack.c.l.b16 %v5422
        %v5450 = vunpack.c.l.b16 %v5423
        %v5451 = vunpack.c.l.b16 %v5424
        %v5452 = vunpack.c.l.b16 %v5425
        %v5453 = vunpack.c.l.b16 %v5426
        %v5454 = vunpack.c.l.b16 %v5427
        %v5455 = vunpack.c.l.b16 %v5428
        %v5456 = vunpack.c.l.b16 %v5429
        %v5457 = vunpack.c.l.b16 %v5430
        %v5458 = vunpack.c.l.b16 %v5431
        %v5459 = vunpack.c.l.b16 %v5432
        %v5460 = vunpack.c.l.b16 %v5433
        %v5461 = vpack.c.b16 %v5450, %v5449
        %v5462 = vpack.c.b16 %v5452, %v5451
        %v5463 = vpack.c.b16 %v5454, %v5453
        %v5464 = vpack.c.b16 %v5456, %v5455
        %v5465 = vpack.c.b16 %v5458, %v5457
        %v5466 = vpack.c.b16 %v5460, %v5459
        %v5474 = vsel %vm3748, %v5436, 0
        %5476 = vmatprep.subr.bf16.mxu0 0
        %5477 = vmatpush1.bf16.msra.mxu0 0
        %5478 = vmatprep.subr.bf16.mxu0 0
        %5479 = vmatpush1.bf16.msra.mxu0 0
        %5480 = vmatprep.subr.bf16.mxu0 0
        %5481 = vmatpush1.bf16.msra.mxu0 %v5466
        %5482 = vmatprep.subr.bf16.mxu0 0
        %5483 = vmatpush1.bf16.msra.mxu0 %v5465
        %5484 = vmatprep.subr.bf16.mxu0 0
        %5485 = vmatpush1.bf16.msra.mxu0 %v5464
        %5486 = vmatprep.subr.bf16.mxu0 0
        %5487 = vmatpush1.bf16.msra.mxu0 %v5463
        %5488 = vmatprep.subr.bf16.mxu0 0
        %5489 = vmatpush1.bf16.msra.mxu0 %v5462
        %5490 = vmatprep.subr.bf16.mxu0 0
        %5491 = vmatpush1.bf16.msra.mxu0 %v5461
        %5492 = vmatprep.subr.bf16.mxu0 0
        %5493 = vmatpush2.bf16.msra.mxu0 0
        %5494 = vmatprep.subr.bf16.mxu0 0
        %5495 = vmatpush2.bf16.msra.mxu0 0
        %5496 = vmatprep.subr.bf16.mxu0 0
        %5497 = vmatpush2.bf16.msra.mxu0 0
        %5498 = vmatprep.subr.bf16.mxu0 0
        %5499 = vmatpush2.bf16.msra.mxu0 0
        %5500 = vmatprep.subr.bf16.mxu0 0
        %5501 = vmatpush2.bf16.msra.mxu0 0
        %5502 = vmatprep.subr.bf16.mxu0 0
        %5503 = vmatpush2.bf16.msra.mxu0 0
        %5504 = vmatprep.subr.bf16.mxu0 0
        %5505 = vmatpush2.bf16.msra.mxu0 0
        %5506 = vmatprep.subr.bf16.mxu0 0
        %5507 = vmatpush2.bf16.msra.mxu0 0
        %5508 = vmatprep.mubr.bf16.mxu0 0
        %5509 = vmatmul.mubr.bf16.gmra.mxu0 %v5348
        %v5510 = vpop.f32.mrf.mxu0
        %v5511 = vadd.f32 0.0, %v5510
        %v5512 = vpop.f32.mrf.mxu0
        %v5513 = vpop.f32.mrf.mxu0
        %v5514 = vadd.f32 0.0, %v5513
        %v5515 = vpop.f32.mrf.mxu0
        %5516 = vmatprep.mubr.bf16.mxu0 0
        %5517 = vmatmul.mubr.bf16.gmra.mxu0 %v5351
        %v5518 = vpop.f32.mrf.mxu0
        %v5519 = vadd.f32 0.0, %v5518
        %v5520 = vpop.f32.mrf.mxu0
        %v5521 = vpop.f32.mrf.mxu0
        %v5522 = vadd.f32 0.0, %v5521
        %v5523 = vpop.f32.mrf.mxu0
        %5524 = vmatprep.mubr.bf16.mxu0 0
        %5525 = vmatmul.mubr.bf16.gmra.mxu0 %v5354
        %v5526 = vpop.f32.mrf.mxu0
        %v5527 = vadd.f32 0.0, %v5526
        %v5528 = vpop.f32.mrf.mxu0
        %v5529 = vpop.f32.mrf.mxu0
        %v5530 = vadd.f32 0.0, %v5529
        %v5531 = vpop.f32.mrf.mxu0
        %5532 = vmatprep.mubr.bf16.mxu0 0
        %5533 = vmatmul.mubr.bf16.gmra.mxu0 %v5474
        %v5534 = vpop.f32.mrf.mxu0
        %v5535 = vadd.f32 0.0, %v5534
        %v5536 = vpop.f32.mrf.mxu0
        %v5537 = vpop.f32.mrf.mxu0
        %v5538 = vadd.f32 0.0, %v5537
        %v5539 = vpop.f32.mrf.mxu0
        %5540 = vdwg.mxu0
        %v5541 = vadd.f32 %v5391, %v5511
        %v5542 = vadd.f32 %v5394, %v5514
        %v5543 = vadd.f32 %v5399, %v5519
        %v5544 = vadd.f32 %v5402, %v5522
        %v5545 = vadd.f32 %v5407, %v5527
        %v5546 = vadd.f32 %v5410, %v5530
        %v5547 = vadd.f32 %v5415, %v5535
        %v5548 = vadd.f32 %v5418, %v5538
        %v5549 = vld [vmem:[%s6] sm:$0x1]
        %v5551 = vlaneseq
        %v5552 = vshrl.u32 %v5551, 7
        %v5553 = vsub.s32 0, %v5552
        %v5554 = vrot.slane %v5549, %v5553
        %v5556 = vadd.f32 %v5541, %v5554
        %v5557 = vadd.f32 %v5542, %v5554
        %v5558 = vadd.f32 %v5543, %v5554
        %v5559 = vadd.f32 %v5544, %v5554
        %v5560 = vadd.f32 %v5545, %v5554
        %v5561 = vadd.f32 %v5546, %v5554
        %v5562 = vadd.f32 %v5547, %v5554
        %v5563 = vadd.f32 %v5548, %v5554
        %v5564 = vmax.f32 %v5556, 0.0
        %v5565 = vmax.f32 %v5557, 0.0
        %v5566 = vmax.f32 %v5558, 0.0
        %v5567 = vmax.f32 %v5559, 0.0
        %v5568 = vmax.f32 %v5560, 0.0
        %v5569 = vmax.f32 %v5561, 0.0
        %v5570 = vmax.f32 %v5562, 0.0
        %v5571 = vmax.f32 %v5563, 0.0
        %v5572 = vpack.c.bf16 %v5564, %v5564
        %v5573 = vpack.c.bf16 %v5565, %v5565
        %v5574 = vpack.c.bf16 %v5566, %v5566
        %v5575 = vpack.c.bf16 %v5567, %v5567
        %v5576 = vpack.c.bf16 %v5568, %v5568
        %v5577 = vpack.c.bf16 %v5569, %v5569
        %v5578 = vpack.c.bf16 %v5570, %v5570
        %v5579 = vpack.c.bf16 %v5571, %v5571
        %v5588 = vunpack.c.l.b16 %v5572
        %v5589 = vunpack.c.l.b16 %v5573
        %v5590 = vunpack.c.l.b16 %v5574
        %v5591 = vunpack.c.l.b16 %v5575
        %v5592 = vunpack.c.l.b16 %v5576
        %v5593 = vunpack.c.l.b16 %v5577
        %v5594 = vunpack.c.l.b16 %v5578
        %v5595 = vunpack.c.l.b16 %v5579
        %v5596 = vpack.c.b16 %v5588, %v5588
        %v5597 = vpack.c.b16 %v5589, %v5589
        %v5598 = vpack.c.b16 %v5590, %v5590
        %v5599 = vpack.c.b16 %v5591, %v5591
        %v5600 = vpack.c.b16 %v5592, %v5592
        %v5601 = vpack.c.b16 %v5593, %v5593
        %v5602 = vpack.c.b16 %v5594, %v5594
        %v5603 = vpack.c.b16 %v5595, %v5595
        %v5605 = vshrl.u32 %v5596, 16
        %v5607 = vrot.slane %v5605, 7
        %v5608 = vshll.u32 %v5596, 16
        %v5610 = vor.u32 %v5607, %v5608
        %v5611 = vrot.slane %v5607, 4
        %v5613 = vshrl.u32 %v5597, 16
        %v5615 = vrot.slane %v5613, 7
        %v5616 = vshll.u32 %v5597, 16
        %v5618 = vor.u32 %v5615, %v5616
        %v5619 = vrot.slane %v5615, 4
        %v5621 = vshrl.u32 %v5598, 16
        %v5623 = vrot.slane %v5621, 7
        %v5624 = vshll.u32 %v5598, 16
        %v5626 = vor.u32 %v5623, %v5624
        %v5627 = vrot.slane %v5623, 4
        %v5629 = vshrl.u32 %v5599, 16
        %v5631 = vrot.slane %v5629, 7
        %v5632 = vshll.u32 %v5599, 16
        %v5634 = vor.u32 %v5631, %v5632
        %v5635 = vrot.slane %v5631, 4
        %v5637 = vshrl.u32 %v5600, 16
        %v5639 = vrot.slane %v5637, 7
        %v5640 = vshll.u32 %v5600, 16
        %v5642 = vor.u32 %v5639, %v5640
        %v5643 = vrot.slane %v5639, 4
        %v5645 = vshrl.u32 %v5601, 16
        %v5647 = vrot.slane %v5645, 7
        %v5648 = vshll.u32 %v5601, 16
        %v5650 = vor.u32 %v5647, %v5648
        %v5651 = vrot.slane %v5647, 4
        %v5653 = vshrl.u32 %v5602, 16
        %v5655 = vrot.slane %v5653, 7
        %v5656 = vshll.u32 %v5602, 16
        %v5658 = vor.u32 %v5655, %v5656
        %v5659 = vrot.slane %v5655, 4
        %v5661 = vshrl.u32 %v5603, 16
        %v5663 = vrot.slane %v5661, 7
        %v5664 = vshll.u32 %v5603, 16
        %v5666 = vor.u32 %v5663, %v5664
        %v5667 = vrot.slane %v5663, 4
        %vm5684 = vcmask 519168
        %vm5685 = vmand %vm5684, %vm500
        %v5686 = vld [vmem:[%s4812] sm:$0xf]
        %v5687 = vsel %vm5685, %v5610, %v5686
        %5688 = vst [vmem:[%s4812] sm:$0xf] %v5687
        %v5689 = vld [vmem:[%s4812 + $0x4] sm:$0x1]
        %v5690 = vsel %vm4814, %v5611, %v5689
        %5691 = vst [vmem:[%s4812 + $0x4] sm:$0x1] %v5690
        %v5692 = vld [vmem:[%s4812 + $0x8] sm:$0xf]
        %v5693 = vsel %vm5685, %v5618, %v5692
        %5694 = vst [vmem:[%s4812 + $0x8] sm:$0xf] %v5693
        %v5695 = vld [vmem:[%s4812 + $0xc] sm:$0x1]
        %v5696 = vsel %vm4814, %v5619, %v5695
        %5697 = vst [vmem:[%s4812 + $0xc] sm:$0x1] %v5696
        %v5698 = vld [vmem:[%s4812 + $0x10] sm:$0xf]
        %v5699 = vsel %vm5685, %v5626, %v5698
        %5700 = vst [vmem:[%s4812 + $0x10] sm:$0xf] %v5699
        %v5701 = vld [vmem:[%s4812 + $0x14] sm:$0x1]
        %v5702 = vsel %vm4814, %v5627, %v5701
        %5703 = vst [vmem:[%s4812 + $0x14] sm:$0x1] %v5702
        %v5704 = vld [vmem:[%s4812 + $0x18] sm:$0xf]
        %v5705 = vsel %vm5685, %v5634, %v5704
        %5706 = vst [vmem:[%s4812 + $0x18] sm:$0xf] %v5705
        %v5707 = vld [vmem:[%s4812 + $0x1c] sm:$0x1]
        %v5708 = vsel %vm4814, %v5635, %v5707
        %5709 = vst [vmem:[%s4812 + $0x1c] sm:$0x1] %v5708
        %v5710 = vld [vmem:[%s4812 + $0x20] sm:$0xf]
        %v5711 = vsel %vm5685, %v5642, %v5710
        %5712 = vst [vmem:[%s4812 + $0x20] sm:$0xf] %v5711
        %v5713 = vld [vmem:[%s4812 + $0x24] sm:$0x1]
        %v5714 = vsel %vm4814, %v5643, %v5713
        %5715 = vst [vmem:[%s4812 + $0x24] sm:$0x1] %v5714
        %v5716 = vld [vmem:[%s4812 + $0x28] sm:$0xf]
        %v5717 = vsel %vm5685, %v5650, %v5716
        %5718 = vst [vmem:[%s4812 + $0x28] sm:$0xf] %v5717
        %v5719 = vld [vmem:[%s4812 + $0x2c] sm:$0x1]
        %v5720 = vsel %vm4814, %v5651, %v5719
        %5721 = vst [vmem:[%s4812 + $0x2c] sm:$0x1] %v5720
        %v5722 = vld [vmem:[%s4812 + $0x30] sm:$0xf]
        %v5723 = vsel %vm5685, %v5658, %v5722
        %5724 = vst [vmem:[%s4812 + $0x30] sm:$0xf] %v5723
        %v5725 = vld [vmem:[%s4812 + $0x34] sm:$0x1]
        %v5726 = vsel %vm4814, %v5659, %v5725
        %5727 = vst [vmem:[%s4812 + $0x34] sm:$0x1] %v5726
        %v5728 = vld [vmem:[%s4812 + $0x38] sm:$0xf]
        %v5729 = vsel %vm5685, %v5666, %v5728
        %5730 = vst [vmem:[%s4812 + $0x38] sm:$0xf] %v5729
        %v5731 = vld [vmem:[%s4812 + $0x3c] sm:$0x1]
        %v5732 = vsel %vm4814, %v5667, %v5731
        %5733 = vst [vmem:[%s4812 + $0x3c] sm:$0x1] %v5732
        %v5734 = vld [vmem:[#allocation6] sm:$0xf]
        %v5735 = vld [vmem:[#allocation6 + $0x8] sm:$0xf]
        %v5736 = vld [vmem:[#allocation6 + $0x10] sm:$0xf]
        %v5737 = vld [vmem:[#allocation6 + $0x18] sm:$0xf]
        %v5738 = vld [vmem:[#allocation6 + $0x20] sm:$0xf]
        %v5739 = vld [vmem:[#allocation6 + $0x28] sm:$0xf]
        %v5740 = vld [vmem:[#allocation6 + $0x30] sm:$0xf]
        %v5741 = vld [vmem:[#allocation6 + $0x38] sm:$0xf]
        %v5742 = vld [vmem:[#allocation6 + $0x40] sm:$0xf]
        %v5743 = vld [vmem:[#allocation6 + $0x48] sm:$0xf]
        %v5744 = vld [vmem:[#allocation6 + $0x4] sm:$0x1]
        %v5745 = vld [vmem:[#allocation6 + $0xc] sm:$0x1]
        %v5746 = vld [vmem:[#allocation6 + $0x14] sm:$0x1]
        %v5747 = vld [vmem:[#allocation6 + $0x1c] sm:$0x1]
        %v5748 = vld [vmem:[#allocation6 + $0x24] sm:$0x1]
        %v5749 = vld [vmem:[#allocation6 + $0x2c] sm:$0x1]
        %v5750 = vld [vmem:[#allocation6 + $0x34] sm:$0x1]
        %v5751 = vld [vmem:[#allocation6 + $0x3c] sm:$0x1]
        %v5752 = vld [vmem:[#allocation6 + $0x44] sm:$0x1]
        %v5753 = vld [vmem:[#allocation6 + $0x4c] sm:$0x1]
        %v5754 = vld [vmem:[#allocation6] sm:$0xe]
        %v5755 = vld [vmem:[#allocation6 + $0x8] sm:$0xe]
        %v5756 = vld [vmem:[#allocation6 + $0x10] sm:$0xe]
        %v5757 = vld [vmem:[#allocation6 + $0x18] sm:$0xe]
        %v5758 = vld [vmem:[#allocation6 + $0x20] sm:$0xe]
        %v5759 = vld [vmem:[#allocation6 + $0x28] sm:$0xe]
        %v5760 = vld [vmem:[#allocation6 + $0x30] sm:$0xe]
        %v5761 = vld [vmem:[#allocation6 + $0x38] sm:$0xe]
        %v5762 = vld [vmem:[#allocation6 + $0x40] sm:$0xe]
        %v5763 = vld [vmem:[#allocation6 + $0x48] sm:$0xe]
        %v5784 = vunpack.c.l.b16 %v5734
        %v5785 = vunpack.c.l.b16 %v5744
        %v5786 = vunpack.c.l.b16 %v5735
        %v5787 = vunpack.c.l.b16 %v5745
        %v5788 = vunpack.c.l.b16 %v5736
        %v5789 = vunpack.c.l.b16 %v5746
        %v5790 = vunpack.c.l.b16 %v5737
        %v5791 = vunpack.c.l.b16 %v5747
        %v5792 = vunpack.c.l.b16 %v5738
        %v5793 = vunpack.c.l.b16 %v5748
        %v5794 = vunpack.c.l.b16 %v5739
        %v5795 = vunpack.c.l.b16 %v5749
        %v5796 = vunpack.c.l.b16 %v5740
        %v5797 = vunpack.c.l.b16 %v5750
        %v5798 = vunpack.c.l.b16 %v5741
        %v5799 = vunpack.c.l.b16 %v5751
        %v5800 = vunpack.c.l.b16 %v5742
        %v5801 = vunpack.c.l.b16 %v5752
        %v5802 = vunpack.c.l.b16 %v5743
        %v5803 = vunpack.c.l.b16 %v5753
        %v5804 = vpack.c.b16 %v5785, %v5784
        %v5805 = vpack.c.b16 %v5787, %v5786
        %v5806 = vpack.c.b16 %v5789, %v5788
        %v5807 = vpack.c.b16 %v5791, %v5790
        %v5808 = vpack.c.b16 %v5793, %v5792
        %v5809 = vpack.c.b16 %v5795, %v5794
        %v5810 = vpack.c.b16 %v5797, %v5796
        %v5811 = vpack.c.b16 %v5799, %v5798
        %v5812 = vpack.c.b16 %v5801, %v5800
        %v5813 = vpack.c.b16 %v5803, %v5802
        %v5815 = vshrl.u32 %v5804, 16
        %v5817 = vshll.u32 %v5804, 16
        %v5819 = vrot.slane %v5817, 1
        %v5820 = vor.u32 %v5815, %v5819
        %v5822 = vshrl.u32 %v5805, 16
        %v5824 = vshll.u32 %v5805, 16
        %v5826 = vrot.slane %v5824, 1
        %v5827 = vor.u32 %v5822, %v5826
        %v5829 = vshrl.u32 %v5806, 16
        %v5831 = vshll.u32 %v5806, 16
        %v5833 = vrot.slane %v5831, 1
        %v5834 = vor.u32 %v5829, %v5833
        %v5836 = vshrl.u32 %v5807, 16
        %v5838 = vshll.u32 %v5807, 16
        %v5840 = vrot.slane %v5838, 1
        %v5841 = vor.u32 %v5836, %v5840
        %v5843 = vshrl.u32 %v5808, 16
        %v5845 = vshll.u32 %v5808, 16
        %v5847 = vrot.slane %v5845, 1
        %v5848 = vor.u32 %v5843, %v5847
        %v5850 = vshrl.u32 %v5809, 16
        %v5852 = vshll.u32 %v5809, 16
        %v5854 = vrot.slane %v5852, 1
        %v5855 = vor.u32 %v5850, %v5854
        %v5857 = vshrl.u32 %v5810, 16
        %v5859 = vshll.u32 %v5810, 16
        %v5861 = vrot.slane %v5859, 1
        %v5862 = vor.u32 %v5857, %v5861
        %v5864 = vshrl.u32 %v5811, 16
        %v5866 = vshll.u32 %v5811, 16
        %v5868 = vrot.slane %v5866, 1
        %v5869 = vor.u32 %v5864, %v5868
        %v5871 = vshrl.u32 %v5812, 16
        %v5873 = vshll.u32 %v5812, 16
        %v5875 = vrot.slane %v5873, 1
        %v5876 = vor.u32 %v5871, %v5875
        %v5878 = vshrl.u32 %v5813, 16
        %v5880 = vshll.u32 %v5813, 16
        %v5882 = vrot.slane %v5880, 1
        %v5883 = vor.u32 %v5878, %v5882
        %5884 = vrot.lane.b32.xlu0 %v5820, 64
        %v5885 = vpop.permute.xlu0 %5884
        %5886 = vrot.lane.b32.xlu0 %v5827, 64
        %v5887 = vpop.permute.xlu0 %5886
        %5888 = vrot.lane.b32.xlu0 %v5834, 64
        %v5889 = vpop.permute.xlu0 %5888
        %5890 = vrot.lane.b32.xlu0 %v5841, 64
        %v5891 = vpop.permute.xlu0 %5890
        %5892 = vrot.lane.b32.xlu0 %v5848, 64
        %v5893 = vpop.permute.xlu0 %5892
        %5894 = vrot.lane.b32.xlu0 %v5855, 64
        %v5895 = vpop.permute.xlu0 %5894
        %5896 = vrot.lane.b32.xlu0 %v5862, 64
        %v5897 = vpop.permute.xlu0 %5896
        %5898 = vrot.lane.b32.xlu0 %v5869, 64
        %v5899 = vpop.permute.xlu0 %5898
        %5900 = vrot.lane.b32.xlu0 %v5876, 64
        %v5901 = vpop.permute.xlu0 %5900
        %5902 = vrot.lane.b32.xlu0 %v5883, 64
        %v5903 = vpop.permute.xlu0 %5902
        %v5914 = vunpack.c.l.b16 %v5754
        %v5915 = vunpack.c.l.b16 %v5755
        %v5916 = vunpack.c.l.b16 %v5756
        %v5917 = vunpack.c.l.b16 %v5757
        %v5918 = vunpack.c.l.b16 %v5758
        %v5919 = vunpack.c.l.b16 %v5759
        %v5920 = vunpack.c.l.b16 %v5760
        %v5921 = vunpack.c.l.b16 %v5761
        %v5922 = vunpack.c.l.b16 %v5762
        %v5923 = vunpack.c.l.b16 %v5763
        %v5924 = vpack.c.b16 %v5785, %v5914
        %v5925 = vpack.c.b16 %v5787, %v5915
        %v5926 = vpack.c.b16 %v5789, %v5916
        %v5927 = vpack.c.b16 %v5791, %v5917
        %v5928 = vpack.c.b16 %v5793, %v5918
        %v5929 = vpack.c.b16 %v5795, %v5919
        %v5930 = vpack.c.b16 %v5797, %v5920
        %v5931 = vpack.c.b16 %v5799, %v5921
        %v5932 = vpack.c.b16 %v5801, %v5922
        %v5933 = vpack.c.b16 %v5803, %v5923
        %v5934 = vrot.slane %v5924, 1
        %v5935 = vrot.slane %v5925, 1
        %v5936 = vrot.slane %v5926, 1
        %v5937 = vrot.slane %v5927, 1
        %v5938 = vrot.slane %v5928, 1
        %v5939 = vrot.slane %v5929, 1
        %v5940 = vrot.slane %v5930, 1
        %v5941 = vrot.slane %v5931, 1
        %v5942 = vrot.slane %v5932, 1
        %v5943 = vrot.slane %v5933, 1
        %v5946 = vsel %vm3650, %v5734, %v5885
        %v5949 = vsel %vm3650, %v5735, %v5887
        %v5952 = vsel %vm3650, %v5736, %v5889
        %v5955 = vsel %vm3650, %v5737, %v5891
        %v5958 = vsel %vm3650, %v5738, %v5893
        %v5961 = vsel %vm3650, %v5739, %v5895
        %v5964 = vsel %vm3650, %v5740, %v5897
        %v5967 = vsel %vm3650, %v5741, %v5899
        %v5970 = vsel %vm3650, %v5742, %v5901
        %v5973 = vsel %vm3650, %v5743, %v5903
        %v5982 = vunpack.c.l.b16 %v5946
        %v5983 = vunpack.c.l.b16 %v5934
        %v5984 = vunpack.c.l.b16 %v5949
        %v5985 = vunpack.c.l.b16 %v5935
        %v5986 = vunpack.c.l.b16 %v5952
        %v5987 = vunpack.c.l.b16 %v5936
        %v5988 = vunpack.c.l.b16 %v5955
        %v5989 = vunpack.c.l.b16 %v5937
        %v5990 = vunpack.c.l.b16 %v5958
        %v5991 = vunpack.c.l.b16 %v5938
        %v5992 = vunpack.c.l.b16 %v5961
        %v5993 = vunpack.c.l.b16 %v5939
        %v5994 = vunpack.c.l.b16 %v5964
        %v5995 = vunpack.c.l.b16 %v5940
        %v5996 = vunpack.c.l.b16 %v5967
        %v5997 = vunpack.c.l.b16 %v5941
        %v5998 = vld [vmem:[%s7] sm:$0xf]
        %v5999 = vld [vmem:[%s7 + $0x4] sm:$0xf]
        %v6000 = vld [vmem:[%s7 + $0x8] sm:$0xf]
        %v6001 = vld [vmem:[%s7 + $0xc] sm:$0xf]
        %v6002 = vld [vmem:[%s7 + $0x10] sm:$0xf]
        %v6003 = vld [vmem:[%s7 + $0x14] sm:$0xf]
        %v6004 = vld [vmem:[%s7 + $0x18] sm:$0xf]
        %v6005 = vld [vmem:[%s7 + $0x1c] sm:$0xf]
        %v6006 = vld [vmem:[%s7 + $0x20] sm:$0xf]
        %v6007 = vld [vmem:[%s7 + $0x24] sm:$0xf]
        %v6008 = vld [vmem:[%s7 + $0x28] sm:$0xf]
        %v6009 = vld [vmem:[%s7 + $0x2c] sm:$0xf]
        %v6010 = vld [vmem:[%s7 + $0x30] sm:$0xf]
        %v6011 = vld [vmem:[%s7 + $0x34] sm:$0xf]
        %v6012 = vld [vmem:[%s7 + $0x38] sm:$0xf]
        %v6013 = vld [vmem:[%s7 + $0x3c] sm:$0xf]
        %v6014 = vld [vmem:[%s7 + $0x40] sm:$0xf]
        %v6015 = vld [vmem:[%s7 + $0x44] sm:$0xf]
        %v6016 = vld [vmem:[%s7 + $0x48] sm:$0xf]
        %v6017 = vld [vmem:[%s7 + $0x4c] sm:$0xf]
        %v6018 = vld [vmem:[%s7 + $0x50] sm:$0xf]
        %v6019 = vld [vmem:[%s7 + $0x54] sm:$0xf]
        %v6020 = vld [vmem:[%s7 + $0x58] sm:$0xf]
        %v6021 = vld [vmem:[%s7 + $0x5c] sm:$0xf]
        %v6023 = vunpack.c.l.b16 %v5970
        %v6024 = vunpack.c.l.b16 %v5942
        %s6025 = scalar_lea.vmem %s7, 96
        %v6026 = vld [vmem:[%s6025] sm:$0xf]
        %v6027 = vld [vmem:[%s6025 + $0x4] sm:$0xf]
        %v6028 = vld [vmem:[%s6025 + $0x8] sm:$0xf]
        %v6029 = vld [vmem:[%s6025 + $0xc] sm:$0xf]
        %v6030 = vld [vmem:[%s6025 + $0x10] sm:$0xf]
        %v6031 = vld [vmem:[%s6025 + $0x14] sm:$0xf]
        %v6032 = vld [vmem:[%s6025 + $0x18] sm:$0xf]
        %v6033 = vld [vmem:[%s6025 + $0x1c] sm:$0xf]
        %v6034 = vld [vmem:[%s6025 + $0x20] sm:$0xf]
        %v6035 = vld [vmem:[%s6025 + $0x24] sm:$0xf]
        %v6036 = vld [vmem:[%s6025 + $0x28] sm:$0xf]
        %v6037 = vld [vmem:[%s6025 + $0x2c] sm:$0xf]
        %v6038 = vld [vmem:[%s6025 + $0x30] sm:$0xf]
        %v6039 = vld [vmem:[%s6025 + $0x34] sm:$0xf]
        %v6040 = vld [vmem:[%s6025 + $0x38] sm:$0xf]
        %v6041 = vld [vmem:[%s6025 + $0x3c] sm:$0xf]
        %v6042 = vld [vmem:[%s6025 + $0x40] sm:$0xf]
        %v6043 = vld [vmem:[%s6025 + $0x44] sm:$0xf]
        %v6044 = vld [vmem:[%s6025 + $0x48] sm:$0xf]
        %v6045 = vld [vmem:[%s6025 + $0x4c] sm:$0xf]
        %v6046 = vld [vmem:[%s6025 + $0x50] sm:$0xf]
        %v6047 = vld [vmem:[%s6025 + $0x54] sm:$0xf]
        %v6048 = vld [vmem:[%s6025 + $0x58] sm:$0xf]
        %v6049 = vld [vmem:[%s6025 + $0x5c] sm:$0xf]
        %v6050 = vpack.c.b16 %v5986, %v5984
        %v6051 = vpack.c.b16 %v5987, %v5985
        %v6052 = vpack.c.b16 %v5990, %v5988
        %v6053 = vpack.c.b16 %v5991, %v5989
        %v6054 = vpack.c.b16 %v5994, %v5992
        %v6055 = vpack.c.b16 %v5995, %v5993
        %v6056 = vpack.c.b16 %v6023, %v5996
        %v6057 = vpack.c.b16 %v6024, %v5997
        %v6086 = vunpack.c.l.b16 %v6026
        %v6087 = vunpack.c.l.b16 %v6027
        %v6088 = vunpack.c.l.b16 %v6028
        %v6089 = vunpack.c.l.b16 %v6029
        %v6090 = vunpack.c.l.b16 %v6030
        %v6091 = vunpack.c.l.b16 %v6031
        %v6092 = vunpack.c.l.b16 %v6032
        %v6093 = vunpack.c.l.b16 %v6033
        %v6094 = vunpack.c.l.b16 %v6034
        %v6095 = vunpack.c.l.b16 %v6035
        %v6096 = vunpack.c.l.b16 %v6036
        %v6097 = vunpack.c.l.b16 %v6037
        %v6098 = vunpack.c.l.b16 %v6038
        %v6099 = vunpack.c.l.b16 %v6039
        %v6100 = vunpack.c.l.b16 %v6040
        %v6101 = vunpack.c.l.b16 %v6041
        %v6102 = vunpack.c.l.b16 %v6042
        %v6103 = vunpack.c.l.b16 %v6043
        %v6104 = vunpack.c.l.b16 %v6044
        %v6105 = vunpack.c.l.b16 %v6045
        %v6106 = vunpack.c.l.b16 %v6046
        %v6107 = vunpack.c.l.b16 %v6047
        %v6108 = vunpack.c.l.b16 %v6048
        %v6109 = vunpack.c.l.b16 %v6049
        %v6110 = vpack.c.b16 %v6087, %v6086
        %v6111 = vpack.c.b16 %v6089, %v6088
        %v6112 = vpack.c.b16 %v6091, %v6090
        %v6113 = vpack.c.b16 %v6093, %v6092
        %v6114 = vpack.c.b16 %v6095, %v6094
        %v6115 = vpack.c.b16 %v6097, %v6096
        %v6116 = vpack.c.b16 %v6099, %v6098
        %v6117 = vpack.c.b16 %v6101, %v6100
        %v6118 = vpack.c.b16 %v6103, %v6102
        %v6119 = vpack.c.b16 %v6105, %v6104
        %v6120 = vpack.c.b16 %v6107, %v6106
        %v6121 = vpack.c.b16 %v6109, %v6108
        %v6135 = vsel %vm3650, %v6051, 0
        %v6138 = vsel %vm3650, %v6053, 0
        %v6141 = vsel %vm3650, %v6055, 0
        %v6144 = vsel %vm3650, %v6057, 0
        %6146 = vmatprep.subr.bf16.mxu0 0
        %6147 = vmatpush1.bf16.msra.mxu0 %v6117
        %6148 = vmatprep.subr.bf16.mxu0 0
        %6149 = vmatpush1.bf16.msra.mxu0 %v6116
        %6150 = vmatprep.subr.bf16.mxu0 0
        %6151 = vmatpush1.bf16.msra.mxu0 %v6115
        %6152 = vmatprep.subr.bf16.mxu0 0
        %6153 = vmatpush1.bf16.msra.mxu0 %v6114
        %6154 = vmatprep.subr.bf16.mxu0 0
        %6155 = vmatpush1.bf16.msra.mxu0 %v6113
        %6156 = vmatprep.subr.bf16.mxu0 0
        %6157 = vmatpush1.bf16.msra.mxu0 %v6112
        %6158 = vmatprep.subr.bf16.mxu0 0
        %6159 = vmatpush1.bf16.msra.mxu0 %v6111
        %6160 = vmatprep.subr.bf16.mxu0 0
        %6161 = vmatpush1.bf16.msra.mxu0 %v6110
        %6162 = vmatprep.subr.bf16.mxu0 0
        %6163 = vmatpush2.bf16.msra.mxu0 0
        %6164 = vmatprep.subr.bf16.mxu0 0
        %6165 = vmatpush2.bf16.msra.mxu0 0
        %6166 = vmatprep.subr.bf16.mxu0 0
        %6167 = vmatpush2.bf16.msra.mxu0 0
        %6168 = vmatprep.subr.bf16.mxu0 0
        %6169 = vmatpush2.bf16.msra.mxu0 0
        %6170 = vmatprep.subr.bf16.mxu0 0
        %6171 = vmatpush2.bf16.msra.mxu0 %v6121
        %6172 = vmatprep.subr.bf16.mxu0 0
        %6173 = vmatpush2.bf16.msra.mxu0 %v6120
        %6174 = vmatprep.subr.bf16.mxu0 0
        %6175 = vmatpush2.bf16.msra.mxu0 %v6119
        %6176 = vmatprep.subr.bf16.mxu0 0
        %6177 = vmatpush2.bf16.msra.mxu0 %v6118
        %6178 = vmatprep.mubr.bf16.mxu0 %v6135
        %6179 = vmatmul.mubr.bf16.gmra.mxu0 %v6050
        %v6180 = vpop.f32.mrf.mxu0
        %v6181 = vadd.f32 0.0, %v6180
        %v6182 = vpop.f32.mrf.mxu0
        %v6183 = vpop.f32.mrf.mxu0
        %v6184 = vadd.f32 0.0, %v6183
        %v6185 = vpop.f32.mrf.mxu0
        %6186 = vmatprep.mubr.bf16.mxu0 %v6138
        %6187 = vmatmul.mubr.bf16.gmra.mxu0 %v6052
        %v6188 = vpop.f32.mrf.mxu0
        %v6189 = vadd.f32 0.0, %v6188
        %v6190 = vpop.f32.mrf.mxu0
        %v6191 = vpop.f32.mrf.mxu0
        %v6192 = vadd.f32 0.0, %v6191
        %v6193 = vpop.f32.mrf.mxu0
        %6194 = vmatprep.mubr.bf16.mxu0 %v6141
        %6195 = vmatmul.mubr.bf16.gmra.mxu0 %v6054
        %v6196 = vpop.f32.mrf.mxu0
        %v6197 = vadd.f32 0.0, %v6196
        %v6198 = vpop.f32.mrf.mxu0
        %v6199 = vpop.f32.mrf.mxu0
        %v6200 = vadd.f32 0.0, %v6199
        %v6201 = vpop.f32.mrf.mxu0
        %6202 = vmatprep.mubr.bf16.mxu0 %v6144
        %6203 = vmatmul.mubr.bf16.gmra.mxu0 %v6056
        %v6204 = vpop.f32.mrf.mxu0
        %v6205 = vadd.f32 0.0, %v6204
        %v6206 = vpop.f32.mrf.mxu0
        %v6207 = vpop.f32.mrf.mxu0
        %v6208 = vadd.f32 0.0, %v6207
        %v6209 = vpop.f32.mrf.mxu0
        %6210 = vdwg.mxu0
        %v6211 = vpack.c.b16 %v5984, %v5982
        %v6212 = vpack.c.b16 %v5985, %v5983
        %v6213 = vpack.c.b16 %v5988, %v5986
        %v6214 = vpack.c.b16 %v5989, %v5987
        %v6215 = vpack.c.b16 %v5992, %v5990
        %v6216 = vpack.c.b16 %v5993, %v5991
        %v6217 = vpack.c.b16 %v5996, %v5994
        %v6218 = vpack.c.b16 %v5997, %v5995
        %v6247 = vunpack.c.l.b16 %v5998
        %v6248 = vunpack.c.l.b16 %v5999
        %v6249 = vunpack.c.l.b16 %v6000
        %v6250 = vunpack.c.l.b16 %v6001
        %v6251 = vunpack.c.l.b16 %v6002
        %v6252 = vunpack.c.l.b16 %v6003
        %v6253 = vunpack.c.l.b16 %v6004
        %v6254 = vunpack.c.l.b16 %v6005
        %v6255 = vunpack.c.l.b16 %v6006
        %v6256 = vunpack.c.l.b16 %v6007
        %v6257 = vunpack.c.l.b16 %v6008
        %v6258 = vunpack.c.l.b16 %v6009
        %v6259 = vunpack.c.l.b16 %v6010
        %v6260 = vunpack.c.l.b16 %v6011
        %v6261 = vunpack.c.l.b16 %v6012
        %v6262 = vunpack.c.l.b16 %v6013
        %v6263 = vunpack.c.l.b16 %v6014
        %v6264 = vunpack.c.l.b16 %v6015
        %v6265 = vunpack.c.l.b16 %v6016
        %v6266 = vunpack.c.l.b16 %v6017
        %v6267 = vunpack.c.l.b16 %v6018
        %v6268 = vunpack.c.l.b16 %v6019
        %v6269 = vunpack.c.l.b16 %v6020
        %v6270 = vunpack.c.l.b16 %v6021
        %v6271 = vpack.c.b16 %v6248, %v6247
        %v6272 = vpack.c.b16 %v6250, %v6249
        %v6273 = vpack.c.b16 %v6252, %v6251
        %v6274 = vpack.c.b16 %v6254, %v6253
        %v6275 = vpack.c.b16 %v6256, %v6255
        %v6276 = vpack.c.b16 %v6258, %v6257
        %v6277 = vpack.c.b16 %v6260, %v6259
        %v6278 = vpack.c.b16 %v6262, %v6261
        %v6279 = vpack.c.b16 %v6264, %v6263
        %v6280 = vpack.c.b16 %v6266, %v6265
        %v6281 = vpack.c.b16 %v6268, %v6267
        %v6282 = vpack.c.b16 %v6270, %v6269
        %v6296 = vsel %vm3650, %v6212, 0
        %v6299 = vsel %vm3650, %v6214, 0
        %v6302 = vsel %vm3650, %v6216, 0
        %v6305 = vsel %vm3650, %v6218, 0
        %6307 = vmatprep.subr.bf16.mxu0 0
        %6308 = vmatpush1.bf16.msra.mxu0 %v6278
        %6309 = vmatprep.subr.bf16.mxu0 0
        %6310 = vmatpush1.bf16.msra.mxu0 %v6277
        %6311 = vmatprep.subr.bf16.mxu0 0
        %6312 = vmatpush1.bf16.msra.mxu0 %v6276
        %6313 = vmatprep.subr.bf16.mxu0 0
        %6314 = vmatpush1.bf16.msra.mxu0 %v6275
        %6315 = vmatprep.subr.bf16.mxu0 0
        %6316 = vmatpush1.bf16.msra.mxu0 %v6274
        %6317 = vmatprep.subr.bf16.mxu0 0
        %6318 = vmatpush1.bf16.msra.mxu0 %v6273
        %6319 = vmatprep.subr.bf16.mxu0 0
        %6320 = vmatpush1.bf16.msra.mxu0 %v6272
        %6321 = vmatprep.subr.bf16.mxu0 0
        %6322 = vmatpush1.bf16.msra.mxu0 %v6271
        %6323 = vmatprep.subr.bf16.mxu0 0
        %6324 = vmatpush2.bf16.msra.mxu0 0
        %6325 = vmatprep.subr.bf16.mxu0 0
        %6326 = vmatpush2.bf16.msra.mxu0 0
        %6327 = vmatprep.subr.bf16.mxu0 0
        %6328 = vmatpush2.bf16.msra.mxu0 0
        %6329 = vmatprep.subr.bf16.mxu0 0
        %6330 = vmatpush2.bf16.msra.mxu0 0
        %6331 = vmatprep.subr.bf16.mxu0 0
        %6332 = vmatpush2.bf16.msra.mxu0 %v6282
        %6333 = vmatprep.subr.bf16.mxu0 0
        %6334 = vmatpush2.bf16.msra.mxu0 %v6281
        %6335 = vmatprep.subr.bf16.mxu0 0
        %6336 = vmatpush2.bf16.msra.mxu0 %v6280
        %6337 = vmatprep.subr.bf16.mxu0 0
        %6338 = vmatpush2.bf16.msra.mxu0 %v6279
        %6339 = vmatprep.mubr.bf16.mxu0 %v6296
        %6340 = vmatmul.mubr.bf16.gmra.mxu0 %v6211
        %v6341 = vpop.f32.mrf.mxu0
        %v6342 = vadd.f32 %v6181, %v6341
        %v6343 = vpop.f32.mrf.mxu0
        %v6344 = vpop.f32.mrf.mxu0
        %v6345 = vadd.f32 %v6184, %v6344
        %v6346 = vpop.f32.mrf.mxu0
        %6347 = vmatprep.mubr.bf16.mxu0 %v6299
        %6348 = vmatmul.mubr.bf16.gmra.mxu0 %v6213
        %v6349 = vpop.f32.mrf.mxu0
        %v6350 = vadd.f32 %v6189, %v6349
        %v6351 = vpop.f32.mrf.mxu0
        %v6352 = vpop.f32.mrf.mxu0
        %v6353 = vadd.f32 %v6192, %v6352
        %v6354 = vpop.f32.mrf.mxu0
        %6355 = vmatprep.mubr.bf16.mxu0 %v6302
        %6356 = vmatmul.mubr.bf16.gmra.mxu0 %v6215
        %v6357 = vpop.f32.mrf.mxu0
        %v6358 = vadd.f32 %v6197, %v6357
        %v6359 = vpop.f32.mrf.mxu0
        %v6360 = vpop.f32.mrf.mxu0
        %v6361 = vadd.f32 %v6200, %v6360
        %v6362 = vpop.f32.mrf.mxu0
        %6363 = vmatprep.mubr.bf16.mxu0 %v6305
        %6364 = vmatmul.mubr.bf16.gmra.mxu0 %v6217
        %v6365 = vpop.f32.mrf.mxu0
        %v6366 = vadd.f32 %v6205, %v6365
        %v6367 = vpop.f32.mrf.mxu0
        %v6368 = vpop.f32.mrf.mxu0
        %v6369 = vadd.f32 %v6208, %v6368
        %v6370 = vpop.f32.mrf.mxu0
        %6371 = vdwg.mxu0
        %v6373 = vunpack.c.l.b16 %v5973
        %v6374 = vunpack.c.l.b16 %v5943
        %s6375 = scalar_lea.vmem %s7, 192
        %v6376 = vld [vmem:[%s6375] sm:$0xf]
        %v6377 = vld [vmem:[%s6375 + $0x4] sm:$0xf]
        %v6378 = vld [vmem:[%s6375 + $0x8] sm:$0xf]
        %v6379 = vld [vmem:[%s6375 + $0xc] sm:$0xf]
        %v6380 = vld [vmem:[%s6375 + $0x10] sm:$0xf]
        %v6381 = vld [vmem:[%s6375 + $0x14] sm:$0xf]
        %v6382 = vld [vmem:[%s6375 + $0x18] sm:$0xf]
        %v6383 = vld [vmem:[%s6375 + $0x1c] sm:$0xf]
        %v6384 = vld [vmem:[%s6375 + $0x20] sm:$0xf]
        %v6385 = vld [vmem:[%s6375 + $0x24] sm:$0xf]
        %v6386 = vld [vmem:[%s6375 + $0x28] sm:$0xf]
        %v6387 = vld [vmem:[%s6375 + $0x2c] sm:$0xf]
        %v6388 = vld [vmem:[%s6375 + $0x30] sm:$0xf]
        %v6389 = vld [vmem:[%s6375 + $0x34] sm:$0xf]
        %v6390 = vld [vmem:[%s6375 + $0x38] sm:$0xf]
        %v6391 = vld [vmem:[%s6375 + $0x3c] sm:$0xf]
        %v6392 = vld [vmem:[%s6375 + $0x40] sm:$0xf]
        %v6393 = vld [vmem:[%s6375 + $0x44] sm:$0xf]
        %v6394 = vld [vmem:[%s6375 + $0x48] sm:$0xf]
        %v6395 = vld [vmem:[%s6375 + $0x4c] sm:$0xf]
        %v6396 = vld [vmem:[%s6375 + $0x50] sm:$0xf]
        %v6397 = vld [vmem:[%s6375 + $0x54] sm:$0xf]
        %v6398 = vld [vmem:[%s6375 + $0x58] sm:$0xf]
        %v6399 = vld [vmem:[%s6375 + $0x5c] sm:$0xf]
        %v6400 = vpack.c.b16 %v6373, %v6023
        %v6401 = vpack.c.b16 %v6374, %v6024
        %v6427 = vunpack.c.l.b16 %v6376
        %v6428 = vunpack.c.l.b16 %v6377
        %v6429 = vunpack.c.l.b16 %v6378
        %v6430 = vunpack.c.l.b16 %v6379
        %v6431 = vunpack.c.l.b16 %v6380
        %v6432 = vunpack.c.l.b16 %v6381
        %v6433 = vunpack.c.l.b16 %v6382
        %v6434 = vunpack.c.l.b16 %v6383
        %v6435 = vunpack.c.l.b16 %v6384
        %v6436 = vunpack.c.l.b16 %v6385
        %v6437 = vunpack.c.l.b16 %v6386
        %v6438 = vunpack.c.l.b16 %v6387
        %v6439 = vunpack.c.l.b16 %v6388
        %v6440 = vunpack.c.l.b16 %v6389
        %v6441 = vunpack.c.l.b16 %v6390
        %v6442 = vunpack.c.l.b16 %v6391
        %v6443 = vunpack.c.l.b16 %v6392
        %v6444 = vunpack.c.l.b16 %v6393
        %v6445 = vunpack.c.l.b16 %v6394
        %v6446 = vunpack.c.l.b16 %v6395
        %v6447 = vunpack.c.l.b16 %v6396
        %v6448 = vunpack.c.l.b16 %v6397
        %v6449 = vunpack.c.l.b16 %v6398
        %v6450 = vunpack.c.l.b16 %v6399
        %v6451 = vpack.c.b16 %v6428, %v6427
        %v6452 = vpack.c.b16 %v6430, %v6429
        %v6453 = vpack.c.b16 %v6432, %v6431
        %v6454 = vpack.c.b16 %v6434, %v6433
        %v6455 = vpack.c.b16 %v6436, %v6435
        %v6456 = vpack.c.b16 %v6438, %v6437
        %v6457 = vpack.c.b16 %v6440, %v6439
        %v6458 = vpack.c.b16 %v6442, %v6441
        %v6459 = vpack.c.b16 %v6444, %v6443
        %v6460 = vpack.c.b16 %v6446, %v6445
        %v6461 = vpack.c.b16 %v6448, %v6447
        %v6462 = vpack.c.b16 %v6450, %v6449
        %v6476 = vsel %vm3650, %v6401, 0
        %6478 = vmatprep.subr.bf16.mxu0 0
        %6479 = vmatpush1.bf16.msra.mxu0 %v6458
        %6480 = vmatprep.subr.bf16.mxu0 0
        %6481 = vmatpush1.bf16.msra.mxu0 %v6457
        %6482 = vmatprep.subr.bf16.mxu0 0
        %6483 = vmatpush1.bf16.msra.mxu0 %v6456
        %6484 = vmatprep.subr.bf16.mxu0 0
        %6485 = vmatpush1.bf16.msra.mxu0 %v6455
        %6486 = vmatprep.subr.bf16.mxu0 0
        %6487 = vmatpush1.bf16.msra.mxu0 %v6454
        %6488 = vmatprep.subr.bf16.mxu0 0
        %6489 = vmatpush1.bf16.msra.mxu0 %v6453
        %6490 = vmatprep.subr.bf16.mxu0 0
        %6491 = vmatpush1.bf16.msra.mxu0 %v6452
        %6492 = vmatprep.subr.bf16.mxu0 0
        %6493 = vmatpush1.bf16.msra.mxu0 %v6451
        %6494 = vmatprep.subr.bf16.mxu0 0
        %6495 = vmatpush2.bf16.msra.mxu0 0
        %6496 = vmatprep.subr.bf16.mxu0 0
        %6497 = vmatpush2.bf16.msra.mxu0 0
        %6498 = vmatprep.subr.bf16.mxu0 0
        %6499 = vmatpush2.bf16.msra.mxu0 0
        %6500 = vmatprep.subr.bf16.mxu0 0
        %6501 = vmatpush2.bf16.msra.mxu0 0
        %6502 = vmatprep.subr.bf16.mxu0 0
        %6503 = vmatpush2.bf16.msra.mxu0 %v6462
        %6504 = vmatprep.subr.bf16.mxu0 0
        %6505 = vmatpush2.bf16.msra.mxu0 %v6461
        %6506 = vmatprep.subr.bf16.mxu0 0
        %6507 = vmatpush2.bf16.msra.mxu0 %v6460
        %6508 = vmatprep.subr.bf16.mxu0 0
        %6509 = vmatpush2.bf16.msra.mxu0 %v6459
        %6510 = vmatprep.mubr.bf16.mxu0 %v6299
        %6511 = vmatmul.mubr.bf16.gmra.mxu0 %v6213
        %v6512 = vpop.f32.mrf.mxu0
        %v6513 = vadd.f32 0.0, %v6512
        %v6514 = vpop.f32.mrf.mxu0
        %v6515 = vpop.f32.mrf.mxu0
        %v6516 = vadd.f32 0.0, %v6515
        %v6517 = vpop.f32.mrf.mxu0
        %6518 = vmatprep.mubr.bf16.mxu0 %v6302
        %6519 = vmatmul.mubr.bf16.gmra.mxu0 %v6215
        %v6520 = vpop.f32.mrf.mxu0
        %v6521 = vadd.f32 0.0, %v6520
        %v6522 = vpop.f32.mrf.mxu0
        %v6523 = vpop.f32.mrf.mxu0
        %v6524 = vadd.f32 0.0, %v6523
        %v6525 = vpop.f32.mrf.mxu0
        %6526 = vmatprep.mubr.bf16.mxu0 %v6305
        %6527 = vmatmul.mubr.bf16.gmra.mxu0 %v6217
        %v6528 = vpop.f32.mrf.mxu0
        %v6529 = vadd.f32 0.0, %v6528
        %v6530 = vpop.f32.mrf.mxu0
        %v6531 = vpop.f32.mrf.mxu0
        %v6532 = vadd.f32 0.0, %v6531
        %v6533 = vpop.f32.mrf.mxu0
        %6534 = vmatprep.mubr.bf16.mxu0 %v6476
        %6535 = vmatmul.mubr.bf16.gmra.mxu0 %v6400
        %v6536 = vpop.f32.mrf.mxu0
        %v6537 = vadd.f32 0.0, %v6536
        %v6538 = vpop.f32.mrf.mxu0
        %v6539 = vpop.f32.mrf.mxu0
        %v6540 = vadd.f32 0.0, %v6539
        %v6541 = vpop.f32.mrf.mxu0
        %6542 = vdwg.mxu0
        %v6543 = vadd.f32 %v6342, %v6513
        %v6544 = vadd.f32 %v6345, %v6516
        %v6545 = vadd.f32 %v6350, %v6521
        %v6546 = vadd.f32 %v6353, %v6524
        %v6547 = vadd.f32 %v6358, %v6529
        %v6548 = vadd.f32 %v6361, %v6532
        %v6549 = vadd.f32 %v6366, %v6537
        %v6550 = vadd.f32 %v6369, %v6540
        %v6551 = vld [vmem:[%s8] sm:$0x1]
        %v6553 = vlaneseq
        %v6554 = vshrl.u32 %v6553, 7
        %v6555 = vsub.s32 0, %v6554
        %v6556 = vrot.slane %v6551, %v6555
        %v6558 = vadd.f32 %v6543, %v6556
        %v6559 = vadd.f32 %v6544, %v6556
        %v6560 = vadd.f32 %v6545, %v6556
        %v6561 = vadd.f32 %v6546, %v6556
        %v6562 = vadd.f32 %v6547, %v6556
        %v6563 = vadd.f32 %v6548, %v6556
        %v6564 = vadd.f32 %v6549, %v6556
        %v6565 = vadd.f32 %v6550, %v6556
        %v6566 = vmax.f32 %v6558, 0.0
        %v6567 = vmax.f32 %v6559, 0.0
        %v6568 = vmax.f32 %v6560, 0.0
        %v6569 = vmax.f32 %v6561, 0.0
        %v6570 = vmax.f32 %v6562, 0.0
        %v6571 = vmax.f32 %v6563, 0.0
        %v6572 = vmax.f32 %v6564, 0.0
        %v6573 = vmax.f32 %v6565, 0.0
        %6574 = vst.msk [vmem:[#allocation7] sm:$0xff] %vm3650, %v6566
        %6575 = vst.msk [vmem:[#allocation7 + $0x8] sm:$0xff] %vm3650, %v6567
        %6576 = vst.msk [vmem:[#allocation7 + $0x10] sm:$0xff] %vm3650, %v6568
        %6577 = vst.msk [vmem:[#allocation7 + $0x18] sm:$0xff] %vm3650, %v6569
        %6578 = vst.msk [vmem:[#allocation7 + $0x20] sm:$0xff] %vm3650, %v6570
        %6579 = vst.msk [vmem:[#allocation7 + $0x28] sm:$0xff] %vm3650, %v6571
        %6580 = vst.msk [vmem:[#allocation7 + $0x30] sm:$0xff] %vm3650, %v6572
        %6581 = vst.msk [vmem:[#allocation7 + $0x38] sm:$0xff] %vm3650, %v6573
        %v6582 = vld [vmem:[#allocation7] ss:$2 sm:$0xf]
        %s6583 = scalar_lea.vmem [#allocation7], 8
        %v6584 = vld [vmem:[%s6583] ss:$2 sm:$0xf]
        %s6585 = scalar_lea.vmem [#allocation7], 16
        %v6586 = vld [vmem:[%s6585] ss:$2 sm:$0xf]
        %s6587 = scalar_lea.vmem [#allocation7], 24
        %v6588 = vld [vmem:[%s6587] ss:$2 sm:$0xf]
        %s6589 = scalar_lea.vmem [#allocation7], 32
        %v6590 = vld [vmem:[%s6589] ss:$2 sm:$0xf]
        %s6591 = scalar_lea.vmem [#allocation7], 40
        %v6592 = vld [vmem:[%s6591] ss:$2 sm:$0xf]
        %s6593 = scalar_lea.vmem [#allocation7], 1
        %v6594 = vld [vmem:[%s6593] ss:$2 sm:$0xf]
        %s6595 = scalar_lea.vmem [#allocation7], 9
        %v6596 = vld [vmem:[%s6595] ss:$2 sm:$0xf]
        %s6597 = scalar_lea.vmem [#allocation7], 17
        %v6598 = vld [vmem:[%s6597] ss:$2 sm:$0xf]
        %s6599 = scalar_lea.vmem [#allocation7], 25
        %v6600 = vld [vmem:[%s6599] ss:$2 sm:$0xf]
        %s6601 = scalar_lea.vmem [#allocation7], 33
        %v6602 = vld [vmem:[%s6601] ss:$2 sm:$0xf]
        %s6603 = scalar_lea.vmem [#allocation7], 41
        %v6604 = vld [vmem:[%s6603] ss:$2 sm:$0xf]
        %v6605 = vmax.f32 %v6582, %v6594
        %v6606 = vmax.f32 %v6584, %v6596
        %v6607 = vmax.f32 %v6586, %v6598
        %v6608 = vmax.f32 %v6588, %v6600
        %v6609 = vmax.f32 %v6590, %v6602
        %v6610 = vmax.f32 %v6592, %v6604
        %v6611 = vsel %vm4805, %v6605, -inf
        %v6612 = vsel %vm4805, %v6606, -inf
        %v6613 = vmax.f32 %v6611, %v6612
        %v6614 = vsel %vm4805, %v6607, -inf
        %v6615 = vsel %vm4805, %v6608, -inf
        %v6616 = vmax.f32 %v6614, %v6615
        %v6617 = vsel %vm4805, %v6609, -inf
        %v6618 = vsel %vm4805, %v6610, -inf
        %v6619 = vmax.f32 %v6617, %v6618
        %v6620 = vadd.f32 %v6613, %v6616
        %v6621 = vadd.f32 %v6620, %v6619
        %v6623 = vrot.slane %v6621, 1
        %v6625 = vadd.f32 %v6621, %v6623
        %v6626 = vrot.slane %v6621, 2
        %v6628 = vadd.f32 %v6625, %v6626
        %v6629 = vmul.f32 %v6628, 0.11111111
        %v6630 = vpack.c.bf16 %v6629, %v6629
        %v6631 = vld [vmem:[%s9] sm:$0xf]
        %v6632 = vld [vmem:[%s9 + $0x4] sm:$0xf]
        %v6633 = vld [vmem:[%s9 + $0x8] sm:$0xf]
        %v6634 = vld [vmem:[%s9 + $0xc] sm:$0xf]
        %v6635 = vld [vmem:[%s9 + $0x10] sm:$0xf]
        %v6636 = vld [vmem:[%s9 + $0x14] sm:$0xf]
        %v6637 = vld [vmem:[%s9 + $0x18] sm:$0xf]
        %v6638 = vld [vmem:[%s9 + $0x1c] sm:$0xf]
        %v6639 = vld [vmem:[%s10] sm:$0x1]
        %v6648 = vunpack.c.l.b16 %v6631
        %v6649 = vunpack.c.l.b16 %v6632
        %v6650 = vunpack.c.l.b16 %v6633
        %v6651 = vunpack.c.l.b16 %v6634
        %v6652 = vunpack.c.l.b16 %v6635
        %v6653 = vunpack.c.l.b16 %v6636
        %v6654 = vunpack.c.l.b16 %v6637
        %v6655 = vunpack.c.l.b16 %v6638
        %v6656 = vpack.c.b16 %v6649, %v6648
        %v6657 = vpack.c.b16 %v6651, %v6650
        %v6658 = vpack.c.b16 %v6653, %v6652
        %v6659 = vpack.c.b16 %v6655, %v6654
        %v6665 = vsel %vm3650, %v6630, 0
        %6667 = vmatprep.subr.bf16.mxu0 0
        %6668 = vmatpush1.bf16.msra.mxu0 0
        %6669 = vmatprep.subr.bf16.mxu0 0
        %6670 = vmatpush1.bf16.msra.mxu0 0
        %6671 = vmatprep.subr.bf16.mxu0 0
        %6672 = vmatpush1.bf16.msra.mxu0 0
        %6673 = vmatprep.subr.bf16.mxu0 0
        %6674 = vmatpush1.bf16.msra.mxu0 0
        %6675 = vmatprep.subr.bf16.mxu0 0
        %6676 = vmatpush1.bf16.msra.mxu0 %v6659
        %6677 = vmatprep.subr.bf16.mxu0 0
        %6678 = vmatpush1.bf16.msra.mxu0 %v6658
        %6679 = vmatprep.subr.bf16.mxu0 0
        %6680 = vmatpush1.bf16.msra.mxu0 %v6657
        %6681 = vmatprep.subr.bf16.mxu0 0
        %6682 = vmatpush1.bf16.msra.mxu0 %v6656
        %6683 = vmatprep.subr.bf16.mxu0 0
        %6684 = vmatpush2.bf16.msra.mxu0 0
        %6685 = vmatprep.subr.bf16.mxu0 0
        %6686 = vmatpush2.bf16.msra.mxu0 0
        %6687 = vmatprep.subr.bf16.mxu0 0
        %6688 = vmatpush2.bf16.msra.mxu0 0
        %6689 = vmatprep.subr.bf16.mxu0 0
        %6690 = vmatpush2.bf16.msra.mxu0 0
        %6691 = vmatprep.subr.bf16.mxu0 0
        %6692 = vmatpush2.bf16.msra.mxu0 0
        %6693 = vmatprep.subr.bf16.mxu0 0
        %6694 = vmatpush2.bf16.msra.mxu0 0
        %6695 = vmatprep.subr.bf16.mxu0 0
        %6696 = vmatpush2.bf16.msra.mxu0 0
        %6697 = vmatprep.subr.bf16.mxu0 0
        %6698 = vmatpush2.bf16.msra.mxu0 0
        %6699 = vmatprep.mubr.bf16.mxu0 0
        %6700 = vmatmul.mubr.bf16.gmra.mxu0 %v6665
        %v6701 = vpop.f32.mrf.mxu0
        %v6702 = vadd.f32 %v6639, %v6701
        %v6703 = vpop.f32.mrf.mxu0
        %v6704 = vpop.f32.mrf.mxu0
        %v6705 = vpop.f32.mrf.mxu0
        %6706 = vdwg.mxu0
        %v6707 = vmax.f32 %v6702, 0.0
        %v6708 = vpack.c.bf16 %v6707, %v6707
        %v6709 = vld [vmem:[%s11] sm:$0xf]
        %v6710 = vld [vmem:[%s11 + $0x4] sm:$0xf]
        %v6711 = vld [vmem:[%s11 + $0x8] sm:$0xf]
        %v6712 = vld [vmem:[%s11 + $0xc] sm:$0xf]
        %v6713 = vld [vmem:[%s11 + $0x10] sm:$0xf]
        %v6714 = vld [vmem:[%s11 + $0x14] sm:$0xf]
        %v6715 = vld [vmem:[%s11 + $0x18] sm:$0xf]
        %v6716 = vld [vmem:[%s11 + $0x1c] sm:$0xf]
        %v6717 = vld [vmem:[%s11 + $0x20] sm:$0xf]
        %v6718 = vld [vmem:[%s11 + $0x24] sm:$0xf]
        %v6719 = vld [vmem:[%s11 + $0x28] sm:$0xf]
        %v6720 = vld [vmem:[%s11 + $0x2c] sm:$0xf]
        %v6721 = vld [vmem:[%s11 + $0x30] sm:$0xf]
        %v6722 = vld [vmem:[%s11 + $0x34] sm:$0xf]
        %v6723 = vld [vmem:[%s11 + $0x38] sm:$0xf]
        %v6724 = vld [vmem:[%s11 + $0x3c] sm:$0xf]
        %v6725 = vld [vmem:[%s12] sm:$0x1]
        %v6742 = vunpack.c.l.b16 %v6709
        %v6743 = vunpack.c.l.b16 %v6710
        %v6744 = vunpack.c.l.b16 %v6711
        %v6745 = vunpack.c.l.b16 %v6712
        %v6746 = vunpack.c.l.b16 %v6713
        %v6747 = vunpack.c.l.b16 %v6714
        %v6748 = vunpack.c.l.b16 %v6715
        %v6749 = vunpack.c.l.b16 %v6716
        %v6750 = vunpack.c.l.b16 %v6717
        %v6751 = vunpack.c.l.b16 %v6718
        %v6752 = vunpack.c.l.b16 %v6719
        %v6753 = vunpack.c.l.b16 %v6720
        %v6754 = vunpack.c.l.b16 %v6721
        %v6755 = vunpack.c.l.b16 %v6722
        %v6756 = vunpack.c.l.b16 %v6723
        %v6757 = vunpack.c.l.b16 %v6724
        %v6758 = vpack.c.b16 %v6743, %v6742
        %v6759 = vpack.c.b16 %v6745, %v6744
        %v6760 = vpack.c.b16 %v6747, %v6746
        %v6761 = vpack.c.b16 %v6749, %v6748
        %v6762 = vpack.c.b16 %v6751, %v6750
        %v6763 = vpack.c.b16 %v6753, %v6752
        %v6764 = vpack.c.b16 %v6755, %v6754
        %v6765 = vpack.c.b16 %v6757, %v6756
        %6774 = vmatprep.subr.bf16.mxu0 0
        %6775 = vmatpush1.bf16.msra.mxu0 %v6765
        %6776 = vmatprep.subr.bf16.mxu0 0
        %6777 = vmatpush1.bf16.msra.mxu0 %v6764
        %6778 = vmatprep.subr.bf16.mxu0 0
        %6779 = vmatpush1.bf16.msra.mxu0 %v6763
        %6780 = vmatprep.subr.bf16.mxu0 0
        %6781 = vmatpush1.bf16.msra.mxu0 %v6762
        %6782 = vmatprep.subr.bf16.mxu0 0
        %6783 = vmatpush1.bf16.msra.mxu0 %v6761
        %6784 = vmatprep.subr.bf16.mxu0 0
        %6785 = vmatpush1.bf16.msra.mxu0 %v6760
        %6786 = vmatprep.subr.bf16.mxu0 0
        %6787 = vmatpush1.bf16.msra.mxu0 %v6759
        %6788 = vmatprep.subr.bf16.mxu0 0
        %6789 = vmatpush1.bf16.msra.mxu0 %v6758
        %6790 = vmatprep.subr.bf16.mxu0 0
        %6791 = vmatpush2.bf16.msra.mxu0 0
        %6792 = vmatprep.subr.bf16.mxu0 0
        %6793 = vmatpush2.bf16.msra.mxu0 0
        %6794 = vmatprep.subr.bf16.mxu0 0
        %6795 = vmatpush2.bf16.msra.mxu0 0
        %6796 = vmatprep.subr.bf16.mxu0 0
        %6797 = vmatpush2.bf16.msra.mxu0 0
        %6798 = vmatprep.subr.bf16.mxu0 0
        %6799 = vmatpush2.bf16.msra.mxu0 0
        %6800 = vmatprep.subr.bf16.mxu0 0
        %6801 = vmatpush2.bf16.msra.mxu0 0
        %6802 = vmatprep.subr.bf16.mxu0 0
        %6803 = vmatpush2.bf16.msra.mxu0 0
        %6804 = vmatprep.subr.bf16.mxu0 0
        %6805 = vmatpush2.bf16.msra.mxu0 0
        %6806 = vmatprep.mubr.bf16.mxu0 0
        %6807 = vmatmul.mubr.bf16.gmra.mxu0 %v6708
        %v6808 = vpop.f32.mrf.mxu0
        %v6809 = vadd.f32 %v6725, %v6808
        %v6810 = vpop.f32.mrf.mxu0
        %v6811 = vpop.f32.mrf.mxu0
        %v6812 = vpop.f32.mrf.mxu0
        %6813 = vdwg.mxu0
        %6814 = vst.msk [vmem:[%s432] sm:$0x1] %vm442, %v6809
        %s6815 = sand.u32 %s313, 1
        %s6816 = scalar_lea.sflag [#allocation9], %s6815
        %s6817 = sand.u32 %s313, 1
        %s6818 = scalar_lea.vmem [#allocation8], %s6817
        // Predicated region
        $region73: #{convnet_forward.1} parent=71 // pred_check
          %p6819 = pneg %p323
        $region74: #{convnet_forward.1} parent=71 // pred_check_branch
          %6821 = sbr.rel (%p6819) target = $region76
        $region75: #{convnet_forward.1} parent=71 // pred_region
          %s6823 = ssub.s32 16, 16
          %6824 = vsyncadd %s6816, %s6823
          %s6825 = smul.addr %s27, 16
          %s6826 = scalar_lea.hbm %s13, %s6825
          %s6828 = sshll.u32 %s6818, 4
          %s6829 = int_to_ptr.vmem [resolvable:$true] %s6828
          %6831 = dma.vmem_to_hbm [thread:$0]  %s6829, 16, %s6826, %s6816
        $region76: #{convnet_forward.1} parent=71 // pred_fallthru
          _
      $region72: #{convnet_forward.1} parent=5 // pred_fallthru
        _
      %p6832 = scmp.le.s32.totalorder 2, %s22
      // Predicated region
      $region77: #{convnet_forward.1} parent=5 // pred_check
        %p6833 = pneg %p6832
      $region78: #{convnet_forward.1} parent=5 // pred_check_branch
        %6835 = sbr.rel (%p6833) target = $region80
      $region79: #{convnet_forward.1} parent=5 // pred_region
        %s6836 = ssub.s32 %s22, 2
        // Predicated region
        $region81: #{convnet_forward.1} parent=79 // pred_check
          %p6837 = pneg %p329
        $region82: #{convnet_forward.1} parent=79 // pred_check_branch
          %6839 = sbr.rel (%p6837) target = $region84
        $region83: #{convnet_forward.1} parent=79 // pred_region
          %s6840 = sand.u32 %s314, 1
          %s6841 = scalar_lea.sflag [#allocation9], %s6840
          %s6842 = sand.u32 %s314, 1
          %s6843 = scalar_lea.vmem [#allocation8], %s6842
          %6844 = dma.done %s6841, 16
        $region84: #{convnet_forward.1} parent=79 // pred_fallthru
          _
      $region80: #{convnet_forward.1} parent=5 // pred_fallthru
        _
    $region6: #{convnet_forward.1} parent=1 // loop_footer
      %s26 = sadd.s32 1, %s22
    $region7: #{convnet_forward.1} parent=1 // loop_footer_branch
      %21 = sbr.rel target = $region3
    $region8: #{convnet_forward.1} parent=1 // loop_exit
      _
    %6845 = vsyncpa [#allocation9], 1
    %s6846 = scalar_lea.sflag [#allocation9], 1
    %6847 = vsyncpa %s6846, 1

</llo_original>
